<compile_context>
chip_gen: v7x
topology: tpu7x:2x2x1
jax: 0.10.0
libtpu: 0.0.40
codegen_flags: <defaults>
</compile_context>

<pallas_src>
import functools
import math
from dataclasses import dataclass

import jax
import jax.numpy as jnp
from jax.experimental import pallas as pl
from jax.experimental.pallas import tpu as pltpu


# ----------------------------- config ---------------------------------------
@dataclass
class GPTConfig:
    block_size: int = 64
    vocab_size: int = 128      # multiple of 128 -> lane-dense logits
    n_layer: int = 2
    n_head: int = 4
    n_embd: int = 128          # multiple of 128 -> lane-dense activations


# ----------------------------- shared math (kernel + reference) --------------
def _layernorm(x, w, b, eps=1e-5):
    mu = jnp.mean(x, axis=-1, keepdims=True)
    var = jnp.mean(jnp.square(x - mu), axis=-1, keepdims=True)
    return (x - mu) * jax.lax.rsqrt(var + eps) * w + b


def _gelu_tanh(x):
    c = math.sqrt(2.0 / math.pi)
    return 0.5 * x * (1.0 + jnp.tanh(c * (x + 0.044715 * x * x * x)))


def _mm(x_f32, w_bf16):
    # bf16 x bf16 -> f32 accumulation on the MXU
    return jnp.dot(x_f32.astype(jnp.bfloat16), w_bf16,
                   preferred_element_type=jnp.float32)


def _causal_bias(T):
    row = jax.lax.broadcasted_iota(jnp.int32, (T, T), 0)
    col = jax.lax.broadcasted_iota(jnp.int32, (T, T), 1)
    return jnp.where(row >= col, 0.0, -1e30).astype(jnp.float32)


def _block_rows(x, bias3, ln1w, ln1b, wqkv, bqkv, wpro, bpro,
                ln2w, ln2b, wfc, bfc, wpr2, bpr2,
                *, n_head, b_blk, seq, recip=None):
    """One transformer block on a (b_blk*seq, C) row batch."""
    if recip is None:
        recip = lambda t: 1.0 / t
    R, C = x.shape
    hd = C // n_head
    scale = 1.0 / math.sqrt(hd)

    # --- attention branch (row-batched qkv matmul, sequence-batched attn) ---
    xn = _layernorm(x, ln1w, ln1b)
    qkv = _mm(xn, wqkv) + bqkv                                  # (R, 3C) f32
    q = qkv[:, 0 * C:1 * C].reshape(b_blk, seq, C)
    k = qkv[:, 1 * C:2 * C].reshape(b_blk, seq, C)
    v = qkv[:, 2 * C:3 * C].reshape(b_blk, seq, C)

    y_heads = []
    for h in range(n_head):                                      # short static loop
        sl = slice(h * hd, (h + 1) * hd)
        qh = q[:, :, sl].astype(jnp.bfloat16)                    # (b_blk, seq, hd)
        kh = k[:, :, sl].astype(jnp.bfloat16)
        vh = v[:, :, sl].astype(jnp.bfloat16)
        s = jnp.einsum('btd,bsd->bts', qh, kh,
                       preferred_element_type=jnp.float32) * scale
        s = s + bias3                                            # additive causal mask
        s = s - jnp.max(s, axis=-1, keepdims=True)
        p = jnp.exp(s)
        p = p * recip(jnp.sum(p, axis=-1, keepdims=True))
        y_heads.append(jnp.einsum('bts,bsd->btd', p.astype(jnp.bfloat16), vh,
                                  preferred_element_type=jnp.float32))
    y = jnp.concatenate(y_heads, axis=-1).reshape(R, C)

    x = x + _mm(y, wpro) + bpro

    # --- MLP branch ---
    xn2 = _layernorm(x, ln2w, ln2b)
    h1 = _gelu_tanh(_mm(xn2, wfc) + bfc)                         # (R, 4C)
    x = x + _mm(h1, wpr2) + bpr2
    return x


def _lm_head_rows(x, lnfw, lnfb, wte_t_bf16):
    # wte already pre-transposed once to (C, V) in prepare_params
    xn = _layernorm(x, lnfw, lnfb)
    return _mm(xn, wte_t_bf16)


# ----------------------------- fused Pallas kernel ---------------------------
def gpt_kernel(n_head, b_blk, seq,
               x_ref, bias_ref,
               ln1w_ref, ln1b_ref, wqkv_ref, bqkv_ref,
               wpro_ref, bpro_ref, ln2w_ref, ln2b_ref,
               wfc_ref, bfc_ref, wpr2_ref, bpr2_ref,
               lnfw_ref, lnfb_ref, wte_t_ref,
               logits_ref,
               x_scr):
    l = pl.program_id(1)
    n_layer = pl.num_programs(1)
    R, C = x_scr.shape

    # init: load the embedding block into the residual scratch at layer 0
    @pl.when(l == 0)
    def _():
        x_scr[...] = x_ref[...].reshape(R, C)

    bias3 = jnp.broadcast_to(bias_ref[...][None], (b_blk, seq, seq))

    x = _block_rows(x_scr[...], bias3,
                    ln1w_ref[0], ln1b_ref[0], wqkv_ref[0], bqkv_ref[0],
                    wpro_ref[0], bpro_ref[0], ln2w_ref[0], ln2b_ref[0],
                    wfc_ref[0], bfc_ref[0], wpr2_ref[0], bpr2_ref[0],
                    n_head=n_head, b_blk=b_blk, seq=seq,
                    recip=lambda t: pl.reciprocal(t, approx=True))
    x_scr[...] = x

    # finalize: LN_f + weight-tied lm_head on the last layer step
    @pl.when(l == n_layer - 1)
    def _():
        logits = _lm_head_rows(x, lnfw_ref[...], lnfb_ref[...], wte_t_ref[...])
        logits_ref[...] = logits.reshape(b_blk, seq, -1)


# ----------------------------- wrapper ---------------------------------------
def prepare_params(params):
    """One-time kernel-ready weights: bf16 matmul weights + (C, V) wte.T."""
    bf = lambda a: a.astype(jnp.bfloat16)
    return {
        'wte_f32': params['wte'], 'wpe': params['wpe'],
        'ln1w': params['ln1w'], 'ln1b': params['ln1b'],
        'wqkv': bf(params['wqkv']), 'bqkv': params['bqkv'],
        'wpro': bf(params['wpro']), 'bpro': params['bpro'],
        'ln2w': params['ln2w'], 'ln2b': params['ln2b'],
        'wfc': bf(params['wfc']), 'bfc': params['bfc'],
        'wpr2': bf(params['wpr2']), 'bpr2': params['bpr2'],
        'lnfw': params['lnfw'], 'lnfb': params['lnfb'],
        'wte_t': bf(params['wte'].T),
    }


def gpt_forward(prepared, idx, cfg: GPTConfig, targets=None, b_blk=None):
    B, T = idx.shape
    assert T <= cfg.block_size
    assert cfg.n_embd % cfg.n_head == 0
    C, V, L, H = cfg.n_embd, cfg.vocab_size, cfg.n_layer, cfg.n_head

    # >=2 grid steps on the parallel batch axis (both v7x TCs), rows = b_blk*T
    if b_blk is None:
        b_blk = B // 2 if (B % 2 == 0 and B >= 2) else B
    assert B % b_blk == 0
    nb = B // b_blk

    # TODO(synk): embedding gather is plain-JAX glue
    x = prepared['wte_f32'][idx] + prepared['wpe'][:T][None]     # (B, T, C) f32
    bias = _causal_bias(T)                                       # computed once/call

    layer_w = (prepared['ln1w'], prepared['ln1b'],
               prepared['wqkv'], prepared['bqkv'],
               prepared['wpro'], prepared['bpro'],
               prepared['ln2w'], prepared['ln2b'],
               prepared['wfc'], prepared['bfc'],
               prepared['wpr2'], prepared['bpr2'])
    final_w = (prepared['lnfw'], prepared['lnfb'], prepared['wte_t'])

    def layer_spec(a):  # per-layer weight: streamed along the layer grid axis
        nd = a.ndim
        return pl.BlockSpec((1,) + a.shape[1:],
                            lambda b, l, _nd=nd: (l,) + (0,) * (_nd - 1))

    def const_spec(a):  # grid-invariant input
        nd = a.ndim
        return pl.BlockSpec(a.shape, lambda b, l, _nd=nd: (0,) * _nd)

    in_specs = ([pl.BlockSpec((b_blk, T, C), lambda b, l: (b, 0, 0)),
                 const_spec(bias)]
                + [layer_spec(a) for a in layer_w]
                + [const_spec(a) for a in final_w])

    logits = pl.pallas_call(
        functools.partial(gpt_kernel, H, b_blk, T),
        out_shape=jax.ShapeDtypeStruct((B, T, V), jnp.float32),
        grid=(nb, L),
        in_specs=in_specs,
        out_specs=pl.BlockSpec((b_blk, T, V), lambda b, l: (b, 0, 0)),
        scratch_shapes=[pltpu.VMEM((b_blk * T, C), jnp.float32)],
        compiler_params=pltpu.CompilerParams(
            dimension_semantics=("parallel", "arbitrary")),
    )(x, bias, *layer_w, *final_w)

    loss = None
    if targets is not None:
        # TODO(synk): cross-entropy is plain-JAX glue (matches F.cross_entropy)
        lse = jax.scipy.special.logsumexp(logits, axis=-1)
        nll = lse - jnp.take_along_axis(logits, targets[..., None],
                                        axis=-1)[..., 0]
        loss = jnp.mean(nll)
    return logits, loss


# ----------------------------- pure-JAX reference ----------------------------
def gpt_forward_ref(prepared, idx, cfg: GPTConfig):
    B, T = idx.shape
    C, V = cfg.n_embd, cfg.vocab_size
    x = prepared['wte_f32'][idx] + prepared['wpe'][:T][None]
    bias3 = jnp.broadcast_to(_causal_bias(T)[None], (B, T, T))
    xr = x.reshape(B * T, C)
    for l in range(cfg.n_layer):
        xr = _block_rows(xr, bias3,
                         prepared['ln1w'][l], prepared['ln1b'][l],
                         prepared['wqkv'][l], prepared['bqkv'][l],
                         prepared['wpro'][l], prepared['bpro'][l],
                         prepared['ln2w'][l], prepared['ln2b'][l],
                         prepared['wfc'][l], prepared['bfc'][l],
                         prepared['wpr2'][l], prepared['bpr2'][l],
                         n_head=cfg.n_head, b_blk=B, seq=T)
    logits = _lm_head_rows(xr, prepared['lnfw'], prepared['lnfb'],
                           prepared['wte_t'])
    return logits.reshape(B, T, V)


# ----------------------------- parameter init --------------------------------
def init_params(key, cfg: GPTConfig):
    C, V, L, BS = cfg.n_embd, cfg.vocab_size, cfg.n_layer, cfg.block_size
    std = 0.02
    std_proj = std * (2 * L) ** -0.5
    k = jax.random.split(key, 6)
    return {
        'wte': std * jax.random.normal(k[0], (V, C), jnp.float32),
        'wpe': std * jax.random.normal(k[1], (BS, C), jnp.float32),
        'ln1w': jnp.ones((L, 1, C), jnp.float32),
        'ln1b': jnp.zeros((L, 1, C), jnp.float32),
        'wqkv': std * jax.random.normal(k[2], (L, C, 3 * C), jnp.float32),
        'bqkv': jnp.zeros((L, 1, 3 * C), jnp.float32),
        'wpro': std_proj * jax.random.normal(k[3], (L, C, C), jnp.float32),
        'bpro': jnp.zeros((L, 1, C), jnp.float32),
        'ln2w': jnp.ones((L, 1, C), jnp.float32),
        'ln2b': jnp.zeros((L, 1, C), jnp.float32),
        'wfc': std * jax.random.normal(k[4], (L, C, 4 * C), jnp.float32),
        'bfc': jnp.zeros((L, 1, 4 * C), jnp.float32),
        'wpr2': std_proj * jax.random.normal(k[5], (L, 4 * C, C), jnp.float32),
        'bpr2': jnp.zeros((L, 1, C), jnp.float32),
        'lnfw': jnp.ones((1, C), jnp.float32),
        'lnfb': jnp.zeros((1, C), jnp.float32),
    }


# ----------------------------- main ------------------------------------------
if __name__ == "__main__":
    cfg = GPTConfig()
    key = jax.random.PRNGKey(0)
    kp, ki, kt = jax.random.split(key, 3)

    params = init_params(kp, cfg)
    prepared = prepare_params(params)          # one-time bf16 cast + wte.T

    B, T = 4, cfg.block_size                   # 4 sequences x 64 tokens
    idx = jax.random.randint(ki, (B, T), 0, cfg.vocab_size, dtype=jnp.int32)
    targets = jax.random.randint(kt, (B, T), 0, cfg.vocab_size, dtype=jnp.int32)

    fwd = jax.jit(lambda p, i, t: gpt_forward(p, i, cfg, targets=t))
    logits, loss = fwd(prepared, idx, targets)
    jax.block_until_ready(logits)
    jax.block_until_ready(loss)

    logits_ref = jax.jit(lambda p, i: gpt_forward_ref(p, i, cfg))(prepared, idx)
    jax.block_until_ready(logits_ref)

    assert logits.shape == (B, T, cfg.vocab_size)
    assert bool(jnp.all(jnp.isfinite(logits))) and bool(jnp.isfinite(loss))
    assert bool(jnp.allclose(logits, logits_ref, atol=1e-2, rtol=1e-2))

    print("KERNEL_OK")
</pallas_src>

<mosaic_0001>
module attributes {stable_mosaic.version = 11 : i64} {
  func.func @gpt_kernel(%arg0: i32, %arg1: i32, %arg2: memref<2x64x128xf32, #tpu.memory_space<vmem>>, %arg3: memref<64x64xf32, #tpu.memory_space<vmem>>, %arg4: memref<1x1x128xf32, #tpu.memory_space<vmem>>, %arg5: memref<1x1x128xf32, #tpu.memory_space<vmem>>, %arg6: memref<1x128x384xbf16, #tpu.memory_space<vmem>>, %arg7: memref<1x1x384xf32, #tpu.memory_space<vmem>>, %arg8: memref<1x128x128xbf16, #tpu.memory_space<vmem>>, %arg9: memref<1x1x128xf32, #tpu.memory_space<vmem>>, %arg10: memref<1x1x128xf32, #tpu.memory_space<vmem>>, %arg11: memref<1x1x128xf32, #tpu.memory_space<vmem>>, %arg12: memref<1x128x512xbf16, #tpu.memory_space<vmem>>, %arg13: memref<1x1x512xf32, #tpu.memory_space<vmem>>, %arg14: memref<1x512x128xbf16, #tpu.memory_space<vmem>>, %arg15: memref<1x1x128xf32, #tpu.memory_space<vmem>>, %arg16: memref<1x128xf32, #tpu.memory_space<vmem>>, %arg17: memref<1x128xf32, #tpu.memory_space<vmem>>, %arg18: memref<128x128xbf16, #tpu.memory_space<vmem>>, %arg19: memref<2x64x128xf32, #tpu.memory_space<vmem>>, %arg20: memref<128x128xf32, #tpu.memory_space<vmem>>) attributes {dimension_semantics = [#tpu.dimension_semantics<parallel>, #tpu.dimension_semantics<arbitrary>], iteration_bounds = array<i64: 2, 2>, scalar_prefetch = 0 : i64, scratch_operands = 1 : i64, tpu.core_type = #tpu.core_type<tc>, window_params = [{transform_indices = @transform_0, window_bounds = array<i64: 2, 64, 128>}, {pipeline_mode = #tpu.pipeline_mode<synchronous>, transform_indices = @transform_1, window_bounds = array<i64: 64, 64>}, {transform_indices = @transform_2, window_bounds = array<i64: 1, 1, 128>}, {transform_indices = @transform_3, window_bounds = array<i64: 1, 1, 128>}, {transform_indices = @transform_4, window_bounds = array<i64: 1, 128, 384>}, {transform_indices = @transform_5, window_bounds = array<i64: 1, 1, 384>}, {transform_indices = @transform_6, window_bounds = array<i64: 1, 128, 128>}, {transform_indices = @transform_7, window_bounds = array<i64: 1, 1, 128>}, {transform_indices = @transform_8, window_bounds = array<i64: 1, 1, 128>}, {transform_indices = @transform_9, window_bounds = array<i64: 1, 1, 128>}, {transform_indices = @transform_10, window_bounds = array<i64: 1, 128, 512>}, {transform_indices = @transform_11, window_bounds = array<i64: 1, 1, 512>}, {transform_indices = @transform_12, window_bounds = array<i64: 1, 512, 128>}, {transform_indices = @transform_13, window_bounds = array<i64: 1, 1, 128>}, {pipeline_mode = #tpu.pipeline_mode<synchronous>, transform_indices = @transform_14, window_bounds = array<i64: 1, 128>}, {pipeline_mode = #tpu.pipeline_mode<synchronous>, transform_indices = @transform_15, window_bounds = array<i64: 1, 128>}, {pipeline_mode = #tpu.pipeline_mode<synchronous>, transform_indices = @transform_16, window_bounds = array<i64: 128, 128>}, {transform_indices = @transform_17, window_bounds = array<i64: 2, 64, 128>}]} {
    %c0_i32 = arith.constant 0 : i32
    %0 = arith.cmpi eq, %arg1, %c0_i32 : i32
    %1 = arith.extui %0 : i1 to i32
    %c0_i32_0 = arith.constant 0 : i32
    %2 = arith.cmpi ne, %1, %c0_i32_0 : i32
    scf.if %2 {
      %c0_80 = arith.constant 0 : index
      %c0_81 = arith.constant 0 : index
      %c0_82 = arith.constant 0 : index
      %207 = vector.load %arg2[%c0_80, %c0_81, %c0_82] : memref<2x64x128xf32, #tpu.memory_space<vmem>>, vector<2x64x128xf32>
      %208 = vector.shape_cast %207 : vector<2x64x128xf32> to vector<128x128xf32>
      %c0_83 = arith.constant 0 : index
      %c0_84 = arith.constant 0 : index
      %209 = vector.load %arg20[%c0_83, %c0_84] : memref<128x128xf32, #tpu.memory_space<vmem>>, vector<128x128xf32>
      tpu.vector_store %arg20[%c0_83, %c0_84], %208 {strides = array<i32>} : memref<128x128xf32, #tpu.memory_space<vmem>>, vector<128x128xf32>,
    } else {
    }
    %c0 = arith.constant 0 : index
    %c0_1 = arith.constant 0 : index
    %3 = vector.load %arg3[%c0, %c0_1] : memref<64x64xf32, #tpu.memory_space<vmem>>, vector<64x64xf32>
    %4 = vector.shape_cast %3 : vector<64x64xf32> to vector<1x64x64xf32>
    %5 = vector.shape_cast %4 : vector<1x64x64xf32> to vector<1x64x64xf32>
    %6 = vector.broadcast %5 : vector<1x64x64xf32> to vector<2x64x64xf32>
    %c0_2 = arith.constant 0 : index
    %c0_3 = arith.constant 0 : index
    %7 = vector.load %arg20[%c0_2, %c0_3] : memref<128x128xf32, #tpu.memory_space<vmem>>, vector<128x128xf32>
    %c0_4 = arith.constant 0 : index
    %c0_5 = arith.constant 0 : index
    %c0_6 = arith.constant 0 : index
    %8 = vector.load %arg4[%c0_4, %c0_5, %c0_6] : memref<1x1x128xf32, #tpu.memory_space<vmem>>, vector<1x1x128xf32>
    %9 = vector.shape_cast %8 : vector<1x1x128xf32> to vector<1x128xf32>
    %c0_7 = arith.constant 0 : index
    %c0_8 = arith.constant 0 : index
    %c0_9 = arith.constant 0 : index
    %10 = vector.load %arg5[%c0_7, %c0_8, %c0_9] : memref<1x1x128xf32, #tpu.memory_space<vmem>>, vector<1x1x128xf32>
    %11 = vector.shape_cast %10 : vector<1x1x128xf32> to vector<1x128xf32>
    %c0_10 = arith.constant 0 : index
    %c0_11 = arith.constant 0 : index
    %c0_12 = arith.constant 0 : index
    %12 = vector.load %arg6[%c0_10, %c0_11, %c0_12] : memref<1x128x384xbf16, #tpu.memory_space<vmem>>, vector<1x128x384xbf16>
    %13 = vector.shape_cast %12 : vector<1x128x384xbf16> to vector<128x384xbf16>
    %c0_13 = arith.constant 0 : index
    %c0_14 = arith.constant 0 : index
    %c0_15 = arith.constant 0 : index
    %14 = vector.load %arg7[%c0_13, %c0_14, %c0_15] : memref<1x1x384xf32, #tpu.memory_space<vmem>>, vector<1x1x384xf32>
    %15 = vector.shape_cast %14 : vector<1x1x384xf32> to vector<1x384xf32>
    %c0_16 = arith.constant 0 : index
    %c0_17 = arith.constant 0 : index
    %c0_18 = arith.constant 0 : index
    %16 = vector.load %arg8[%c0_16, %c0_17, %c0_18] : memref<1x128x128xbf16, #tpu.memory_space<vmem>>, vector<1x128x128xbf16>
    %17 = vector.shape_cast %16 : vector<1x128x128xbf16> to vector<128x128xbf16>
    %c0_19 = arith.constant 0 : index
    %c0_20 = arith.constant 0 : index
    %c0_21 = arith.constant 0 : index
    %18 = vector.load %arg9[%c0_19, %c0_20, %c0_21] : memref<1x1x128xf32, #tpu.memory_space<vmem>>, vector<1x1x128xf32>
    %19 = vector.shape_cast %18 : vector<1x1x128xf32> to vector<1x128xf32>
    %c0_22 = arith.constant 0 : index
    %c0_23 = arith.constant 0 : index
    %c0_24 = arith.constant 0 : index
    %20 = vector.load %arg10[%c0_22, %c0_23, %c0_24] : memref<1x1x128xf32, #tpu.memory_space<vmem>>, vector<1x1x128xf32>
    %21 = vector.shape_cast %20 : vector<1x1x128xf32> to vector<1x128xf32>
    %c0_25 = arith.constant 0 : index
    %c0_26 = arith.constant 0 : index
    %c0_27 = arith.constant 0 : index
    %22 = vector.load %arg11[%c0_25, %c0_26, %c0_27] : memref<1x1x128xf32, #tpu.memory_space<vmem>>, vector<1x1x128xf32>
    %23 = vector.shape_cast %22 : vector<1x1x128xf32> to vector<1x128xf32>
    %c0_28 = arith.constant 0 : index
    %c0_29 = arith.constant 0 : index
    %c0_30 = arith.constant 0 : index
    %24 = vector.load %arg12[%c0_28, %c0_29, %c0_30] : memref<1x128x512xbf16, #tpu.memory_space<vmem>>, vector<1x128x512xbf16>
    %25 = vector.shape_cast %24 : vector<1x128x512xbf16> to vector<128x512xbf16>
    %c0_31 = arith.constant 0 : index
    %c0_32 = arith.constant 0 : index
    %c0_33 = arith.constant 0 : index
    %26 = vector.load %arg13[%c0_31, %c0_32, %c0_33] : memref<1x1x512xf32, #tpu.memory_space<vmem>>, vector<1x1x512xf32>
    %27 = vector.shape_cast %26 : vector<1x1x512xf32> to vector<1x512xf32>
    %c0_34 = arith.constant 0 : index
    %c0_35 = arith.constant 0 : index
    %c0_36 = arith.constant 0 : index
    %28 = vector.load %arg14[%c0_34, %c0_35, %c0_36] : memref<1x512x128xbf16, #tpu.memory_space<vmem>>, vector<1x512x128xbf16>
    %29 = vector.shape_cast %28 : vector<1x512x128xbf16> to vector<512x128xbf16>
    %c0_37 = arith.constant 0 : index
    %c0_38 = arith.constant 0 : index
    %c0_39 = arith.constant 0 : index
    %30 = vector.load %arg15[%c0_37, %c0_38, %c0_39] : memref<1x1x128xf32, #tpu.memory_space<vmem>>, vector<1x1x128xf32>
    %31 = vector.shape_cast %30 : vector<1x1x128xf32> to vector<1x128xf32>
    %cst = arith.constant dense<0.000000e+00> : vector<128xf32>
    %32 = vector.multi_reduction <add>, %7, %cst [1] : vector<128x128xf32> to vector<128xf32>
    %33 = vector.shape_cast %32 : vector<128xf32> to vector<128x1xf32>
    %cst_40 = arith.constant 1.280000e+02 : f32
    %34 = vector.broadcast %cst_40 : f32 to vector<128x1xf32>
    %35 = arith.divf %33, %34 : vector<128x1xf32>
    %36 = vector.broadcast %35 : vector<128x1xf32> to vector<128x128xf32>
    %37 = arith.subf %7, %36 : vector<128x128xf32>
    %38 = arith.mulf %37, %37 : vector<128x128xf32>
    %cst_41 = arith.constant dense<0.000000e+00> : vector<128xf32>
    %39 = vector.multi_reduction <add>, %38, %cst_41 [1] : vector<128x128xf32> to vector<128xf32>
    %40 = vector.shape_cast %39 : vector<128xf32> to vector<128x1xf32>
    %cst_42 = arith.constant 1.280000e+02 : f32
    %41 = vector.broadcast %cst_42 : f32 to vector<128x1xf32>
    %42 = arith.divf %40, %41 : vector<128x1xf32>
    %43 = vector.broadcast %35 : vector<128x1xf32> to vector<128x128xf32>
    %44 = arith.subf %7, %43 : vector<128x128xf32>
    %cst_43 = arith.constant 9.99999974E-6 : f32
    %45 = vector.broadcast %cst_43 : f32 to vector<128x1xf32>
    %46 = arith.addf %42, %45 : vector<128x1xf32>
    %47 = math.rsqrt %46 : vector<128x1xf32>
    %48 = vector.broadcast %47 : vector<128x1xf32> to vector<128x128xf32>
    %49 = arith.mulf %44, %48 : vector<128x128xf32>
    %50 = vector.broadcast %9 : vector<1x128xf32> to vector<128x128xf32>
    %51 = arith.mulf %49, %50 : vector<128x128xf32>
    %52 = vector.broadcast %11 : vector<1x128xf32> to vector<128x128xf32>
    %53 = arith.addf %51, %52 : vector<128x128xf32>
    %54 = arith.truncf %53 : vector<128x128xf32> to vector<128x128xbf16>
    %cst_44 = arith.constant dense<0.000000e+00> : vector<128x384xf32>
    %55 = tpu.matmul %54, %13, %cst_44 {dimension_numbers = #tpu.dot_dimension_numbers<[1], [0], [0], [1], [0, 0, 1, 1], [], []>} : vector<128x128xbf16>, vector<128x384xbf16>, vector<128x384xf32> -> vector<128x384xf32>
    %56 = vector.broadcast %15 : vector<1x384xf32> to vector<128x384xf32>
    %57 = arith.addf %55, %56 : vector<128x384xf32>
    %58 = vector.extract_strided_slice %57 {offsets = [0, 0], sizes = [128, 128], strides = [1, 1]} : vector<128x384xf32> to vector<128x128xf32>
    %59 = vector.shape_cast %58 : vector<128x128xf32> to vector<2x64x128xf32>
    %60 = vector.extract_strided_slice %57 {offsets = [0, 128], sizes = [128, 128], strides = [1, 1]} : vector<128x384xf32> to vector<128x128xf32>
    %61 = vector.shape_cast %60 : vector<128x128xf32> to vector<2x64x128xf32>
    %62 = vector.extract_strided_slice %57 {offsets = [0, 256], sizes = [128, 128], strides = [1, 1]} : vector<128x384xf32> to vector<128x128xf32>
    %63 = vector.shape_cast %62 : vector<128x128xf32> to vector<2x64x128xf32>
    %64 = vector.extract_strided_slice %59 {offsets = [0, 0, 0], sizes = [2, 64, 32], strides = [1, 1, 1]} : vector<2x64x128xf32> to vector<2x64x32xf32>
    %65 = arith.truncf %64 : vector<2x64x32xf32> to vector<2x64x32xbf16>
    %66 = vector.extract_strided_slice %61 {offsets = [0, 0, 0], sizes = [2, 64, 32], strides = [1, 1, 1]} : vector<2x64x128xf32> to vector<2x64x32xf32>
    %67 = arith.truncf %66 : vector<2x64x32xf32> to vector<2x64x32xbf16>
    %68 = vector.extract_strided_slice %63 {offsets = [0, 0, 0], sizes = [2, 64, 32], strides = [1, 1, 1]} : vector<2x64x128xf32> to vector<2x64x32xf32>
    %69 = arith.truncf %68 : vector<2x64x32xf32> to vector<2x64x32xbf16>
    "tpu.trace_start"() <{level = 10 : i32, message = "btd,bsd->bts"}> : () -> ()
    %cst_45 = arith.constant dense<0.000000e+00> : vector<2x64x64xf32>
    %70 = tpu.matmul %65, %67, %cst_45 {dimension_numbers = #tpu.dot_dimension_numbers<[2], [2], [1], [1], [0, 0, 0, 1, 1, 1], [0], [0]>} : vector<2x64x32xbf16>, vector<2x64x32xbf16>, vector<2x64x64xf32> -> vector<2x64x64xf32>
    "tpu.trace_stop"() : () -> ()
    %cst_46 = arith.constant 0.176776692 : f32
    %71 = vector.broadcast %cst_46 : f32 to vector<2x64x64xf32>
    %72 = arith.mulf %70, %71 : vector<2x64x64xf32>
    %73 = arith.addf %72, %6 : vector<2x64x64xf32>
    %cst_47 = arith.constant dense<0xFF800000> : vector<2x64xf32>
    %74 = vector.multi_reduction <maximumf>, %73, %cst_47 [2] : vector<2x64x64xf32> to vector<2x64xf32>
    %75 = vector.shape_cast %74 : vector<2x64xf32> to vector<2x64x1xf32>
    %76 = vector.broadcast %75 : vector<2x64x1xf32> to vector<2x64x64xf32>
    %77 = arith.subf %73, %76 : vector<2x64x64xf32>
    %78 = math.exp %77 : vector<2x64x64xf32>
    %cst_48 = arith.constant dense<0.000000e+00> : vector<2x64xf32>
    %79 = vector.multi_reduction <add>, %78, %cst_48 [2] : vector<2x64x64xf32> to vector<2x64xf32>
    %80 = vector.shape_cast %79 : vector<2x64xf32> to vector<2x64x1xf32>
    %81 = tpu.reciprocal %80 {approx = true} : vector<2x64x1xf32> -> vector<2x64x1xf32>
    %82 = vector.broadcast %81 : vector<2x64x1xf32> to vector<2x64x64xf32>
    %83 = arith.mulf %78, %82 : vector<2x64x64xf32>
    %84 = arith.truncf %83 : vector<2x64x64xf32> to vector<2x64x64xbf16>
    "tpu.trace_start"() <{level = 10 : i32, message = "bts,bsd->btd"}> : () -> ()
    %cst_49 = arith.constant dense<0.000000e+00> : vector<2x64x32xf32>
    %85 = tpu.matmul %84, %69, %cst_49 {dimension_numbers = #tpu.dot_dimension_numbers<[2], [1], [1], [2], [0, 0, 0, 1, 1, 2], [0], [0]>} : vector<2x64x64xbf16>, vector<2x64x32xbf16>, vector<2x64x32xf32> -> vector<2x64x32xf32>
    "tpu.trace_stop"() : () -> ()
    %86 = vector.extract_strided_slice %59 {offsets = [0, 0, 32], sizes = [2, 64, 32], strides = [1, 1, 1]} : vector<2x64x128xf32> to vector<2x64x32xf32>
    %87 = arith.truncf %86 : vector<2x64x32xf32> to vector<2x64x32xbf16>
    %88 = vector.extract_strided_slice %61 {offsets = [0, 0, 32], sizes = [2, 64, 32], strides = [1, 1, 1]} : vector<2x64x128xf32> to vector<2x64x32xf32>
    %89 = arith.truncf %88 : vector<2x64x32xf32> to vector<2x64x32xbf16>
    %90 = vector.extract_strided_slice %63 {offsets = [0, 0, 32], sizes = [2, 64, 32], strides = [1, 1, 1]} : vector<2x64x128xf32> to vector<2x64x32xf32>
    %91 = arith.truncf %90 : vector<2x64x32xf32> to vector<2x64x32xbf16>
    "tpu.trace_start"() <{level = 10 : i32, message = "btd,bsd->bts"}> : () -> ()
    %cst_50 = arith.constant dense<0.000000e+00> : vector<2x64x64xf32>
    %92 = tpu.matmul %87, %89, %cst_50 {dimension_numbers = #tpu.dot_dimension_numbers<[2], [2], [1], [1], [0, 0, 0, 1, 1, 1], [0], [0]>} : vector<2x64x32xbf16>, vector<2x64x32xbf16>, vector<2x64x64xf32> -> vector<2x64x64xf32>
    "tpu.trace_stop"() : () -> ()
    %cst_51 = arith.constant 0.176776692 : f32
    %93 = vector.broadcast %cst_51 : f32 to vector<2x64x64xf32>
    %94 = arith.mulf %92, %93 : vector<2x64x64xf32>
    %95 = arith.addf %94, %6 : vector<2x64x64xf32>
    %cst_52 = arith.constant dense<0xFF800000> : vector<2x64xf32>
    %96 = vector.multi_reduction <maximumf>, %95, %cst_52 [2] : vector<2x64x64xf32> to vector<2x64xf32>
    %97 = vector.shape_cast %96 : vector<2x64xf32> to vector<2x64x1xf32>
    %98 = vector.broadcast %97 : vector<2x64x1xf32> to vector<2x64x64xf32>
    %99 = arith.subf %95, %98 : vector<2x64x64xf32>
    %100 = math.exp %99 : vector<2x64x64xf32>
    %cst_53 = arith.constant dense<0.000000e+00> : vector<2x64xf32>
    %101 = vector.multi_reduction <add>, %100, %cst_53 [2] : vector<2x64x64xf32> to vector<2x64xf32>
    %102 = vector.shape_cast %101 : vector<2x64xf32> to vector<2x64x1xf32>
    %103 = tpu.reciprocal %102 {approx = true} : vector<2x64x1xf32> -> vector<2x64x1xf32>
    %104 = vector.broadcast %103 : vector<2x64x1xf32> to vector<2x64x64xf32>
    %105 = arith.mulf %100, %104 : vector<2x64x64xf32>
    %106 = arith.truncf %105 : vector<2x64x64xf32> to vector<2x64x64xbf16>
    "tpu.trace_start"() <{level = 10 : i32, message = "bts,bsd->btd"}> : () -> ()
    %cst_54 = arith.constant dense<0.000000e+00> : vector<2x64x32xf32>
    %107 = tpu.matmul %106, %91, %cst_54 {dimension_numbers = #tpu.dot_dimension_numbers<[2], [1], [1], [2], [0, 0, 0, 1, 1, 2], [0], [0]>} : vector<2x64x64xbf16>, vector<2x64x32xbf16>, vector<2x64x32xf32> -> vector<2x64x32xf32>
    "tpu.trace_stop"() : () -> ()
    %108 = vector.extract_strided_slice %59 {offsets = [0, 0, 64], sizes = [2, 64, 32], strides = [1, 1, 1]} : vector<2x64x128xf32> to vector<2x64x32xf32>
    %109 = arith.truncf %108 : vector<2x64x32xf32> to vector<2x64x32xbf16>
    %110 = vector.extract_strided_slice %61 {offsets = [0, 0, 64], sizes = [2, 64, 32], strides = [1, 1, 1]} : vector<2x64x128xf32> to vector<2x64x32xf32>
    %111 = arith.truncf %110 : vector<2x64x32xf32> to vector<2x64x32xbf16>
    %112 = vector.extract_strided_slice %63 {offsets = [0, 0, 64], sizes = [2, 64, 32], strides = [1, 1, 1]} : vector<2x64x128xf32> to vector<2x64x32xf32>
    %113 = arith.truncf %112 : vector<2x64x32xf32> to vector<2x64x32xbf16>
    "tpu.trace_start"() <{level = 10 : i32, message = "btd,bsd->bts"}> : () -> ()
    %cst_55 = arith.constant dense<0.000000e+00> : vector<2x64x64xf32>
    %114 = tpu.matmul %109, %111, %cst_55 {dimension_numbers = #tpu.dot_dimension_numbers<[2], [2], [1], [1], [0, 0, 0, 1, 1, 1], [0], [0]>} : vector<2x64x32xbf16>, vector<2x64x32xbf16>, vector<2x64x64xf32> -> vector<2x64x64xf32>
    "tpu.trace_stop"() : () -> ()
    %cst_56 = arith.constant 0.176776692 : f32
    %115 = vector.broadcast %cst_56 : f32 to vector<2x64x64xf32>
    %116 = arith.mulf %114, %115 : vector<2x64x64xf32>
    %117 = arith.addf %116, %6 : vector<2x64x64xf32>
    %cst_57 = arith.constant dense<0xFF800000> : vector<2x64xf32>
    %118 = vector.multi_reduction <maximumf>, %117, %cst_57 [2] : vector<2x64x64xf32> to vector<2x64xf32>
    %119 = vector.shape_cast %118 : vector<2x64xf32> to vector<2x64x1xf32>
    %120 = vector.broadcast %119 : vector<2x64x1xf32> to vector<2x64x64xf32>
    %121 = arith.subf %117, %120 : vector<2x64x64xf32>
    %122 = math.exp %121 : vector<2x64x64xf32>
    %cst_58 = arith.constant dense<0.000000e+00> : vector<2x64xf32>
    %123 = vector.multi_reduction <add>, %122, %cst_58 [2] : vector<2x64x64xf32> to vector<2x64xf32>
    %124 = vector.shape_cast %123 : vector<2x64xf32> to vector<2x64x1xf32>
    %125 = tpu.reciprocal %124 {approx = true} : vector<2x64x1xf32> -> vector<2x64x1xf32>
    %126 = vector.broadcast %125 : vector<2x64x1xf32> to vector<2x64x64xf32>
    %127 = arith.mulf %122, %126 : vector<2x64x64xf32>
    %128 = arith.truncf %127 : vector<2x64x64xf32> to vector<2x64x64xbf16>
    "tpu.trace_start"() <{level = 10 : i32, message = "bts,bsd->btd"}> : () -> ()
    %cst_59 = arith.constant dense<0.000000e+00> : vector<2x64x32xf32>
    %129 = tpu.matmul %128, %113, %cst_59 {dimension_numbers = #tpu.dot_dimension_numbers<[2], [1], [1], [2], [0, 0, 0, 1, 1, 2], [0], [0]>} : vector<2x64x64xbf16>, vector<2x64x32xbf16>, vector<2x64x32xf32> -> vector<2x64x32xf32>
    "tpu.trace_stop"() : () -> ()
    %130 = vector.extract_strided_slice %59 {offsets = [0, 0, 96], sizes = [2, 64, 32], strides = [1, 1, 1]} : vector<2x64x128xf32> to vector<2x64x32xf32>
    %131 = arith.truncf %130 : vector<2x64x32xf32> to vector<2x64x32xbf16>
    %132 = vector.extract_strided_slice %61 {offsets = [0, 0, 96], sizes = [2, 64, 32], strides = [1, 1, 1]} : vector<2x64x128xf32> to vector<2x64x32xf32>
    %133 = arith.truncf %132 : vector<2x64x32xf32> to vector<2x64x32xbf16>
    %134 = vector.extract_strided_slice %63 {offsets = [0, 0, 96], sizes = [2, 64, 32], strides = [1, 1, 1]} : vector<2x64x128xf32> to vector<2x64x32xf32>
    %135 = arith.truncf %134 : vector<2x64x32xf32> to vector<2x64x32xbf16>
    "tpu.trace_start"() <{level = 10 : i32, message = "btd,bsd->bts"}> : () -> ()
    %cst_60 = arith.constant dense<0.000000e+00> : vector<2x64x64xf32>
    %136 = tpu.matmul %131, %133, %cst_60 {dimension_numbers = #tpu.dot_dimension_numbers<[2], [2], [1], [1], [0, 0, 0, 1, 1, 1], [0], [0]>} : vector<2x64x32xbf16>, vector<2x64x32xbf16>, vector<2x64x64xf32> -> vector<2x64x64xf32>
    "tpu.trace_stop"() : () -> ()
    %cst_61 = arith.constant 0.176776692 : f32
    %137 = vector.broadcast %cst_61 : f32 to vector<2x64x64xf32>
    %138 = arith.mulf %136, %137 : vector<2x64x64xf32>
    %139 = arith.addf %138, %6 : vector<2x64x64xf32>
    %cst_62 = arith.constant dense<0xFF800000> : vector<2x64xf32>
    %140 = vector.multi_reduction <maximumf>, %139, %cst_62 [2] : vector<2x64x64xf32> to vector<2x64xf32>
    %141 = vector.shape_cast %140 : vector<2x64xf32> to vector<2x64x1xf32>
    %142 = vector.broadcast %141 : vector<2x64x1xf32> to vector<2x64x64xf32>
    %143 = arith.subf %139, %142 : vector<2x64x64xf32>
    %144 = math.exp %143 : vector<2x64x64xf32>
    %cst_63 = arith.constant dense<0.000000e+00> : vector<2x64xf32>
    %145 = vector.multi_reduction <add>, %144, %cst_63 [2] : vector<2x64x64xf32> to vector<2x64xf32>
    %146 = vector.shape_cast %145 : vector<2x64xf32> to vector<2x64x1xf32>
    %147 = tpu.reciprocal %146 {approx = true} : vector<2x64x1xf32> -> vector<2x64x1xf32>
    %148 = vector.broadcast %147 : vector<2x64x1xf32> to vector<2x64x64xf32>
    %149 = arith.mulf %144, %148 : vector<2x64x64xf32>
    %150 = arith.truncf %149 : vector<2x64x64xf32> to vector<2x64x64xbf16>
    "tpu.trace_start"() <{level = 10 : i32, message = "bts,bsd->btd"}> : () -> ()
    %cst_64 = arith.constant dense<0.000000e+00> : vector<2x64x32xf32>
    %151 = tpu.matmul %150, %135, %cst_64 {dimension_numbers = #tpu.dot_dimension_numbers<[2], [1], [1], [2], [0, 0, 0, 1, 1, 2], [0], [0]>} : vector<2x64x64xbf16>, vector<2x64x32xbf16>, vector<2x64x32xf32> -> vector<2x64x32xf32>
    "tpu.trace_stop"() : () -> ()
    %152 = tpu.concatenate %85, %107, %129, %151 in 2 : vector<2x64x32xf32>, vector<2x64x32xf32>, vector<2x64x32xf32>, vector<2x64x32xf32> -> vector<2x64x128xf32>
    %153 = vector.shape_cast %152 : vector<2x64x128xf32> to vector<128x128xf32>
    %154 = arith.truncf %153 : vector<128x128xf32> to vector<128x128xbf16>
    %cst_65 = arith.constant dense<0.000000e+00> : vector<128x128xf32>
    %155 = tpu.matmul %154, %17, %cst_65 {dimension_numbers = #tpu.dot_dimension_numbers<[1], [0], [0], [1], [0, 0, 1, 1], [], []>} : vector<128x128xbf16>, vector<128x128xbf16>, vector<128x128xf32> -> vector<128x128xf32>
    %156 = arith.addf %7, %155 : vector<128x128xf32>
    %157 = vector.broadcast %19 : vector<1x128xf32> to vector<128x128xf32>
    %158 = arith.addf %156, %157 : vector<128x128xf32>
    %cst_66 = arith.constant dense<0.000000e+00> : vector<128xf32>
    %159 = vector.multi_reduction <add>, %158, %cst_66 [1] : vector<128x128xf32> to vector<128xf32>
    %160 = vector.shape_cast %159 : vector<128xf32> to vector<128x1xf32>
    %cst_67 = arith.constant 1.280000e+02 : f32
    %161 = vector.broadcast %cst_67 : f32 to vector<128x1xf32>
    %162 = arith.divf %160, %161 : vector<128x1xf32>
    %163 = vector.broadcast %162 : vector<128x1xf32> to vector<128x128xf32>
    %164 = arith.subf %158, %163 : vector<128x128xf32>
    %165 = arith.mulf %164, %164 : vector<128x128xf32>
    %cst_68 = arith.constant dense<0.000000e+00> : vector<128xf32>
    %166 = vector.multi_reduction <add>, %165, %cst_68 [1] : vector<128x128xf32> to vector<128xf32>
    %167 = vector.shape_cast %166 : vector<128xf32> to vector<128x1xf32>
    %cst_69 = arith.constant 1.280000e+02 : f32
    %168 = vector.broadcast %cst_69 : f32 to vector<128x1xf32>
    %169 = arith.divf %167, %168 : vector<128x1xf32>
    %170 = vector.broadcast %162 : vector<128x1xf32> to vector<128x128xf32>
    %171 = arith.subf %158, %170 : vector<128x128xf32>
    %cst_70 = arith.constant 9.99999974E-6 : f32
    %172 = vector.broadcast %cst_70 : f32 to vector<128x1xf32>
    %173 = arith.addf %169, %172 : vector<128x1xf32>
    %174 = math.rsqrt %173 : vector<128x1xf32>
    %175 = vector.broadcast %174 : vector<128x1xf32> to vector<128x128xf32>
    %176 = arith.mulf %171, %175 : vector<128x128xf32>
    %177 = vector.broadcast %21 : vector<1x128xf32> to vector<128x128xf32>
    %178 = arith.mulf %176, %177 : vector<128x128xf32>
    %179 = vector.broadcast %23 : vector<1x128xf32> to vector<128x128xf32>
    %180 = arith.addf %178, %179 : vector<128x128xf32>
    %181 = arith.truncf %180 : vector<128x128xf32> to vector<128x128xbf16>
    %cst_71 = arith.constant dense<0.000000e+00> : vector<128x512xf32>
    %182 = tpu.matmul %181, %25, %cst_71 {dimension_numbers = #tpu.dot_dimension_numbers<[1], [0], [0], [1], [0, 0, 1, 1], [], []>} : vector<128x128xbf16>, vector<128x512xbf16>, vector<128x512xf32> -> vector<128x512xf32>
    %183 = vector.broadcast %27 : vector<1x512xf32> to vector<128x512xf32>
    %184 = arith.addf %182, %183 : vector<128x512xf32>
    %cst_72 = arith.constant 5.000000e-01 : f32
    %185 = vector.broadcast %cst_72 : f32 to vector<128x512xf32>
    %186 = arith.mulf %185, %184 : vector<128x512xf32>
    %cst_73 = arith.constant 4.471500e-02 : f32
    %187 = vector.broadcast %cst_73 : f32 to vector<128x512xf32>
    %188 = arith.mulf %187, %184 : vector<128x512xf32>
    %189 = arith.mulf %188, %184 : vector<128x512xf32>
    %190 = arith.mulf %189, %184 : vector<128x512xf32>
    %191 = arith.addf %184, %190 : vector<128x512xf32>
    %cst_74 = arith.constant 0.797884583 : f32
    %192 = vector.broadcast %cst_74 : f32 to vector<128x512xf32>
    %193 = arith.mulf %192, %191 : vector<128x512xf32>
    %194 = math.tanh %193 : vector<128x512xf32>
    %cst_75 = arith.constant 1.000000e+00 : f32
    %195 = vector.broadcast %cst_75 : f32 to vector<128x512xf32>
    %196 = arith.addf %195, %194 : vector<128x512xf32>
    %197 = arith.mulf %186, %196 : vector<128x512xf32>
    %198 = arith.truncf %197 : vector<128x512xf32> to vector<128x512xbf16>
    %cst_76 = arith.constant dense<0.000000e+00> : vector<128x128xf32>
    %199 = tpu.matmul %198, %29, %cst_76 {dimension_numbers = #tpu.dot_dimension_numbers<[1], [0], [0], [1], [0, 0, 1, 1], [], []>} : vector<128x512xbf16>, vector<512x128xbf16>, vector<128x128xf32> -> vector<128x128xf32>
    %200 = arith.addf %158, %199 : vector<128x128xf32>
    %201 = vector.broadcast %31 : vector<1x128xf32> to vector<128x128xf32>
    %202 = arith.addf %200, %201 : vector<128x128xf32>
    %c0_77 = arith.constant 0 : index
    %c0_78 = arith.constant 0 : index
    %203 = vector.load %arg20[%c0_77, %c0_78] : memref<128x128xf32, #tpu.memory_space<vmem>>, vector<128x128xf32>
    tpu.vector_store %arg20[%c0_77, %c0_78], %202 {strides = array<i32>} : memref<128x128xf32, #tpu.memory_space<vmem>>, vector<128x128xf32>,
    %c1_i32 = arith.constant 1 : i32
    %204 = arith.cmpi eq, %arg1, %c1_i32 : i32
    %205 = arith.extui %204 : i1 to i32
    %c0_i32_79 = arith.constant 0 : i32
    %206 = arith.cmpi ne, %205, %c0_i32_79 : i32
    scf.if %206 {
      %c0_80 = arith.constant 0 : index
      %c0_81 = arith.constant 0 : index
      %207 = vector.load %arg16[%c0_80, %c0_81] : memref<1x128xf32, #tpu.memory_space<vmem>>, vector<1x128xf32>
      %c0_82 = arith.constant 0 : index
      %c0_83 = arith.constant 0 : index
      %208 = vector.load %arg17[%c0_82, %c0_83] : memref<1x128xf32, #tpu.memory_space<vmem>>, vector<1x128xf32>
      %c0_84 = arith.constant 0 : index
      %c0_85 = arith.constant 0 : index
      %209 = vector.load %arg18[%c0_84, %c0_85] : memref<128x128xbf16, #tpu.memory_space<vmem>>, vector<128x128xbf16>
      %cst_86 = arith.constant dense<0.000000e+00> : vector<128xf32>
      %210 = vector.multi_reduction <add>, %202, %cst_86 [1] : vector<128x128xf32> to vector<128xf32>
      %211 = vector.shape_cast %210 : vector<128xf32> to vector<128x1xf32>
      %cst_87 = arith.constant 1.280000e+02 : f32
      %212 = vector.broadcast %cst_87 : f32 to vector<128x1xf32>
      %213 = arith.divf %211, %212 : vector<128x1xf32>
      %214 = vector.broadcast %213 : vector<128x1xf32> to vector<128x128xf32>
      %215 = arith.subf %202, %214 : vector<128x128xf32>
      %216 = arith.mulf %215, %215 : vector<128x128xf32>
      %cst_88 = arith.constant dense<0.000000e+00> : vector<128xf32>
      %217 = vector.multi_reduction <add>, %216, %cst_88 [1] : vector<128x128xf32> to vector<128xf32>
      %218 = vector.shape_cast %217 : vector<128xf32> to vector<128x1xf32>
      %cst_89 = arith.constant 1.280000e+02 : f32
      %219 = vector.broadcast %cst_89 : f32 to vector<128x1xf32>
      %220 = arith.divf %218, %219 : vector<128x1xf32>
      %221 = vector.broadcast %213 : vector<128x1xf32> to vector<128x128xf32>
      %222 = arith.subf %202, %221 : vector<128x128xf32>
      %cst_90 = arith.constant 9.99999974E-6 : f32
      %223 = vector.broadcast %cst_90 : f32 to vector<128x1xf32>
      %224 = arith.addf %220, %223 : vector<128x1xf32>
      %225 = math.rsqrt %224 : vector<128x1xf32>
      %226 = vector.broadcast %225 : vector<128x1xf32> to vector<128x128xf32>
      %227 = arith.mulf %222, %226 : vector<128x128xf32>
      %228 = vector.broadcast %207 : vector<1x128xf32> to vector<128x128xf32>
      %229 = arith.mulf %227, %228 : vector<128x128xf32>
      %230 = vector.broadcast %208 : vector<1x128xf32> to vector<128x128xf32>
      %231 = arith.addf %229, %230 : vector<128x128xf32>
      %232 = arith.truncf %231 : vector<128x128xf32> to vector<128x128xbf16>
      %cst_91 = arith.constant dense<0.000000e+00> : vector<128x128xf32>
      %233 = tpu.matmul %232, %209, %cst_91 {dimension_numbers = #tpu.dot_dimension_numbers<[1], [0], [0], [1], [0, 0, 1, 1], [], []>} : vector<128x128xbf16>, vector<128x128xbf16>, vector<128x128xf32> -> vector<128x128xf32>
      %234 = vector.shape_cast %233 : vector<128x128xf32> to vector<2x64x128xf32>
      %c0_92 = arith.constant 0 : index
      %c0_93 = arith.constant 0 : index
      %c0_94 = arith.constant 0 : index
      %235 = vector.load %arg19[%c0_92, %c0_93, %c0_94] : memref<2x64x128xf32, #tpu.memory_space<vmem>>, vector<2x64x128xf32>
      tpu.vector_store %arg19[%c0_92, %c0_93, %c0_94], %234 {strides = array<i32>} : memref<2x64x128xf32, #tpu.memory_space<vmem>>, vector<2x64x128xf32>,
    } else {
    }
    return
  }
  func.func @transform_0(%arg0: i32, %arg1: i32) -> (i32, i32, i32) {
    %c0_i32 = arith.constant 0 : i32
    %c0_i32_0 = arith.constant 0 : i32
    %c0_i32_1 = arith.constant 0 : i32
    return %arg0, %c0_i32, %c0_i32_0 : i32, i32, i32
  }
  func.func @transform_1(%arg0: i32, %arg1: i32) -> (i32, i32) {
    %c0_i32 = arith.constant 0 : i32
    %c0_i32_0 = arith.constant 0 : i32
    %c0_i32_1 = arith.constant 0 : i32
    return %c0_i32, %c0_i32_0 : i32, i32
  }
  func.func @transform_2(%arg0: i32, %arg1: i32) -> (i32, i32, i32) {
    %c0_i32 = arith.constant 0 : i32
    %c0_i32_0 = arith.constant 0 : i32
    %c0_i32_1 = arith.constant 0 : i32
    return %arg1, %c0_i32, %c0_i32_0 : i32, i32, i32
  }
  func.func @transform_3(%arg0: i32, %arg1: i32) -> (i32, i32, i32) {
    %c0_i32 = arith.constant 0 : i32
    %c0_i32_0 = arith.constant 0 : i32
    %c0_i32_1 = arith.constant 0 : i32
    return %arg1, %c0_i32, %c0_i32_0 : i32, i32, i32
  }
  func.func @transform_4(%arg0: i32, %arg1: i32) -> (i32, i32, i32) {
    %c0_i32 = arith.constant 0 : i32
    %c0_i32_0 = arith.constant 0 : i32
    %c0_i32_1 = arith.constant 0 : i32
    return %arg1, %c0_i32, %c0_i32_0 : i32, i32, i32
  }
  func.func @transform_5(%arg0: i32, %arg1: i32) -> (i32, i32, i32) {
    %c0_i32 = arith.constant 0 : i32
    %c0_i32_0 = arith.constant 0 : i32
    %c0_i32_1 = arith.constant 0 : i32
    return %arg1, %c0_i32, %c0_i32_0 : i32, i32, i32
  }
  func.func @transform_6(%arg0: i32, %arg1: i32) -> (i32, i32, i32) {
    %c0_i32 = arith.constant 0 : i32
    %c0_i32_0 = arith.constant 0 : i32
    %c0_i32_1 = arith.constant 0 : i32
    return %arg1, %c0_i32, %c0_i32_0 : i32, i32, i32
  }
  func.func @transform_7(%arg0: i32, %arg1: i32) -> (i32, i32, i32) {
    %c0_i32 = arith.constant 0 : i32
    %c0_i32_0 = arith.constant 0 : i32
    %c0_i32_1 = arith.constant 0 : i32
    return %arg1, %c0_i32, %c0_i32_0 : i32, i32, i32
  }
  func.func @transform_8(%arg0: i32, %arg1: i32) -> (i32, i32, i32) {
    %c0_i32 = arith.constant 0 : i32
    %c0_i32_0 = arith.constant 0 : i32
    %c0_i32_1 = arith.constant 0 : i32
    return %arg1, %c0_i32, %c0_i32_0 : i32, i32, i32
  }
  func.func @transform_9(%arg0: i32, %arg1: i32) -> (i32, i32, i32) {
    %c0_i32 = arith.constant 0 : i32
    %c0_i32_0 = arith.constant 0 : i32
    %c0_i32_1 = arith.constant 0 : i32
    return %arg1, %c0_i32, %c0_i32_0 : i32, i32, i32
  }
  func.func @transform_10(%arg0: i32, %arg1: i32) -> (i32, i32, i32) {
    %c0_i32 = arith.constant 0 : i32
    %c0_i32_0 = arith.constant 0 : i32
    %c0_i32_1 = arith.constant 0 : i32
    return %arg1, %c0_i32, %c0_i32_0 : i32, i32, i32
  }
  func.func @transform_11(%arg0: i32, %arg1: i32) -> (i32, i32, i32) {
    %c0_i32 = arith.constant 0 : i32
    %c0_i32_0 = arith.constant 0 : i32
    %c0_i32_1 = arith.constant 0 : i32
    return %arg1, %c0_i32, %c0_i32_0 : i32, i32, i32
  }
  func.func @transform_12(%arg0: i32, %arg1: i32) -> (i32, i32, i32) {
    %c0_i32 = arith.constant 0 : i32
    %c0_i32_0 = arith.constant 0 : i32
    %c0_i32_1 = arith.constant 0 : i32
    return %arg1, %c0_i32, %c0_i32_0 : i32, i32, i32
  }
  func.func @transform_13(%arg0: i32, %arg1: i32) -> (i32, i32, i32) {
    %c0_i32 = arith.constant 0 : i32
    %c0_i32_0 = arith.constant 0 : i32
    %c0_i32_1 = arith.constant 0 : i32
    return %arg1, %c0_i32, %c0_i32_0 : i32, i32, i32
  }
  func.func @transform_14(%arg0: i32, %arg1: i32) -> (i32, i32) {
    %c0_i32 = arith.constant 0 : i32
    %c0_i32_0 = arith.constant 0 : i32
    %c0_i32_1 = arith.constant 0 : i32
    return %c0_i32, %c0_i32_0 : i32, i32
  }
  func.func @transform_15(%arg0: i32, %arg1: i32) -> (i32, i32) {
    %c0_i32 = arith.constant 0 : i32
    %c0_i32_0 = arith.constant 0 : i32
    %c0_i32_1 = arith.constant 0 : i32
    return %c0_i32, %c0_i32_0 : i32, i32
  }
  func.func @transform_16(%arg0: i32, %arg1: i32) -> (i32, i32) {
    %c0_i32 = arith.constant 0 : i32
    %c0_i32_0 = arith.constant 0 : i32
    %c0_i32_1 = arith.constant 0 : i32
    return %c0_i32, %c0_i32_0 : i32, i32
  }
  func.func @transform_17(%arg0: i32, %arg1: i32) -> (i32, i32, i32) {
    %c0_i32 = arith.constant 0 : i32
    %c0_i32_0 = arith.constant 0 : i32
    %c0_i32_1 = arith.constant 0 : i32
    return %arg0, %c0_i32, %c0_i32_0 : i32, i32, i32
  }
}

</mosaic_0001>

<llo_original>
// kernel: _lambda_.1
$region0: #{_lambda_.1}
  #allocation0 [shape = 'u32[]', space=smem, size = 0x4, offset = 0x4, fixed_abs, tag = 'smem constant byte address 0x4 - core index']
  #allocation1 [shape = 'u32[144,128]{1,0:T(1,128)}', space=vmem, size = 0x12000, scoped, tag = 'internal scratch']
  #allocation2 [shape = 'f32[128,128]{1,0:T(8,128)}', space=vmem, size = 0x10000, scoped, tag = 'scratch operand']
  %s0 = inlined_call_operand.vmem [shape: f32[4,64,128], index: 0, kind: input, shape index: {}]
  %s1 = inlined_call_operand.vmem [shape: f32[64,64], index: 1, kind: input, shape index: {}]
  %s2 = inlined_call_operand.vmem [shape: f32[2,1,128], index: 2, kind: input, shape index: {}]
  %s3 = inlined_call_operand.vmem [shape: f32[2,1,128], index: 3, kind: input, shape index: {}]
  %s4 = inlined_call_operand.vmem [shape: bf16[2,128,384], index: 4, kind: input, shape index: {}]
  %s5 = inlined_call_operand.vmem [shape: f32[2,1,384], index: 5, kind: input, shape index: {}]
  %s6 = inlined_call_operand.vmem [shape: bf16[2,128,128], index: 6, kind: input, shape index: {}]
  %s7 = inlined_call_operand.vmem [shape: f32[2,1,128], index: 7, kind: input, shape index: {}]
  %s8 = inlined_call_operand.vmem [shape: f32[2,1,128], index: 8, kind: input, shape index: {}]
  %s9 = inlined_call_operand.vmem [shape: f32[2,1,128], index: 9, kind: input, shape index: {}]
  %s10 = inlined_call_operand.vmem [shape: bf16[2,128,512], index: 10, kind: input, shape index: {}]
  %s11 = inlined_call_operand.vmem [shape: f32[2,1,512], index: 11, kind: input, shape index: {}]
  %s12 = inlined_call_operand.vmem [shape: bf16[2,512,128], index: 12, kind: input, shape index: {}]
  %s13 = inlined_call_operand.vmem [shape: f32[2,1,128], index: 13, kind: input, shape index: {}]
  %s14 = inlined_call_operand.vmem [shape: f32[1,128], index: 14, kind: input, shape index: {}]
  %s15 = inlined_call_operand.vmem [shape: f32[1,128], index: 15, kind: input, shape index: {}]
  %s16 = inlined_call_operand.vmem [shape: bf16[128,128], index: 16, kind: input, shape index: {}]
  %s17 = inlined_call_operand.vmem [shape: f32[4,64,128], index: 17, kind: output, shape index: {}]
  %s18 = sld [smem:[#allocation0]]
  $region109: #{_lambda_.1} parent=0
    _
  %s20 = ssub.s32 1, %s18
  %s21 = scalar_select 0, %s20, %s18
  loop: start=0, step=1, limit=6
  $region2: #{_lambda_.1} parent=0 // loop_pre_header
    _
  $region3: #{_lambda_.1} parent=0 // loop_header
    %s23 = sphi 0, %s27
    %p24 = scmp.ge.s32.totalorder %s23, 6
    %s30 = sphi 0, %s42
    %s31 = sphi 0, %s38
    %s32 = sphi 0, %s30
    %s33 = sphi 0, %s31
    %s34 = sphi 0, %s32
    %s35 = sphi 0, %s33
    %s45 = sphi 0, %s47
    %s48 = sphi 0, %s45
    %s49 = sphi 0, %s48
    %s65 = sphi 0, %s49
    %s69 = sphi 0, %s69
    %s71 = sphi 0, %s69
    %s72 = sphi 0, %s71
    %s86 = sphi 0, %s72
    %s92 = sphi 0, %s94
    %s95 = sphi 0, %s92
    %s96 = sphi 0, %s95
    %s112 = sphi 0, %s96
    %s118 = sphi 0, %s120
    %s121 = sphi 0, %s118
    %s122 = sphi 0, %s121
    %s138 = sphi 0, %s122
    %s144 = sphi 0, %s146
    %s147 = sphi 0, %s144
    %s148 = sphi 0, %s147
    %s164 = sphi 0, %s148
    %s170 = sphi 0, %s172
    %s173 = sphi 0, %s170
    %s174 = sphi 0, %s173
    %s190 = sphi 0, %s174
    %s196 = sphi 0, %s198
    %s199 = sphi 0, %s196
    %s200 = sphi 0, %s199
    %s216 = sphi 0, %s200
    %s222 = sphi 0, %s224
    %s225 = sphi 0, %s222
    %s226 = sphi 0, %s225
    %s242 = sphi 0, %s226
    %s248 = sphi 0, %s250
    %s251 = sphi 0, %s248
    %s252 = sphi 0, %s251
    %s268 = sphi 0, %s252
    %s274 = sphi 0, %s276
    %s277 = sphi 0, %s274
    %s278 = sphi 0, %s277
    %s294 = sphi 0, %s278
    %s300 = sphi 0, %s302
    %s303 = sphi 0, %s300
    %s304 = sphi 0, %s303
    %s320 = sphi 0, %s304
    %s326 = sphi 0, %s328
    %s329 = sphi 0, %s326
    %s330 = sphi 0, %s329
    %s346 = sphi 0, %s330
    %s352 = sphi 0, %s354
    %s355 = sphi 0, %s352
    %s356 = sphi 0, %s355
    %s372 = sphi 0, %s356
    %s378 = sphi 0, %s380
    %s381 = sphi 0, %s378
    %s382 = sphi 0, %s381
    %s398 = sphi 0, %s382
    %s402 = sphi 0, %s402
    %s404 = sphi 0, %s402
    %s405 = sphi 0, %s404
    %s419 = sphi 0, %s405
    %s423 = sphi 0, %s423
    %s425 = sphi 0, %s423
    %s426 = sphi 0, %s425
    %s440 = sphi 0, %s426
    %s444 = sphi 0, %s444
    %s446 = sphi 0, %s444
    %s447 = sphi 0, %s446
    %s461 = sphi 0, %s447
    %s467 = sphi 0, %s469
    %s470 = sphi 0, %s467
    %s471 = sphi 0, %s470
    %s487 = sphi 0, %s471
  $region4: #{_lambda_.1} parent=0 // loop_header_branch
    %26 = sbr.rel (%p24) target = $region8
  $region5: #{_lambda_.1} parent=0 // loop_body
    %s28 = ssub.s32 %s23, 1
    %s29 = ssub.s32 %s23, 2
    %s36 = sadd.s32 1, %s31
    %p37 = scmp.ge.s32.totalorder %s36, 2
    %s38 = scalar_select %p37, 0, %s36
    %s39 = sadd.s32 1, %s30
    %s40 = scalar_select %p37, %s39, %s30
    %p41 = scmp.ge.s32.totalorder %s40, 2
    %s42 = scalar_select %p41, 0, %s40
    %s43 = ssub.s32 %s30, %s42
    %p44 = scmp.eq.s32.totalorder %s43, 0
    %s46 = sadd.s32 %s45, 1
    %s47 = scalar_select %p44, %s45, %s46
    %p50 = pneg %p44
    %p51 = scmp.eq.s32.totalorder %s23, 3
    %p52 = por %p50, %p51
    %p53 = scmp.ne.s32.totalorder %s45, %s48
    %p54 = scmp.eq.s32.totalorder %s23, 0
    %p55 = por %p53, %p54
    %p56 = scmp.ne.s32.totalorder %s45, %s48
    %p57 = scmp.eq.s32.totalorder %s28, 3
    %p58 = por %p56, %p57
    %p59 = scmp.ne.s32.totalorder %s48, %s49
    %p60 = scmp.eq.s32.totalorder %s28, 0
    %p61 = por %p59, %p60
    %p62 = scmp.ne.s32.totalorder %s48, %s49
    %p63 = scmp.eq.s32.totalorder %s29, 3
    %p64 = por %p62, %p63
    %p66 = scmp.ne.s32.totalorder %s49, %s65
    %p67 = scmp.eq.s32.totalorder %s29, 0
    %p68 = por %p66, %p67
    %s70 = sadd.s32 %s69, 1
    %p73 = scmp.eq.s32.totalorder %s23, 3
    %p74 = scmp.ne.s32.totalorder %s69, %s71
    %p75 = scmp.eq.s32.totalorder %s23, 0
    %p76 = por %p74, %p75
    %p77 = scmp.ne.s32.totalorder %s69, %s71
    %p78 = scmp.eq.s32.totalorder %s28, 3
    %p79 = por %p77, %p78
    %p80 = scmp.ne.s32.totalorder %s71, %s72
    %p81 = scmp.eq.s32.totalorder %s28, 0
    %p82 = por %p80, %p81
    %p83 = scmp.ne.s32.totalorder %s71, %s72
    %p84 = scmp.eq.s32.totalorder %s29, 3
    %p85 = por %p83, %p84
    %p87 = scmp.ne.s32.totalorder %s72, %s86
    %p88 = scmp.eq.s32.totalorder %s29, 0
    %p89 = por %p87, %p88
    %s90 = ssub.s32 %s31, %s38
    %p91 = scmp.eq.s32.totalorder %s90, 0
    %s93 = sadd.s32 %s92, 1
    %s94 = scalar_select %p91, %s92, %s93
    %p97 = pneg %p91
    %p98 = scmp.eq.s32.totalorder %s23, 3
    %p99 = por %p97, %p98
    %p100 = scmp.ne.s32.totalorder %s92, %s95
    %p101 = scmp.eq.s32.totalorder %s23, 0
    %p102 = por %p100, %p101
    %p103 = scmp.ne.s32.totalorder %s92, %s95
    %p104 = scmp.eq.s32.totalorder %s28, 3
    %p105 = por %p103, %p104
    %p106 = scmp.ne.s32.totalorder %s95, %s96
    %p107 = scmp.eq.s32.totalorder %s28, 0
    %p108 = por %p106, %p107
    %p109 = scmp.ne.s32.totalorder %s95, %s96
    %p110 = scmp.eq.s32.totalorder %s29, 3
    %p111 = por %p109, %p110
    %p113 = scmp.ne.s32.totalorder %s96, %s112
    %p114 = scmp.eq.s32.totalorder %s29, 0
    %p115 = por %p113, %p114
    %s116 = ssub.s32 %s31, %s38
    %p117 = scmp.eq.s32.totalorder %s116, 0
    %s119 = sadd.s32 %s118, 1
    %s120 = scalar_select %p117, %s118, %s119
    %p123 = pneg %p117
    %p124 = scmp.eq.s32.totalorder %s23, 3
    %p125 = por %p123, %p124
    %p126 = scmp.ne.s32.totalorder %s118, %s121
    %p127 = scmp.eq.s32.totalorder %s23, 0
    %p128 = por %p126, %p127
    %p129 = scmp.ne.s32.totalorder %s118, %s121
    %p130 = scmp.eq.s32.totalorder %s28, 3
    %p131 = por %p129, %p130
    %p132 = scmp.ne.s32.totalorder %s121, %s122
    %p133 = scmp.eq.s32.totalorder %s28, 0
    %p134 = por %p132, %p133
    %p135 = scmp.ne.s32.totalorder %s121, %s122
    %p136 = scmp.eq.s32.totalorder %s29, 3
    %p137 = por %p135, %p136
    %p139 = scmp.ne.s32.totalorder %s122, %s138
    %p140 = scmp.eq.s32.totalorder %s29, 0
    %p141 = por %p139, %p140
    %s142 = ssub.s32 %s31, %s38
    %p143 = scmp.eq.s32.totalorder %s142, 0
    %s145 = sadd.s32 %s144, 1
    %s146 = scalar_select %p143, %s144, %s145
    %p149 = pneg %p143
    %p150 = scmp.eq.s32.totalorder %s23, 3
    %p151 = por %p149, %p150
    %p152 = scmp.ne.s32.totalorder %s144, %s147
    %p153 = scmp.eq.s32.totalorder %s23, 0
    %p154 = por %p152, %p153
    %p155 = scmp.ne.s32.totalorder %s144, %s147
    %p156 = scmp.eq.s32.totalorder %s28, 3
    %p157 = por %p155, %p156
    %p158 = scmp.ne.s32.totalorder %s147, %s148
    %p159 = scmp.eq.s32.totalorder %s28, 0
    %p160 = por %p158, %p159
    %p161 = scmp.ne.s32.totalorder %s147, %s148
    %p162 = scmp.eq.s32.totalorder %s29, 3
    %p163 = por %p161, %p162
    %p165 = scmp.ne.s32.totalorder %s148, %s164
    %p166 = scmp.eq.s32.totalorder %s29, 0
    %p167 = por %p165, %p166
    %s168 = ssub.s32 %s31, %s38
    %p169 = scmp.eq.s32.totalorder %s168, 0
    %s171 = sadd.s32 %s170, 1
    %s172 = scalar_select %p169, %s170, %s171
    %p175 = pneg %p169
    %p176 = scmp.eq.s32.totalorder %s23, 3
    %p177 = por %p175, %p176
    %p178 = scmp.ne.s32.totalorder %s170, %s173
    %p179 = scmp.eq.s32.totalorder %s23, 0
    %p180 = por %p178, %p179
    %p181 = scmp.ne.s32.totalorder %s170, %s173
    %p182 = scmp.eq.s32.totalorder %s28, 3
    %p183 = por %p181, %p182
    %p184 = scmp.ne.s32.totalorder %s173, %s174
    %p185 = scmp.eq.s32.totalorder %s28, 0
    %p186 = por %p184, %p185
    %p187 = scmp.ne.s32.totalorder %s173, %s174
    %p188 = scmp.eq.s32.totalorder %s29, 3
    %p189 = por %p187, %p188
    %p191 = scmp.ne.s32.totalorder %s174, %s190
    %p192 = scmp.eq.s32.totalorder %s29, 0
    %p193 = por %p191, %p192
    %s194 = ssub.s32 %s31, %s38
    %p195 = scmp.eq.s32.totalorder %s194, 0
    %s197 = sadd.s32 %s196, 1
    %s198 = scalar_select %p195, %s196, %s197
    %p201 = pneg %p195
    %p202 = scmp.eq.s32.totalorder %s23, 3
    %p203 = por %p201, %p202
    %p204 = scmp.ne.s32.totalorder %s196, %s199
    %p205 = scmp.eq.s32.totalorder %s23, 0
    %p206 = por %p204, %p205
    %p207 = scmp.ne.s32.totalorder %s196, %s199
    %p208 = scmp.eq.s32.totalorder %s28, 3
    %p209 = por %p207, %p208
    %p210 = scmp.ne.s32.totalorder %s199, %s200
    %p211 = scmp.eq.s32.totalorder %s28, 0
    %p212 = por %p210, %p211
    %p213 = scmp.ne.s32.totalorder %s199, %s200
    %p214 = scmp.eq.s32.totalorder %s29, 3
    %p215 = por %p213, %p214
    %p217 = scmp.ne.s32.totalorder %s200, %s216
    %p218 = scmp.eq.s32.totalorder %s29, 0
    %p219 = por %p217, %p218
    %s220 = ssub.s32 %s31, %s38
    %p221 = scmp.eq.s32.totalorder %s220, 0
    %s223 = sadd.s32 %s222, 1
    %s224 = scalar_select %p221, %s222, %s223
    %p227 = pneg %p221
    %p228 = scmp.eq.s32.totalorder %s23, 3
    %p229 = por %p227, %p228
    %p230 = scmp.ne.s32.totalorder %s222, %s225
    %p231 = scmp.eq.s32.totalorder %s23, 0
    %p232 = por %p230, %p231
    %p233 = scmp.ne.s32.totalorder %s222, %s225
    %p234 = scmp.eq.s32.totalorder %s28, 3
    %p235 = por %p233, %p234
    %p236 = scmp.ne.s32.totalorder %s225, %s226
    %p237 = scmp.eq.s32.totalorder %s28, 0
    %p238 = por %p236, %p237
    %p239 = scmp.ne.s32.totalorder %s225, %s226
    %p240 = scmp.eq.s32.totalorder %s29, 3
    %p241 = por %p239, %p240
    %p243 = scmp.ne.s32.totalorder %s226, %s242
    %p244 = scmp.eq.s32.totalorder %s29, 0
    %p245 = por %p243, %p244
    %s246 = ssub.s32 %s31, %s38
    %p247 = scmp.eq.s32.totalorder %s246, 0
    %s249 = sadd.s32 %s248, 1
    %s250 = scalar_select %p247, %s248, %s249
    %p253 = pneg %p247
    %p254 = scmp.eq.s32.totalorder %s23, 3
    %p255 = por %p253, %p254
    %p256 = scmp.ne.s32.totalorder %s248, %s251
    %p257 = scmp.eq.s32.totalorder %s23, 0
    %p258 = por %p256, %p257
    %p259 = scmp.ne.s32.totalorder %s248, %s251
    %p260 = scmp.eq.s32.totalorder %s28, 3
    %p261 = por %p259, %p260
    %p262 = scmp.ne.s32.totalorder %s251, %s252
    %p263 = scmp.eq.s32.totalorder %s28, 0
    %p264 = por %p262, %p263
    %p265 = scmp.ne.s32.totalorder %s251, %s252
    %p266 = scmp.eq.s32.totalorder %s29, 3
    %p267 = por %p265, %p266
    %p269 = scmp.ne.s32.totalorder %s252, %s268
    %p270 = scmp.eq.s32.totalorder %s29, 0
    %p271 = por %p269, %p270
    %s272 = ssub.s32 %s31, %s38
    %p273 = scmp.eq.s32.totalorder %s272, 0
    %s275 = sadd.s32 %s274, 1
    %s276 = scalar_select %p273, %s274, %s275
    %p279 = pneg %p273
    %p280 = scmp.eq.s32.totalorder %s23, 3
    %p281 = por %p279, %p280
    %p282 = scmp.ne.s32.totalorder %s274, %s277
    %p283 = scmp.eq.s32.totalorder %s23, 0
    %p284 = por %p282, %p283
    %p285 = scmp.ne.s32.totalorder %s274, %s277
    %p286 = scmp.eq.s32.totalorder %s28, 3
    %p287 = por %p285, %p286
    %p288 = scmp.ne.s32.totalorder %s277, %s278
    %p289 = scmp.eq.s32.totalorder %s28, 0
    %p290 = por %p288, %p289
    %p291 = scmp.ne.s32.totalorder %s277, %s278
    %p292 = scmp.eq.s32.totalorder %s29, 3
    %p293 = por %p291, %p292
    %p295 = scmp.ne.s32.totalorder %s278, %s294
    %p296 = scmp.eq.s32.totalorder %s29, 0
    %p297 = por %p295, %p296
    %s298 = ssub.s32 %s31, %s38
    %p299 = scmp.eq.s32.totalorder %s298, 0
    %s301 = sadd.s32 %s300, 1
    %s302 = scalar_select %p299, %s300, %s301
    %p305 = pneg %p299
    %p306 = scmp.eq.s32.totalorder %s23, 3
    %p307 = por %p305, %p306
    %p308 = scmp.ne.s32.totalorder %s300, %s303
    %p309 = scmp.eq.s32.totalorder %s23, 0
    %p310 = por %p308, %p309
    %p311 = scmp.ne.s32.totalorder %s300, %s303
    %p312 = scmp.eq.s32.totalorder %s28, 3
    %p313 = por %p311, %p312
    %p314 = scmp.ne.s32.totalorder %s303, %s304
    %p315 = scmp.eq.s32.totalorder %s28, 0
    %p316 = por %p314, %p315
    %p317 = scmp.ne.s32.totalorder %s303, %s304
    %p318 = scmp.eq.s32.totalorder %s29, 3
    %p319 = por %p317, %p318
    %p321 = scmp.ne.s32.totalorder %s304, %s320
    %p322 = scmp.eq.s32.totalorder %s29, 0
    %p323 = por %p321, %p322
    %s324 = ssub.s32 %s31, %s38
    %p325 = scmp.eq.s32.totalorder %s324, 0
    %s327 = sadd.s32 %s326, 1
    %s328 = scalar_select %p325, %s326, %s327
    %p331 = pneg %p325
    %p332 = scmp.eq.s32.totalorder %s23, 3
    %p333 = por %p331, %p332
    %p334 = scmp.ne.s32.totalorder %s326, %s329
    %p335 = scmp.eq.s32.totalorder %s23, 0
    %p336 = por %p334, %p335
    %p337 = scmp.ne.s32.totalorder %s326, %s329
    %p338 = scmp.eq.s32.totalorder %s28, 3
    %p339 = por %p337, %p338
    %p340 = scmp.ne.s32.totalorder %s329, %s330
    %p341 = scmp.eq.s32.totalorder %s28, 0
    %p342 = por %p340, %p341
    %p343 = scmp.ne.s32.totalorder %s329, %s330
    %p344 = scmp.eq.s32.totalorder %s29, 3
    %p345 = por %p343, %p344
    %p347 = scmp.ne.s32.totalorder %s330, %s346
    %p348 = scmp.eq.s32.totalorder %s29, 0
    %p349 = por %p347, %p348
    %s350 = ssub.s32 %s31, %s38
    %p351 = scmp.eq.s32.totalorder %s350, 0
    %s353 = sadd.s32 %s352, 1
    %s354 = scalar_select %p351, %s352, %s353
    %p357 = pneg %p351
    %p358 = scmp.eq.s32.totalorder %s23, 3
    %p359 = por %p357, %p358
    %p360 = scmp.ne.s32.totalorder %s352, %s355
    %p361 = scmp.eq.s32.totalorder %s23, 0
    %p362 = por %p360, %p361
    %p363 = scmp.ne.s32.totalorder %s352, %s355
    %p364 = scmp.eq.s32.totalorder %s28, 3
    %p365 = por %p363, %p364
    %p366 = scmp.ne.s32.totalorder %s355, %s356
    %p367 = scmp.eq.s32.totalorder %s28, 0
    %p368 = por %p366, %p367
    %p369 = scmp.ne.s32.totalorder %s355, %s356
    %p370 = scmp.eq.s32.totalorder %s29, 3
    %p371 = por %p369, %p370
    %p373 = scmp.ne.s32.totalorder %s356, %s372
    %p374 = scmp.eq.s32.totalorder %s29, 0
    %p375 = por %p373, %p374
    %s376 = ssub.s32 %s31, %s38
    %p377 = scmp.eq.s32.totalorder %s376, 0
    %s379 = sadd.s32 %s378, 1
    %s380 = scalar_select %p377, %s378, %s379
    %p383 = pneg %p377
    %p384 = scmp.eq.s32.totalorder %s23, 3
    %p385 = por %p383, %p384
    %p386 = scmp.ne.s32.totalorder %s378, %s381
    %p387 = scmp.eq.s32.totalorder %s23, 0
    %p388 = por %p386, %p387
    %p389 = scmp.ne.s32.totalorder %s378, %s381
    %p390 = scmp.eq.s32.totalorder %s28, 3
    %p391 = por %p389, %p390
    %p392 = scmp.ne.s32.totalorder %s381, %s382
    %p393 = scmp.eq.s32.totalorder %s28, 0
    %p394 = por %p392, %p393
    %p395 = scmp.ne.s32.totalorder %s381, %s382
    %p396 = scmp.eq.s32.totalorder %s29, 3
    %p397 = por %p395, %p396
    %p399 = scmp.ne.s32.totalorder %s382, %s398
    %p400 = scmp.eq.s32.totalorder %s29, 0
    %p401 = por %p399, %p400
    %s403 = sadd.s32 %s402, 1
    %p406 = scmp.eq.s32.totalorder %s23, 3
    %p407 = scmp.ne.s32.totalorder %s402, %s404
    %p408 = scmp.eq.s32.totalorder %s23, 0
    %p409 = por %p407, %p408
    %p410 = scmp.ne.s32.totalorder %s402, %s404
    %p411 = scmp.eq.s32.totalorder %s28, 3
    %p412 = por %p410, %p411
    %p413 = scmp.ne.s32.totalorder %s404, %s405
    %p414 = scmp.eq.s32.totalorder %s28, 0
    %p415 = por %p413, %p414
    %p416 = scmp.ne.s32.totalorder %s404, %s405
    %p417 = scmp.eq.s32.totalorder %s29, 3
    %p418 = por %p416, %p417
    %p420 = scmp.ne.s32.totalorder %s405, %s419
    %p421 = scmp.eq.s32.totalorder %s29, 0
    %p422 = por %p420, %p421
    %s424 = sadd.s32 %s423, 1
    %p427 = scmp.eq.s32.totalorder %s23, 3
    %p428 = scmp.ne.s32.totalorder %s423, %s425
    %p429 = scmp.eq.s32.totalorder %s23, 0
    %p430 = por %p428, %p429
    %p431 = scmp.ne.s32.totalorder %s423, %s425
    %p432 = scmp.eq.s32.totalorder %s28, 3
    %p433 = por %p431, %p432
    %p434 = scmp.ne.s32.totalorder %s425, %s426
    %p435 = scmp.eq.s32.totalorder %s28, 0
    %p436 = por %p434, %p435
    %p437 = scmp.ne.s32.totalorder %s425, %s426
    %p438 = scmp.eq.s32.totalorder %s29, 3
    %p439 = por %p437, %p438
    %p441 = scmp.ne.s32.totalorder %s426, %s440
    %p442 = scmp.eq.s32.totalorder %s29, 0
    %p443 = por %p441, %p442
    %s445 = sadd.s32 %s444, 1
    %p448 = scmp.eq.s32.totalorder %s23, 3
    %p449 = scmp.ne.s32.totalorder %s444, %s446
    %p450 = scmp.eq.s32.totalorder %s23, 0
    %p451 = por %p449, %p450
    %p452 = scmp.ne.s32.totalorder %s444, %s446
    %p453 = scmp.eq.s32.totalorder %s28, 3
    %p454 = por %p452, %p453
    %p455 = scmp.ne.s32.totalorder %s446, %s447
    %p456 = scmp.eq.s32.totalorder %s28, 0
    %p457 = por %p455, %p456
    %p458 = scmp.ne.s32.totalorder %s446, %s447
    %p459 = scmp.eq.s32.totalorder %s29, 3
    %p460 = por %p458, %p459
    %p462 = scmp.ne.s32.totalorder %s447, %s461
    %p463 = scmp.eq.s32.totalorder %s29, 0
    %p464 = por %p462, %p463
    %s465 = ssub.s32 %s30, %s42
    %p466 = scmp.eq.s32.totalorder %s465, 0
    %s468 = sadd.s32 %s467, 1
    %s469 = scalar_select %p466, %s467, %s468
    %p472 = pneg %p466
    %p473 = scmp.eq.s32.totalorder %s23, 3
    %p474 = por %p472, %p473
    %p475 = scmp.ne.s32.totalorder %s467, %s470
    %p476 = scmp.eq.s32.totalorder %s23, 0
    %p477 = por %p475, %p476
    %p478 = scmp.ne.s32.totalorder %s467, %s470
    %p479 = scmp.eq.s32.totalorder %s28, 3
    %p480 = por %p478, %p479
    %p481 = scmp.ne.s32.totalorder %s470, %s471
    %p482 = scmp.eq.s32.totalorder %s28, 0
    %p483 = por %p481, %p482
    %p484 = scmp.ne.s32.totalorder %s470, %s471
    %p485 = scmp.eq.s32.totalorder %s29, 3
    %p486 = por %p484, %p485
    %p488 = scmp.ne.s32.totalorder %s471, %s487
    %p489 = scmp.eq.s32.totalorder %s29, 0
    %p490 = por %p488, %p489
    %p491 = scmp.le.s32.totalorder 1, %s23
    %p492 = scmp.lt.s32.totalorder %s23, 5
    %p493 = pnand %p491, %p492
    %p494 = pneg %p493
    // Predicated region
    $region9: #{_lambda_.1} parent=5 // pred_check
      _
    $region10: #{_lambda_.1} parent=5 // pred_check_branch
      %496 = sbr.rel (%p493) target = $region12
    $region11: #{_lambda_.1} parent=5 // pred_region
      %s497 = ssub.s32 %s23, 1
      // Predicated region
      $region13: #{_lambda_.1} parent=11 // pred_check
        %p498 = pneg %p82
      $region14: #{_lambda_.1} parent=11 // pred_check_branch
        %500 = sbr.rel (%p498) target = $region16
      $region15: #{_lambda_.1} parent=11 // pred_region
        _
      $region16: #{_lambda_.1} parent=11 // pred_fallthru
        _
      // Predicated region
      $region17: #{_lambda_.1} parent=11 // pred_check
        %p501 = pneg %p415
      $region18: #{_lambda_.1} parent=11 // pred_check_branch
        %503 = sbr.rel (%p501) target = $region20
      $region19: #{_lambda_.1} parent=11 // pred_region
        _
      $region20: #{_lambda_.1} parent=11 // pred_fallthru
        _
      // Predicated region
      $region21: #{_lambda_.1} parent=11 // pred_check
        %p504 = pneg %p436
      $region22: #{_lambda_.1} parent=11 // pred_check_branch
        %506 = sbr.rel (%p504) target = $region24
      $region23: #{_lambda_.1} parent=11 // pred_region
        _
      $region24: #{_lambda_.1} parent=11 // pred_fallthru
        _
      // Predicated region
      $region25: #{_lambda_.1} parent=11 // pred_check
        %p507 = pneg %p457
      $region26: #{_lambda_.1} parent=11 // pred_check_branch
        %509 = sbr.rel (%p507) target = $region28
      $region27: #{_lambda_.1} parent=11 // pred_region
        _
      $region28: #{_lambda_.1} parent=11 // pred_fallthru
        _
    $region12: #{_lambda_.1} parent=5 // pred_fallthru
      _
    %p510 = scmp.lt.s32.totalorder %s23, 4
    // Predicated region
    $region29: #{_lambda_.1} parent=5 // pred_check
      %p511 = pneg %p510
    $region30: #{_lambda_.1} parent=5 // pred_check_branch
      %513 = sbr.rel (%p511) target = $region32
    $region31: #{_lambda_.1} parent=5 // pred_region
      // Predicated region
      $region33: #{_lambda_.1} parent=31 // pred_check
        %p514 = pneg %p55
      $region34: #{_lambda_.1} parent=31 // pred_check_branch
        %516 = sbr.rel (%p514) target = $region36
      $region35: #{_lambda_.1} parent=31 // pred_region
        %s517 = smul.u32 2, %s30
        %p518 = scmp.lt.s32.totalorder %s517, 3
        %s519 = scalar_select %p518, %s517, 3
        %s520 = smul.addr %s519, 8
        %s521 = smul.addr %s520, 8
        %s522 = scalar_lea.vmem %s0, %s521
        %s523 = smul.u32 2, %s30
      $region36: #{_lambda_.1} parent=31 // pred_fallthru
        _
      // Predicated region
      $region37: #{_lambda_.1} parent=31 // pred_check
        %p524 = pneg %p102
      $region38: #{_lambda_.1} parent=31 // pred_check_branch
        %526 = sbr.rel (%p524) target = $region40
      $region39: #{_lambda_.1} parent=31 // pred_region
        %p527 = scmp.lt.s32.totalorder %s31, 1
        %s528 = scalar_select %p527, %s31, 1
        %s529 = scalar_lea.vmem %s2, %s528
      $region40: #{_lambda_.1} parent=31 // pred_fallthru
        _
      // Predicated region
      $region41: #{_lambda_.1} parent=31 // pred_check
        %p530 = pneg %p128
      $region42: #{_lambda_.1} parent=31 // pred_check_branch
        %532 = sbr.rel (%p530) target = $region44
      $region43: #{_lambda_.1} parent=31 // pred_region
        %p533 = scmp.lt.s32.totalorder %s31, 1
        %s534 = scalar_select %p533, %s31, 1
        %s535 = scalar_lea.vmem %s3, %s534
      $region44: #{_lambda_.1} parent=31 // pred_fallthru
        _
      // Predicated region
      $region45: #{_lambda_.1} parent=31 // pred_check
        %p536 = pneg %p154
      $region46: #{_lambda_.1} parent=31 // pred_check_branch
        %538 = sbr.rel (%p536) target = $region48
      $region47: #{_lambda_.1} parent=31 // pred_region
        %p539 = scmp.lt.s32.totalorder %s31, 1
        %s540 = scalar_select %p539, %s31, 1
        %s541 = smul.addr %s540, 48
        %s542 = smul.addr %s541, 4
        %s543 = scalar_lea.vmem %s4, %s542
      $region48: #{_lambda_.1} parent=31 // pred_fallthru
        _
      // Predicated region
      $region49: #{_lambda_.1} parent=31 // pred_check
        %p544 = pneg %p180
      $region50: #{_lambda_.1} parent=31 // pred_check_branch
        %546 = sbr.rel (%p544) target = $region52
      $region51: #{_lambda_.1} parent=31 // pred_region
        %p547 = scmp.lt.s32.totalorder %s31, 1
        %s548 = scalar_select %p547, %s31, 1
        %s549 = smul.addr %s548, 3
        %s550 = scalar_lea.vmem %s5, %s549
      $region52: #{_lambda_.1} parent=31 // pred_fallthru
        _
      // Predicated region
      $region53: #{_lambda_.1} parent=31 // pred_check
        %p551 = pneg %p206
      $region54: #{_lambda_.1} parent=31 // pred_check_branch
        %553 = sbr.rel (%p551) target = $region56
      $region55: #{_lambda_.1} parent=31 // pred_region
        %p554 = scmp.lt.s32.totalorder %s31, 1
        %s555 = scalar_select %p554, %s31, 1
        %s556 = smul.addr %s555, 16
        %s557 = smul.addr %s556, 4
        %s558 = scalar_lea.vmem %s6, %s557
      $region56: #{_lambda_.1} parent=31 // pred_fallthru
        _
      // Predicated region
      $region57: #{_lambda_.1} parent=31 // pred_check
        %p559 = pneg %p232
      $region58: #{_lambda_.1} parent=31 // pred_check_branch
        %561 = sbr.rel (%p559) target = $region60
      $region59: #{_lambda_.1} parent=31 // pred_region
        %p562 = scmp.lt.s32.totalorder %s31, 1
        %s563 = scalar_select %p562, %s31, 1
        %s564 = scalar_lea.vmem %s7, %s563
      $region60: #{_lambda_.1} parent=31 // pred_fallthru
        _
      // Predicated region
      $region61: #{_lambda_.1} parent=31 // pred_check
        %p565 = pneg %p258
      $region62: #{_lambda_.1} parent=31 // pred_check_branch
        %567 = sbr.rel (%p565) target = $region64
      $region63: #{_lambda_.1} parent=31 // pred_region
        %p568 = scmp.lt.s32.totalorder %s31, 1
        %s569 = scalar_select %p568, %s31, 1
        %s570 = scalar_lea.vmem %s8, %s569
      $region64: #{_lambda_.1} parent=31 // pred_fallthru
        _
      // Predicated region
      $region65: #{_lambda_.1} parent=31 // pred_check
        %p571 = pneg %p284
      $region66: #{_lambda_.1} parent=31 // pred_check_branch
        %573 = sbr.rel (%p571) target = $region68
      $region67: #{_lambda_.1} parent=31 // pred_region
        %p574 = scmp.lt.s32.totalorder %s31, 1
        %s575 = scalar_select %p574, %s31, 1
        %s576 = scalar_lea.vmem %s9, %s575
      $region68: #{_lambda_.1} parent=31 // pred_fallthru
        _
      // Predicated region
      $region69: #{_lambda_.1} parent=31 // pred_check
        %p577 = pneg %p310
      $region70: #{_lambda_.1} parent=31 // pred_check_branch
        %579 = sbr.rel (%p577) target = $region72
      $region71: #{_lambda_.1} parent=31 // pred_region
        %p580 = scmp.lt.s32.totalorder %s31, 1
        %s581 = scalar_select %p580, %s31, 1
        %s582 = smul.addr %s581, 64
        %s583 = smul.addr %s582, 4
        %s584 = scalar_lea.vmem %s10, %s583
      $region72: #{_lambda_.1} parent=31 // pred_fallthru
        _
      // Predicated region
      $region73: #{_lambda_.1} parent=31 // pred_check
        %p585 = pneg %p336
      $region74: #{_lambda_.1} parent=31 // pred_check_branch
        %587 = sbr.rel (%p585) target = $region76
      $region75: #{_lambda_.1} parent=31 // pred_region
        %p588 = scmp.lt.s32.totalorder %s31, 1
        %s589 = scalar_select %p588, %s31, 1
        %s590 = smul.addr %s589, 4
        %s591 = scalar_lea.vmem %s11, %s590
      $region76: #{_lambda_.1} parent=31 // pred_fallthru
        _
      // Predicated region
      $region77: #{_lambda_.1} parent=31 // pred_check
        %p592 = pneg %p362
      $region78: #{_lambda_.1} parent=31 // pred_check_branch
        %594 = sbr.rel (%p592) target = $region80
      $region79: #{_lambda_.1} parent=31 // pred_region
        %p595 = scmp.lt.s32.totalorder %s31, 1
        %s596 = scalar_select %p595, %s31, 1
        %s597 = smul.addr %s596, 64
        %s598 = smul.addr %s597, 4
        %s599 = scalar_lea.vmem %s12, %s598
      $region80: #{_lambda_.1} parent=31 // pred_fallthru
        _
      // Predicated region
      $region81: #{_lambda_.1} parent=31 // pred_check
        %p600 = pneg %p388
      $region82: #{_lambda_.1} parent=31 // pred_check_branch
        %602 = sbr.rel (%p600) target = $region84
      $region83: #{_lambda_.1} parent=31 // pred_region
        %p603 = scmp.lt.s32.totalorder %s31, 1
        %s604 = scalar_select %p603, %s31, 1
        %s605 = scalar_lea.vmem %s13, %s604
      $region84: #{_lambda_.1} parent=31 // pred_fallthru
        _
    $region32: #{_lambda_.1} parent=5 // pred_fallthru
      _
    %p606 = scmp.le.s32.totalorder 1, %s23
    %p607 = scmp.lt.s32.totalorder %s23, 5
    %p608 = pnand %p606, %p607
    %p609 = pneg %p608
    // Predicated region
    $region85: #{_lambda_.1} parent=5 // pred_check
      _
    $region86: #{_lambda_.1} parent=5 // pred_check_branch
      %611 = sbr.rel (%p608) target = $region88
    $region87: #{_lambda_.1} parent=5 // pred_region
      %s612 = ssub.s32 %s23, 1
      %s613 = smul.u32 2, %s32
      %p614 = scmp.lt.s32.totalorder %s613, 3
      %s615 = scalar_select %p614, %s613, 3
      %s616 = smul.addr %s615, 8
      %s617 = smul.addr %s616, 8
      %s618 = scalar_lea.vmem %s0, %s617
      %p619 = pneg %p61
      %p620 = pneg %p58
      %p621 = pneg %p82
      %p622 = pneg %p79
      %p623 = scmp.lt.s32.totalorder %s33, 1
      %s624 = scalar_select %p623, %s33, 1
      %s625 = scalar_lea.vmem %s2, %s624
      %p626 = pneg %p108
      %p627 = pneg %p105
      %p628 = scmp.lt.s32.totalorder %s33, 1
      %s629 = scalar_select %p628, %s33, 1
      %s630 = scalar_lea.vmem %s3, %s629
      %p631 = pneg %p134
      %p632 = pneg %p131
      %p633 = scmp.lt.s32.totalorder %s33, 1
      %s634 = scalar_select %p633, %s33, 1
      %s635 = smul.addr %s634, 48
      %s636 = smul.addr %s635, 4
      %s637 = scalar_lea.vmem %s4, %s636
      %p638 = pneg %p160
      %p639 = pneg %p157
      %p640 = scmp.lt.s32.totalorder %s33, 1
      %s641 = scalar_select %p640, %s33, 1
      %s642 = smul.addr %s641, 3
      %s643 = scalar_lea.vmem %s5, %s642
      %p644 = pneg %p186
      %p645 = pneg %p183
      %p646 = scmp.lt.s32.totalorder %s33, 1
      %s647 = scalar_select %p646, %s33, 1
      %s648 = smul.addr %s647, 16
      %s649 = smul.addr %s648, 4
      %s650 = scalar_lea.vmem %s6, %s649
      %p651 = pneg %p212
      %p652 = pneg %p209
      %p653 = scmp.lt.s32.totalorder %s33, 1
      %s654 = scalar_select %p653, %s33, 1
      %s655 = scalar_lea.vmem %s7, %s654
      %p656 = pneg %p238
      %p657 = pneg %p235
      %p658 = scmp.lt.s32.totalorder %s33, 1
      %s659 = scalar_select %p658, %s33, 1
      %s660 = scalar_lea.vmem %s8, %s659
      %p661 = pneg %p264
      %p662 = pneg %p261
      %p663 = scmp.lt.s32.totalorder %s33, 1
      %s664 = scalar_select %p663, %s33, 1
      %s665 = scalar_lea.vmem %s9, %s664
      %p666 = pneg %p290
      %p667 = pneg %p287
      %p668 = scmp.lt.s32.totalorder %s33, 1
      %s669 = scalar_select %p668, %s33, 1
      %s670 = smul.addr %s669, 64
      %s671 = smul.addr %s670, 4
      %s672 = scalar_lea.vmem %s10, %s671
      %p673 = pneg %p316
      %p674 = pneg %p313
      %p675 = scmp.lt.s32.totalorder %s33, 1
      %s676 = scalar_select %p675, %s33, 1
      %s677 = smul.addr %s676, 4
      %s678 = scalar_lea.vmem %s11, %s677
      %p679 = pneg %p342
      %p680 = pneg %p339
      %p681 = scmp.lt.s32.totalorder %s33, 1
      %s682 = scalar_select %p681, %s33, 1
      %s683 = smul.addr %s682, 64
      %s684 = smul.addr %s683, 4
      %s685 = scalar_lea.vmem %s12, %s684
      %p686 = pneg %p368
      %p687 = pneg %p365
      %p688 = scmp.lt.s32.totalorder %s33, 1
      %s689 = scalar_select %p688, %s33, 1
      %s690 = scalar_lea.vmem %s13, %s689
      %p691 = pneg %p394
      %p692 = pneg %p391
      %p693 = pneg %p415
      %p694 = pneg %p412
      %p695 = pneg %p436
      %p696 = pneg %p433
      %p697 = pneg %p457
      %p698 = pneg %p454
      %p699 = pneg %p483
      %p700 = pneg %p480
      %s701 = smul.u32 2, %s32
      %p702 = scmp.lt.s32.totalorder %s701, 3
      %s703 = scalar_select %p702, %s701, 3
      %s704 = smul.addr %s703, 8
      %s705 = smul.addr %s704, 8
      %s706 = scalar_lea.vmem %s17, %s705
      %s707 = smul.u32 2, %s32
      %p708 = scmp.lt.s32.totalorder %s707, 3
      %s709 = scalar_select %p708, %s707, 3
      %s710 = smul.addr %s709, 8
      %s711 = smul.addr %s710, 8
      %s712 = scalar_lea.vmem %s0, %s711
      %s713 = smul.u32 2, %s32
      %p714 = scmp.lt.s32.totalorder %s33, 1
      %s715 = scalar_select %p714, %s33, 1
      %s716 = scalar_lea.vmem %s2, %s715
      %p717 = scmp.lt.s32.totalorder %s33, 1
      %s718 = scalar_select %p717, %s33, 1
      %s719 = scalar_lea.vmem %s3, %s718
      %p720 = scmp.lt.s32.totalorder %s33, 1
      %s721 = scalar_select %p720, %s33, 1
      %s722 = smul.addr %s721, 48
      %s723 = smul.addr %s722, 4
      %s724 = scalar_lea.vmem %s4, %s723
      %p725 = scmp.lt.s32.totalorder %s33, 1
      %s726 = scalar_select %p725, %s33, 1
      %s727 = smul.addr %s726, 3
      %s728 = scalar_lea.vmem %s5, %s727
      %p729 = scmp.lt.s32.totalorder %s33, 1
      %s730 = scalar_select %p729, %s33, 1
      %s731 = smul.addr %s730, 16
      %s732 = smul.addr %s731, 4
      %s733 = scalar_lea.vmem %s6, %s732
      %p734 = scmp.lt.s32.totalorder %s33, 1
      %s735 = scalar_select %p734, %s33, 1
      %s736 = scalar_lea.vmem %s7, %s735
      %p737 = scmp.lt.s32.totalorder %s33, 1
      %s738 = scalar_select %p737, %s33, 1
      %s739 = scalar_lea.vmem %s8, %s738
      %p740 = scmp.lt.s32.totalorder %s33, 1
      %s741 = scalar_select %p740, %s33, 1
      %s742 = scalar_lea.vmem %s9, %s741
      %p743 = scmp.lt.s32.totalorder %s33, 1
      %s744 = scalar_select %p743, %s33, 1
      %s745 = smul.addr %s744, 64
      %s746 = smul.addr %s745, 4
      %s747 = scalar_lea.vmem %s10, %s746
      %p748 = scmp.lt.s32.totalorder %s33, 1
      %s749 = scalar_select %p748, %s33, 1
      %s750 = smul.addr %s749, 4
      %s751 = scalar_lea.vmem %s11, %s750
      %p752 = scmp.lt.s32.totalorder %s33, 1
      %s753 = scalar_select %p752, %s33, 1
      %s754 = smul.addr %s753, 64
      %s755 = smul.addr %s754, 4
      %s756 = scalar_lea.vmem %s12, %s755
      %p757 = scmp.lt.s32.totalorder %s33, 1
      %s758 = scalar_select %p757, %s33, 1
      %s759 = scalar_lea.vmem %s13, %s758
      %s760 = smul.u32 2, %s32
      %p761 = scmp.lt.s32.totalorder %s760, 3
      %s762 = scalar_select %p761, %s760, 3
      %s763 = smul.addr %s762, 8
      %s764 = smul.addr %s763, 8
      %s765 = scalar_lea.vmem %s17, %s764
      %s766 = smul.u32 2, %s32
      %p768 = scmp.eq.s32.totalorder %s33, 0
      // Predicated region
      $region89: #{_lambda_.1} parent=87 // pred_check
        %p769 = pneg %p768
      $region90: #{_lambda_.1} parent=87 // pred_check_branch
        %771 = sbr.rel (%p769) target = $region92
      $region91: #{_lambda_.1} parent=87 // pred_region
        %v772 = vld [vmem:[%s712] sm:$0xff]
        %v773 = vld [vmem:[%s712 + $0x8] sm:$0xff]
        %v774 = vld [vmem:[%s712 + $0x10] sm:$0xff]
        %v775 = vld [vmem:[%s712 + $0x18] sm:$0xff]
        %v776 = vld [vmem:[%s712 + $0x20] sm:$0xff]
        %v777 = vld [vmem:[%s712 + $0x28] sm:$0xff]
        %v778 = vld [vmem:[%s712 + $0x30] sm:$0xff]
        %v779 = vld [vmem:[%s712 + $0x38] sm:$0xff]
        %v780 = vld [vmem:[%s712 + $0x40] sm:$0xff]
        %v781 = vld [vmem:[%s712 + $0x48] sm:$0xff]
        %v782 = vld [vmem:[%s712 + $0x50] sm:$0xff]
        %v783 = vld [vmem:[%s712 + $0x58] sm:$0xff]
        %v784 = vld [vmem:[%s712 + $0x60] sm:$0xff]
        %v785 = vld [vmem:[%s712 + $0x68] sm:$0xff]
        %v786 = vld [vmem:[%s712 + $0x70] sm:$0xff]
        %v787 = vld [vmem:[%s712 + $0x78] sm:$0xff]
        %788 = vst [vmem:[#allocation2] sm:$0xff] %v772
        %789 = vst [vmem:[#allocation2 + $0x8] sm:$0xff] %v773
        %790 = vst [vmem:[#allocation2 + $0x10] sm:$0xff] %v774
        %791 = vst [vmem:[#allocation2 + $0x18] sm:$0xff] %v775
        %792 = vst [vmem:[#allocation2 + $0x20] sm:$0xff] %v776
        %793 = vst [vmem:[#allocation2 + $0x28] sm:$0xff] %v777
        %794 = vst [vmem:[#allocation2 + $0x30] sm:$0xff] %v778
        %795 = vst [vmem:[#allocation2 + $0x38] sm:$0xff] %v779
        %796 = vst [vmem:[#allocation2 + $0x40] sm:$0xff] %v780
        %797 = vst [vmem:[#allocation2 + $0x48] sm:$0xff] %v781
        %798 = vst [vmem:[#allocation2 + $0x50] sm:$0xff] %v782
        %799 = vst [vmem:[#allocation2 + $0x58] sm:$0xff] %v783
        %800 = vst [vmem:[#allocation2 + $0x60] sm:$0xff] %v784
        %801 = vst [vmem:[#allocation2 + $0x68] sm:$0xff] %v785
        %802 = vst [vmem:[#allocation2 + $0x70] sm:$0xff] %v786
        %803 = vst [vmem:[#allocation2 + $0x78] sm:$0xff] %v787
      $region92: #{_lambda_.1} parent=87 // pred_fallthru
        _
      %v804 = vld [vmem:[%s1] sm:$0xff]
      %v805 = vld [vmem:[%s1 + $0x8] sm:$0xff]
      %v806 = vld [vmem:[%s1 + $0x10] sm:$0xff]
      %v807 = vld [vmem:[%s1 + $0x18] sm:$0xff]
      %v808 = vld [vmem:[%s1 + $0x20] sm:$0xff]
      %v809 = vld [vmem:[%s1 + $0x28] sm:$0xff]
      %v810 = vld [vmem:[%s1 + $0x30] sm:$0xff]
      %v811 = vld [vmem:[%s1 + $0x38] sm:$0xff]
      %v812 = vld [vmem:[#allocation2] sm:$0xff]
      %v813 = vld [vmem:[#allocation2 + $0x8] sm:$0xff]
      %v814 = vld [vmem:[#allocation2 + $0x10] sm:$0xff]
      %v815 = vld [vmem:[#allocation2 + $0x18] sm:$0xff]
      %v816 = vld [vmem:[#allocation2 + $0x20] sm:$0xff]
      %v817 = vld [vmem:[#allocation2 + $0x28] sm:$0xff]
      %v818 = vld [vmem:[#allocation2 + $0x30] sm:$0xff]
      %v819 = vld [vmem:[#allocation2 + $0x38] sm:$0xff]
      %v820 = vld [vmem:[#allocation2 + $0x40] sm:$0xff]
      %v821 = vld [vmem:[#allocation2 + $0x48] sm:$0xff]
      %v822 = vld [vmem:[#allocation2 + $0x50] sm:$0xff]
      %v823 = vld [vmem:[#allocation2 + $0x58] sm:$0xff]
      %v824 = vld [vmem:[#allocation2 + $0x60] sm:$0xff]
      %v825 = vld [vmem:[#allocation2 + $0x68] sm:$0xff]
      %v826 = vld [vmem:[#allocation2 + $0x70] sm:$0xff]
      %v827 = vld [vmem:[#allocation2 + $0x78] sm:$0xff]
      %v828 = vld [vmem:[%s716] sm:$0x1]
      %v829 = vld [vmem:[%s719] sm:$0x1]
      %v830 = vld [vmem:[%s724] sm:$0xff]
      %v831 = vld [vmem:[%s724 + $0x8] sm:$0xf]
      %v832 = vld [vmem:[%s724 + $0xc] sm:$0xff]
      %v833 = vld [vmem:[%s724 + $0x14] sm:$0xf]
      %v834 = vld [vmem:[%s724 + $0x18] sm:$0xff]
      %v835 = vld [vmem:[%s724 + $0x20] sm:$0xf]
      %v836 = vld [vmem:[%s724 + $0x24] sm:$0xff]
      %v837 = vld [vmem:[%s724 + $0x2c] sm:$0xf]
      %v838 = vld [vmem:[%s724 + $0x30] sm:$0xff]
      %v839 = vld [vmem:[%s724 + $0x38] sm:$0xf]
      %v840 = vld [vmem:[%s724 + $0x3c] sm:$0xff]
      %v841 = vld [vmem:[%s724 + $0x44] sm:$0xf]
      %v842 = vld [vmem:[%s724 + $0x48] sm:$0xff]
      %v843 = vld [vmem:[%s724 + $0x50] sm:$0xf]
      %v844 = vld [vmem:[%s724 + $0x54] sm:$0xff]
      %v845 = vld [vmem:[%s724 + $0x5c] sm:$0xf]
      %v846 = vld [vmem:[%s724 + $0x60] sm:$0xff]
      %v847 = vld [vmem:[%s724 + $0x68] sm:$0xf]
      %v848 = vld [vmem:[%s724 + $0x6c] sm:$0xff]
      %v849 = vld [vmem:[%s724 + $0x74] sm:$0xf]
      %v850 = vld [vmem:[%s724 + $0x78] sm:$0xff]
      %v851 = vld [vmem:[%s724 + $0x80] sm:$0xf]
      %v852 = vld [vmem:[%s724 + $0x84] sm:$0xff]
      %v853 = vld [vmem:[%s724 + $0x8c] sm:$0xf]
      %v854 = vld [vmem:[%s724 + $0x90] sm:$0xff]
      %v855 = vld [vmem:[%s724 + $0x98] sm:$0xf]
      %v856 = vld [vmem:[%s724 + $0x9c] sm:$0xff]
      %v857 = vld [vmem:[%s724 + $0xa4] sm:$0xf]
      %v858 = vld [vmem:[%s724 + $0xa8] sm:$0xff]
      %v859 = vld [vmem:[%s724 + $0xb0] sm:$0xf]
      %v860 = vld [vmem:[%s724 + $0xb4] sm:$0xff]
      %v861 = vld [vmem:[%s724 + $0xbc] sm:$0xf]
      %v862 = vld [vmem:[%s728] sm:$0x7]
      %v863 = vld [vmem:[%s733] sm:$0xf]
      %v864 = vld [vmem:[%s733 + $0x4] sm:$0xf]
      %v865 = vld [vmem:[%s733 + $0x8] sm:$0xf]
      %v866 = vld [vmem:[%s733 + $0xc] sm:$0xf]
      %v867 = vld [vmem:[%s733 + $0x10] sm:$0xf]
      %v868 = vld [vmem:[%s733 + $0x14] sm:$0xf]
      %v869 = vld [vmem:[%s733 + $0x18] sm:$0xf]
      %v870 = vld [vmem:[%s733 + $0x1c] sm:$0xf]
      %v871 = vld [vmem:[%s733 + $0x20] sm:$0xf]
      %v872 = vld [vmem:[%s733 + $0x24] sm:$0xf]
      %v873 = vld [vmem:[%s733 + $0x28] sm:$0xf]
      %v874 = vld [vmem:[%s733 + $0x2c] sm:$0xf]
      %v875 = vld [vmem:[%s733 + $0x30] sm:$0xf]
      %v876 = vld [vmem:[%s733 + $0x34] sm:$0xf]
      %v877 = vld [vmem:[%s733 + $0x38] sm:$0xf]
      %v878 = vld [vmem:[%s733 + $0x3c] sm:$0xf]
      %v879 = vld [vmem:[%s736] sm:$0x1]
      %v880 = vld [vmem:[%s739] sm:$0x1]
      %v881 = vld [vmem:[%s742] sm:$0x1]
      %v882 = vld [vmem:[%s747] sm:$0xff]
      %v883 = vld [vmem:[%s747 + $0x8] sm:$0xff]
      %v884 = vld [vmem:[%s747 + $0x10] sm:$0xff]
      %v885 = vld [vmem:[%s747 + $0x18] sm:$0xff]
      %v886 = vld [vmem:[%s747 + $0x20] sm:$0xff]
      %v887 = vld [vmem:[%s747 + $0x28] sm:$0xff]
      %v888 = vld [vmem:[%s747 + $0x30] sm:$0xff]
      %v889 = vld [vmem:[%s747 + $0x38] sm:$0xff]
      %v890 = vld [vmem:[%s747 + $0x40] sm:$0xff]
      %v891 = vld [vmem:[%s747 + $0x48] sm:$0xff]
      %v892 = vld [vmem:[%s747 + $0x50] sm:$0xff]
      %v893 = vld [vmem:[%s747 + $0x58] sm:$0xff]
      %v894 = vld [vmem:[%s747 + $0x60] sm:$0xff]
      %v895 = vld [vmem:[%s747 + $0x68] sm:$0xff]
      %v896 = vld [vmem:[%s747 + $0x70] sm:$0xff]
      %v897 = vld [vmem:[%s747 + $0x78] sm:$0xff]
      %v898 = vld [vmem:[%s747 + $0x80] sm:$0xff]
      %v899 = vld [vmem:[%s747 + $0x88] sm:$0xff]
      %v900 = vld [vmem:[%s747 + $0x90] sm:$0xff]
      %v901 = vld [vmem:[%s747 + $0x98] sm:$0xff]
      %v902 = vld [vmem:[%s747 + $0xa0] sm:$0xff]
      %v903 = vld [vmem:[%s747 + $0xa8] sm:$0xff]
      %v904 = vld [vmem:[%s747 + $0xb0] sm:$0xff]
      %v905 = vld [vmem:[%s747 + $0xb8] sm:$0xff]
      %v906 = vld [vmem:[%s747 + $0xc0] sm:$0xff]
      %v907 = vld [vmem:[%s747 + $0xc8] sm:$0xff]
      %v908 = vld [vmem:[%s747 + $0xd0] sm:$0xff]
      %v909 = vld [vmem:[%s747 + $0xd8] sm:$0xff]
      %v910 = vld [vmem:[%s747 + $0xe0] sm:$0xff]
      %v911 = vld [vmem:[%s747 + $0xe8] sm:$0xff]
      %v912 = vld [vmem:[%s747 + $0xf0] sm:$0xff]
      %v913 = vld [vmem:[%s747 + $0xf8] sm:$0xff]
      %v914 = vld [vmem:[%s751] sm:$0xf]
      %v915 = vld [vmem:[%s756] sm:$0xf]
      %v916 = vld [vmem:[%s756 + $0x4] sm:$0xf]
      %v917 = vld [vmem:[%s756 + $0x8] sm:$0xf]
      %v918 = vld [vmem:[%s756 + $0xc] sm:$0xf]
      %v919 = vld [vmem:[%s756 + $0x10] sm:$0xf]
      %v920 = vld [vmem:[%s756 + $0x14] sm:$0xf]
      %v921 = vld [vmem:[%s756 + $0x18] sm:$0xf]
      %v922 = vld [vmem:[%s756 + $0x1c] sm:$0xf]
      %v923 = vld [vmem:[%s756 + $0x20] sm:$0xf]
      %v924 = vld [vmem:[%s756 + $0x24] sm:$0xf]
      %v925 = vld [vmem:[%s756 + $0x28] sm:$0xf]
      %v926 = vld [vmem:[%s756 + $0x2c] sm:$0xf]
      %v927 = vld [vmem:[%s756 + $0x30] sm:$0xf]
      %v928 = vld [vmem:[%s756 + $0x34] sm:$0xf]
      %v929 = vld [vmem:[%s756 + $0x38] sm:$0xf]
      %v930 = vld [vmem:[%s756 + $0x3c] sm:$0xf]
      %v931 = vld [vmem:[%s756 + $0x40] sm:$0xf]
      %v932 = vld [vmem:[%s756 + $0x44] sm:$0xf]
      %v933 = vld [vmem:[%s756 + $0x48] sm:$0xf]
      %v934 = vld [vmem:[%s756 + $0x4c] sm:$0xf]
      %v935 = vld [vmem:[%s756 + $0x50] sm:$0xf]
      %v936 = vld [vmem:[%s756 + $0x54] sm:$0xf]
      %v937 = vld [vmem:[%s756 + $0x58] sm:$0xf]
      %v938 = vld [vmem:[%s756 + $0x5c] sm:$0xf]
      %v939 = vld [vmem:[%s756 + $0x60] sm:$0xf]
      %v940 = vld [vmem:[%s756 + $0x64] sm:$0xf]
      %v941 = vld [vmem:[%s756 + $0x68] sm:$0xf]
      %v942 = vld [vmem:[%s756 + $0x6c] sm:$0xf]
      %v943 = vld [vmem:[%s756 + $0x70] sm:$0xf]
      %v944 = vld [vmem:[%s756 + $0x74] sm:$0xf]
      %v945 = vld [vmem:[%s756 + $0x78] sm:$0xf]
      %v946 = vld [vmem:[%s756 + $0x7c] sm:$0xf]
      %v947 = vld [vmem:[%s756 + $0x80] sm:$0xf]
      %v948 = vld [vmem:[%s756 + $0x84] sm:$0xf]
      %v949 = vld [vmem:[%s756 + $0x88] sm:$0xf]
      %v950 = vld [vmem:[%s756 + $0x8c] sm:$0xf]
      %v951 = vld [vmem:[%s756 + $0x90] sm:$0xf]
      %v952 = vld [vmem:[%s756 + $0x94] sm:$0xf]
      %v953 = vld [vmem:[%s756 + $0x98] sm:$0xf]
      %v954 = vld [vmem:[%s756 + $0x9c] sm:$0xf]
      %v955 = vld [vmem:[%s756 + $0xa0] sm:$0xf]
      %v956 = vld [vmem:[%s756 + $0xa4] sm:$0xf]
      %v957 = vld [vmem:[%s756 + $0xa8] sm:$0xf]
      %v958 = vld [vmem:[%s756 + $0xac] sm:$0xf]
      %v959 = vld [vmem:[%s756 + $0xb0] sm:$0xf]
      %v960 = vld [vmem:[%s756 + $0xb4] sm:$0xf]
      %v961 = vld [vmem:[%s756 + $0xb8] sm:$0xf]
      %v962 = vld [vmem:[%s756 + $0xbc] sm:$0xf]
      %v963 = vld [vmem:[%s756 + $0xc0] sm:$0xf]
      %v964 = vld [vmem:[%s756 + $0xc4] sm:$0xf]
      %v965 = vld [vmem:[%s756 + $0xc8] sm:$0xf]
      %v966 = vld [vmem:[%s756 + $0xcc] sm:$0xf]
      %v967 = vld [vmem:[%s756 + $0xd0] sm:$0xf]
      %v968 = vld [vmem:[%s756 + $0xd4] sm:$0xf]
      %v969 = vld [vmem:[%s756 + $0xd8] sm:$0xf]
      %v970 = vld [vmem:[%s756 + $0xdc] sm:$0xf]
      %v971 = vld [vmem:[%s756 + $0xe0] sm:$0xf]
      %v972 = vld [vmem:[%s756 + $0xe4] sm:$0xf]
      %v973 = vld [vmem:[%s756 + $0xe8] sm:$0xf]
      %v974 = vld [vmem:[%s756 + $0xec] sm:$0xf]
      %v975 = vld [vmem:[%s756 + $0xf0] sm:$0xf]
      %v976 = vld [vmem:[%s756 + $0xf4] sm:$0xf]
      %v977 = vld [vmem:[%s756 + $0xf8] sm:$0xf]
      %v978 = vld [vmem:[%s756 + $0xfc] sm:$0xf]
      %v979 = vld [vmem:[%s759] sm:$0x1]
      %980 = vadd.xlane.f32.xlu0 %v812
      %v981 = vpop.xlane.xlu0 %980
      %982 = vadd.xlane.f32.xlu0 %v813
      %v983 = vpop.xlane.xlu0 %982
      %984 = vadd.xlane.f32.xlu0 %v814
      %v985 = vpop.xlane.xlu0 %984
      %986 = vadd.xlane.f32.xlu0 %v815
      %v987 = vpop.xlane.xlu0 %986
      %988 = vadd.xlane.f32.xlu0 %v816
      %v989 = vpop.xlane.xlu0 %988
      %990 = vadd.xlane.f32.xlu0 %v817
      %v991 = vpop.xlane.xlu0 %990
      %992 = vadd.xlane.f32.xlu0 %v818
      %v993 = vpop.xlane.xlu0 %992
      %994 = vadd.xlane.f32.xlu0 %v819
      %v995 = vpop.xlane.xlu0 %994
      %996 = vadd.xlane.f32.xlu0 %v820
      %v997 = vpop.xlane.xlu0 %996
      %998 = vadd.xlane.f32.xlu0 %v821
      %v999 = vpop.xlane.xlu0 %998
      %1000 = vadd.xlane.f32.xlu0 %v822
      %v1001 = vpop.xlane.xlu0 %1000
      %1002 = vadd.xlane.f32.xlu0 %v823
      %v1003 = vpop.xlane.xlu0 %1002
      %1004 = vadd.xlane.f32.xlu0 %v824
      %v1005 = vpop.xlane.xlu0 %1004
      %1006 = vadd.xlane.f32.xlu0 %v825
      %v1007 = vpop.xlane.xlu0 %1006
      %1008 = vadd.xlane.f32.xlu0 %v826
      %v1009 = vpop.xlane.xlu0 %1008
      %1010 = vadd.xlane.f32.xlu0 %v827
      %v1011 = vpop.xlane.xlu0 %1010
      %v1012 = vrcp.pop 128.0
      %v1013 = vmul.f32 %v981, %v1012
      %v1014 = vmul.f32 %v983, %v1012
      %v1015 = vmul.f32 %v985, %v1012
      %v1016 = vmul.f32 %v987, %v1012
      %v1017 = vmul.f32 %v989, %v1012
      %v1018 = vmul.f32 %v991, %v1012
      %v1019 = vmul.f32 %v993, %v1012
      %v1020 = vmul.f32 %v995, %v1012
      %v1021 = vmul.f32 %v997, %v1012
      %v1022 = vmul.f32 %v999, %v1012
      %v1023 = vmul.f32 %v1001, %v1012
      %v1024 = vmul.f32 %v1003, %v1012
      %v1025 = vmul.f32 %v1005, %v1012
      %v1026 = vmul.f32 %v1007, %v1012
      %v1027 = vmul.f32 %v1009, %v1012
      %v1028 = vmul.f32 %v1011, %v1012
      %v1029 = vsub.f32 %v812, %v1013
      %v1030 = vsub.f32 %v813, %v1014
      %v1031 = vsub.f32 %v814, %v1015
      %v1032 = vsub.f32 %v815, %v1016
      %v1033 = vsub.f32 %v816, %v1017
      %v1034 = vsub.f32 %v817, %v1018
      %v1035 = vsub.f32 %v818, %v1019
      %v1036 = vsub.f32 %v819, %v1020
      %v1037 = vsub.f32 %v820, %v1021
      %v1038 = vsub.f32 %v821, %v1022
      %v1039 = vsub.f32 %v822, %v1023
      %v1040 = vsub.f32 %v823, %v1024
      %v1041 = vsub.f32 %v824, %v1025
      %v1042 = vsub.f32 %v825, %v1026
      %v1043 = vsub.f32 %v826, %v1027
      %v1044 = vsub.f32 %v827, %v1028
      %v1045 = vmul.f32 %v1029, %v1029
      %v1046 = vmul.f32 %v1030, %v1030
      %v1047 = vmul.f32 %v1031, %v1031
      %v1048 = vmul.f32 %v1032, %v1032
      %v1049 = vmul.f32 %v1033, %v1033
      %v1050 = vmul.f32 %v1034, %v1034
      %v1051 = vmul.f32 %v1035, %v1035
      %v1052 = vmul.f32 %v1036, %v1036
      %v1053 = vmul.f32 %v1037, %v1037
      %v1054 = vmul.f32 %v1038, %v1038
      %v1055 = vmul.f32 %v1039, %v1039
      %v1056 = vmul.f32 %v1040, %v1040
      %v1057 = vmul.f32 %v1041, %v1041
      %v1058 = vmul.f32 %v1042, %v1042
      %v1059 = vmul.f32 %v1043, %v1043
      %v1060 = vmul.f32 %v1044, %v1044
      %1061 = vadd.xlane.f32.xlu0 %v1045
      %v1062 = vpop.xlane.xlu0 %1061
      %1063 = vadd.xlane.f32.xlu0 %v1046
      %v1064 = vpop.xlane.xlu0 %1063
      %1065 = vadd.xlane.f32.xlu0 %v1047
      %v1066 = vpop.xlane.xlu0 %1065
      %1067 = vadd.xlane.f32.xlu0 %v1048
      %v1068 = vpop.xlane.xlu0 %1067
      %1069 = vadd.xlane.f32.xlu0 %v1049
      %v1070 = vpop.xlane.xlu0 %1069
      %1071 = vadd.xlane.f32.xlu0 %v1050
      %v1072 = vpop.xlane.xlu0 %1071
      %1073 = vadd.xlane.f32.xlu0 %v1051
      %v1074 = vpop.xlane.xlu0 %1073
      %1075 = vadd.xlane.f32.xlu0 %v1052
      %v1076 = vpop.xlane.xlu0 %1075
      %1077 = vadd.xlane.f32.xlu0 %v1053
      %v1078 = vpop.xlane.xlu0 %1077
      %1079 = vadd.xlane.f32.xlu0 %v1054
      %v1080 = vpop.xlane.xlu0 %1079
      %1081 = vadd.xlane.f32.xlu0 %v1055
      %v1082 = vpop.xlane.xlu0 %1081
      %1083 = vadd.xlane.f32.xlu0 %v1056
      %v1084 = vpop.xlane.xlu0 %1083
      %1085 = vadd.xlane.f32.xlu0 %v1057
      %v1086 = vpop.xlane.xlu0 %1085
      %1087 = vadd.xlane.f32.xlu0 %v1058
      %v1088 = vpop.xlane.xlu0 %1087
      %1089 = vadd.xlane.f32.xlu0 %v1059
      %v1090 = vpop.xlane.xlu0 %1089
      %1091 = vadd.xlane.f32.xlu0 %v1060
      %v1092 = vpop.xlane.xlu0 %1091
      %v1093 = vmul.f32 %v1062, %v1012
      %v1094 = vmul.f32 %v1064, %v1012
      %v1095 = vmul.f32 %v1066, %v1012
      %v1096 = vmul.f32 %v1068, %v1012
      %v1097 = vmul.f32 %v1070, %v1012
      %v1098 = vmul.f32 %v1072, %v1012
      %v1099 = vmul.f32 %v1074, %v1012
      %v1100 = vmul.f32 %v1076, %v1012
      %v1101 = vmul.f32 %v1078, %v1012
      %v1102 = vmul.f32 %v1080, %v1012
      %v1103 = vmul.f32 %v1082, %v1012
      %v1104 = vmul.f32 %v1084, %v1012
      %v1105 = vmul.f32 %v1086, %v1012
      %v1106 = vmul.f32 %v1088, %v1012
      %v1107 = vmul.f32 %v1090, %v1012
      %v1108 = vmul.f32 %v1092, %v1012
      %v1109 = vadd.f32 %v1093, 1e-05
      %v1110 = vadd.f32 %v1094, 1e-05
      %v1111 = vadd.f32 %v1095, 1e-05
      %v1112 = vadd.f32 %v1096, 1e-05
      %v1113 = vadd.f32 %v1097, 1e-05
      %v1114 = vadd.f32 %v1098, 1e-05
      %v1115 = vadd.f32 %v1099, 1e-05
      %v1116 = vadd.f32 %v1100, 1e-05
      %v1117 = vadd.f32 %v1101, 1e-05
      %v1118 = vadd.f32 %v1102, 1e-05
      %v1119 = vadd.f32 %v1103, 1e-05
      %v1120 = vadd.f32 %v1104, 1e-05
      %v1121 = vadd.f32 %v1105, 1e-05
      %v1122 = vadd.f32 %v1106, 1e-05
      %v1123 = vadd.f32 %v1107, 1e-05
      %v1124 = vadd.f32 %v1108, 1e-05
      %v1125 = vrsqrt.pop %v1109
      %v1126 = vrsqrt.pop %v1110
      %v1127 = vrsqrt.pop %v1111
      %v1128 = vrsqrt.pop %v1112
      %v1129 = vrsqrt.pop %v1113
      %v1130 = vrsqrt.pop %v1114
      %v1131 = vrsqrt.pop %v1115
      %v1132 = vrsqrt.pop %v1116
      %v1133 = vrsqrt.pop %v1117
      %v1134 = vrsqrt.pop %v1118
      %v1135 = vrsqrt.pop %v1119
      %v1136 = vrsqrt.pop %v1120
      %v1137 = vrsqrt.pop %v1121
      %v1138 = vrsqrt.pop %v1122
      %v1139 = vrsqrt.pop %v1123
      %v1140 = vrsqrt.pop %v1124
      %v1141 = vmul.f32 %v1029, %v1125
      %v1142 = vmul.f32 %v1030, %v1126
      %v1143 = vmul.f32 %v1031, %v1127
      %v1144 = vmul.f32 %v1032, %v1128
      %v1145 = vmul.f32 %v1033, %v1129
      %v1146 = vmul.f32 %v1034, %v1130
      %v1147 = vmul.f32 %v1035, %v1131
      %v1148 = vmul.f32 %v1036, %v1132
      %v1149 = vmul.f32 %v1037, %v1133
      %v1150 = vmul.f32 %v1038, %v1134
      %v1151 = vmul.f32 %v1039, %v1135
      %v1152 = vmul.f32 %v1040, %v1136
      %v1153 = vmul.f32 %v1041, %v1137
      %v1154 = vmul.f32 %v1042, %v1138
      %v1155 = vmul.f32 %v1043, %v1139
      %v1156 = vmul.f32 %v1044, %v1140
      %v1158 = vlaneseq
      %v1159 = vshrl.u32 %v1158, 7
      %v1160 = vsub.s32 0, %v1159
      %v1161 = vrot.slane %v828, %v1160
      %v1163 = vmul.f32 %v1141, %v1161
      %v1164 = vmul.f32 %v1142, %v1161
      %v1165 = vmul.f32 %v1143, %v1161
      %v1166 = vmul.f32 %v1144, %v1161
      %v1167 = vmul.f32 %v1145, %v1161
      %v1168 = vmul.f32 %v1146, %v1161
      %v1169 = vmul.f32 %v1147, %v1161
      %v1170 = vmul.f32 %v1148, %v1161
      %v1171 = vmul.f32 %v1149, %v1161
      %v1172 = vmul.f32 %v1150, %v1161
      %v1173 = vmul.f32 %v1151, %v1161
      %v1174 = vmul.f32 %v1152, %v1161
      %v1175 = vmul.f32 %v1153, %v1161
      %v1176 = vmul.f32 %v1154, %v1161
      %v1177 = vmul.f32 %v1155, %v1161
      %v1178 = vmul.f32 %v1156, %v1161
      %v1180 = vlaneseq
      %v1181 = vshrl.u32 %v1180, 7
      %v1182 = vsub.s32 0, %v1181
      %v1183 = vrot.slane %v829, %v1182
      %v1185 = vadd.f32 %v1163, %v1183
      %v1186 = vadd.f32 %v1164, %v1183
      %v1187 = vadd.f32 %v1165, %v1183
      %v1188 = vadd.f32 %v1166, %v1183
      %v1189 = vadd.f32 %v1167, %v1183
      %v1190 = vadd.f32 %v1168, %v1183
      %v1191 = vadd.f32 %v1169, %v1183
      %v1192 = vadd.f32 %v1170, %v1183
      %v1193 = vadd.f32 %v1171, %v1183
      %v1194 = vadd.f32 %v1172, %v1183
      %v1195 = vadd.f32 %v1173, %v1183
      %v1196 = vadd.f32 %v1174, %v1183
      %v1197 = vadd.f32 %v1175, %v1183
      %v1198 = vadd.f32 %v1176, %v1183
      %v1199 = vadd.f32 %v1177, %v1183
      %v1200 = vadd.f32 %v1178, %v1183
      %v1201 = vpack.c.bf16 %v1186, %v1185
      %v1202 = vpack.c.bf16 %v1188, %v1187
      %v1203 = vpack.c.bf16 %v1190, %v1189
      %v1204 = vpack.c.bf16 %v1192, %v1191
      %v1205 = vpack.c.bf16 %v1194, %v1193
      %v1206 = vpack.c.bf16 %v1196, %v1195
      %v1207 = vpack.c.bf16 %v1198, %v1197
      %v1208 = vpack.c.bf16 %v1200, %v1199
      %v1210 = vlaneseq
      %v1211 = vshrl.u32 %v1210, 7
      %v1212 = vsub.s32 0, %v1211
      %v1213 = vrot.slane %v862, %v1212
      %v1214 = vlaneseq
      %v1215 = vshrl.u32 %v1214, 7
      %v1216 = vsub.s32 1, %v1215
      %v1217 = vrot.slane %v862, %v1216
      %v1218 = vlaneseq
      %v1219 = vshrl.u32 %v1218, 7
      %v1220 = vsub.s32 2, %v1219
      %v1221 = vrot.slane %v862, %v1220
      %v1257 = vunpack.c.l.b16 %v830
      %v1258 = vunpack.c.h.b16 %v830
      %v1259 = vunpack.c.l.b16 %v831
      %v1260 = vunpack.c.l.b16 %v832
      %v1261 = vunpack.c.h.b16 %v832
      %v1262 = vunpack.c.l.b16 %v833
      %v1263 = vunpack.c.l.b16 %v834
      %v1264 = vunpack.c.h.b16 %v834
      %v1265 = vunpack.c.l.b16 %v835
      %v1266 = vunpack.c.l.b16 %v836
      %v1267 = vunpack.c.h.b16 %v836
      %v1268 = vunpack.c.l.b16 %v837
      %v1269 = vunpack.c.l.b16 %v838
      %v1270 = vunpack.c.h.b16 %v838
      %v1271 = vunpack.c.l.b16 %v839
      %v1272 = vunpack.c.l.b16 %v840
      %v1273 = vunpack.c.h.b16 %v840
      %v1274 = vunpack.c.l.b16 %v841
      %v1275 = vunpack.c.l.b16 %v842
      %v1276 = vunpack.c.h.b16 %v842
      %v1277 = vunpack.c.l.b16 %v843
      %v1278 = vunpack.c.l.b16 %v844
      %v1279 = vunpack.c.h.b16 %v844
      %v1280 = vunpack.c.l.b16 %v845
      %v1281 = vunpack.c.l.b16 %v846
      %v1282 = vunpack.c.h.b16 %v846
      %v1283 = vunpack.c.l.b16 %v847
      %v1284 = vunpack.c.l.b16 %v848
      %v1285 = vunpack.c.h.b16 %v848
      %v1286 = vunpack.c.l.b16 %v849
      %v1287 = vunpack.c.l.b16 %v850
      %v1288 = vunpack.c.h.b16 %v850
      %v1289 = vunpack.c.l.b16 %v851
      %v1290 = vunpack.c.l.b16 %v852
      %v1291 = vunpack.c.h.b16 %v852
      %v1292 = vunpack.c.l.b16 %v853
      %v1293 = vunpack.c.l.b16 %v854
      %v1294 = vunpack.c.h.b16 %v854
      %v1295 = vunpack.c.l.b16 %v855
      %v1296 = vunpack.c.l.b16 %v856
      %v1297 = vunpack.c.h.b16 %v856
      %v1298 = vunpack.c.l.b16 %v857
      %v1299 = vunpack.c.l.b16 %v858
      %v1300 = vunpack.c.h.b16 %v858
      %v1301 = vunpack.c.l.b16 %v859
      %v1302 = vunpack.c.l.b16 %v860
      %v1303 = vunpack.c.h.b16 %v860
      %v1304 = vunpack.c.l.b16 %v861
      %v1305 = vpack.c.b16 %v1260, %v1257
      %v1306 = vpack.c.b16 %v1261, %v1258
      %v1307 = vpack.c.b16 %v1262, %v1259
      %v1308 = vpack.c.b16 %v1266, %v1263
      %v1309 = vpack.c.b16 %v1267, %v1264
      %v1310 = vpack.c.b16 %v1268, %v1265
      %v1311 = vpack.c.b16 %v1272, %v1269
      %v1312 = vpack.c.b16 %v1273, %v1270
      %v1313 = vpack.c.b16 %v1274, %v1271
      %v1314 = vpack.c.b16 %v1278, %v1275
      %v1315 = vpack.c.b16 %v1279, %v1276
      %v1316 = vpack.c.b16 %v1280, %v1277
      %v1317 = vpack.c.b16 %v1284, %v1281
      %v1318 = vpack.c.b16 %v1285, %v1282
      %v1319 = vpack.c.b16 %v1286, %v1283
      %v1320 = vpack.c.b16 %v1290, %v1287
      %v1321 = vpack.c.b16 %v1291, %v1288
      %v1322 = vpack.c.b16 %v1292, %v1289
      %v1323 = vpack.c.b16 %v1296, %v1293
      %v1324 = vpack.c.b16 %v1297, %v1294
      %v1325 = vpack.c.b16 %v1298, %v1295
      %v1326 = vpack.c.b16 %v1302, %v1299
      %v1327 = vpack.c.b16 %v1303, %v1300
      %v1328 = vpack.c.b16 %v1304, %v1301
      %1353 = vmatprep.subr.bf16.mxu0 %v1306
      %1354 = vmatpush1.bf16.msra.mxu0 %v1305
      %1355 = vmatprep.subr.bf16.mxu0 %v1309
      %1356 = vmatpush1.bf16.msra.mxu0 %v1308
      %1357 = vmatprep.subr.bf16.mxu0 %v1312
      %1358 = vmatpush1.bf16.msra.mxu0 %v1311
      %1359 = vmatprep.subr.bf16.mxu0 %v1315
      %1360 = vmatpush1.bf16.msra.mxu0 %v1314
      %1361 = vmatprep.subr.bf16.mxu0 %v1318
      %1362 = vmatpush1.bf16.msra.mxu0 %v1317
      %1363 = vmatprep.subr.bf16.mxu0 %v1321
      %1364 = vmatpush1.bf16.msra.mxu0 %v1320
      %1365 = vmatprep.subr.bf16.mxu0 %v1324
      %1366 = vmatpush1.bf16.msra.mxu0 %v1323
      %1367 = vmatprep.subr.bf16.mxu0 %v1327
      %1368 = vmatpush1.bf16.msra.mxu0 %v1326
      %1369 = vmatprep.subr.bf16.mxu0 0
      %1370 = vmatpush1.bf16.msra.mxu0 0
      %1371 = vmatprep.subr.bf16.mxu0 0
      %1372 = vmatpush1.bf16.msra.mxu0 0
      %1373 = vmatprep.subr.bf16.mxu0 0
      %1374 = vmatpush1.bf16.msra.mxu0 0
      %1375 = vmatprep.subr.bf16.mxu0 0
      %1376 = vmatpush1.bf16.msra.mxu0 0
      %1377 = vmatprep.subr.bf16.mxu0 0
      %1378 = vmatpush1.bf16.msra.mxu0 0
      %1379 = vmatprep.subr.bf16.mxu0 0
      %1380 = vmatpush1.bf16.msra.mxu0 0
      %1381 = vmatprep.subr.bf16.mxu0 0
      %1382 = vmatpush1.bf16.msra.mxu0 0
      %1383 = vmatprep.subr.bf16.mxu0 0
      %1384 = vmatpush1.bf16.msra.mxu0 0
      %1385 = vmatprep.mubr.bf16.mxu0 0
      %1386 = vmatmul.mubr.bf16.gmra.mrb[0].mxu0 %v1201
      %v1387 = vpop.f32.mrb[0].mxu0
      %v1388 = vadd.f32 %v1213, %v1387
      %v1389 = vpop.f32.mrb[0].mxu0
      %v1390 = vadd.f32 %v1217, %v1389
      %v1391 = vpop.f32.mrb[0].mxu0
      %v1392 = vadd.f32 %v1213, %v1391
      %v1393 = vpop.f32.mrb[0].mxu0
      %v1394 = vadd.f32 %v1217, %v1393
      %1395 = vmatprep.mubr.bf16.mxu0 0
      %1396 = vmatmul.mubr.bf16.gmra.mrb[0].mxu0 %v1202
      %v1397 = vpop.f32.mrb[0].mxu0
      %v1398 = vadd.f32 %v1213, %v1397
      %v1399 = vpop.f32.mrb[0].mxu0
      %v1400 = vadd.f32 %v1217, %v1399
      %v1401 = vpop.f32.mrb[0].mxu0
      %v1402 = vadd.f32 %v1213, %v1401
      %v1403 = vpop.f32.mrb[0].mxu0
      %v1404 = vadd.f32 %v1217, %v1403
      %1405 = vmatprep.mubr.bf16.mxu0 0
      %1406 = vmatmul.mubr.bf16.gmra.mrb[0].mxu0 %v1203
      %v1407 = vpop.f32.mrb[0].mxu0
      %v1408 = vadd.f32 %v1213, %v1407
      %v1409 = vpop.f32.mrb[0].mxu0
      %v1410 = vadd.f32 %v1217, %v1409
      %v1411 = vpop.f32.mrb[0].mxu0
      %v1412 = vadd.f32 %v1213, %v1411
      %v1413 = vpop.f32.mrb[0].mxu0
      %v1414 = vadd.f32 %v1217, %v1413
      %1415 = vmatprep.mubr.bf16.mxu0 0
      %1416 = vmatmul.mubr.bf16.gmra.mrb[0].mxu0 %v1204
      %v1417 = vpop.f32.mrb[0].mxu0
      %v1418 = vadd.f32 %v1213, %v1417
      %v1419 = vpop.f32.mrb[0].mxu0
      %v1420 = vadd.f32 %v1217, %v1419
      %v1421 = vpop.f32.mrb[0].mxu0
      %v1422 = vadd.f32 %v1213, %v1421
      %v1423 = vpop.f32.mrb[0].mxu0
      %v1424 = vadd.f32 %v1217, %v1423
      %1425 = vmatprep.mubr.bf16.mxu0 0
      %1426 = vmatmul.mubr.bf16.gmra.mrb[0].mxu0 %v1205
      %v1427 = vpop.f32.mrb[0].mxu0
      %v1428 = vadd.f32 %v1213, %v1427
      %v1429 = vpop.f32.mrb[0].mxu0
      %v1430 = vadd.f32 %v1217, %v1429
      %v1431 = vpop.f32.mrb[0].mxu0
      %v1432 = vadd.f32 %v1213, %v1431
      %v1433 = vpop.f32.mrb[0].mxu0
      %v1434 = vadd.f32 %v1217, %v1433
      %1435 = vmatprep.mubr.bf16.mxu0 0
      %1436 = vmatmul.mubr.bf16.gmra.mrb[0].mxu0 %v1206
      %v1437 = vpop.f32.mrb[0].mxu0
      %v1438 = vadd.f32 %v1213, %v1437
      %v1439 = vpop.f32.mrb[0].mxu0
      %v1440 = vadd.f32 %v1217, %v1439
      %v1441 = vpop.f32.mrb[0].mxu0
      %v1442 = vadd.f32 %v1213, %v1441
      %v1443 = vpop.f32.mrb[0].mxu0
      %v1444 = vadd.f32 %v1217, %v1443
      %1445 = vmatprep.mubr.bf16.mxu0 0
      %1446 = vmatmul.mubr.bf16.gmra.mrb[0].mxu0 %v1207
      %v1447 = vpop.f32.mrb[0].mxu0
      %v1448 = vadd.f32 %v1213, %v1447
      %v1449 = vpop.f32.mrb[0].mxu0
      %v1450 = vadd.f32 %v1217, %v1449
      %v1451 = vpop.f32.mrb[0].mxu0
      %v1452 = vadd.f32 %v1213, %v1451
      %v1453 = vpop.f32.mrb[0].mxu0
      %v1454 = vadd.f32 %v1217, %v1453
      %1455 = vmatprep.mubr.bf16.mxu0 0
      %1456 = vmatmul.mubr.bf16.gmra.mrb[0].mxu0 %v1208
      %v1457 = vpop.f32.mrb[0].mxu0
      %v1458 = vadd.f32 %v1213, %v1457
      %v1459 = vpop.f32.mrb[0].mxu0
      %v1460 = vadd.f32 %v1217, %v1459
      %v1461 = vpop.f32.mrb[0].mxu0
      %v1462 = vadd.f32 %v1213, %v1461
      %v1463 = vpop.f32.mrb[0].mxu0
      %v1464 = vadd.f32 %v1217, %v1463
      %1465 = vdwg.mxu0
      %1466 = vmatprep.subr.bf16.mxu0 0
      %1467 = vmatpush1.bf16.msra.mxu0 %v1307
      %1468 = vmatprep.subr.bf16.mxu0 0
      %1469 = vmatpush1.bf16.msra.mxu0 %v1310
      %1470 = vmatprep.subr.bf16.mxu0 0
      %1471 = vmatpush1.bf16.msra.mxu0 %v1313
      %1472 = vmatprep.subr.bf16.mxu0 0
      %1473 = vmatpush1.bf16.msra.mxu0 %v1316
      %1474 = vmatprep.subr.bf16.mxu0 0
      %1475 = vmatpush1.bf16.msra.mxu0 %v1319
      %1476 = vmatprep.subr.bf16.mxu0 0
      %1477 = vmatpush1.bf16.msra.mxu0 %v1322
      %1478 = vmatprep.subr.bf16.mxu0 0
      %1479 = vmatpush1.bf16.msra.mxu0 %v1325
      %1480 = vmatprep.subr.bf16.mxu0 0
      %1481 = vmatpush1.bf16.msra.mxu0 %v1328
      %1482 = vmatprep.subr.bf16.mxu0 0
      %1483 = vmatpush1.bf16.msra.mxu0 0
      %1484 = vmatprep.subr.bf16.mxu0 0
      %1485 = vmatpush1.bf16.msra.mxu0 0
      %1486 = vmatprep.subr.bf16.mxu0 0
      %1487 = vmatpush1.bf16.msra.mxu0 0
      %1488 = vmatprep.subr.bf16.mxu0 0
      %1489 = vmatpush1.bf16.msra.mxu0 0
      %1490 = vmatprep.subr.bf16.mxu0 0
      %1491 = vmatpush1.bf16.msra.mxu0 0
      %1492 = vmatprep.subr.bf16.mxu0 0
      %1493 = vmatpush1.bf16.msra.mxu0 0
      %1494 = vmatprep.subr.bf16.mxu0 0
      %1495 = vmatpush1.bf16.msra.mxu0 0
      %1496 = vmatprep.subr.bf16.mxu0 0
      %1497 = vmatpush1.bf16.msra.mxu0 0
      %1498 = vmatprep.mubr.bf16.mxu0 0
      %1499 = vmatmul.mubr.bf16.gmra.mrb[0].mxu0 %v1201
      %v1500 = vpop.f32.mrb[0].mxu0
      %v1501 = vadd.f32 %v1221, %v1500
      %v1502 = vpop.f32.mrb[0].mxu0
      %v1503 = vpop.f32.mrb[0].mxu0
      %v1504 = vadd.f32 %v1221, %v1503
      %v1505 = vpop.f32.mrb[0].mxu0
      %1506 = vmatprep.mubr.bf16.mxu0 0
      %1507 = vmatmul.mubr.bf16.gmra.mrb[0].mxu0 %v1202
      %v1508 = vpop.f32.mrb[0].mxu0
      %v1509 = vadd.f32 %v1221, %v1508
      %v1510 = vpop.f32.mrb[0].mxu0
      %v1511 = vpop.f32.mrb[0].mxu0
      %v1512 = vadd.f32 %v1221, %v1511
      %v1513 = vpop.f32.mrb[0].mxu0
      %1514 = vmatprep.mubr.bf16.mxu0 0
      %1515 = vmatmul.mubr.bf16.gmra.mrb[0].mxu0 %v1203
      %v1516 = vpop.f32.mrb[0].mxu0
      %v1517 = vadd.f32 %v1221, %v1516
      %v1518 = vpop.f32.mrb[0].mxu0
      %v1519 = vpop.f32.mrb[0].mxu0
      %v1520 = vadd.f32 %v1221, %v1519
      %v1521 = vpop.f32.mrb[0].mxu0
      %1522 = vmatprep.mubr.bf16.mxu0 0
      %1523 = vmatmul.mubr.bf16.gmra.mrb[0].mxu0 %v1204
      %v1524 = vpop.f32.mrb[0].mxu0
      %v1525 = vadd.f32 %v1221, %v1524
      %v1526 = vpop.f32.mrb[0].mxu0
      %v1527 = vpop.f32.mrb[0].mxu0
      %v1528 = vadd.f32 %v1221, %v1527
      %v1529 = vpop.f32.mrb[0].mxu0
      %1530 = vmatprep.mubr.bf16.mxu0 0
      %1531 = vmatmul.mubr.bf16.gmra.mrb[0].mxu0 %v1205
      %v1532 = vpop.f32.mrb[0].mxu0
      %v1533 = vadd.f32 %v1221, %v1532
      %v1534 = vpop.f32.mrb[0].mxu0
      %v1535 = vpop.f32.mrb[0].mxu0
      %v1536 = vadd.f32 %v1221, %v1535
      %v1537 = vpop.f32.mrb[0].mxu0
      %1538 = vmatprep.mubr.bf16.mxu0 0
      %1539 = vmatmul.mubr.bf16.gmra.mrb[0].mxu0 %v1206
      %v1540 = vpop.f32.mrb[0].mxu0
      %v1541 = vadd.f32 %v1221, %v1540
      %v1542 = vpop.f32.mrb[0].mxu0
      %v1543 = vpop.f32.mrb[0].mxu0
      %v1544 = vadd.f32 %v1221, %v1543
      %v1545 = vpop.f32.mrb[0].mxu0
      %1546 = vmatprep.mubr.bf16.mxu0 0
      %1547 = vmatmul.mubr.bf16.gmra.mrb[0].mxu0 %v1207
      %v1548 = vpop.f32.mrb[0].mxu0
      %v1549 = vadd.f32 %v1221, %v1548
      %v1550 = vpop.f32.mrb[0].mxu0
      %v1551 = vpop.f32.mrb[0].mxu0
      %v1552 = vadd.f32 %v1221, %v1551
      %v1553 = vpop.f32.mrb[0].mxu0
      %1554 = vmatprep.mubr.bf16.mxu0 0
      %1555 = vmatmul.mubr.bf16.gmra.mrb[0].mxu0 %v1208
      %v1556 = vpop.f32.mrb[0].mxu0
      %v1557 = vadd.f32 %v1221, %v1556
      %v1558 = vpop.f32.mrb[0].mxu0
      %v1559 = vpop.f32.mrb[0].mxu0
      %v1560 = vadd.f32 %v1221, %v1559
      %v1561 = vpop.f32.mrb[0].mxu0
      %1562 = vdwg.mxu0
      %v1563 = vpack.c.bf16 %v1392, %v1388
      %v1564 = vpack.c.bf16 %v1402, %v1398
      %v1565 = vpack.c.bf16 %v1412, %v1408
      %v1566 = vpack.c.bf16 %v1422, %v1418
      %v1567 = vpack.c.bf16 %v1432, %v1428
      %v1568 = vpack.c.bf16 %v1442, %v1438
      %v1569 = vpack.c.bf16 %v1452, %v1448
      %v1570 = vpack.c.bf16 %v1462, %v1458
      %v1571 = vpack.c.bf16 %v1394, %v1390
      %v1572 = vpack.c.bf16 %v1404, %v1400
      %v1573 = vpack.c.bf16 %v1414, %v1410
      %v1574 = vpack.c.bf16 %v1424, %v1420
      %v1575 = vpack.c.bf16 %v1434, %v1430
      %v1576 = vpack.c.bf16 %v1444, %v1440
      %v1577 = vpack.c.bf16 %v1454, %v1450
      %v1578 = vpack.c.bf16 %v1464, %v1460
      %v1579 = vpack.c.bf16 %v1504, %v1501
      %v1580 = vpack.c.bf16 %v1512, %v1509
      %v1581 = vpack.c.bf16 %v1520, %v1517
      %v1582 = vpack.c.bf16 %v1528, %v1525
      %v1583 = vpack.c.bf16 %v1536, %v1533
      %v1584 = vpack.c.bf16 %v1544, %v1541
      %v1585 = vpack.c.bf16 %v1552, %v1549
      %v1586 = vpack.c.bf16 %v1560, %v1557
      %vm1587 = vcmask 261120
      %v1589 = vsel %vm1587, %v1563, 0
      %v1592 = vsel %vm1587, %v1564, 0
      %v1595 = vsel %vm1587, %v1565, 0
      %v1598 = vsel %vm1587, %v1566, 0
      %v1601 = vsel %vm1587, %v1571, 0
      %v1604 = vsel %vm1587, %v1572, 0
      %v1607 = vsel %vm1587, %v1573, 0
      %v1610 = vsel %vm1587, %v1574, 0
      %1612 = vmatprep.subr.bf16.mxu0 0
      %1613 = vmatpush1.bf16.xpose.msra.mxu0 %v1601
      %1614 = vmatprep.subr.bf16.mxu0 0
      %1615 = vmatpush1.bf16.xpose.msra.mxu0 %v1604
      %1616 = vmatprep.subr.bf16.mxu0 0
      %1617 = vmatpush1.bf16.xpose.msra.mxu0 %v1607
      %1618 = vmatprep.subr.bf16.mxu0 0
      %1619 = vmatpush1.bf16.xpose.msra.mxu0 %v1610
      %1620 = vmatprep.subr.bf16.mxu0 0
      %1621 = vmatpush1.bf16.xpose.msra.mxu0 0
      %1622 = vmatprep.subr.bf16.mxu0 0
      %1623 = vmatpush1.bf16.xpose.msra.mxu0 0
      %1624 = vmatprep.subr.bf16.mxu0 0
      %1625 = vmatpush1.bf16.xpose.msra.mxu0 0
      %1626 = vmatprep.subr.bf16.mxu0 0
      %1627 = vmatpush1.bf16.xpose.msra.mxu0 0
      %1628 = vmatprep.subr.bf16.mxu0 0
      %1629 = vmatpush1.bf16.xpose.msra.mxu0 0
      %1630 = vmatprep.subr.bf16.mxu0 0
      %1631 = vmatpush1.bf16.xpose.msra.mxu0 0
      %1632 = vmatprep.subr.bf16.mxu0 0
      %1633 = vmatpush1.bf16.xpose.msra.mxu0 0
      %1634 = vmatprep.subr.bf16.mxu0 0
      %1635 = vmatpush1.bf16.xpose.msra.mxu0 0
      %1636 = vmatprep.subr.bf16.mxu0 0
      %1637 = vmatpush1.bf16.xpose.msra.mxu0 0
      %1638 = vmatprep.subr.bf16.mxu0 0
      %1639 = vmatpush1.bf16.xpose.msra.mxu0 0
      %1640 = vmatprep.subr.bf16.mxu0 0
      %1641 = vmatpush1.bf16.xpose.msra.mxu0 0
      %1642 = vmatprep.subr.bf16.mxu0 0
      %1643 = vmatpush1.bf16.xpose.msra.mxu0 0
      %1644 = vmatprep.mubr.bf16.mxu0 0
      %1645 = vmatmul.mubr.bf16.gmra.mrb[0].mxu0 %v1589
      %v1646 = vpop.f32.mrb[0].mxu0
      %v1647 = vadd.f32 0.0, %v1646
      %v1648 = vpop.f32.mrb[0].mxu0
      %v1649 = vpop.f32.mrb[0].mxu0
      %v1650 = vadd.f32 0.0, %v1649
      %v1651 = vpop.f32.mrb[0].mxu0
      %1652 = vmatprep.mubr.bf16.mxu0 0
      %1653 = vmatmul.mubr.bf16.gmra.mrb[0].mxu0 %v1592
      %v1654 = vpop.f32.mrb[0].mxu0
      %v1655 = vadd.f32 0.0, %v1654
      %v1656 = vpop.f32.mrb[0].mxu0
      %v1657 = vpop.f32.mrb[0].mxu0
      %v1658 = vadd.f32 0.0, %v1657
      %v1659 = vpop.f32.mrb[0].mxu0
      %1660 = vmatprep.mubr.bf16.mxu0 0
      %1661 = vmatmul.mubr.bf16.gmra.mrb[0].mxu0 %v1595
      %v1662 = vpop.f32.mrb[0].mxu0
      %v1663 = vadd.f32 0.0, %v1662
      %v1664 = vpop.f32.mrb[0].mxu0
      %v1665 = vpop.f32.mrb[0].mxu0
      %v1666 = vadd.f32 0.0, %v1665
      %v1667 = vpop.f32.mrb[0].mxu0
      %1668 = vmatprep.mubr.bf16.mxu0 0
      %1669 = vmatmul.mubr.bf16.gmra.mrb[0].mxu0 %v1598
      %v1670 = vpop.f32.mrb[0].mxu0
      %v1671 = vadd.f32 0.0, %v1670
      %v1672 = vpop.f32.mrb[0].mxu0
      %v1673 = vpop.f32.mrb[0].mxu0
      %v1674 = vadd.f32 0.0, %v1673
      %v1675 = vpop.f32.mrb[0].mxu0
      %1676 = vdwg.mxu0
      %v1678 = vsel %vm1587, %v1567, 0
      %v1681 = vsel %vm1587, %v1568, 0
      %v1684 = vsel %vm1587, %v1569, 0
      %v1687 = vsel %vm1587, %v1570, 0
      %v1690 = vsel %vm1587, %v1575, 0
      %v1693 = vsel %vm1587, %v1576, 0
      %v1696 = vsel %vm1587, %v1577, 0
      %v1699 = vsel %vm1587, %v1578, 0
      %1701 = vmatprep.subr.bf16.mxu0 0
      %1702 = vmatpush1.bf16.xpose.msra.mxu0 %v1690
      %1703 = vmatprep.subr.bf16.mxu0 0
      %1704 = vmatpush1.bf16.xpose.msra.mxu0 %v1693
      %1705 = vmatprep.subr.bf16.mxu0 0
      %1706 = vmatpush1.bf16.xpose.msra.mxu0 %v1696
      %1707 = vmatprep.subr.bf16.mxu0 0
      %1708 = vmatpush1.bf16.xpose.msra.mxu0 %v1699
      %1709 = vmatprep.subr.bf16.mxu0 0
      %1710 = vmatpush1.bf16.xpose.msra.mxu0 0
      %1711 = vmatprep.subr.bf16.mxu0 0
      %1712 = vmatpush1.bf16.xpose.msra.mxu0 0
      %1713 = vmatprep.subr.bf16.mxu0 0
      %1714 = vmatpush1.bf16.xpose.msra.mxu0 0
      %1715 = vmatprep.subr.bf16.mxu0 0
      %1716 = vmatpush1.bf16.xpose.msra.mxu0 0
      %1717 = vmatprep.subr.bf16.mxu0 0
      %1718 = vmatpush1.bf16.xpose.msra.mxu0 0
      %1719 = vmatprep.subr.bf16.mxu0 0
      %1720 = vmatpush1.bf16.xpose.msra.mxu0 0
      %1721 = vmatprep.subr.bf16.mxu0 0
      %1722 = vmatpush1.bf16.xpose.msra.mxu0 0
      %1723 = vmatprep.subr.bf16.mxu0 0
      %1724 = vmatpush1.bf16.xpose.msra.mxu0 0
      %1725 = vmatprep.subr.bf16.mxu0 0
      %1726 = vmatpush1.bf16.xpose.msra.mxu0 0
      %1727 = vmatprep.subr.bf16.mxu0 0
      %1728 = vmatpush1.bf16.xpose.msra.mxu0 0
      %1729 = vmatprep.subr.bf16.mxu0 0
      %1730 = vmatpush1.bf16.xpose.msra.mxu0 0
      %1731 = vmatprep.subr.bf16.mxu0 0
      %1732 = vmatpush1.bf16.xpose.msra.mxu0 0
      %1733 = vmatprep.mubr.bf16.mxu0 0
      %1734 = vmatmul.mubr.bf16.gmra.mrb[0].mxu0 %v1678
      %v1735 = vpop.f32.mrb[0].mxu0
      %v1736 = vadd.f32 0.0, %v1735
      %v1737 = vpop.f32.mrb[0].mxu0
      %v1738 = vpop.f32.mrb[0].mxu0
      %v1739 = vadd.f32 0.0, %v1738
      %v1740 = vpop.f32.mrb[0].mxu0
      %1741 = vmatprep.mubr.bf16.mxu0 0
      %1742 = vmatmul.mubr.bf16.gmra.mrb[0].mxu0 %v1681
      %v1743 = vpop.f32.mrb[0].mxu0
      %v1744 = vadd.f32 0.0, %v1743
      %v1745 = vpop.f32.mrb[0].mxu0
      %v1746 = vpop.f32.mrb[0].mxu0
      %v1747 = vadd.f32 0.0, %v1746
      %v1748 = vpop.f32.mrb[0].mxu0
      %1749 = vmatprep.mubr.bf16.mxu0 0
      %1750 = vmatmul.mubr.bf16.gmra.mrb[0].mxu0 %v1684
      %v1751 = vpop.f32.mrb[0].mxu0
      %v1752 = vadd.f32 0.0, %v1751
      %v1753 = vpop.f32.mrb[0].mxu0
      %v1754 = vpop.f32.mrb[0].mxu0
      %v1755 = vadd.f32 0.0, %v1754
      %v1756 = vpop.f32.mrb[0].mxu0
      %1757 = vmatprep.mubr.bf16.mxu0 0
      %1758 = vmatmul.mubr.bf16.gmra.mrb[0].mxu0 %v1687
      %v1759 = vpop.f32.mrb[0].mxu0
      %v1760 = vadd.f32 0.0, %v1759
      %v1761 = vpop.f32.mrb[0].mxu0
      %v1762 = vpop.f32.mrb[0].mxu0
      %v1763 = vadd.f32 0.0, %v1762
      %v1764 = vpop.f32.mrb[0].mxu0
      %1765 = vdwg.mxu0
      %v1766 = vmul.f32 %v1647, 0.17677669
      %v1767 = vmul.f32 %v1650, 0.17677669
      %v1768 = vmul.f32 %v1655, 0.17677669
      %v1769 = vmul.f32 %v1658, 0.17677669
      %v1770 = vmul.f32 %v1663, 0.17677669
      %v1771 = vmul.f32 %v1666, 0.17677669
      %v1772 = vmul.f32 %v1671, 0.17677669
      %v1773 = vmul.f32 %v1674, 0.17677669
      %v1774 = vmul.f32 %v1736, 0.17677669
      %v1775 = vmul.f32 %v1739, 0.17677669
      %v1776 = vmul.f32 %v1744, 0.17677669
      %v1777 = vmul.f32 %v1747, 0.17677669
      %v1778 = vmul.f32 %v1752, 0.17677669
      %v1779 = vmul.f32 %v1755, 0.17677669
      %v1780 = vmul.f32 %v1760, 0.17677669
      %v1781 = vmul.f32 %v1763, 0.17677669
      %v1782 = vadd.f32 %v1766, %v804
      %v1783 = vadd.f32 %v1767, %v805
      %v1784 = vadd.f32 %v1768, %v806
      %v1785 = vadd.f32 %v1769, %v807
      %v1786 = vadd.f32 %v1770, %v808
      %v1787 = vadd.f32 %v1771, %v809
      %v1788 = vadd.f32 %v1772, %v810
      %v1789 = vadd.f32 %v1773, %v811
      %v1790 = vadd.f32 %v1774, %v804
      %v1791 = vadd.f32 %v1775, %v805
      %v1792 = vadd.f32 %v1776, %v806
      %v1793 = vadd.f32 %v1777, %v807
      %v1794 = vadd.f32 %v1778, %v808
      %v1795 = vadd.f32 %v1779, %v809
      %v1796 = vadd.f32 %v1780, %v810
      %v1797 = vadd.f32 %v1781, %v811
      %vm1798 = vcmask 523264
      %v1799 = vsel %vm1798, %v1782, -inf
      %1800 = vmax.xlane.f32.xlu0 %v1799
      %v1801 = vpop.xlane.xlu0 %1800
      %v1802 = vsel %vm1798, %v1783, -inf
      %1803 = vmax.xlane.f32.xlu0 %v1802
      %v1804 = vpop.xlane.xlu0 %1803
      %v1805 = vsel %vm1798, %v1784, -inf
      %1806 = vmax.xlane.f32.xlu0 %v1805
      %v1807 = vpop.xlane.xlu0 %1806
      %v1808 = vsel %vm1798, %v1785, -inf
      %1809 = vmax.xlane.f32.xlu0 %v1808
      %v1810 = vpop.xlane.xlu0 %1809
      %v1811 = vsel %vm1798, %v1786, -inf
      %1812 = vmax.xlane.f32.xlu0 %v1811
      %v1813 = vpop.xlane.xlu0 %1812
      %v1814 = vsel %vm1798, %v1787, -inf
      %1815 = vmax.xlane.f32.xlu0 %v1814
      %v1816 = vpop.xlane.xlu0 %1815
      %v1817 = vsel %vm1798, %v1788, -inf
      %1818 = vmax.xlane.f32.xlu0 %v1817
      %v1819 = vpop.xlane.xlu0 %1818
      %v1820 = vsel %vm1798, %v1789, -inf
      %1821 = vmax.xlane.f32.xlu0 %v1820
      %v1822 = vpop.xlane.xlu0 %1821
      %v1823 = vsel %vm1798, %v1790, -inf
      %1824 = vmax.xlane.f32.xlu0 %v1823
      %v1825 = vpop.xlane.xlu0 %1824
      %v1826 = vsel %vm1798, %v1791, -inf
      %1827 = vmax.xlane.f32.xlu0 %v1826
      %v1828 = vpop.xlane.xlu0 %1827
      %v1829 = vsel %vm1798, %v1792, -inf
      %1830 = vmax.xlane.f32.xlu0 %v1829
      %v1831 = vpop.xlane.xlu0 %1830
      %v1832 = vsel %vm1798, %v1793, -inf
      %1833 = vmax.xlane.f32.xlu0 %v1832
      %v1834 = vpop.xlane.xlu0 %1833
      %v1835 = vsel %vm1798, %v1794, -inf
      %1836 = vmax.xlane.f32.xlu0 %v1835
      %v1837 = vpop.xlane.xlu0 %1836
      %v1838 = vsel %vm1798, %v1795, -inf
      %1839 = vmax.xlane.f32.xlu0 %v1838
      %v1840 = vpop.xlane.xlu0 %1839
      %v1841 = vsel %vm1798, %v1796, -inf
      %1842 = vmax.xlane.f32.xlu0 %v1841
      %v1843 = vpop.xlane.xlu0 %1842
      %v1844 = vsel %vm1798, %v1797, -inf
      %1845 = vmax.xlane.f32.xlu0 %v1844
      %v1846 = vpop.xlane.xlu0 %1845
      %v1847 = vsub.f32 %v1782, %v1801
      %v1848 = vsub.f32 %v1783, %v1804
      %v1849 = vsub.f32 %v1784, %v1807
      %v1850 = vsub.f32 %v1785, %v1810
      %v1851 = vsub.f32 %v1786, %v1813
      %v1852 = vsub.f32 %v1787, %v1816
      %v1853 = vsub.f32 %v1788, %v1819
      %v1854 = vsub.f32 %v1789, %v1822
      %v1855 = vsub.f32 %v1790, %v1825
      %v1856 = vsub.f32 %v1791, %v1828
      %v1857 = vsub.f32 %v1792, %v1831
      %v1858 = vsub.f32 %v1793, %v1834
      %v1859 = vsub.f32 %v1794, %v1837
      %v1860 = vsub.f32 %v1795, %v1840
      %v1861 = vsub.f32 %v1796, %v1843
      %v1862 = vsub.f32 %v1797, %v1846
      %v1863 = vmul.f32 %v1847, 1.442695
      %v1864 = vpow.pop %v1863
      %v1865 = vmul.f32 %v1848, 1.442695
      %v1866 = vpow.pop %v1865
      %v1867 = vmul.f32 %v1849, 1.442695
      %v1868 = vpow.pop %v1867
      %v1869 = vmul.f32 %v1850, 1.442695
      %v1870 = vpow.pop %v1869
      %v1871 = vmul.f32 %v1851, 1.442695
      %v1872 = vpow.pop %v1871
      %v1873 = vmul.f32 %v1852, 1.442695
      %v1874 = vpow.pop %v1873
      %v1875 = vmul.f32 %v1853, 1.442695
      %v1876 = vpow.pop %v1875
      %v1877 = vmul.f32 %v1854, 1.442695
      %v1878 = vpow.pop %v1877
      %v1879 = vmul.f32 %v1855, 1.442695
      %v1880 = vpow.pop %v1879
      %v1881 = vmul.f32 %v1856, 1.442695
      %v1882 = vpow.pop %v1881
      %v1883 = vmul.f32 %v1857, 1.442695
      %v1884 = vpow.pop %v1883
      %v1885 = vmul.f32 %v1858, 1.442695
      %v1886 = vpow.pop %v1885
      %v1887 = vmul.f32 %v1859, 1.442695
      %v1888 = vpow.pop %v1887
      %v1889 = vmul.f32 %v1860, 1.442695
      %v1890 = vpow.pop %v1889
      %v1891 = vmul.f32 %v1861, 1.442695
      %v1892 = vpow.pop %v1891
      %v1893 = vmul.f32 %v1862, 1.442695
      %v1894 = vpow.pop %v1893
      %v1895 = vsel %vm1798, %v1864, 0.0
      %1896 = vadd.xlane.f32.xlu0 %v1895
      %v1897 = vpop.xlane.xlu0 %1896
      %v1898 = vsel %vm1798, %v1866, 0.0
      %1899 = vadd.xlane.f32.xlu0 %v1898
      %v1900 = vpop.xlane.xlu0 %1899
      %v1901 = vsel %vm1798, %v1868, 0.0
      %1902 = vadd.xlane.f32.xlu0 %v1901
      %v1903 = vpop.xlane.xlu0 %1902
      %v1904 = vsel %vm1798, %v1870, 0.0
      %1905 = vadd.xlane.f32.xlu0 %v1904
      %v1906 = vpop.xlane.xlu0 %1905
      %v1907 = vsel %vm1798, %v1872, 0.0
      %1908 = vadd.xlane.f32.xlu0 %v1907
      %v1909 = vpop.xlane.xlu0 %1908
      %v1910 = vsel %vm1798, %v1874, 0.0
      %1911 = vadd.xlane.f32.xlu0 %v1910
      %v1912 = vpop.xlane.xlu0 %1911
      %v1913 = vsel %vm1798, %v1876, 0.0
      %1914 = vadd.xlane.f32.xlu0 %v1913
      %v1915 = vpop.xlane.xlu0 %1914
      %v1916 = vsel %vm1798, %v1878, 0.0
      %1917 = vadd.xlane.f32.xlu0 %v1916
      %v1918 = vpop.xlane.xlu0 %1917
      %v1919 = vsel %vm1798, %v1880, 0.0
      %1920 = vadd.xlane.f32.xlu0 %v1919
      %v1921 = vpop.xlane.xlu0 %1920
      %v1922 = vsel %vm1798, %v1882, 0.0
      %1923 = vadd.xlane.f32.xlu0 %v1922
      %v1924 = vpop.xlane.xlu0 %1923
      %v1925 = vsel %vm1798, %v1884, 0.0
      %1926 = vadd.xlane.f32.xlu0 %v1925
      %v1927 = vpop.xlane.xlu0 %1926
      %v1928 = vsel %vm1798, %v1886, 0.0
      %1929 = vadd.xlane.f32.xlu0 %v1928
      %v1930 = vpop.xlane.xlu0 %1929
      %v1931 = vsel %vm1798, %v1888, 0.0
      %1932 = vadd.xlane.f32.xlu0 %v1931
      %v1933 = vpop.xlane.xlu0 %1932
      %v1934 = vsel %vm1798, %v1890, 0.0
      %1935 = vadd.xlane.f32.xlu0 %v1934
      %v1936 = vpop.xlane.xlu0 %1935
      %v1937 = vsel %vm1798, %v1892, 0.0
      %1938 = vadd.xlane.f32.xlu0 %v1937
      %v1939 = vpop.xlane.xlu0 %1938
      %v1940 = vsel %vm1798, %v1894, 0.0
      %1941 = vadd.xlane.f32.xlu0 %v1940
      %v1942 = vpop.xlane.xlu0 %1941
      %v1943 = vrcp.pop %v1897
      %v1944 = vrcp.pop %v1900
      %v1945 = vrcp.pop %v1903
      %v1946 = vrcp.pop %v1906
      %v1947 = vrcp.pop %v1909
      %v1948 = vrcp.pop %v1912
      %v1949 = vrcp.pop %v1915
      %v1950 = vrcp.pop %v1918
      %v1951 = vrcp.pop %v1921
      %v1952 = vrcp.pop %v1924
      %v1953 = vrcp.pop %v1927
      %v1954 = vrcp.pop %v1930
      %v1955 = vrcp.pop %v1933
      %v1956 = vrcp.pop %v1936
      %v1957 = vrcp.pop %v1939
      %v1958 = vrcp.pop %v1942
      %v1959 = vmul.f32 %v1864, %v1943
      %v1960 = vmul.f32 %v1866, %v1944
      %v1961 = vmul.f32 %v1868, %v1945
      %v1962 = vmul.f32 %v1870, %v1946
      %v1963 = vmul.f32 %v1872, %v1947
      %v1964 = vmul.f32 %v1874, %v1948
      %v1965 = vmul.f32 %v1876, %v1949
      %v1966 = vmul.f32 %v1878, %v1950
      %v1967 = vmul.f32 %v1880, %v1951
      %v1968 = vmul.f32 %v1882, %v1952
      %v1969 = vmul.f32 %v1884, %v1953
      %v1970 = vmul.f32 %v1886, %v1954
      %v1971 = vmul.f32 %v1888, %v1955
      %v1972 = vmul.f32 %v1890, %v1956
      %v1973 = vmul.f32 %v1892, %v1957
      %v1974 = vmul.f32 %v1894, %v1958
      %v1975 = vpack.c.bf16 %v1960, %v1959
      %v1976 = vpack.c.bf16 %v1962, %v1961
      %v1977 = vpack.c.bf16 %v1964, %v1963
      %v1978 = vpack.c.bf16 %v1966, %v1965
      %v1979 = vpack.c.bf16 %v1968, %v1967
      %v1980 = vpack.c.bf16 %v1970, %v1969
      %v1981 = vpack.c.bf16 %v1972, %v1971
      %v1982 = vpack.c.bf16 %v1974, %v1973
      %v1984 = vsel %vm1798, %v1975, 0
      %v1987 = vsel %vm1798, %v1976, 0
      %v1990 = vsel %vm1798, %v1977, 0
      %v1993 = vsel %vm1798, %v1978, 0
      %1995 = vmatprep.subr.bf16.mxu0 0
      %1996 = vmatpush1.bf16.msra.mxu0 %v1579
      %1997 = vmatprep.subr.bf16.mxu0 0
      %1998 = vmatpush1.bf16.msra.mxu0 %v1580
      %1999 = vmatprep.subr.bf16.mxu0 0
      %2000 = vmatpush1.bf16.msra.mxu0 %v1581
      %2001 = vmatprep.subr.bf16.mxu0 0
      %2002 = vmatpush1.bf16.msra.mxu0 %v1582
      %2003 = vmatprep.subr.bf16.mxu0 0
      %2004 = vmatpush1.bf16.msra.mxu0 0
      %2005 = vmatprep.subr.bf16.mxu0 0
      %2006 = vmatpush1.bf16.msra.mxu0 0
      %2007 = vmatprep.subr.bf16.mxu0 0
      %2008 = vmatpush1.bf16.msra.mxu0 0
      %2009 = vmatprep.subr.bf16.mxu0 0
      %2010 = vmatpush1.bf16.msra.mxu0 0
      %2011 = vmatprep.subr.bf16.mxu0 0
      %2012 = vmatpush1.bf16.msra.mxu0 0
      %2013 = vmatprep.subr.bf16.mxu0 0
      %2014 = vmatpush1.bf16.msra.mxu0 0
      %2015 = vmatprep.subr.bf16.mxu0 0
      %2016 = vmatpush1.bf16.msra.mxu0 0
      %2017 = vmatprep.subr.bf16.mxu0 0
      %2018 = vmatpush1.bf16.msra.mxu0 0
      %2019 = vmatprep.subr.bf16.mxu0 0
      %2020 = vmatpush1.bf16.msra.mxu0 0
      %2021 = vmatprep.subr.bf16.mxu0 0
      %2022 = vmatpush1.bf16.msra.mxu0 0
      %2023 = vmatprep.subr.bf16.mxu0 0
      %2024 = vmatpush1.bf16.msra.mxu0 0
      %2025 = vmatprep.subr.bf16.mxu0 0
      %2026 = vmatpush1.bf16.msra.mxu0 0
      %2027 = vmatprep.mubr.bf16.mxu0 0
      %2028 = vmatmul.mubr.bf16.gmra.mrb[0].mxu0 %v1984
      %v2029 = vpop.f32.mrb[0].mxu0
      %v2030 = vadd.f32 0.0, %v2029
      %v2031 = vpop.f32.mrb[0].mxu0
      %v2032 = vpop.f32.mrb[0].mxu0
      %v2033 = vadd.f32 0.0, %v2032
      %v2034 = vpop.f32.mrb[0].mxu0
      %2035 = vmatprep.mubr.bf16.mxu0 0
      %2036 = vmatmul.mubr.bf16.gmra.mrb[0].mxu0 %v1987
      %v2037 = vpop.f32.mrb[0].mxu0
      %v2038 = vadd.f32 0.0, %v2037
      %v2039 = vpop.f32.mrb[0].mxu0
      %v2040 = vpop.f32.mrb[0].mxu0
      %v2041 = vadd.f32 0.0, %v2040
      %v2042 = vpop.f32.mrb[0].mxu0
      %2043 = vmatprep.mubr.bf16.mxu0 0
      %2044 = vmatmul.mubr.bf16.gmra.mrb[0].mxu0 %v1990
      %v2045 = vpop.f32.mrb[0].mxu0
      %v2046 = vadd.f32 0.0, %v2045
      %v2047 = vpop.f32.mrb[0].mxu0
      %v2048 = vpop.f32.mrb[0].mxu0
      %v2049 = vadd.f32 0.0, %v2048
      %v2050 = vpop.f32.mrb[0].mxu0
      %2051 = vmatprep.mubr.bf16.mxu0 0
      %2052 = vmatmul.mubr.bf16.gmra.mrb[0].mxu0 %v1993
      %v2053 = vpop.f32.mrb[0].mxu0
      %v2054 = vadd.f32 0.0, %v2053
      %v2055 = vpop.f32.mrb[0].mxu0
      %v2056 = vpop.f32.mrb[0].mxu0
      %v2057 = vadd.f32 0.0, %v2056
      %v2058 = vpop.f32.mrb[0].mxu0
      %2059 = vdwg.mxu0
      %v2061 = vsel %vm1798, %v1979, 0
      %v2064 = vsel %vm1798, %v1980, 0
      %v2067 = vsel %vm1798, %v1981, 0
      %v2070 = vsel %vm1798, %v1982, 0
      %2072 = vmatprep.subr.bf16.mxu0 0
      %2073 = vmatpush1.bf16.msra.mxu0 %v1583
      %2074 = vmatprep.subr.bf16.mxu0 0
      %2075 = vmatpush1.bf16.msra.mxu0 %v1584
      %2076 = vmatprep.subr.bf16.mxu0 0
      %2077 = vmatpush1.bf16.msra.mxu0 %v1585
      %2078 = vmatprep.subr.bf16.mxu0 0
      %2079 = vmatpush1.bf16.msra.mxu0 %v1586
      %2080 = vmatprep.subr.bf16.mxu0 0
      %2081 = vmatpush1.bf16.msra.mxu0 0
      %2082 = vmatprep.subr.bf16.mxu0 0
      %2083 = vmatpush1.bf16.msra.mxu0 0
      %2084 = vmatprep.subr.bf16.mxu0 0
      %2085 = vmatpush1.bf16.msra.mxu0 0
      %2086 = vmatprep.subr.bf16.mxu0 0
      %2087 = vmatpush1.bf16.msra.mxu0 0
      %2088 = vmatprep.subr.bf16.mxu0 0
      %2089 = vmatpush1.bf16.msra.mxu0 0
      %2090 = vmatprep.subr.bf16.mxu0 0
      %2091 = vmatpush1.bf16.msra.mxu0 0
      %2092 = vmatprep.subr.bf16.mxu0 0
      %2093 = vmatpush1.bf16.msra.mxu0 0
      %2094 = vmatprep.subr.bf16.mxu0 0
      %2095 = vmatpush1.bf16.msra.mxu0 0
      %2096 = vmatprep.subr.bf16.mxu0 0
      %2097 = vmatpush1.bf16.msra.mxu0 0
      %2098 = vmatprep.subr.bf16.mxu0 0
      %2099 = vmatpush1.bf16.msra.mxu0 0
      %2100 = vmatprep.subr.bf16.mxu0 0
      %2101 = vmatpush1.bf16.msra.mxu0 0
      %2102 = vmatprep.subr.bf16.mxu0 0
      %2103 = vmatpush1.bf16.msra.mxu0 0
      %2104 = vmatprep.mubr.bf16.mxu0 0
      %2105 = vmatmul.mubr.bf16.gmra.mrb[0].mxu0 %v2061
      %v2106 = vpop.f32.mrb[0].mxu0
      %v2107 = vadd.f32 0.0, %v2106
      %v2108 = vpop.f32.mrb[0].mxu0
      %v2109 = vpop.f32.mrb[0].mxu0
      %v2110 = vadd.f32 0.0, %v2109
      %v2111 = vpop.f32.mrb[0].mxu0
      %2112 = vmatprep.mubr.bf16.mxu0 0
      %2113 = vmatmul.mubr.bf16.gmra.mrb[0].mxu0 %v2064
      %v2114 = vpop.f32.mrb[0].mxu0
      %v2115 = vadd.f32 0.0, %v2114
      %v2116 = vpop.f32.mrb[0].mxu0
      %v2117 = vpop.f32.mrb[0].mxu0
      %v2118 = vadd.f32 0.0, %v2117
      %v2119 = vpop.f32.mrb[0].mxu0
      %2120 = vmatprep.mubr.bf16.mxu0 0
      %2121 = vmatmul.mubr.bf16.gmra.mrb[0].mxu0 %v2067
      %v2122 = vpop.f32.mrb[0].mxu0
      %v2123 = vadd.f32 0.0, %v2122
      %v2124 = vpop.f32.mrb[0].mxu0
      %v2125 = vpop.f32.mrb[0].mxu0
      %v2126 = vadd.f32 0.0, %v2125
      %v2127 = vpop.f32.mrb[0].mxu0
      %2128 = vmatprep.mubr.bf16.mxu0 0
      %2129 = vmatmul.mubr.bf16.gmra.mrb[0].mxu0 %v2070
      %v2130 = vpop.f32.mrb[0].mxu0
      %v2131 = vadd.f32 0.0, %v2130
      %v2132 = vpop.f32.mrb[0].mxu0
      %v2133 = vpop.f32.mrb[0].mxu0
      %v2134 = vadd.f32 0.0, %v2133
      %v2135 = vpop.f32.mrb[0].mxu0
      %2136 = vdwg.mxu0
      %2141 = vrot.lane.b32.xlu0 %v1563, 96
      %v2142 = vpop.permute.xlu0 %2141
      %2143 = vrot.lane.b32.xlu0 %v1564, 96
      %v2144 = vpop.permute.xlu0 %2143
      %2145 = vrot.lane.b32.xlu0 %v1565, 96
      %v2146 = vpop.permute.xlu0 %2145
      %2147 = vrot.lane.b32.xlu0 %v1566, 96
      %v2148 = vpop.permute.xlu0 %2147
      %2153 = vrot.lane.b32.xlu0 %v1571, 96
      %v2154 = vpop.permute.xlu0 %2153
      %2155 = vrot.lane.b32.xlu0 %v1572, 96
      %v2156 = vpop.permute.xlu0 %2155
      %2157 = vrot.lane.b32.xlu0 %v1573, 96
      %v2158 = vpop.permute.xlu0 %2157
      %2159 = vrot.lane.b32.xlu0 %v1574, 96
      %v2160 = vpop.permute.xlu0 %2159
      %v2162 = vsel %vm1587, %v2142, 0
      %v2165 = vsel %vm1587, %v2144, 0
      %v2168 = vsel %vm1587, %v2146, 0
      %v2171 = vsel %vm1587, %v2148, 0
      %v2174 = vsel %vm1587, %v2154, 0
      %v2177 = vsel %vm1587, %v2156, 0
      %v2180 = vsel %vm1587, %v2158, 0
      %v2183 = vsel %vm1587, %v2160, 0
      %2185 = vmatprep.subr.bf16.mxu0 0
      %2186 = vmatpush1.bf16.xpose.msra.mxu0 %v2174
      %2187 = vmatprep.subr.bf16.mxu0 0
      %2188 = vmatpush1.bf16.xpose.msra.mxu0 %v2177
      %2189 = vmatprep.subr.bf16.mxu0 0
      %2190 = vmatpush1.bf16.xpose.msra.mxu0 %v2180
      %2191 = vmatprep.subr.bf16.mxu0 0
      %2192 = vmatpush1.bf16.xpose.msra.mxu0 %v2183
      %2193 = vmatprep.subr.bf16.mxu0 0
      %2194 = vmatpush1.bf16.xpose.msra.mxu0 0
      %2195 = vmatprep.subr.bf16.mxu0 0
      %2196 = vmatpush1.bf16.xpose.msra.mxu0 0
      %2197 = vmatprep.subr.bf16.mxu0 0
      %2198 = vmatpush1.bf16.xpose.msra.mxu0 0
      %2199 = vmatprep.subr.bf16.mxu0 0
      %2200 = vmatpush1.bf16.xpose.msra.mxu0 0
      %2201 = vmatprep.subr.bf16.mxu0 0
      %2202 = vmatpush1.bf16.xpose.msra.mxu0 0
      %2203 = vmatprep.subr.bf16.mxu0 0
      %2204 = vmatpush1.bf16.xpose.msra.mxu0 0
      %2205 = vmatprep.subr.bf16.mxu0 0
      %2206 = vmatpush1.bf16.xpose.msra.mxu0 0
      %2207 = vmatprep.subr.bf16.mxu0 0
      %2208 = vmatpush1.bf16.xpose.msra.mxu0 0
      %2209 = vmatprep.subr.bf16.mxu0 0
      %2210 = vmatpush1.bf16.xpose.msra.mxu0 0
      %2211 = vmatprep.subr.bf16.mxu0 0
      %2212 = vmatpush1.bf16.xpose.msra.mxu0 0
      %2213 = vmatprep.subr.bf16.mxu0 0
      %2214 = vmatpush1.bf16.xpose.msra.mxu0 0
      %2215 = vmatprep.subr.bf16.mxu0 0
      %2216 = vmatpush1.bf16.xpose.msra.mxu0 0
      %2217 = vmatprep.mubr.bf16.mxu0 0
      %2218 = vmatmul.mubr.bf16.gmra.mrb[0].mxu0 %v2162
      %v2219 = vpop.f32.mrb[0].mxu0
      %v2220 = vadd.f32 0.0, %v2219
      %v2221 = vpop.f32.mrb[0].mxu0
      %v2222 = vpop.f32.mrb[0].mxu0
      %v2223 = vadd.f32 0.0, %v2222
      %v2224 = vpop.f32.mrb[0].mxu0
      %2225 = vmatprep.mubr.bf16.mxu0 0
      %2226 = vmatmul.mubr.bf16.gmra.mrb[0].mxu0 %v2165
      %v2227 = vpop.f32.mrb[0].mxu0
      %v2228 = vadd.f32 0.0, %v2227
      %v2229 = vpop.f32.mrb[0].mxu0
      %v2230 = vpop.f32.mrb[0].mxu0
      %v2231 = vadd.f32 0.0, %v2230
      %v2232 = vpop.f32.mrb[0].mxu0
      %2233 = vmatprep.mubr.bf16.mxu0 0
      %2234 = vmatmul.mubr.bf16.gmra.mrb[0].mxu0 %v2168
      %v2235 = vpop.f32.mrb[0].mxu0
      %v2236 = vadd.f32 0.0, %v2235
      %v2237 = vpop.f32.mrb[0].mxu0
      %v2238 = vpop.f32.mrb[0].mxu0
      %v2239 = vadd.f32 0.0, %v2238
      %v2240 = vpop.f32.mrb[0].mxu0
      %2241 = vmatprep.mubr.bf16.mxu0 0
      %2242 = vmatmul.mubr.bf16.gmra.mrb[0].mxu0 %v2171
      %v2243 = vpop.f32.mrb[0].mxu0
      %v2244 = vadd.f32 0.0, %v2243
      %v2245 = vpop.f32.mrb[0].mxu0
      %v2246 = vpop.f32.mrb[0].mxu0
      %v2247 = vadd.f32 0.0, %v2246
      %v2248 = vpop.f32.mrb[0].mxu0
      %2249 = vdwg.mxu0
      %2254 = vrot.lane.b32.xlu0 %v1567, 96
      %v2255 = vpop.permute.xlu0 %2254
      %2256 = vrot.lane.b32.xlu0 %v1568, 96
      %v2257 = vpop.permute.xlu0 %2256
      %2258 = vrot.lane.b32.xlu0 %v1569, 96
      %v2259 = vpop.permute.xlu0 %2258
      %2260 = vrot.lane.b32.xlu0 %v1570, 96
      %v2261 = vpop.permute.xlu0 %2260
      %2266 = vrot.lane.b32.xlu0 %v1575, 96
      %v2267 = vpop.permute.xlu0 %2266
      %2268 = vrot.lane.b32.xlu0 %v1576, 96
      %v2269 = vpop.permute.xlu0 %2268
      %2270 = vrot.lane.b32.xlu0 %v1577, 96
      %v2271 = vpop.permute.xlu0 %2270
      %2272 = vrot.lane.b32.xlu0 %v1578, 96
      %v2273 = vpop.permute.xlu0 %2272
      %v2275 = vsel %vm1587, %v2255, 0
      %v2278 = vsel %vm1587, %v2257, 0
      %v2281 = vsel %vm1587, %v2259, 0
      %v2284 = vsel %vm1587, %v2261, 0
      %v2287 = vsel %vm1587, %v2267, 0
      %v2290 = vsel %vm1587, %v2269, 0
      %v2293 = vsel %vm1587, %v2271, 0
      %v2296 = vsel %vm1587, %v2273, 0
      %2298 = vmatprep.subr.bf16.mxu0 0
      %2299 = vmatpush1.bf16.xpose.msra.mxu0 %v2287
      %2300 = vmatprep.subr.bf16.mxu0 0
      %2301 = vmatpush1.bf16.xpose.msra.mxu0 %v2290
      %2302 = vmatprep.subr.bf16.mxu0 0
      %2303 = vmatpush1.bf16.xpose.msra.mxu0 %v2293
      %2304 = vmatprep.subr.bf16.mxu0 0
      %2305 = vmatpush1.bf16.xpose.msra.mxu0 %v2296
      %2306 = vmatprep.subr.bf16.mxu0 0
      %2307 = vmatpush1.bf16.xpose.msra.mxu0 0
      %2308 = vmatprep.subr.bf16.mxu0 0
      %2309 = vmatpush1.bf16.xpose.msra.mxu0 0
      %2310 = vmatprep.subr.bf16.mxu0 0
      %2311 = vmatpush1.bf16.xpose.msra.mxu0 0
      %2312 = vmatprep.subr.bf16.mxu0 0
      %2313 = vmatpush1.bf16.xpose.msra.mxu0 0
      %2314 = vmatprep.subr.bf16.mxu0 0
      %2315 = vmatpush1.bf16.xpose.msra.mxu0 0
      %2316 = vmatprep.subr.bf16.mxu0 0
      %2317 = vmatpush1.bf16.xpose.msra.mxu0 0
      %2318 = vmatprep.subr.bf16.mxu0 0
      %2319 = vmatpush1.bf16.xpose.msra.mxu0 0
      %2320 = vmatprep.subr.bf16.mxu0 0
      %2321 = vmatpush1.bf16.xpose.msra.mxu0 0
      %2322 = vmatprep.subr.bf16.mxu0 0
      %2323 = vmatpush1.bf16.xpose.msra.mxu0 0
      %2324 = vmatprep.subr.bf16.mxu0 0
      %2325 = vmatpush1.bf16.xpose.msra.mxu0 0
      %2326 = vmatprep.subr.bf16.mxu0 0
      %2327 = vmatpush1.bf16.xpose.msra.mxu0 0
      %2328 = vmatprep.subr.bf16.mxu0 0
      %2329 = vmatpush1.bf16.xpose.msra.mxu0 0
      %2330 = vmatprep.mubr.bf16.mxu0 0
      %2331 = vmatmul.mubr.bf16.gmra.mrb[0].mxu0 %v2275
      %v2332 = vpop.f32.mrb[0].mxu0
      %v2333 = vadd.f32 0.0, %v2332
      %v2334 = vpop.f32.mrb[0].mxu0
      %v2335 = vpop.f32.mrb[0].mxu0
      %v2336 = vadd.f32 0.0, %v2335
      %v2337 = vpop.f32.mrb[0].mxu0
      %2338 = vmatprep.mubr.bf16.mxu0 0
      %2339 = vmatmul.mubr.bf16.gmra.mrb[0].mxu0 %v2278
      %v2340 = vpop.f32.mrb[0].mxu0
      %v2341 = vadd.f32 0.0, %v2340
      %v2342 = vpop.f32.mrb[0].mxu0
      %v2343 = vpop.f32.mrb[0].mxu0
      %v2344 = vadd.f32 0.0, %v2343
      %v2345 = vpop.f32.mrb[0].mxu0
      %2346 = vmatprep.mubr.bf16.mxu0 0
      %2347 = vmatmul.mubr.bf16.gmra.mrb[0].mxu0 %v2281
      %v2348 = vpop.f32.mrb[0].mxu0
      %v2349 = vadd.f32 0.0, %v2348
      %v2350 = vpop.f32.mrb[0].mxu0
      %v2351 = vpop.f32.mrb[0].mxu0
      %v2352 = vadd.f32 0.0, %v2351
      %v2353 = vpop.f32.mrb[0].mxu0
      %2354 = vmatprep.mubr.bf16.mxu0 0
      %2355 = vmatmul.mubr.bf16.gmra.mrb[0].mxu0 %v2284
      %v2356 = vpop.f32.mrb[0].mxu0
      %v2357 = vadd.f32 0.0, %v2356
      %v2358 = vpop.f32.mrb[0].mxu0
      %v2359 = vpop.f32.mrb[0].mxu0
      %v2360 = vadd.f32 0.0, %v2359
      %v2361 = vpop.f32.mrb[0].mxu0
      %2362 = vdwg.mxu0
      %v2363 = vmul.f32 %v2220, 0.17677669
      %v2364 = vmul.f32 %v2223, 0.17677669
      %v2365 = vmul.f32 %v2228, 0.17677669
      %v2366 = vmul.f32 %v2231, 0.17677669
      %v2367 = vmul.f32 %v2236, 0.17677669
      %v2368 = vmul.f32 %v2239, 0.17677669
      %v2369 = vmul.f32 %v2244, 0.17677669
      %v2370 = vmul.f32 %v2247, 0.17677669
      %v2371 = vmul.f32 %v2333, 0.17677669
      %v2372 = vmul.f32 %v2336, 0.17677669
      %v2373 = vmul.f32 %v2341, 0.17677669
      %v2374 = vmul.f32 %v2344, 0.17677669
      %v2375 = vmul.f32 %v2349, 0.17677669
      %v2376 = vmul.f32 %v2352, 0.17677669
      %v2377 = vmul.f32 %v2357, 0.17677669
      %v2378 = vmul.f32 %v2360, 0.17677669
      %v2379 = vadd.f32 %v2363, %v804
      %v2380 = vadd.f32 %v2364, %v805
      %v2381 = vadd.f32 %v2365, %v806
      %v2382 = vadd.f32 %v2366, %v807
      %v2383 = vadd.f32 %v2367, %v808
      %v2384 = vadd.f32 %v2368, %v809
      %v2385 = vadd.f32 %v2369, %v810
      %v2386 = vadd.f32 %v2370, %v811
      %v2387 = vadd.f32 %v2371, %v804
      %v2388 = vadd.f32 %v2372, %v805
      %v2389 = vadd.f32 %v2373, %v806
      %v2390 = vadd.f32 %v2374, %v807
      %v2391 = vadd.f32 %v2375, %v808
      %v2392 = vadd.f32 %v2376, %v809
      %v2393 = vadd.f32 %v2377, %v810
      %v2394 = vadd.f32 %v2378, %v811
      %v2395 = vsel %vm1798, %v2379, -inf
      %2396 = vmax.xlane.f32.xlu0 %v2395
      %v2397 = vpop.xlane.xlu0 %2396
      %v2398 = vsel %vm1798, %v2380, -inf
      %2399 = vmax.xlane.f32.xlu0 %v2398
      %v2400 = vpop.xlane.xlu0 %2399
      %v2401 = vsel %vm1798, %v2381, -inf
      %2402 = vmax.xlane.f32.xlu0 %v2401
      %v2403 = vpop.xlane.xlu0 %2402
      %v2404 = vsel %vm1798, %v2382, -inf
      %2405 = vmax.xlane.f32.xlu0 %v2404
      %v2406 = vpop.xlane.xlu0 %2405
      %v2407 = vsel %vm1798, %v2383, -inf
      %2408 = vmax.xlane.f32.xlu0 %v2407
      %v2409 = vpop.xlane.xlu0 %2408
      %v2410 = vsel %vm1798, %v2384, -inf
      %2411 = vmax.xlane.f32.xlu0 %v2410
      %v2412 = vpop.xlane.xlu0 %2411
      %v2413 = vsel %vm1798, %v2385, -inf
      %2414 = vmax.xlane.f32.xlu0 %v2413
      %v2415 = vpop.xlane.xlu0 %2414
      %v2416 = vsel %vm1798, %v2386, -inf
      %2417 = vmax.xlane.f32.xlu0 %v2416
      %v2418 = vpop.xlane.xlu0 %2417
      %v2419 = vsel %vm1798, %v2387, -inf
      %2420 = vmax.xlane.f32.xlu0 %v2419
      %v2421 = vpop.xlane.xlu0 %2420
      %v2422 = vsel %vm1798, %v2388, -inf
      %2423 = vmax.xlane.f32.xlu0 %v2422
      %v2424 = vpop.xlane.xlu0 %2423
      %v2425 = vsel %vm1798, %v2389, -inf
      %2426 = vmax.xlane.f32.xlu0 %v2425
      %v2427 = vpop.xlane.xlu0 %2426
      %v2428 = vsel %vm1798, %v2390, -inf
      %2429 = vmax.xlane.f32.xlu0 %v2428
      %v2430 = vpop.xlane.xlu0 %2429
      %v2431 = vsel %vm1798, %v2391, -inf
      %2432 = vmax.xlane.f32.xlu0 %v2431
      %v2433 = vpop.xlane.xlu0 %2432
      %v2434 = vsel %vm1798, %v2392, -inf
      %2435 = vmax.xlane.f32.xlu0 %v2434
      %v2436 = vpop.xlane.xlu0 %2435
      %v2437 = vsel %vm1798, %v2393, -inf
      %2438 = vmax.xlane.f32.xlu0 %v2437
      %v2439 = vpop.xlane.xlu0 %2438
      %v2440 = vsel %vm1798, %v2394, -inf
      %2441 = vmax.xlane.f32.xlu0 %v2440
      %v2442 = vpop.xlane.xlu0 %2441
      %v2443 = vsub.f32 %v2379, %v2397
      %v2444 = vsub.f32 %v2380, %v2400
      %v2445 = vsub.f32 %v2381, %v2403
      %v2446 = vsub.f32 %v2382, %v2406
      %v2447 = vsub.f32 %v2383, %v2409
      %v2448 = vsub.f32 %v2384, %v2412
      %v2449 = vsub.f32 %v2385, %v2415
      %v2450 = vsub.f32 %v2386, %v2418
      %v2451 = vsub.f32 %v2387, %v2421
      %v2452 = vsub.f32 %v2388, %v2424
      %v2453 = vsub.f32 %v2389, %v2427
      %v2454 = vsub.f32 %v2390, %v2430
      %v2455 = vsub.f32 %v2391, %v2433
      %v2456 = vsub.f32 %v2392, %v2436
      %v2457 = vsub.f32 %v2393, %v2439
      %v2458 = vsub.f32 %v2394, %v2442
      %v2459 = vmul.f32 %v2443, 1.442695
      %v2460 = vpow.pop %v2459
      %v2461 = vmul.f32 %v2444, 1.442695
      %v2462 = vpow.pop %v2461
      %v2463 = vmul.f32 %v2445, 1.442695
      %v2464 = vpow.pop %v2463
      %v2465 = vmul.f32 %v2446, 1.442695
      %v2466 = vpow.pop %v2465
      %v2467 = vmul.f32 %v2447, 1.442695
      %v2468 = vpow.pop %v2467
      %v2469 = vmul.f32 %v2448, 1.442695
      %v2470 = vpow.pop %v2469
      %v2471 = vmul.f32 %v2449, 1.442695
      %v2472 = vpow.pop %v2471
      %v2473 = vmul.f32 %v2450, 1.442695
      %v2474 = vpow.pop %v2473
      %v2475 = vmul.f32 %v2451, 1.442695
      %v2476 = vpow.pop %v2475
      %v2477 = vmul.f32 %v2452, 1.442695
      %v2478 = vpow.pop %v2477
      %v2479 = vmul.f32 %v2453, 1.442695
      %v2480 = vpow.pop %v2479
      %v2481 = vmul.f32 %v2454, 1.442695
      %v2482 = vpow.pop %v2481
      %v2483 = vmul.f32 %v2455, 1.442695
      %v2484 = vpow.pop %v2483
      %v2485 = vmul.f32 %v2456, 1.442695
      %v2486 = vpow.pop %v2485
      %v2487 = vmul.f32 %v2457, 1.442695
      %v2488 = vpow.pop %v2487
      %v2489 = vmul.f32 %v2458, 1.442695
      %v2490 = vpow.pop %v2489
      %v2491 = vsel %vm1798, %v2460, 0.0
      %2492 = vadd.xlane.f32.xlu0 %v2491
      %v2493 = vpop.xlane.xlu0 %2492
      %v2494 = vsel %vm1798, %v2462, 0.0
      %2495 = vadd.xlane.f32.xlu0 %v2494
      %v2496 = vpop.xlane.xlu0 %2495
      %v2497 = vsel %vm1798, %v2464, 0.0
      %2498 = vadd.xlane.f32.xlu0 %v2497
      %v2499 = vpop.xlane.xlu0 %2498
      %v2500 = vsel %vm1798, %v2466, 0.0
      %2501 = vadd.xlane.f32.xlu0 %v2500
      %v2502 = vpop.xlane.xlu0 %2501
      %v2503 = vsel %vm1798, %v2468, 0.0
      %2504 = vadd.xlane.f32.xlu0 %v2503
      %v2505 = vpop.xlane.xlu0 %2504
      %v2506 = vsel %vm1798, %v2470, 0.0
      %2507 = vadd.xlane.f32.xlu0 %v2506
      %v2508 = vpop.xlane.xlu0 %2507
      %v2509 = vsel %vm1798, %v2472, 0.0
      %2510 = vadd.xlane.f32.xlu0 %v2509
      %v2511 = vpop.xlane.xlu0 %2510
      %v2512 = vsel %vm1798, %v2474, 0.0
      %2513 = vadd.xlane.f32.xlu0 %v2512
      %v2514 = vpop.xlane.xlu0 %2513
      %v2515 = vsel %vm1798, %v2476, 0.0
      %2516 = vadd.xlane.f32.xlu0 %v2515
      %v2517 = vpop.xlane.xlu0 %2516
      %v2518 = vsel %vm1798, %v2478, 0.0
      %2519 = vadd.xlane.f32.xlu0 %v2518
      %v2520 = vpop.xlane.xlu0 %2519
      %v2521 = vsel %vm1798, %v2480, 0.0
      %2522 = vadd.xlane.f32.xlu0 %v2521
      %v2523 = vpop.xlane.xlu0 %2522
      %v2524 = vsel %vm1798, %v2482, 0.0
      %2525 = vadd.xlane.f32.xlu0 %v2524
      %v2526 = vpop.xlane.xlu0 %2525
      %v2527 = vsel %vm1798, %v2484, 0.0
      %2528 = vadd.xlane.f32.xlu0 %v2527
      %v2529 = vpop.xlane.xlu0 %2528
      %v2530 = vsel %vm1798, %v2486, 0.0
      %2531 = vadd.xlane.f32.xlu0 %v2530
      %v2532 = vpop.xlane.xlu0 %2531
      %v2533 = vsel %vm1798, %v2488, 0.0
      %2534 = vadd.xlane.f32.xlu0 %v2533
      %v2535 = vpop.xlane.xlu0 %2534
      %v2536 = vsel %vm1798, %v2490, 0.0
      %2537 = vadd.xlane.f32.xlu0 %v2536
      %v2538 = vpop.xlane.xlu0 %2537
      %v2539 = vrcp.pop %v2493
      %v2540 = vrcp.pop %v2496
      %v2541 = vrcp.pop %v2499
      %v2542 = vrcp.pop %v2502
      %v2543 = vrcp.pop %v2505
      %v2544 = vrcp.pop %v2508
      %v2545 = vrcp.pop %v2511
      %v2546 = vrcp.pop %v2514
      %v2547 = vrcp.pop %v2517
      %v2548 = vrcp.pop %v2520
      %v2549 = vrcp.pop %v2523
      %v2550 = vrcp.pop %v2526
      %v2551 = vrcp.pop %v2529
      %v2552 = vrcp.pop %v2532
      %v2553 = vrcp.pop %v2535
      %v2554 = vrcp.pop %v2538
      %v2555 = vmul.f32 %v2460, %v2539
      %v2556 = vmul.f32 %v2462, %v2540
      %v2557 = vmul.f32 %v2464, %v2541
      %v2558 = vmul.f32 %v2466, %v2542
      %v2559 = vmul.f32 %v2468, %v2543
      %v2560 = vmul.f32 %v2470, %v2544
      %v2561 = vmul.f32 %v2472, %v2545
      %v2562 = vmul.f32 %v2474, %v2546
      %v2563 = vmul.f32 %v2476, %v2547
      %v2564 = vmul.f32 %v2478, %v2548
      %v2565 = vmul.f32 %v2480, %v2549
      %v2566 = vmul.f32 %v2482, %v2550
      %v2567 = vmul.f32 %v2484, %v2551
      %v2568 = vmul.f32 %v2486, %v2552
      %v2569 = vmul.f32 %v2488, %v2553
      %v2570 = vmul.f32 %v2490, %v2554
      %v2571 = vpack.c.bf16 %v2556, %v2555
      %v2572 = vpack.c.bf16 %v2558, %v2557
      %v2573 = vpack.c.bf16 %v2560, %v2559
      %v2574 = vpack.c.bf16 %v2562, %v2561
      %v2575 = vpack.c.bf16 %v2564, %v2563
      %v2576 = vpack.c.bf16 %v2566, %v2565
      %v2577 = vpack.c.bf16 %v2568, %v2567
      %v2578 = vpack.c.bf16 %v2570, %v2569
      %2583 = vrot.lane.b32.xlu0 %v1579, 96
      %v2584 = vpop.permute.xlu0 %2583
      %2585 = vrot.lane.b32.xlu0 %v1580, 96
      %v2586 = vpop.permute.xlu0 %2585
      %2587 = vrot.lane.b32.xlu0 %v1581, 96
      %v2588 = vpop.permute.xlu0 %2587
      %2589 = vrot.lane.b32.xlu0 %v1582, 96
      %v2590 = vpop.permute.xlu0 %2589
      %v2596 = vsel %vm1798, %v2571, 0
      %v2599 = vsel %vm1798, %v2572, 0
      %v2602 = vsel %vm1798, %v2573, 0
      %v2605 = vsel %vm1798, %v2574, 0
      %2607 = vmatprep.subr.bf16.mxu0 0
      %2608 = vmatpush1.bf16.msra.mxu0 %v2584
      %2609 = vmatprep.subr.bf16.mxu0 0
      %2610 = vmatpush1.bf16.msra.mxu0 %v2586
      %2611 = vmatprep.subr.bf16.mxu0 0
      %2612 = vmatpush1.bf16.msra.mxu0 %v2588
      %2613 = vmatprep.subr.bf16.mxu0 0
      %2614 = vmatpush1.bf16.msra.mxu0 %v2590
      %2615 = vmatprep.subr.bf16.mxu0 0
      %2616 = vmatpush1.bf16.msra.mxu0 0
      %2617 = vmatprep.subr.bf16.mxu0 0
      %2618 = vmatpush1.bf16.msra.mxu0 0
      %2619 = vmatprep.subr.bf16.mxu0 0
      %2620 = vmatpush1.bf16.msra.mxu0 0
      %2621 = vmatprep.subr.bf16.mxu0 0
      %2622 = vmatpush1.bf16.msra.mxu0 0
      %2623 = vmatprep.subr.bf16.mxu0 0
      %2624 = vmatpush1.bf16.msra.mxu0 0
      %2625 = vmatprep.subr.bf16.mxu0 0
      %2626 = vmatpush1.bf16.msra.mxu0 0
      %2627 = vmatprep.subr.bf16.mxu0 0
      %2628 = vmatpush1.bf16.msra.mxu0 0
      %2629 = vmatprep.subr.bf16.mxu0 0
      %2630 = vmatpush1.bf16.msra.mxu0 0
      %2631 = vmatprep.subr.bf16.mxu0 0
      %2632 = vmatpush1.bf16.msra.mxu0 0
      %2633 = vmatprep.subr.bf16.mxu0 0
      %2634 = vmatpush1.bf16.msra.mxu0 0
      %2635 = vmatprep.subr.bf16.mxu0 0
      %2636 = vmatpush1.bf16.msra.mxu0 0
      %2637 = vmatprep.subr.bf16.mxu0 0
      %2638 = vmatpush1.bf16.msra.mxu0 0
      %2639 = vmatprep.mubr.bf16.mxu0 0
      %2640 = vmatmul.mubr.bf16.gmra.mrb[0].mxu0 %v2596
      %v2641 = vpop.f32.mrb[0].mxu0
      %v2642 = vadd.f32 0.0, %v2641
      %v2643 = vpop.f32.mrb[0].mxu0
      %v2644 = vpop.f32.mrb[0].mxu0
      %v2645 = vadd.f32 0.0, %v2644
      %v2646 = vpop.f32.mrb[0].mxu0
      %2647 = vmatprep.mubr.bf16.mxu0 0
      %2648 = vmatmul.mubr.bf16.gmra.mrb[0].mxu0 %v2599
      %v2649 = vpop.f32.mrb[0].mxu0
      %v2650 = vadd.f32 0.0, %v2649
      %v2651 = vpop.f32.mrb[0].mxu0
      %v2652 = vpop.f32.mrb[0].mxu0
      %v2653 = vadd.f32 0.0, %v2652
      %v2654 = vpop.f32.mrb[0].mxu0
      %2655 = vmatprep.mubr.bf16.mxu0 0
      %2656 = vmatmul.mubr.bf16.gmra.mrb[0].mxu0 %v2602
      %v2657 = vpop.f32.mrb[0].mxu0
      %v2658 = vadd.f32 0.0, %v2657
      %v2659 = vpop.f32.mrb[0].mxu0
      %v2660 = vpop.f32.mrb[0].mxu0
      %v2661 = vadd.f32 0.0, %v2660
      %v2662 = vpop.f32.mrb[0].mxu0
      %2663 = vmatprep.mubr.bf16.mxu0 0
      %2664 = vmatmul.mubr.bf16.gmra.mrb[0].mxu0 %v2605
      %v2665 = vpop.f32.mrb[0].mxu0
      %v2666 = vadd.f32 0.0, %v2665
      %v2667 = vpop.f32.mrb[0].mxu0
      %v2668 = vpop.f32.mrb[0].mxu0
      %v2669 = vadd.f32 0.0, %v2668
      %v2670 = vpop.f32.mrb[0].mxu0
      %2671 = vdwg.mxu0
      %2676 = vrot.lane.b32.xlu0 %v1583, 96
      %v2677 = vpop.permute.xlu0 %2676
      %2678 = vrot.lane.b32.xlu0 %v1584, 96
      %v2679 = vpop.permute.xlu0 %2678
      %2680 = vrot.lane.b32.xlu0 %v1585, 96
      %v2681 = vpop.permute.xlu0 %2680
      %2682 = vrot.lane.b32.xlu0 %v1586, 96
      %v2683 = vpop.permute.xlu0 %2682
      %v2689 = vsel %vm1798, %v2575, 0
      %v2692 = vsel %vm1798, %v2576, 0
      %v2695 = vsel %vm1798, %v2577, 0
      %v2698 = vsel %vm1798, %v2578, 0
      %2700 = vmatprep.subr.bf16.mxu0 0
      %2701 = vmatpush1.bf16.msra.mxu0 %v2677
      %2702 = vmatprep.subr.bf16.mxu0 0
      %2703 = vmatpush1.bf16.msra.mxu0 %v2679
      %2704 = vmatprep.subr.bf16.mxu0 0
      %2705 = vmatpush1.bf16.msra.mxu0 %v2681
      %2706 = vmatprep.subr.bf16.mxu0 0
      %2707 = vmatpush1.bf16.msra.mxu0 %v2683
      %2708 = vmatprep.subr.bf16.mxu0 0
      %2709 = vmatpush1.bf16.msra.mxu0 0
      %2710 = vmatprep.subr.bf16.mxu0 0
      %2711 = vmatpush1.bf16.msra.mxu0 0
      %2712 = vmatprep.subr.bf16.mxu0 0
      %2713 = vmatpush1.bf16.msra.mxu0 0
      %2714 = vmatprep.subr.bf16.mxu0 0
      %2715 = vmatpush1.bf16.msra.mxu0 0
      %2716 = vmatprep.subr.bf16.mxu0 0
      %2717 = vmatpush1.bf16.msra.mxu0 0
      %2718 = vmatprep.subr.bf16.mxu0 0
      %2719 = vmatpush1.bf16.msra.mxu0 0
      %2720 = vmatprep.subr.bf16.mxu0 0
      %2721 = vmatpush1.bf16.msra.mxu0 0
      %2722 = vmatprep.subr.bf16.mxu0 0
      %2723 = vmatpush1.bf16.msra.mxu0 0
      %2724 = vmatprep.subr.bf16.mxu0 0
      %2725 = vmatpush1.bf16.msra.mxu0 0
      %2726 = vmatprep.subr.bf16.mxu0 0
      %2727 = vmatpush1.bf16.msra.mxu0 0
      %2728 = vmatprep.subr.bf16.mxu0 0
      %2729 = vmatpush1.bf16.msra.mxu0 0
      %2730 = vmatprep.subr.bf16.mxu0 0
      %2731 = vmatpush1.bf16.msra.mxu0 0
      %2732 = vmatprep.mubr.bf16.mxu0 0
      %2733 = vmatmul.mubr.bf16.gmra.mrb[0].mxu0 %v2689
      %v2734 = vpop.f32.mrb[0].mxu0
      %v2735 = vadd.f32 0.0, %v2734
      %v2736 = vpop.f32.mrb[0].mxu0
      %v2737 = vpop.f32.mrb[0].mxu0
      %v2738 = vadd.f32 0.0, %v2737
      %v2739 = vpop.f32.mrb[0].mxu0
      %2740 = vmatprep.mubr.bf16.mxu0 0
      %2741 = vmatmul.mubr.bf16.gmra.mrb[0].mxu0 %v2692
      %v2742 = vpop.f32.mrb[0].mxu0
      %v2743 = vadd.f32 0.0, %v2742
      %v2744 = vpop.f32.mrb[0].mxu0
      %v2745 = vpop.f32.mrb[0].mxu0
      %v2746 = vadd.f32 0.0, %v2745
      %v2747 = vpop.f32.mrb[0].mxu0
      %2748 = vmatprep.mubr.bf16.mxu0 0
      %2749 = vmatmul.mubr.bf16.gmra.mrb[0].mxu0 %v2695
      %v2750 = vpop.f32.mrb[0].mxu0
      %v2751 = vadd.f32 0.0, %v2750
      %v2752 = vpop.f32.mrb[0].mxu0
      %v2753 = vpop.f32.mrb[0].mxu0
      %v2754 = vadd.f32 0.0, %v2753
      %v2755 = vpop.f32.mrb[0].mxu0
      %2756 = vmatprep.mubr.bf16.mxu0 0
      %2757 = vmatmul.mubr.bf16.gmra.mrb[0].mxu0 %v2698
      %v2758 = vpop.f32.mrb[0].mxu0
      %v2759 = vadd.f32 0.0, %v2758
      %v2760 = vpop.f32.mrb[0].mxu0
      %v2761 = vpop.f32.mrb[0].mxu0
      %v2762 = vadd.f32 0.0, %v2761
      %v2763 = vpop.f32.mrb[0].mxu0
      %2764 = vdwg.mxu0
      %2765 = vrot.lane.b32.xlu0 %v1563, 64
      %v2766 = vpop.permute.xlu0 %2765
      %2767 = vrot.lane.b32.xlu0 %v1564, 64
      %v2768 = vpop.permute.xlu0 %2767
      %2769 = vrot.lane.b32.xlu0 %v1565, 64
      %v2770 = vpop.permute.xlu0 %2769
      %2771 = vrot.lane.b32.xlu0 %v1566, 64
      %v2772 = vpop.permute.xlu0 %2771
      %2773 = vrot.lane.b32.xlu0 %v1571, 64
      %v2774 = vpop.permute.xlu0 %2773
      %2775 = vrot.lane.b32.xlu0 %v1572, 64
      %v2776 = vpop.permute.xlu0 %2775
      %2777 = vrot.lane.b32.xlu0 %v1573, 64
      %v2778 = vpop.permute.xlu0 %2777
      %2779 = vrot.lane.b32.xlu0 %v1574, 64
      %v2780 = vpop.permute.xlu0 %2779
      %v2782 = vsel %vm1587, %v2766, 0
      %v2785 = vsel %vm1587, %v2768, 0
      %v2788 = vsel %vm1587, %v2770, 0
      %v2791 = vsel %vm1587, %v2772, 0
      %v2794 = vsel %vm1587, %v2774, 0
      %v2797 = vsel %vm1587, %v2776, 0
      %v2800 = vsel %vm1587, %v2778, 0
      %v2803 = vsel %vm1587, %v2780, 0
      %2805 = vmatprep.subr.bf16.mxu0 0
      %2806 = vmatpush1.bf16.xpose.msra.mxu0 %v2794
      %2807 = vmatprep.subr.bf16.mxu0 0
      %2808 = vmatpush1.bf16.xpose.msra.mxu0 %v2797
      %2809 = vmatprep.subr.bf16.mxu0 0
      %2810 = vmatpush1.bf16.xpose.msra.mxu0 %v2800
      %2811 = vmatprep.subr.bf16.mxu0 0
      %2812 = vmatpush1.bf16.xpose.msra.mxu0 %v2803
      %2813 = vmatprep.subr.bf16.mxu0 0
      %2814 = vmatpush1.bf16.xpose.msra.mxu0 0
      %2815 = vmatprep.subr.bf16.mxu0 0
      %2816 = vmatpush1.bf16.xpose.msra.mxu0 0
      %2817 = vmatprep.subr.bf16.mxu0 0
      %2818 = vmatpush1.bf16.xpose.msra.mxu0 0
      %2819 = vmatprep.subr.bf16.mxu0 0
      %2820 = vmatpush1.bf16.xpose.msra.mxu0 0
      %2821 = vmatprep.subr.bf16.mxu0 0
      %2822 = vmatpush1.bf16.xpose.msra.mxu0 0
      %2823 = vmatprep.subr.bf16.mxu0 0
      %2824 = vmatpush1.bf16.xpose.msra.mxu0 0
      %2825 = vmatprep.subr.bf16.mxu0 0
      %2826 = vmatpush1.bf16.xpose.msra.mxu0 0
      %2827 = vmatprep.subr.bf16.mxu0 0
      %2828 = vmatpush1.bf16.xpose.msra.mxu0 0
      %2829 = vmatprep.subr.bf16.mxu0 0
      %2830 = vmatpush1.bf16.xpose.msra.mxu0 0
      %2831 = vmatprep.subr.bf16.mxu0 0
      %2832 = vmatpush1.bf16.xpose.msra.mxu0 0
      %2833 = vmatprep.subr.bf16.mxu0 0
      %2834 = vmatpush1.bf16.xpose.msra.mxu0 0
      %2835 = vmatprep.subr.bf16.mxu0 0
      %2836 = vmatpush1.bf16.xpose.msra.mxu0 0
      %2837 = vmatprep.mubr.bf16.mxu0 0
      %2838 = vmatmul.mubr.bf16.gmra.mrb[0].mxu0 %v2782
      %v2839 = vpop.f32.mrb[0].mxu0
      %v2840 = vadd.f32 0.0, %v2839
      %v2841 = vpop.f32.mrb[0].mxu0
      %v2842 = vpop.f32.mrb[0].mxu0
      %v2843 = vadd.f32 0.0, %v2842
      %v2844 = vpop.f32.mrb[0].mxu0
      %2845 = vmatprep.mubr.bf16.mxu0 0
      %2846 = vmatmul.mubr.bf16.gmra.mrb[0].mxu0 %v2785
      %v2847 = vpop.f32.mrb[0].mxu0
      %v2848 = vadd.f32 0.0, %v2847
      %v2849 = vpop.f32.mrb[0].mxu0
      %v2850 = vpop.f32.mrb[0].mxu0
      %v2851 = vadd.f32 0.0, %v2850
      %v2852 = vpop.f32.mrb[0].mxu0
      %2853 = vmatprep.mubr.bf16.mxu0 0
      %2854 = vmatmul.mubr.bf16.gmra.mrb[0].mxu0 %v2788
      %v2855 = vpop.f32.mrb[0].mxu0
      %v2856 = vadd.f32 0.0, %v2855
      %v2857 = vpop.f32.mrb[0].mxu0
      %v2858 = vpop.f32.mrb[0].mxu0
      %v2859 = vadd.f32 0.0, %v2858
      %v2860 = vpop.f32.mrb[0].mxu0
      %2861 = vmatprep.mubr.bf16.mxu0 0
      %2862 = vmatmul.mubr.bf16.gmra.mrb[0].mxu0 %v2791
      %v2863 = vpop.f32.mrb[0].mxu0
      %v2864 = vadd.f32 0.0, %v2863
      %v2865 = vpop.f32.mrb[0].mxu0
      %v2866 = vpop.f32.mrb[0].mxu0
      %v2867 = vadd.f32 0.0, %v2866
      %v2868 = vpop.f32.mrb[0].mxu0
      %2869 = vdwg.mxu0
      %2870 = vrot.lane.b32.xlu0 %v1567, 64
      %v2871 = vpop.permute.xlu0 %2870
      %2872 = vrot.lane.b32.xlu0 %v1568, 64
      %v2873 = vpop.permute.xlu0 %2872
      %2874 = vrot.lane.b32.xlu0 %v1569, 64
      %v2875 = vpop.permute.xlu0 %2874
      %2876 = vrot.lane.b32.xlu0 %v1570, 64
      %v2877 = vpop.permute.xlu0 %2876
      %2878 = vrot.lane.b32.xlu0 %v1575, 64
      %v2879 = vpop.permute.xlu0 %2878
      %2880 = vrot.lane.b32.xlu0 %v1576, 64
      %v2881 = vpop.permute.xlu0 %2880
      %2882 = vrot.lane.b32.xlu0 %v1577, 64
      %v2883 = vpop.permute.xlu0 %2882
      %2884 = vrot.lane.b32.xlu0 %v1578, 64
      %v2885 = vpop.permute.xlu0 %2884
      %v2887 = vsel %vm1587, %v2871, 0
      %v2890 = vsel %vm1587, %v2873, 0
      %v2893 = vsel %vm1587, %v2875, 0
      %v2896 = vsel %vm1587, %v2877, 0
      %v2899 = vsel %vm1587, %v2879, 0
      %v2902 = vsel %vm1587, %v2881, 0
      %v2905 = vsel %vm1587, %v2883, 0
      %v2908 = vsel %vm1587, %v2885, 0
      %2910 = vmatprep.subr.bf16.mxu0 0
      %2911 = vmatpush1.bf16.xpose.msra.mxu0 %v2899
      %2912 = vmatprep.subr.bf16.mxu0 0
      %2913 = vmatpush1.bf16.xpose.msra.mxu0 %v2902
      %2914 = vmatprep.subr.bf16.mxu0 0
      %2915 = vmatpush1.bf16.xpose.msra.mxu0 %v2905
      %2916 = vmatprep.subr.bf16.mxu0 0
      %2917 = vmatpush1.bf16.xpose.msra.mxu0 %v2908
      %2918 = vmatprep.subr.bf16.mxu0 0
      %2919 = vmatpush1.bf16.xpose.msra.mxu0 0
      %2920 = vmatprep.subr.bf16.mxu0 0
      %2921 = vmatpush1.bf16.xpose.msra.mxu0 0
      %2922 = vmatprep.subr.bf16.mxu0 0
      %2923 = vmatpush1.bf16.xpose.msra.mxu0 0
      %2924 = vmatprep.subr.bf16.mxu0 0
      %2925 = vmatpush1.bf16.xpose.msra.mxu0 0
      %2926 = vmatprep.subr.bf16.mxu0 0
      %2927 = vmatpush1.bf16.xpose.msra.mxu0 0
      %2928 = vmatprep.subr.bf16.mxu0 0
      %2929 = vmatpush1.bf16.xpose.msra.mxu0 0
      %2930 = vmatprep.subr.bf16.mxu0 0
      %2931 = vmatpush1.bf16.xpose.msra.mxu0 0
      %2932 = vmatprep.subr.bf16.mxu0 0
      %2933 = vmatpush1.bf16.xpose.msra.mxu0 0
      %2934 = vmatprep.subr.bf16.mxu0 0
      %2935 = vmatpush1.bf16.xpose.msra.mxu0 0
      %2936 = vmatprep.subr.bf16.mxu0 0
      %2937 = vmatpush1.bf16.xpose.msra.mxu0 0
      %2938 = vmatprep.subr.bf16.mxu0 0
      %2939 = vmatpush1.bf16.xpose.msra.mxu0 0
      %2940 = vmatprep.subr.bf16.mxu0 0
      %2941 = vmatpush1.bf16.xpose.msra.mxu0 0
      %2942 = vmatprep.mubr.bf16.mxu0 0
      %2943 = vmatmul.mubr.bf16.gmra.mrb[0].mxu0 %v2887
      %v2944 = vpop.f32.mrb[0].mxu0
      %v2945 = vadd.f32 0.0, %v2944
      %v2946 = vpop.f32.mrb[0].mxu0
      %v2947 = vpop.f32.mrb[0].mxu0
      %v2948 = vadd.f32 0.0, %v2947
      %v2949 = vpop.f32.mrb[0].mxu0
      %2950 = vmatprep.mubr.bf16.mxu0 0
      %2951 = vmatmul.mubr.bf16.gmra.mrb[0].mxu0 %v2890
      %v2952 = vpop.f32.mrb[0].mxu0
      %v2953 = vadd.f32 0.0, %v2952
      %v2954 = vpop.f32.mrb[0].mxu0
      %v2955 = vpop.f32.mrb[0].mxu0
      %v2956 = vadd.f32 0.0, %v2955
      %v2957 = vpop.f32.mrb[0].mxu0
      %2958 = vmatprep.mubr.bf16.mxu0 0
      %2959 = vmatmul.mubr.bf16.gmra.mrb[0].mxu0 %v2893
      %v2960 = vpop.f32.mrb[0].mxu0
      %v2961 = vadd.f32 0.0, %v2960
      %v2962 = vpop.f32.mrb[0].mxu0
      %v2963 = vpop.f32.mrb[0].mxu0
      %v2964 = vadd.f32 0.0, %v2963
      %v2965 = vpop.f32.mrb[0].mxu0
      %2966 = vmatprep.mubr.bf16.mxu0 0
      %2967 = vmatmul.mubr.bf16.gmra.mrb[0].mxu0 %v2896
      %v2968 = vpop.f32.mrb[0].mxu0
      %v2969 = vadd.f32 0.0, %v2968
      %v2970 = vpop.f32.mrb[0].mxu0
      %v2971 = vpop.f32.mrb[0].mxu0
      %v2972 = vadd.f32 0.0, %v2971
      %v2973 = vpop.f32.mrb[0].mxu0
      %2974 = vdwg.mxu0
      %v2975 = vmul.f32 %v2840, 0.17677669
      %v2976 = vmul.f32 %v2843, 0.17677669
      %v2977 = vmul.f32 %v2848, 0.17677669
      %v2978 = vmul.f32 %v2851, 0.17677669
      %v2979 = vmul.f32 %v2856, 0.17677669
      %v2980 = vmul.f32 %v2859, 0.17677669
      %v2981 = vmul.f32 %v2864, 0.17677669
      %v2982 = vmul.f32 %v2867, 0.17677669
      %v2983 = vmul.f32 %v2945, 0.17677669
      %v2984 = vmul.f32 %v2948, 0.17677669
      %v2985 = vmul.f32 %v2953, 0.17677669
      %v2986 = vmul.f32 %v2956, 0.17677669
      %v2987 = vmul.f32 %v2961, 0.17677669
      %v2988 = vmul.f32 %v2964, 0.17677669
      %v2989 = vmul.f32 %v2969, 0.17677669
      %v2990 = vmul.f32 %v2972, 0.17677669
      %v2991 = vadd.f32 %v2975, %v804
      %v2992 = vadd.f32 %v2976, %v805
      %v2993 = vadd.f32 %v2977, %v806
      %v2994 = vadd.f32 %v2978, %v807
      %v2995 = vadd.f32 %v2979, %v808
      %v2996 = vadd.f32 %v2980, %v809
      %v2997 = vadd.f32 %v2981, %v810
      %v2998 = vadd.f32 %v2982, %v811
      %v2999 = vadd.f32 %v2983, %v804
      %v3000 = vadd.f32 %v2984, %v805
      %v3001 = vadd.f32 %v2985, %v806
      %v3002 = vadd.f32 %v2986, %v807
      %v3003 = vadd.f32 %v2987, %v808
      %v3004 = vadd.f32 %v2988, %v809
      %v3005 = vadd.f32 %v2989, %v810
      %v3006 = vadd.f32 %v2990, %v811
      %v3007 = vsel %vm1798, %v2991, -inf
      %3008 = vmax.xlane.f32.xlu0 %v3007
      %v3009 = vpop.xlane.xlu0 %3008
      %v3010 = vsel %vm1798, %v2992, -inf
      %3011 = vmax.xlane.f32.xlu0 %v3010
      %v3012 = vpop.xlane.xlu0 %3011
      %v3013 = vsel %vm1798, %v2993, -inf
      %3014 = vmax.xlane.f32.xlu0 %v3013
      %v3015 = vpop.xlane.xlu0 %3014
      %v3016 = vsel %vm1798, %v2994, -inf
      %3017 = vmax.xlane.f32.xlu0 %v3016
      %v3018 = vpop.xlane.xlu0 %3017
      %v3019 = vsel %vm1798, %v2995, -inf
      %3020 = vmax.xlane.f32.xlu0 %v3019
      %v3021 = vpop.xlane.xlu0 %3020
      %v3022 = vsel %vm1798, %v2996, -inf
      %3023 = vmax.xlane.f32.xlu0 %v3022
      %v3024 = vpop.xlane.xlu0 %3023
      %v3025 = vsel %vm1798, %v2997, -inf
      %3026 = vmax.xlane.f32.xlu0 %v3025
      %v3027 = vpop.xlane.xlu0 %3026
      %v3028 = vsel %vm1798, %v2998, -inf
      %3029 = vmax.xlane.f32.xlu0 %v3028
      %v3030 = vpop.xlane.xlu0 %3029
      %v3031 = vsel %vm1798, %v2999, -inf
      %3032 = vmax.xlane.f32.xlu0 %v3031
      %v3033 = vpop.xlane.xlu0 %3032
      %v3034 = vsel %vm1798, %v3000, -inf
      %3035 = vmax.xlane.f32.xlu0 %v3034
      %v3036 = vpop.xlane.xlu0 %3035
      %v3037 = vsel %vm1798, %v3001, -inf
      %3038 = vmax.xlane.f32.xlu0 %v3037
      %v3039 = vpop.xlane.xlu0 %3038
      %v3040 = vsel %vm1798, %v3002, -inf
      %3041 = vmax.xlane.f32.xlu0 %v3040
      %v3042 = vpop.xlane.xlu0 %3041
      %v3043 = vsel %vm1798, %v3003, -inf
      %3044 = vmax.xlane.f32.xlu0 %v3043
      %v3045 = vpop.xlane.xlu0 %3044
      %v3046 = vsel %vm1798, %v3004, -inf
      %3047 = vmax.xlane.f32.xlu0 %v3046
      %v3048 = vpop.xlane.xlu0 %3047
      %v3049 = vsel %vm1798, %v3005, -inf
      %3050 = vmax.xlane.f32.xlu0 %v3049
      %v3051 = vpop.xlane.xlu0 %3050
      %v3052 = vsel %vm1798, %v3006, -inf
      %3053 = vmax.xlane.f32.xlu0 %v3052
      %v3054 = vpop.xlane.xlu0 %3053
      %v3055 = vsub.f32 %v2991, %v3009
      %v3056 = vsub.f32 %v2992, %v3012
      %v3057 = vsub.f32 %v2993, %v3015
      %v3058 = vsub.f32 %v2994, %v3018
      %v3059 = vsub.f32 %v2995, %v3021
      %v3060 = vsub.f32 %v2996, %v3024
      %v3061 = vsub.f32 %v2997, %v3027
      %v3062 = vsub.f32 %v2998, %v3030
      %v3063 = vsub.f32 %v2999, %v3033
      %v3064 = vsub.f32 %v3000, %v3036
      %v3065 = vsub.f32 %v3001, %v3039
      %v3066 = vsub.f32 %v3002, %v3042
      %v3067 = vsub.f32 %v3003, %v3045
      %v3068 = vsub.f32 %v3004, %v3048
      %v3069 = vsub.f32 %v3005, %v3051
      %v3070 = vsub.f32 %v3006, %v3054
      %v3071 = vmul.f32 %v3055, 1.442695
      %v3072 = vpow.pop %v3071
      %v3073 = vmul.f32 %v3056, 1.442695
      %v3074 = vpow.pop %v3073
      %v3075 = vmul.f32 %v3057, 1.442695
      %v3076 = vpow.pop %v3075
      %v3077 = vmul.f32 %v3058, 1.442695
      %v3078 = vpow.pop %v3077
      %v3079 = vmul.f32 %v3059, 1.442695
      %v3080 = vpow.pop %v3079
      %v3081 = vmul.f32 %v3060, 1.442695
      %v3082 = vpow.pop %v3081
      %v3083 = vmul.f32 %v3061, 1.442695
      %v3084 = vpow.pop %v3083
      %v3085 = vmul.f32 %v3062, 1.442695
      %v3086 = vpow.pop %v3085
      %v3087 = vmul.f32 %v3063, 1.442695
      %v3088 = vpow.pop %v3087
      %v3089 = vmul.f32 %v3064, 1.442695
      %v3090 = vpow.pop %v3089
      %v3091 = vmul.f32 %v3065, 1.442695
      %v3092 = vpow.pop %v3091
      %v3093 = vmul.f32 %v3066, 1.442695
      %v3094 = vpow.pop %v3093
      %v3095 = vmul.f32 %v3067, 1.442695
      %v3096 = vpow.pop %v3095
      %v3097 = vmul.f32 %v3068, 1.442695
      %v3098 = vpow.pop %v3097
      %v3099 = vmul.f32 %v3069, 1.442695
      %v3100 = vpow.pop %v3099
      %v3101 = vmul.f32 %v3070, 1.442695
      %v3102 = vpow.pop %v3101
      %v3103 = vsel %vm1798, %v3072, 0.0
      %3104 = vadd.xlane.f32.xlu0 %v3103
      %v3105 = vpop.xlane.xlu0 %3104
      %v3106 = vsel %vm1798, %v3074, 0.0
      %3107 = vadd.xlane.f32.xlu0 %v3106
      %v3108 = vpop.xlane.xlu0 %3107
      %v3109 = vsel %vm1798, %v3076, 0.0
      %3110 = vadd.xlane.f32.xlu0 %v3109
      %v3111 = vpop.xlane.xlu0 %3110
      %v3112 = vsel %vm1798, %v3078, 0.0
      %3113 = vadd.xlane.f32.xlu0 %v3112
      %v3114 = vpop.xlane.xlu0 %3113
      %v3115 = vsel %vm1798, %v3080, 0.0
      %3116 = vadd.xlane.f32.xlu0 %v3115
      %v3117 = vpop.xlane.xlu0 %3116
      %v3118 = vsel %vm1798, %v3082, 0.0
      %3119 = vadd.xlane.f32.xlu0 %v3118
      %v3120 = vpop.xlane.xlu0 %3119
      %v3121 = vsel %vm1798, %v3084, 0.0
      %3122 = vadd.xlane.f32.xlu0 %v3121
      %v3123 = vpop.xlane.xlu0 %3122
      %v3124 = vsel %vm1798, %v3086, 0.0
      %3125 = vadd.xlane.f32.xlu0 %v3124
      %v3126 = vpop.xlane.xlu0 %3125
      %v3127 = vsel %vm1798, %v3088, 0.0
      %3128 = vadd.xlane.f32.xlu0 %v3127
      %v3129 = vpop.xlane.xlu0 %3128
      %v3130 = vsel %vm1798, %v3090, 0.0
      %3131 = vadd.xlane.f32.xlu0 %v3130
      %v3132 = vpop.xlane.xlu0 %3131
      %v3133 = vsel %vm1798, %v3092, 0.0
      %3134 = vadd.xlane.f32.xlu0 %v3133
      %v3135 = vpop.xlane.xlu0 %3134
      %v3136 = vsel %vm1798, %v3094, 0.0
      %3137 = vadd.xlane.f32.xlu0 %v3136
      %v3138 = vpop.xlane.xlu0 %3137
      %v3139 = vsel %vm1798, %v3096, 0.0
      %3140 = vadd.xlane.f32.xlu0 %v3139
      %v3141 = vpop.xlane.xlu0 %3140
      %v3142 = vsel %vm1798, %v3098, 0.0
      %3143 = vadd.xlane.f32.xlu0 %v3142
      %v3144 = vpop.xlane.xlu0 %3143
      %v3145 = vsel %vm1798, %v3100, 0.0
      %3146 = vadd.xlane.f32.xlu0 %v3145
      %v3147 = vpop.xlane.xlu0 %3146
      %v3148 = vsel %vm1798, %v3102, 0.0
      %3149 = vadd.xlane.f32.xlu0 %v3148
      %v3150 = vpop.xlane.xlu0 %3149
      %v3151 = vrcp.pop %v3105
      %v3152 = vrcp.pop %v3108
      %v3153 = vrcp.pop %v3111
      %v3154 = vrcp.pop %v3114
      %v3155 = vrcp.pop %v3117
      %v3156 = vrcp.pop %v3120
      %v3157 = vrcp.pop %v3123
      %v3158 = vrcp.pop %v3126
      %v3159 = vrcp.pop %v3129
      %v3160 = vrcp.pop %v3132
      %v3161 = vrcp.pop %v3135
      %v3162 = vrcp.pop %v3138
      %v3163 = vrcp.pop %v3141
      %v3164 = vrcp.pop %v3144
      %v3165 = vrcp.pop %v3147
      %v3166 = vrcp.pop %v3150
      %v3167 = vmul.f32 %v3072, %v3151
      %v3168 = vmul.f32 %v3074, %v3152
      %v3169 = vmul.f32 %v3076, %v3153
      %v3170 = vmul.f32 %v3078, %v3154
      %v3171 = vmul.f32 %v3080, %v3155
      %v3172 = vmul.f32 %v3082, %v3156
      %v3173 = vmul.f32 %v3084, %v3157
      %v3174 = vmul.f32 %v3086, %v3158
      %v3175 = vmul.f32 %v3088, %v3159
      %v3176 = vmul.f32 %v3090, %v3160
      %v3177 = vmul.f32 %v3092, %v3161
      %v3178 = vmul.f32 %v3094, %v3162
      %v3179 = vmul.f32 %v3096, %v3163
      %v3180 = vmul.f32 %v3098, %v3164
      %v3181 = vmul.f32 %v3100, %v3165
      %v3182 = vmul.f32 %v3102, %v3166
      %v3183 = vpack.c.bf16 %v3168, %v3167
      %v3184 = vpack.c.bf16 %v3170, %v3169
      %v3185 = vpack.c.bf16 %v3172, %v3171
      %v3186 = vpack.c.bf16 %v3174, %v3173
      %v3187 = vpack.c.bf16 %v3176, %v3175
      %v3188 = vpack.c.bf16 %v3178, %v3177
      %v3189 = vpack.c.bf16 %v3180, %v3179
      %v3190 = vpack.c.bf16 %v3182, %v3181
      %3191 = vrot.lane.b32.xlu0 %v1579, 64
      %v3192 = vpop.permute.xlu0 %3191
      %3193 = vrot.lane.b32.xlu0 %v1580, 64
      %v3194 = vpop.permute.xlu0 %3193
      %3195 = vrot.lane.b32.xlu0 %v1581, 64
      %v3196 = vpop.permute.xlu0 %3195
      %3197 = vrot.lane.b32.xlu0 %v1582, 64
      %v3198 = vpop.permute.xlu0 %3197
      %v3204 = vsel %vm1798, %v3183, 0
      %v3207 = vsel %vm1798, %v3184, 0
      %v3210 = vsel %vm1798, %v3185, 0
      %v3213 = vsel %vm1798, %v3186, 0
      %3215 = vmatprep.subr.bf16.mxu0 0
      %3216 = vmatpush1.bf16.msra.mxu0 %v3192
      %3217 = vmatprep.subr.bf16.mxu0 0
      %3218 = vmatpush1.bf16.msra.mxu0 %v3194
      %3219 = vmatprep.subr.bf16.mxu0 0
      %3220 = vmatpush1.bf16.msra.mxu0 %v3196
      %3221 = vmatprep.subr.bf16.mxu0 0
      %3222 = vmatpush1.bf16.msra.mxu0 %v3198
      %3223 = vmatprep.subr.bf16.mxu0 0
      %3224 = vmatpush1.bf16.msra.mxu0 0
      %3225 = vmatprep.subr.bf16.mxu0 0
      %3226 = vmatpush1.bf16.msra.mxu0 0
      %3227 = vmatprep.subr.bf16.mxu0 0
      %3228 = vmatpush1.bf16.msra.mxu0 0
      %3229 = vmatprep.subr.bf16.mxu0 0
      %3230 = vmatpush1.bf16.msra.mxu0 0
      %3231 = vmatprep.subr.bf16.mxu0 0
      %3232 = vmatpush1.bf16.msra.mxu0 0
      %3233 = vmatprep.subr.bf16.mxu0 0
      %3234 = vmatpush1.bf16.msra.mxu0 0
      %3235 = vmatprep.subr.bf16.mxu0 0
      %3236 = vmatpush1.bf16.msra.mxu0 0
      %3237 = vmatprep.subr.bf16.mxu0 0
      %3238 = vmatpush1.bf16.msra.mxu0 0
      %3239 = vmatprep.subr.bf16.mxu0 0
      %3240 = vmatpush1.bf16.msra.mxu0 0
      %3241 = vmatprep.subr.bf16.mxu0 0
      %3242 = vmatpush1.bf16.msra.mxu0 0
      %3243 = vmatprep.subr.bf16.mxu0 0
      %3244 = vmatpush1.bf16.msra.mxu0 0
      %3245 = vmatprep.subr.bf16.mxu0 0
      %3246 = vmatpush1.bf16.msra.mxu0 0
      %3247 = vmatprep.mubr.bf16.mxu0 0
      %3248 = vmatmul.mubr.bf16.gmra.mrb[0].mxu0 %v3204
      %v3249 = vpop.f32.mrb[0].mxu0
      %v3250 = vadd.f32 0.0, %v3249
      %v3251 = vpop.f32.mrb[0].mxu0
      %v3252 = vpop.f32.mrb[0].mxu0
      %v3253 = vadd.f32 0.0, %v3252
      %v3254 = vpop.f32.mrb[0].mxu0
      %3255 = vmatprep.mubr.bf16.mxu0 0
      %3256 = vmatmul.mubr.bf16.gmra.mrb[0].mxu0 %v3207
      %v3257 = vpop.f32.mrb[0].mxu0
      %v3258 = vadd.f32 0.0, %v3257
      %v3259 = vpop.f32.mrb[0].mxu0
      %v3260 = vpop.f32.mrb[0].mxu0
      %v3261 = vadd.f32 0.0, %v3260
      %v3262 = vpop.f32.mrb[0].mxu0
      %3263 = vmatprep.mubr.bf16.mxu0 0
      %3264 = vmatmul.mubr.bf16.gmra.mrb[0].mxu0 %v3210
      %v3265 = vpop.f32.mrb[0].mxu0
      %v3266 = vadd.f32 0.0, %v3265
      %v3267 = vpop.f32.mrb[0].mxu0
      %v3268 = vpop.f32.mrb[0].mxu0
      %v3269 = vadd.f32 0.0, %v3268
      %v3270 = vpop.f32.mrb[0].mxu0
      %3271 = vmatprep.mubr.bf16.mxu0 0
      %3272 = vmatmul.mubr.bf16.gmra.mrb[0].mxu0 %v3213
      %v3273 = vpop.f32.mrb[0].mxu0
      %v3274 = vadd.f32 0.0, %v3273
      %v3275 = vpop.f32.mrb[0].mxu0
      %v3276 = vpop.f32.mrb[0].mxu0
      %v3277 = vadd.f32 0.0, %v3276
      %v3278 = vpop.f32.mrb[0].mxu0
      %3279 = vdwg.mxu0
      %3280 = vrot.lane.b32.xlu0 %v1583, 64
      %v3281 = vpop.permute.xlu0 %3280
      %3282 = vrot.lane.b32.xlu0 %v1584, 64
      %v3283 = vpop.permute.xlu0 %3282
      %3284 = vrot.lane.b32.xlu0 %v1585, 64
      %v3285 = vpop.permute.xlu0 %3284
      %3286 = vrot.lane.b32.xlu0 %v1586, 64
      %v3287 = vpop.permute.xlu0 %3286
      %v3293 = vsel %vm1798, %v3187, 0
      %v3296 = vsel %vm1798, %v3188, 0
      %v3299 = vsel %vm1798, %v3189, 0
      %v3302 = vsel %vm1798, %v3190, 0
      %3304 = vmatprep.subr.bf16.mxu0 0
      %3305 = vmatpush1.bf16.msra.mxu0 %v3281
      %3306 = vmatprep.subr.bf16.mxu0 0
      %3307 = vmatpush1.bf16.msra.mxu0 %v3283
      %3308 = vmatprep.subr.bf16.mxu0 0
      %3309 = vmatpush1.bf16.msra.mxu0 %v3285
      %3310 = vmatprep.subr.bf16.mxu0 0
      %3311 = vmatpush1.bf16.msra.mxu0 %v3287
      %3312 = vmatprep.subr.bf16.mxu0 0
      %3313 = vmatpush1.bf16.msra.mxu0 0
      %3314 = vmatprep.subr.bf16.mxu0 0
      %3315 = vmatpush1.bf16.msra.mxu0 0
      %3316 = vmatprep.subr.bf16.mxu0 0
      %3317 = vmatpush1.bf16.msra.mxu0 0
      %3318 = vmatprep.subr.bf16.mxu0 0
      %3319 = vmatpush1.bf16.msra.mxu0 0
      %3320 = vmatprep.subr.bf16.mxu0 0
      %3321 = vmatpush1.bf16.msra.mxu0 0
      %3322 = vmatprep.subr.bf16.mxu0 0
      %3323 = vmatpush1.bf16.msra.mxu0 0
      %3324 = vmatprep.subr.bf16.mxu0 0
      %3325 = vmatpush1.bf16.msra.mxu0 0
      %3326 = vmatprep.subr.bf16.mxu0 0
      %3327 = vmatpush1.bf16.msra.mxu0 0
      %3328 = vmatprep.subr.bf16.mxu0 0
      %3329 = vmatpush1.bf16.msra.mxu0 0
      %3330 = vmatprep.subr.bf16.mxu0 0
      %3331 = vmatpush1.bf16.msra.mxu0 0
      %3332 = vmatprep.subr.bf16.mxu0 0
      %3333 = vmatpush1.bf16.msra.mxu0 0
      %3334 = vmatprep.subr.bf16.mxu0 0
      %3335 = vmatpush1.bf16.msra.mxu0 0
      %3336 = vmatprep.mubr.bf16.mxu0 0
      %3337 = vmatmul.mubr.bf16.gmra.mrb[0].mxu0 %v3293
      %v3338 = vpop.f32.mrb[0].mxu0
      %v3339 = vadd.f32 0.0, %v3338
      %v3340 = vpop.f32.mrb[0].mxu0
      %v3341 = vpop.f32.mrb[0].mxu0
      %v3342 = vadd.f32 0.0, %v3341
      %v3343 = vpop.f32.mrb[0].mxu0
      %3344 = vmatprep.mubr.bf16.mxu0 0
      %3345 = vmatmul.mubr.bf16.gmra.mrb[0].mxu0 %v3296
      %v3346 = vpop.f32.mrb[0].mxu0
      %v3347 = vadd.f32 0.0, %v3346
      %v3348 = vpop.f32.mrb[0].mxu0
      %v3349 = vpop.f32.mrb[0].mxu0
      %v3350 = vadd.f32 0.0, %v3349
      %v3351 = vpop.f32.mrb[0].mxu0
      %3352 = vmatprep.mubr.bf16.mxu0 0
      %3353 = vmatmul.mubr.bf16.gmra.mrb[0].mxu0 %v3299
      %v3354 = vpop.f32.mrb[0].mxu0
      %v3355 = vadd.f32 0.0, %v3354
      %v3356 = vpop.f32.mrb[0].mxu0
      %v3357 = vpop.f32.mrb[0].mxu0
      %v3358 = vadd.f32 0.0, %v3357
      %v3359 = vpop.f32.mrb[0].mxu0
      %3360 = vmatprep.mubr.bf16.mxu0 0
      %3361 = vmatmul.mubr.bf16.gmra.mrb[0].mxu0 %v3302
      %v3362 = vpop.f32.mrb[0].mxu0
      %v3363 = vadd.f32 0.0, %v3362
      %v3364 = vpop.f32.mrb[0].mxu0
      %v3365 = vpop.f32.mrb[0].mxu0
      %v3366 = vadd.f32 0.0, %v3365
      %v3367 = vpop.f32.mrb[0].mxu0
      %3368 = vdwg.mxu0
      %3369 = vrot.lane.b32.xlu0 %v1563, 32
      %v3370 = vpop.permute.xlu0 %3369
      %3371 = vrot.lane.b32.xlu0 %v1564, 32
      %v3372 = vpop.permute.xlu0 %3371
      %3373 = vrot.lane.b32.xlu0 %v1565, 32
      %v3374 = vpop.permute.xlu0 %3373
      %3375 = vrot.lane.b32.xlu0 %v1566, 32
      %v3376 = vpop.permute.xlu0 %3375
      %3377 = vrot.lane.b32.xlu0 %v1571, 32
      %v3378 = vpop.permute.xlu0 %3377
      %3379 = vrot.lane.b32.xlu0 %v1572, 32
      %v3380 = vpop.permute.xlu0 %3379
      %3381 = vrot.lane.b32.xlu0 %v1573, 32
      %v3382 = vpop.permute.xlu0 %3381
      %3383 = vrot.lane.b32.xlu0 %v1574, 32
      %v3384 = vpop.permute.xlu0 %3383
      %v3386 = vsel %vm1587, %v3370, 0
      %v3389 = vsel %vm1587, %v3372, 0
      %v3392 = vsel %vm1587, %v3374, 0
      %v3395 = vsel %vm1587, %v3376, 0
      %v3398 = vsel %vm1587, %v3378, 0
      %v3401 = vsel %vm1587, %v3380, 0
      %v3404 = vsel %vm1587, %v3382, 0
      %v3407 = vsel %vm1587, %v3384, 0
      %3409 = vmatprep.subr.bf16.mxu0 0
      %3410 = vmatpush1.bf16.xpose.msra.mxu0 %v3398
      %3411 = vmatprep.subr.bf16.mxu0 0
      %3412 = vmatpush1.bf16.xpose.msra.mxu0 %v3401
      %3413 = vmatprep.subr.bf16.mxu0 0
      %3414 = vmatpush1.bf16.xpose.msra.mxu0 %v3404
      %3415 = vmatprep.subr.bf16.mxu0 0
      %3416 = vmatpush1.bf16.xpose.msra.mxu0 %v3407
      %3417 = vmatprep.subr.bf16.mxu0 0
      %3418 = vmatpush1.bf16.xpose.msra.mxu0 0
      %3419 = vmatprep.subr.bf16.mxu0 0
      %3420 = vmatpush1.bf16.xpose.msra.mxu0 0
      %3421 = vmatprep.subr.bf16.mxu0 0
      %3422 = vmatpush1.bf16.xpose.msra.mxu0 0
      %3423 = vmatprep.subr.bf16.mxu0 0
      %3424 = vmatpush1.bf16.xpose.msra.mxu0 0
      %3425 = vmatprep.subr.bf16.mxu0 0
      %3426 = vmatpush1.bf16.xpose.msra.mxu0 0
      %3427 = vmatprep.subr.bf16.mxu0 0
      %3428 = vmatpush1.bf16.xpose.msra.mxu0 0
      %3429 = vmatprep.subr.bf16.mxu0 0
      %3430 = vmatpush1.bf16.xpose.msra.mxu0 0
      %3431 = vmatprep.subr.bf16.mxu0 0
      %3432 = vmatpush1.bf16.xpose.msra.mxu0 0
      %3433 = vmatprep.subr.bf16.mxu0 0
      %3434 = vmatpush1.bf16.xpose.msra.mxu0 0
      %3435 = vmatprep.subr.bf16.mxu0 0
      %3436 = vmatpush1.bf16.xpose.msra.mxu0 0
      %3437 = vmatprep.subr.bf16.mxu0 0
      %3438 = vmatpush1.bf16.xpose.msra.mxu0 0
      %3439 = vmatprep.subr.bf16.mxu0 0
      %3440 = vmatpush1.bf16.xpose.msra.mxu0 0
      %3441 = vmatprep.mubr.bf16.mxu0 0
      %3442 = vmatmul.mubr.bf16.gmra.mrb[0].mxu0 %v3386
      %v3443 = vpop.f32.mrb[0].mxu0
      %v3444 = vadd.f32 0.0, %v3443
      %v3445 = vpop.f32.mrb[0].mxu0
      %v3446 = vpop.f32.mrb[0].mxu0
      %v3447 = vadd.f32 0.0, %v3446
      %v3448 = vpop.f32.mrb[0].mxu0
      %3449 = vmatprep.mubr.bf16.mxu0 0
      %3450 = vmatmul.mubr.bf16.gmra.mrb[0].mxu0 %v3389
      %v3451 = vpop.f32.mrb[0].mxu0
      %v3452 = vadd.f32 0.0, %v3451
      %v3453 = vpop.f32.mrb[0].mxu0
      %v3454 = vpop.f32.mrb[0].mxu0
      %v3455 = vadd.f32 0.0, %v3454
      %v3456 = vpop.f32.mrb[0].mxu0
      %3457 = vmatprep.mubr.bf16.mxu0 0
      %3458 = vmatmul.mubr.bf16.gmra.mrb[0].mxu0 %v3392
      %v3459 = vpop.f32.mrb[0].mxu0
      %v3460 = vadd.f32 0.0, %v3459
      %v3461 = vpop.f32.mrb[0].mxu0
      %v3462 = vpop.f32.mrb[0].mxu0
      %v3463 = vadd.f32 0.0, %v3462
      %v3464 = vpop.f32.mrb[0].mxu0
      %3465 = vmatprep.mubr.bf16.mxu0 0
      %3466 = vmatmul.mubr.bf16.gmra.mrb[0].mxu0 %v3395
      %v3467 = vpop.f32.mrb[0].mxu0
      %v3468 = vadd.f32 0.0, %v3467
      %v3469 = vpop.f32.mrb[0].mxu0
      %v3470 = vpop.f32.mrb[0].mxu0
      %v3471 = vadd.f32 0.0, %v3470
      %v3472 = vpop.f32.mrb[0].mxu0
      %3473 = vdwg.mxu0
      %3474 = vrot.lane.b32.xlu0 %v1567, 32
      %v3475 = vpop.permute.xlu0 %3474
      %3476 = vrot.lane.b32.xlu0 %v1568, 32
      %v3477 = vpop.permute.xlu0 %3476
      %3478 = vrot.lane.b32.xlu0 %v1569, 32
      %v3479 = vpop.permute.xlu0 %3478
      %3480 = vrot.lane.b32.xlu0 %v1570, 32
      %v3481 = vpop.permute.xlu0 %3480
      %3482 = vrot.lane.b32.xlu0 %v1575, 32
      %v3483 = vpop.permute.xlu0 %3482
      %3484 = vrot.lane.b32.xlu0 %v1576, 32
      %v3485 = vpop.permute.xlu0 %3484
      %3486 = vrot.lane.b32.xlu0 %v1577, 32
      %v3487 = vpop.permute.xlu0 %3486
      %3488 = vrot.lane.b32.xlu0 %v1578, 32
      %v3489 = vpop.permute.xlu0 %3488
      %v3491 = vsel %vm1587, %v3475, 0
      %v3494 = vsel %vm1587, %v3477, 0
      %v3497 = vsel %vm1587, %v3479, 0
      %v3500 = vsel %vm1587, %v3481, 0
      %v3503 = vsel %vm1587, %v3483, 0
      %v3506 = vsel %vm1587, %v3485, 0
      %v3509 = vsel %vm1587, %v3487, 0
      %v3512 = vsel %vm1587, %v3489, 0
      %3514 = vmatprep.subr.bf16.mxu0 0
      %3515 = vmatpush1.bf16.xpose.msra.mxu0 %v3503
      %3516 = vmatprep.subr.bf16.mxu0 0
      %3517 = vmatpush1.bf16.xpose.msra.mxu0 %v3506
      %3518 = vmatprep.subr.bf16.mxu0 0
      %3519 = vmatpush1.bf16.xpose.msra.mxu0 %v3509
      %3520 = vmatprep.subr.bf16.mxu0 0
      %3521 = vmatpush1.bf16.xpose.msra.mxu0 %v3512
      %3522 = vmatprep.subr.bf16.mxu0 0
      %3523 = vmatpush1.bf16.xpose.msra.mxu0 0
      %3524 = vmatprep.subr.bf16.mxu0 0
      %3525 = vmatpush1.bf16.xpose.msra.mxu0 0
      %3526 = vmatprep.subr.bf16.mxu0 0
      %3527 = vmatpush1.bf16.xpose.msra.mxu0 0
      %3528 = vmatprep.subr.bf16.mxu0 0
      %3529 = vmatpush1.bf16.xpose.msra.mxu0 0
      %3530 = vmatprep.subr.bf16.mxu0 0
      %3531 = vmatpush1.bf16.xpose.msra.mxu0 0
      %3532 = vmatprep.subr.bf16.mxu0 0
      %3533 = vmatpush1.bf16.xpose.msra.mxu0 0
      %3534 = vmatprep.subr.bf16.mxu0 0
      %3535 = vmatpush1.bf16.xpose.msra.mxu0 0
      %3536 = vmatprep.subr.bf16.mxu0 0
      %3537 = vmatpush1.bf16.xpose.msra.mxu0 0
      %3538 = vmatprep.subr.bf16.mxu0 0
      %3539 = vmatpush1.bf16.xpose.msra.mxu0 0
      %3540 = vmatprep.subr.bf16.mxu0 0
      %3541 = vmatpush1.bf16.xpose.msra.mxu0 0
      %3542 = vmatprep.subr.bf16.mxu0 0
      %3543 = vmatpush1.bf16.xpose.msra.mxu0 0
      %3544 = vmatprep.subr.bf16.mxu0 0
      %3545 = vmatpush1.bf16.xpose.msra.mxu0 0
      %3546 = vmatprep.mubr.bf16.mxu0 0
      %3547 = vmatmul.mubr.bf16.gmra.mrb[0].mxu0 %v3491
      %v3548 = vpop.f32.mrb[0].mxu0
      %v3549 = vadd.f32 0.0, %v3548
      %v3550 = vpop.f32.mrb[0].mxu0
      %v3551 = vpop.f32.mrb[0].mxu0
      %v3552 = vadd.f32 0.0, %v3551
      %v3553 = vpop.f32.mrb[0].mxu0
      %3554 = vmatprep.mubr.bf16.mxu0 0
      %3555 = vmatmul.mubr.bf16.gmra.mrb[0].mxu0 %v3494
      %v3556 = vpop.f32.mrb[0].mxu0
      %v3557 = vadd.f32 0.0, %v3556
      %v3558 = vpop.f32.mrb[0].mxu0
      %v3559 = vpop.f32.mrb[0].mxu0
      %v3560 = vadd.f32 0.0, %v3559
      %v3561 = vpop.f32.mrb[0].mxu0
      %3562 = vmatprep.mubr.bf16.mxu0 0
      %3563 = vmatmul.mubr.bf16.gmra.mrb[0].mxu0 %v3497
      %v3564 = vpop.f32.mrb[0].mxu0
      %v3565 = vadd.f32 0.0, %v3564
      %v3566 = vpop.f32.mrb[0].mxu0
      %v3567 = vpop.f32.mrb[0].mxu0
      %v3568 = vadd.f32 0.0, %v3567
      %v3569 = vpop.f32.mrb[0].mxu0
      %3570 = vmatprep.mubr.bf16.mxu0 0
      %3571 = vmatmul.mubr.bf16.gmra.mrb[0].mxu0 %v3500
      %v3572 = vpop.f32.mrb[0].mxu0
      %v3573 = vadd.f32 0.0, %v3572
      %v3574 = vpop.f32.mrb[0].mxu0
      %v3575 = vpop.f32.mrb[0].mxu0
      %v3576 = vadd.f32 0.0, %v3575
      %v3577 = vpop.f32.mrb[0].mxu0
      %3578 = vdwg.mxu0
      %v3579 = vmul.f32 %v3444, 0.17677669
      %v3580 = vmul.f32 %v3447, 0.17677669
      %v3581 = vmul.f32 %v3452, 0.17677669
      %v3582 = vmul.f32 %v3455, 0.17677669
      %v3583 = vmul.f32 %v3460, 0.17677669
      %v3584 = vmul.f32 %v3463, 0.17677669
      %v3585 = vmul.f32 %v3468, 0.17677669
      %v3586 = vmul.f32 %v3471, 0.17677669
      %v3587 = vmul.f32 %v3549, 0.17677669
      %v3588 = vmul.f32 %v3552, 0.17677669
      %v3589 = vmul.f32 %v3557, 0.17677669
      %v3590 = vmul.f32 %v3560, 0.17677669
      %v3591 = vmul.f32 %v3565, 0.17677669
      %v3592 = vmul.f32 %v3568, 0.17677669
      %v3593 = vmul.f32 %v3573, 0.17677669
      %v3594 = vmul.f32 %v3576, 0.17677669
      %v3595 = vadd.f32 %v3579, %v804
      %v3596 = vadd.f32 %v3580, %v805
      %v3597 = vadd.f32 %v3581, %v806
      %v3598 = vadd.f32 %v3582, %v807
      %v3599 = vadd.f32 %v3583, %v808
      %v3600 = vadd.f32 %v3584, %v809
      %v3601 = vadd.f32 %v3585, %v810
      %v3602 = vadd.f32 %v3586, %v811
      %v3603 = vadd.f32 %v3587, %v804
      %v3604 = vadd.f32 %v3588, %v805
      %v3605 = vadd.f32 %v3589, %v806
      %v3606 = vadd.f32 %v3590, %v807
      %v3607 = vadd.f32 %v3591, %v808
      %v3608 = vadd.f32 %v3592, %v809
      %v3609 = vadd.f32 %v3593, %v810
      %v3610 = vadd.f32 %v3594, %v811
      %v3611 = vsel %vm1798, %v3595, -inf
      %3612 = vmax.xlane.f32.xlu0 %v3611
      %v3613 = vpop.xlane.xlu0 %3612
      %v3614 = vsel %vm1798, %v3596, -inf
      %3615 = vmax.xlane.f32.xlu0 %v3614
      %v3616 = vpop.xlane.xlu0 %3615
      %v3617 = vsel %vm1798, %v3597, -inf
      %3618 = vmax.xlane.f32.xlu0 %v3617
      %v3619 = vpop.xlane.xlu0 %3618
      %v3620 = vsel %vm1798, %v3598, -inf
      %3621 = vmax.xlane.f32.xlu0 %v3620
      %v3622 = vpop.xlane.xlu0 %3621
      %v3623 = vsel %vm1798, %v3599, -inf
      %3624 = vmax.xlane.f32.xlu0 %v3623
      %v3625 = vpop.xlane.xlu0 %3624
      %v3626 = vsel %vm1798, %v3600, -inf
      %3627 = vmax.xlane.f32.xlu0 %v3626
      %v3628 = vpop.xlane.xlu0 %3627
      %v3629 = vsel %vm1798, %v3601, -inf
      %3630 = vmax.xlane.f32.xlu0 %v3629
      %v3631 = vpop.xlane.xlu0 %3630
      %v3632 = vsel %vm1798, %v3602, -inf
      %3633 = vmax.xlane.f32.xlu0 %v3632
      %v3634 = vpop.xlane.xlu0 %3633
      %v3635 = vsel %vm1798, %v3603, -inf
      %3636 = vmax.xlane.f32.xlu0 %v3635
      %v3637 = vpop.xlane.xlu0 %3636
      %v3638 = vsel %vm1798, %v3604, -inf
      %3639 = vmax.xlane.f32.xlu0 %v3638
      %v3640 = vpop.xlane.xlu0 %3639
      %v3641 = vsel %vm1798, %v3605, -inf
      %3642 = vmax.xlane.f32.xlu0 %v3641
      %v3643 = vpop.xlane.xlu0 %3642
      %v3644 = vsel %vm1798, %v3606, -inf
      %3645 = vmax.xlane.f32.xlu0 %v3644
      %v3646 = vpop.xlane.xlu0 %3645
      %v3647 = vsel %vm1798, %v3607, -inf
      %3648 = vmax.xlane.f32.xlu0 %v3647
      %v3649 = vpop.xlane.xlu0 %3648
      %v3650 = vsel %vm1798, %v3608, -inf
      %3651 = vmax.xlane.f32.xlu0 %v3650
      %v3652 = vpop.xlane.xlu0 %3651
      %v3653 = vsel %vm1798, %v3609, -inf
      %3654 = vmax.xlane.f32.xlu0 %v3653
      %v3655 = vpop.xlane.xlu0 %3654
      %v3656 = vsel %vm1798, %v3610, -inf
      %3657 = vmax.xlane.f32.xlu0 %v3656
      %v3658 = vpop.xlane.xlu0 %3657
      %v3659 = vsub.f32 %v3595, %v3613
      %v3660 = vsub.f32 %v3596, %v3616
      %v3661 = vsub.f32 %v3597, %v3619
      %v3662 = vsub.f32 %v3598, %v3622
      %v3663 = vsub.f32 %v3599, %v3625
      %v3664 = vsub.f32 %v3600, %v3628
      %v3665 = vsub.f32 %v3601, %v3631
      %v3666 = vsub.f32 %v3602, %v3634
      %v3667 = vsub.f32 %v3603, %v3637
      %v3668 = vsub.f32 %v3604, %v3640
      %v3669 = vsub.f32 %v3605, %v3643
      %v3670 = vsub.f32 %v3606, %v3646
      %v3671 = vsub.f32 %v3607, %v3649
      %v3672 = vsub.f32 %v3608, %v3652
      %v3673 = vsub.f32 %v3609, %v3655
      %v3674 = vsub.f32 %v3610, %v3658
      %v3675 = vmul.f32 %v3659, 1.442695
      %v3676 = vpow.pop %v3675
      %v3677 = vmul.f32 %v3660, 1.442695
      %v3678 = vpow.pop %v3677
      %v3679 = vmul.f32 %v3661, 1.442695
      %v3680 = vpow.pop %v3679
      %v3681 = vmul.f32 %v3662, 1.442695
      %v3682 = vpow.pop %v3681
      %v3683 = vmul.f32 %v3663, 1.442695
      %v3684 = vpow.pop %v3683
      %v3685 = vmul.f32 %v3664, 1.442695
      %v3686 = vpow.pop %v3685
      %v3687 = vmul.f32 %v3665, 1.442695
      %v3688 = vpow.pop %v3687
      %v3689 = vmul.f32 %v3666, 1.442695
      %v3690 = vpow.pop %v3689
      %v3691 = vmul.f32 %v3667, 1.442695
      %v3692 = vpow.pop %v3691
      %v3693 = vmul.f32 %v3668, 1.442695
      %v3694 = vpow.pop %v3693
      %v3695 = vmul.f32 %v3669, 1.442695
      %v3696 = vpow.pop %v3695
      %v3697 = vmul.f32 %v3670, 1.442695
      %v3698 = vpow.pop %v3697
      %v3699 = vmul.f32 %v3671, 1.442695
      %v3700 = vpow.pop %v3699
      %v3701 = vmul.f32 %v3672, 1.442695
      %v3702 = vpow.pop %v3701
      %v3703 = vmul.f32 %v3673, 1.442695
      %v3704 = vpow.pop %v3703
      %v3705 = vmul.f32 %v3674, 1.442695
      %v3706 = vpow.pop %v3705
      %v3707 = vsel %vm1798, %v3676, 0.0
      %3708 = vadd.xlane.f32.xlu0 %v3707
      %v3709 = vpop.xlane.xlu0 %3708
      %v3710 = vsel %vm1798, %v3678, 0.0
      %3711 = vadd.xlane.f32.xlu0 %v3710
      %v3712 = vpop.xlane.xlu0 %3711
      %v3713 = vsel %vm1798, %v3680, 0.0
      %3714 = vadd.xlane.f32.xlu0 %v3713
      %v3715 = vpop.xlane.xlu0 %3714
      %v3716 = vsel %vm1798, %v3682, 0.0
      %3717 = vadd.xlane.f32.xlu0 %v3716
      %v3718 = vpop.xlane.xlu0 %3717
      %v3719 = vsel %vm1798, %v3684, 0.0
      %3720 = vadd.xlane.f32.xlu0 %v3719
      %v3721 = vpop.xlane.xlu0 %3720
      %v3722 = vsel %vm1798, %v3686, 0.0
      %3723 = vadd.xlane.f32.xlu0 %v3722
      %v3724 = vpop.xlane.xlu0 %3723
      %v3725 = vsel %vm1798, %v3688, 0.0
      %3726 = vadd.xlane.f32.xlu0 %v3725
      %v3727 = vpop.xlane.xlu0 %3726
      %v3728 = vsel %vm1798, %v3690, 0.0
      %3729 = vadd.xlane.f32.xlu0 %v3728
      %v3730 = vpop.xlane.xlu0 %3729
      %v3731 = vsel %vm1798, %v3692, 0.0
      %3732 = vadd.xlane.f32.xlu0 %v3731
      %v3733 = vpop.xlane.xlu0 %3732
      %v3734 = vsel %vm1798, %v3694, 0.0
      %3735 = vadd.xlane.f32.xlu0 %v3734
      %v3736 = vpop.xlane.xlu0 %3735
      %v3737 = vsel %vm1798, %v3696, 0.0
      %3738 = vadd.xlane.f32.xlu0 %v3737
      %v3739 = vpop.xlane.xlu0 %3738
      %v3740 = vsel %vm1798, %v3698, 0.0
      %3741 = vadd.xlane.f32.xlu0 %v3740
      %v3742 = vpop.xlane.xlu0 %3741
      %v3743 = vsel %vm1798, %v3700, 0.0
      %3744 = vadd.xlane.f32.xlu0 %v3743
      %v3745 = vpop.xlane.xlu0 %3744
      %v3746 = vsel %vm1798, %v3702, 0.0
      %3747 = vadd.xlane.f32.xlu0 %v3746
      %v3748 = vpop.xlane.xlu0 %3747
      %v3749 = vsel %vm1798, %v3704, 0.0
      %3750 = vadd.xlane.f32.xlu0 %v3749
      %v3751 = vpop.xlane.xlu0 %3750
      %v3752 = vsel %vm1798, %v3706, 0.0
      %3753 = vadd.xlane.f32.xlu0 %v3752
      %v3754 = vpop.xlane.xlu0 %3753
      %v3755 = vrcp.pop %v3709
      %v3756 = vrcp.pop %v3712
      %v3757 = vrcp.pop %v3715
      %v3758 = vrcp.pop %v3718
      %v3759 = vrcp.pop %v3721
      %v3760 = vrcp.pop %v3724
      %v3761 = vrcp.pop %v3727
      %v3762 = vrcp.pop %v3730
      %v3763 = vrcp.pop %v3733
      %v3764 = vrcp.pop %v3736
      %v3765 = vrcp.pop %v3739
      %v3766 = vrcp.pop %v3742
      %v3767 = vrcp.pop %v3745
      %v3768 = vrcp.pop %v3748
      %v3769 = vrcp.pop %v3751
      %v3770 = vrcp.pop %v3754
      %v3771 = vmul.f32 %v3676, %v3755
      %v3772 = vmul.f32 %v3678, %v3756
      %v3773 = vmul.f32 %v3680, %v3757
      %v3774 = vmul.f32 %v3682, %v3758
      %v3775 = vmul.f32 %v3684, %v3759
      %v3776 = vmul.f32 %v3686, %v3760
      %v3777 = vmul.f32 %v3688, %v3761
      %v3778 = vmul.f32 %v3690, %v3762
      %v3779 = vmul.f32 %v3692, %v3763
      %v3780 = vmul.f32 %v3694, %v3764
      %v3781 = vmul.f32 %v3696, %v3765
      %v3782 = vmul.f32 %v3698, %v3766
      %v3783 = vmul.f32 %v3700, %v3767
      %v3784 = vmul.f32 %v3702, %v3768
      %v3785 = vmul.f32 %v3704, %v3769
      %v3786 = vmul.f32 %v3706, %v3770
      %v3787 = vpack.c.bf16 %v3772, %v3771
      %v3788 = vpack.c.bf16 %v3774, %v3773
      %v3789 = vpack.c.bf16 %v3776, %v3775
      %v3790 = vpack.c.bf16 %v3778, %v3777
      %v3791 = vpack.c.bf16 %v3780, %v3779
      %v3792 = vpack.c.bf16 %v3782, %v3781
      %v3793 = vpack.c.bf16 %v3784, %v3783
      %v3794 = vpack.c.bf16 %v3786, %v3785
      %3795 = vrot.lane.b32.xlu0 %v1579, 32
      %v3796 = vpop.permute.xlu0 %3795
      %3797 = vrot.lane.b32.xlu0 %v1580, 32
      %v3798 = vpop.permute.xlu0 %3797
      %3799 = vrot.lane.b32.xlu0 %v1581, 32
      %v3800 = vpop.permute.xlu0 %3799
      %3801 = vrot.lane.b32.xlu0 %v1582, 32
      %v3802 = vpop.permute.xlu0 %3801
      %v3808 = vsel %vm1798, %v3787, 0
      %v3811 = vsel %vm1798, %v3788, 0
      %v3814 = vsel %vm1798, %v3789, 0
      %v3817 = vsel %vm1798, %v3790, 0
      %3819 = vmatprep.subr.bf16.mxu0 0
      %3820 = vmatpush1.bf16.msra.mxu0 %v3796
      %3821 = vmatprep.subr.bf16.mxu0 0
      %3822 = vmatpush1.bf16.msra.mxu0 %v3798
      %3823 = vmatprep.subr.bf16.mxu0 0
      %3824 = vmatpush1.bf16.msra.mxu0 %v3800
      %3825 = vmatprep.subr.bf16.mxu0 0
      %3826 = vmatpush1.bf16.msra.mxu0 %v3802
      %3827 = vmatprep.subr.bf16.mxu0 0
      %3828 = vmatpush1.bf16.msra.mxu0 0
      %3829 = vmatprep.subr.bf16.mxu0 0
      %3830 = vmatpush1.bf16.msra.mxu0 0
      %3831 = vmatprep.subr.bf16.mxu0 0
      %3832 = vmatpush1.bf16.msra.mxu0 0
      %3833 = vmatprep.subr.bf16.mxu0 0
      %3834 = vmatpush1.bf16.msra.mxu0 0
      %3835 = vmatprep.subr.bf16.mxu0 0
      %3836 = vmatpush1.bf16.msra.mxu0 0
      %3837 = vmatprep.subr.bf16.mxu0 0
      %3838 = vmatpush1.bf16.msra.mxu0 0
      %3839 = vmatprep.subr.bf16.mxu0 0
      %3840 = vmatpush1.bf16.msra.mxu0 0
      %3841 = vmatprep.subr.bf16.mxu0 0
      %3842 = vmatpush1.bf16.msra.mxu0 0
      %3843 = vmatprep.subr.bf16.mxu0 0
      %3844 = vmatpush1.bf16.msra.mxu0 0
      %3845 = vmatprep.subr.bf16.mxu0 0
      %3846 = vmatpush1.bf16.msra.mxu0 0
      %3847 = vmatprep.subr.bf16.mxu0 0
      %3848 = vmatpush1.bf16.msra.mxu0 0
      %3849 = vmatprep.subr.bf16.mxu0 0
      %3850 = vmatpush1.bf16.msra.mxu0 0
      %3851 = vmatprep.mubr.bf16.mxu0 0
      %3852 = vmatmul.mubr.bf16.gmra.mrb[0].mxu0 %v3808
      %v3853 = vpop.f32.mrb[0].mxu0
      %v3854 = vadd.f32 0.0, %v3853
      %v3855 = vpop.f32.mrb[0].mxu0
      %v3856 = vpop.f32.mrb[0].mxu0
      %v3857 = vadd.f32 0.0, %v3856
      %v3858 = vpop.f32.mrb[0].mxu0
      %3859 = vmatprep.mubr.bf16.mxu0 0
      %3860 = vmatmul.mubr.bf16.gmra.mrb[0].mxu0 %v3811
      %v3861 = vpop.f32.mrb[0].mxu0
      %v3862 = vadd.f32 0.0, %v3861
      %v3863 = vpop.f32.mrb[0].mxu0
      %v3864 = vpop.f32.mrb[0].mxu0
      %v3865 = vadd.f32 0.0, %v3864
      %v3866 = vpop.f32.mrb[0].mxu0
      %3867 = vmatprep.mubr.bf16.mxu0 0
      %3868 = vmatmul.mubr.bf16.gmra.mrb[0].mxu0 %v3814
      %v3869 = vpop.f32.mrb[0].mxu0
      %v3870 = vadd.f32 0.0, %v3869
      %v3871 = vpop.f32.mrb[0].mxu0
      %v3872 = vpop.f32.mrb[0].mxu0
      %v3873 = vadd.f32 0.0, %v3872
      %v3874 = vpop.f32.mrb[0].mxu0
      %3875 = vmatprep.mubr.bf16.mxu0 0
      %3876 = vmatmul.mubr.bf16.gmra.mrb[0].mxu0 %v3817
      %v3877 = vpop.f32.mrb[0].mxu0
      %v3878 = vadd.f32 0.0, %v3877
      %v3879 = vpop.f32.mrb[0].mxu0
      %v3880 = vpop.f32.mrb[0].mxu0
      %v3881 = vadd.f32 0.0, %v3880
      %v3882 = vpop.f32.mrb[0].mxu0
      %3883 = vdwg.mxu0
      %3884 = vrot.lane.b32.xlu0 %v1583, 32
      %v3885 = vpop.permute.xlu0 %3884
      %3886 = vrot.lane.b32.xlu0 %v1584, 32
      %v3887 = vpop.permute.xlu0 %3886
      %3888 = vrot.lane.b32.xlu0 %v1585, 32
      %v3889 = vpop.permute.xlu0 %3888
      %3890 = vrot.lane.b32.xlu0 %v1586, 32
      %v3891 = vpop.permute.xlu0 %3890
      %v3897 = vsel %vm1798, %v3791, 0
      %v3900 = vsel %vm1798, %v3792, 0
      %v3903 = vsel %vm1798, %v3793, 0
      %v3906 = vsel %vm1798, %v3794, 0
      %3908 = vmatprep.subr.bf16.mxu0 0
      %3909 = vmatpush1.bf16.msra.mxu0 %v3885
      %3910 = vmatprep.subr.bf16.mxu0 0
      %3911 = vmatpush1.bf16.msra.mxu0 %v3887
      %3912 = vmatprep.subr.bf16.mxu0 0
      %3913 = vmatpush1.bf16.msra.mxu0 %v3889
      %3914 = vmatprep.subr.bf16.mxu0 0
      %3915 = vmatpush1.bf16.msra.mxu0 %v3891
      %3916 = vmatprep.subr.bf16.mxu0 0
      %3917 = vmatpush1.bf16.msra.mxu0 0
      %3918 = vmatprep.subr.bf16.mxu0 0
      %3919 = vmatpush1.bf16.msra.mxu0 0
      %3920 = vmatprep.subr.bf16.mxu0 0
      %3921 = vmatpush1.bf16.msra.mxu0 0
      %3922 = vmatprep.subr.bf16.mxu0 0
      %3923 = vmatpush1.bf16.msra.mxu0 0
      %3924 = vmatprep.subr.bf16.mxu0 0
      %3925 = vmatpush1.bf16.msra.mxu0 0
      %3926 = vmatprep.subr.bf16.mxu0 0
      %3927 = vmatpush1.bf16.msra.mxu0 0
      %3928 = vmatprep.subr.bf16.mxu0 0
      %3929 = vmatpush1.bf16.msra.mxu0 0
      %3930 = vmatprep.subr.bf16.mxu0 0
      %3931 = vmatpush1.bf16.msra.mxu0 0
      %3932 = vmatprep.subr.bf16.mxu0 0
      %3933 = vmatpush1.bf16.msra.mxu0 0
      %3934 = vmatprep.subr.bf16.mxu0 0
      %3935 = vmatpush1.bf16.msra.mxu0 0
      %3936 = vmatprep.subr.bf16.mxu0 0
      %3937 = vmatpush1.bf16.msra.mxu0 0
      %3938 = vmatprep.subr.bf16.mxu0 0
      %3939 = vmatpush1.bf16.msra.mxu0 0
      %3940 = vmatprep.mubr.bf16.mxu0 0
      %3941 = vmatmul.mubr.bf16.gmra.mrb[0].mxu0 %v3897
      %v3942 = vpop.f32.mrb[0].mxu0
      %v3943 = vadd.f32 0.0, %v3942
      %v3944 = vpop.f32.mrb[0].mxu0
      %v3945 = vpop.f32.mrb[0].mxu0
      %v3946 = vadd.f32 0.0, %v3945
      %v3947 = vpop.f32.mrb[0].mxu0
      %3948 = vmatprep.mubr.bf16.mxu0 0
      %3949 = vmatmul.mubr.bf16.gmra.mrb[0].mxu0 %v3900
      %v3950 = vpop.f32.mrb[0].mxu0
      %v3951 = vadd.f32 0.0, %v3950
      %v3952 = vpop.f32.mrb[0].mxu0
      %v3953 = vpop.f32.mrb[0].mxu0
      %v3954 = vadd.f32 0.0, %v3953
      %v3955 = vpop.f32.mrb[0].mxu0
      %3956 = vmatprep.mubr.bf16.mxu0 0
      %3957 = vmatmul.mubr.bf16.gmra.mrb[0].mxu0 %v3903
      %v3958 = vpop.f32.mrb[0].mxu0
      %v3959 = vadd.f32 0.0, %v3958
      %v3960 = vpop.f32.mrb[0].mxu0
      %v3961 = vpop.f32.mrb[0].mxu0
      %v3962 = vadd.f32 0.0, %v3961
      %v3963 = vpop.f32.mrb[0].mxu0
      %3964 = vmatprep.mubr.bf16.mxu0 0
      %3965 = vmatmul.mubr.bf16.gmra.mrb[0].mxu0 %v3906
      %v3966 = vpop.f32.mrb[0].mxu0
      %v3967 = vadd.f32 0.0, %v3966
      %v3968 = vpop.f32.mrb[0].mxu0
      %v3969 = vpop.f32.mrb[0].mxu0
      %v3970 = vadd.f32 0.0, %v3969
      %v3971 = vpop.f32.mrb[0].mxu0
      %3972 = vdwg.mxu0
      %3989 = vrot.lane.b32.xlu0 %v2642, 32
      %v3990 = vpop.permute.xlu0 %3989
      %3991 = vrot.lane.b32.xlu0 %v2645, 32
      %v3992 = vpop.permute.xlu0 %3991
      %3993 = vrot.lane.b32.xlu0 %v2650, 32
      %v3994 = vpop.permute.xlu0 %3993
      %3995 = vrot.lane.b32.xlu0 %v2653, 32
      %v3996 = vpop.permute.xlu0 %3995
      %3997 = vrot.lane.b32.xlu0 %v2658, 32
      %v3998 = vpop.permute.xlu0 %3997
      %3999 = vrot.lane.b32.xlu0 %v2661, 32
      %v4000 = vpop.permute.xlu0 %3999
      %4001 = vrot.lane.b32.xlu0 %v2666, 32
      %v4002 = vpop.permute.xlu0 %4001
      %4003 = vrot.lane.b32.xlu0 %v2669, 32
      %v4004 = vpop.permute.xlu0 %4003
      %4005 = vrot.lane.b32.xlu0 %v2735, 32
      %v4006 = vpop.permute.xlu0 %4005
      %4007 = vrot.lane.b32.xlu0 %v2738, 32
      %v4008 = vpop.permute.xlu0 %4007
      %4009 = vrot.lane.b32.xlu0 %v2743, 32
      %v4010 = vpop.permute.xlu0 %4009
      %4011 = vrot.lane.b32.xlu0 %v2746, 32
      %v4012 = vpop.permute.xlu0 %4011
      %4013 = vrot.lane.b32.xlu0 %v2751, 32
      %v4014 = vpop.permute.xlu0 %4013
      %4015 = vrot.lane.b32.xlu0 %v2754, 32
      %v4016 = vpop.permute.xlu0 %4015
      %4017 = vrot.lane.b32.xlu0 %v2759, 32
      %v4018 = vpop.permute.xlu0 %4017
      %4019 = vrot.lane.b32.xlu0 %v2762, 32
      %v4020 = vpop.permute.xlu0 %4019
      %4053 = vrot.lane.b32.xlu0 %v3250, 64
      %v4054 = vpop.permute.xlu0 %4053
      %4055 = vrot.lane.b32.xlu0 %v3253, 64
      %v4056 = vpop.permute.xlu0 %4055
      %4057 = vrot.lane.b32.xlu0 %v3258, 64
      %v4058 = vpop.permute.xlu0 %4057
      %4059 = vrot.lane.b32.xlu0 %v3261, 64
      %v4060 = vpop.permute.xlu0 %4059
      %4061 = vrot.lane.b32.xlu0 %v3266, 64
      %v4062 = vpop.permute.xlu0 %4061
      %4063 = vrot.lane.b32.xlu0 %v3269, 64
      %v4064 = vpop.permute.xlu0 %4063
      %4065 = vrot.lane.b32.xlu0 %v3274, 64
      %v4066 = vpop.permute.xlu0 %4065
      %4067 = vrot.lane.b32.xlu0 %v3277, 64
      %v4068 = vpop.permute.xlu0 %4067
      %4069 = vrot.lane.b32.xlu0 %v3339, 64
      %v4070 = vpop.permute.xlu0 %4069
      %4071 = vrot.lane.b32.xlu0 %v3342, 64
      %v4072 = vpop.permute.xlu0 %4071
      %4073 = vrot.lane.b32.xlu0 %v3347, 64
      %v4074 = vpop.permute.xlu0 %4073
      %4075 = vrot.lane.b32.xlu0 %v3350, 64
      %v4076 = vpop.permute.xlu0 %4075
      %4077 = vrot.lane.b32.xlu0 %v3355, 64
      %v4078 = vpop.permute.xlu0 %4077
      %4079 = vrot.lane.b32.xlu0 %v3358, 64
      %v4080 = vpop.permute.xlu0 %4079
      %4081 = vrot.lane.b32.xlu0 %v3363, 64
      %v4082 = vpop.permute.xlu0 %4081
      %4083 = vrot.lane.b32.xlu0 %v3366, 64
      %v4084 = vpop.permute.xlu0 %4083
      %4117 = vrot.lane.b32.xlu0 %v3854, 96
      %v4118 = vpop.permute.xlu0 %4117
      %4119 = vrot.lane.b32.xlu0 %v3857, 96
      %v4120 = vpop.permute.xlu0 %4119
      %4121 = vrot.lane.b32.xlu0 %v3862, 96
      %v4122 = vpop.permute.xlu0 %4121
      %4123 = vrot.lane.b32.xlu0 %v3865, 96
      %v4124 = vpop.permute.xlu0 %4123
      %4125 = vrot.lane.b32.xlu0 %v3870, 96
      %v4126 = vpop.permute.xlu0 %4125
      %4127 = vrot.lane.b32.xlu0 %v3873, 96
      %v4128 = vpop.permute.xlu0 %4127
      %4129 = vrot.lane.b32.xlu0 %v3878, 96
      %v4130 = vpop.permute.xlu0 %4129
      %4131 = vrot.lane.b32.xlu0 %v3881, 96
      %v4132 = vpop.permute.xlu0 %4131
      %4133 = vrot.lane.b32.xlu0 %v3943, 96
      %v4134 = vpop.permute.xlu0 %4133
      %4135 = vrot.lane.b32.xlu0 %v3946, 96
      %v4136 = vpop.permute.xlu0 %4135
      %4137 = vrot.lane.b32.xlu0 %v3951, 96
      %v4138 = vpop.permute.xlu0 %4137
      %4139 = vrot.lane.b32.xlu0 %v3954, 96
      %v4140 = vpop.permute.xlu0 %4139
      %4141 = vrot.lane.b32.xlu0 %v3959, 96
      %v4142 = vpop.permute.xlu0 %4141
      %4143 = vrot.lane.b32.xlu0 %v3962, 96
      %v4144 = vpop.permute.xlu0 %4143
      %4145 = vrot.lane.b32.xlu0 %v3967, 96
      %v4146 = vpop.permute.xlu0 %4145
      %4147 = vrot.lane.b32.xlu0 %v3970, 96
      %v4148 = vpop.permute.xlu0 %4147
      %v4165 = vsel %vm1587, %v2030, %v3990
      %v4166 = vsel %vm1587, %v2033, %v3992
      %v4167 = vsel %vm1587, %v2038, %v3994
      %v4168 = vsel %vm1587, %v2041, %v3996
      %v4169 = vsel %vm1587, %v2046, %v3998
      %v4170 = vsel %vm1587, %v2049, %v4000
      %v4171 = vsel %vm1587, %v2054, %v4002
      %v4172 = vsel %vm1587, %v2057, %v4004
      %v4173 = vsel %vm1587, %v2107, %v4006
      %v4174 = vsel %vm1587, %v2110, %v4008
      %v4175 = vsel %vm1587, %v2115, %v4010
      %v4176 = vsel %vm1587, %v2118, %v4012
      %v4177 = vsel %vm1587, %v2123, %v4014
      %v4178 = vsel %vm1587, %v2126, %v4016
      %v4179 = vsel %vm1587, %v2131, %v4018
      %v4180 = vsel %vm1587, %v2134, %v4020
      %v4181 = vsel %vm1798, %v4165, %v4054
      %v4182 = vsel %vm1798, %v4166, %v4056
      %v4183 = vsel %vm1798, %v4167, %v4058
      %v4184 = vsel %vm1798, %v4168, %v4060
      %v4185 = vsel %vm1798, %v4169, %v4062
      %v4186 = vsel %vm1798, %v4170, %v4064
      %v4187 = vsel %vm1798, %v4171, %v4066
      %v4188 = vsel %vm1798, %v4172, %v4068
      %v4189 = vsel %vm1798, %v4173, %v4070
      %v4190 = vsel %vm1798, %v4174, %v4072
      %v4191 = vsel %vm1798, %v4175, %v4074
      %v4192 = vsel %vm1798, %v4176, %v4076
      %v4193 = vsel %vm1798, %v4177, %v4078
      %v4194 = vsel %vm1798, %v4178, %v4080
      %v4195 = vsel %vm1798, %v4179, %v4082
      %v4196 = vsel %vm1798, %v4180, %v4084
      %vm4197 = vcmask 785408
      %v4198 = vsel %vm4197, %v4181, %v4118
      %v4199 = vsel %vm4197, %v4182, %v4120
      %v4200 = vsel %vm4197, %v4183, %v4122
      %v4201 = vsel %vm4197, %v4184, %v4124
      %v4202 = vsel %vm4197, %v4185, %v4126
      %v4203 = vsel %vm4197, %v4186, %v4128
      %v4204 = vsel %vm4197, %v4187, %v4130
      %v4205 = vsel %vm4197, %v4188, %v4132
      %v4206 = vsel %vm4197, %v4189, %v4134
      %v4207 = vsel %vm4197, %v4190, %v4136
      %v4208 = vsel %vm4197, %v4191, %v4138
      %v4209 = vsel %vm4197, %v4192, %v4140
      %v4210 = vsel %vm4197, %v4193, %v4142
      %v4211 = vsel %vm4197, %v4194, %v4144
      %v4212 = vsel %vm4197, %v4195, %v4146
      %v4213 = vsel %vm4197, %v4196, %v4148
      %v4214 = vpack.c.bf16 %v4199, %v4198
      %v4215 = vpack.c.bf16 %v4201, %v4200
      %v4216 = vpack.c.bf16 %v4203, %v4202
      %v4217 = vpack.c.bf16 %v4205, %v4204
      %v4218 = vpack.c.bf16 %v4207, %v4206
      %v4219 = vpack.c.bf16 %v4209, %v4208
      %v4220 = vpack.c.bf16 %v4211, %v4210
      %v4221 = vpack.c.bf16 %v4213, %v4212
      %v4238 = vunpack.c.l.b16 %v863
      %v4239 = vunpack.c.l.b16 %v864
      %v4240 = vunpack.c.l.b16 %v865
      %v4241 = vunpack.c.l.b16 %v866
      %v4242 = vunpack.c.l.b16 %v867
      %v4243 = vunpack.c.l.b16 %v868
      %v4244 = vunpack.c.l.b16 %v869
      %v4245 = vunpack.c.l.b16 %v870
      %v4246 = vunpack.c.l.b16 %v871
      %v4247 = vunpack.c.l.b16 %v872
      %v4248 = vunpack.c.l.b16 %v873
      %v4249 = vunpack.c.l.b16 %v874
      %v4250 = vunpack.c.l.b16 %v875
      %v4251 = vunpack.c.l.b16 %v876
      %v4252 = vunpack.c.l.b16 %v877
      %v4253 = vunpack.c.l.b16 %v878
      %v4254 = vpack.c.b16 %v4239, %v4238
      %v4255 = vpack.c.b16 %v4241, %v4240
      %v4256 = vpack.c.b16 %v4243, %v4242
      %v4257 = vpack.c.b16 %v4245, %v4244
      %v4258 = vpack.c.b16 %v4247, %v4246
      %v4259 = vpack.c.b16 %v4249, %v4248
      %v4260 = vpack.c.b16 %v4251, %v4250
      %v4261 = vpack.c.b16 %v4253, %v4252
      %4270 = vmatprep.subr.bf16.mxu0 0
      %4271 = vmatpush1.bf16.msra.mxu0 %v4254
      %4272 = vmatprep.subr.bf16.mxu0 0
      %4273 = vmatpush1.bf16.msra.mxu0 %v4255
      %4274 = vmatprep.subr.bf16.mxu0 0
      %4275 = vmatpush1.bf16.msra.mxu0 %v4256
      %4276 = vmatprep.subr.bf16.mxu0 0
      %4277 = vmatpush1.bf16.msra.mxu0 %v4257
      %4278 = vmatprep.subr.bf16.mxu0 0
      %4279 = vmatpush1.bf16.msra.mxu0 %v4258
      %4280 = vmatprep.subr.bf16.mxu0 0
      %4281 = vmatpush1.bf16.msra.mxu0 %v4259
      %4282 = vmatprep.subr.bf16.mxu0 0
      %4283 = vmatpush1.bf16.msra.mxu0 %v4260
      %4284 = vmatprep.subr.bf16.mxu0 0
      %4285 = vmatpush1.bf16.msra.mxu0 %v4261
      %4286 = vmatprep.subr.bf16.mxu0 0
      %4287 = vmatpush1.bf16.msra.mxu0 0
      %4288 = vmatprep.subr.bf16.mxu0 0
      %4289 = vmatpush1.bf16.msra.mxu0 0
      %4290 = vmatprep.subr.bf16.mxu0 0
      %4291 = vmatpush1.bf16.msra.mxu0 0
      %4292 = vmatprep.subr.bf16.mxu0 0
      %4293 = vmatpush1.bf16.msra.mxu0 0
      %4294 = vmatprep.subr.bf16.mxu0 0
      %4295 = vmatpush1.bf16.msra.mxu0 0
      %4296 = vmatprep.subr.bf16.mxu0 0
      %4297 = vmatpush1.bf16.msra.mxu0 0
      %4298 = vmatprep.subr.bf16.mxu0 0
      %4299 = vmatpush1.bf16.msra.mxu0 0
      %4300 = vmatprep.subr.bf16.mxu0 0
      %4301 = vmatpush1.bf16.msra.mxu0 0
      %4302 = vmatprep.mubr.bf16.mxu0 0
      %4303 = vmatmul.mubr.bf16.gmra.mrb[0].mxu0 %v4214
      %v4304 = vpop.f32.mrb[0].mxu0
      %v4305 = vadd.f32 0.0, %v4304
      %v4306 = vpop.f32.mrb[0].mxu0
      %v4307 = vpop.f32.mrb[0].mxu0
      %v4308 = vadd.f32 0.0, %v4307
      %v4309 = vpop.f32.mrb[0].mxu0
      %4310 = vmatprep.mubr.bf16.mxu0 0
      %4311 = vmatmul.mubr.bf16.gmra.mrb[0].mxu0 %v4215
      %v4312 = vpop.f32.mrb[0].mxu0
      %v4313 = vadd.f32 0.0, %v4312
      %v4314 = vpop.f32.mrb[0].mxu0
      %v4315 = vpop.f32.mrb[0].mxu0
      %v4316 = vadd.f32 0.0, %v4315
      %v4317 = vpop.f32.mrb[0].mxu0
      %4318 = vmatprep.mubr.bf16.mxu0 0
      %4319 = vmatmul.mubr.bf16.gmra.mrb[0].mxu0 %v4216
      %v4320 = vpop.f32.mrb[0].mxu0
      %v4321 = vadd.f32 0.0, %v4320
      %v4322 = vpop.f32.mrb[0].mxu0
      %v4323 = vpop.f32.mrb[0].mxu0
      %v4324 = vadd.f32 0.0, %v4323
      %v4325 = vpop.f32.mrb[0].mxu0
      %4326 = vmatprep.mubr.bf16.mxu0 0
      %4327 = vmatmul.mubr.bf16.gmra.mrb[0].mxu0 %v4217
      %v4328 = vpop.f32.mrb[0].mxu0
      %v4329 = vadd.f32 0.0, %v4328
      %v4330 = vpop.f32.mrb[0].mxu0
      %v4331 = vpop.f32.mrb[0].mxu0
      %v4332 = vadd.f32 0.0, %v4331
      %v4333 = vpop.f32.mrb[0].mxu0
      %4334 = vmatprep.mubr.bf16.mxu0 0
      %4335 = vmatmul.mubr.bf16.gmra.mrb[0].mxu0 %v4218
      %v4336 = vpop.f32.mrb[0].mxu0
      %v4337 = vadd.f32 0.0, %v4336
      %v4338 = vpop.f32.mrb[0].mxu0
      %v4339 = vpop.f32.mrb[0].mxu0
      %v4340 = vadd.f32 0.0, %v4339
      %v4341 = vpop.f32.mrb[0].mxu0
      %4342 = vmatprep.mubr.bf16.mxu0 0
      %4343 = vmatmul.mubr.bf16.gmra.mrb[0].mxu0 %v4219
      %v4344 = vpop.f32.mrb[0].mxu0
      %v4345 = vadd.f32 0.0, %v4344
      %v4346 = vpop.f32.mrb[0].mxu0
      %v4347 = vpop.f32.mrb[0].mxu0
      %v4348 = vadd.f32 0.0, %v4347
      %v4349 = vpop.f32.mrb[0].mxu0
      %4350 = vmatprep.mubr.bf16.mxu0 0
      %4351 = vmatmul.mubr.bf16.gmra.mrb[0].mxu0 %v4220
      %v4352 = vpop.f32.mrb[0].mxu0
      %v4353 = vadd.f32 0.0, %v4352
      %v4354 = vpop.f32.mrb[0].mxu0
      %v4355 = vpop.f32.mrb[0].mxu0
      %v4356 = vadd.f32 0.0, %v4355
      %v4357 = vpop.f32.mrb[0].mxu0
      %4358 = vmatprep.mubr.bf16.mxu0 0
      %4359 = vmatmul.mubr.bf16.gmra.mrb[0].mxu0 %v4221
      %v4360 = vpop.f32.mrb[0].mxu0
      %v4361 = vadd.f32 0.0, %v4360
      %v4362 = vpop.f32.mrb[0].mxu0
      %v4363 = vpop.f32.mrb[0].mxu0
      %v4364 = vadd.f32 0.0, %v4363
      %v4365 = vpop.f32.mrb[0].mxu0
      %4366 = vdwg.mxu0
      %v4367 = vadd.f32 %v812, %v4305
      %v4368 = vadd.f32 %v813, %v4308
      %v4369 = vadd.f32 %v814, %v4313
      %v4370 = vadd.f32 %v815, %v4316
      %v4371 = vadd.f32 %v816, %v4321
      %v4372 = vadd.f32 %v817, %v4324
      %v4373 = vadd.f32 %v818, %v4329
      %v4374 = vadd.f32 %v819, %v4332
      %v4375 = vadd.f32 %v820, %v4337
      %v4376 = vadd.f32 %v821, %v4340
      %v4377 = vadd.f32 %v822, %v4345
      %v4378 = vadd.f32 %v823, %v4348
      %v4379 = vadd.f32 %v824, %v4353
      %v4380 = vadd.f32 %v825, %v4356
      %v4381 = vadd.f32 %v826, %v4361
      %v4382 = vadd.f32 %v827, %v4364
      %v4384 = vlaneseq
      %v4385 = vshrl.u32 %v4384, 7
      %v4386 = vsub.s32 0, %v4385
      %v4387 = vrot.slane %v879, %v4386
      %v4389 = vadd.f32 %v4367, %v4387
      %v4390 = vadd.f32 %v4368, %v4387
      %v4391 = vadd.f32 %v4369, %v4387
      %v4392 = vadd.f32 %v4370, %v4387
      %v4393 = vadd.f32 %v4371, %v4387
      %v4394 = vadd.f32 %v4372, %v4387
      %v4395 = vadd.f32 %v4373, %v4387
      %v4396 = vadd.f32 %v4374, %v4387
      %v4397 = vadd.f32 %v4375, %v4387
      %v4398 = vadd.f32 %v4376, %v4387
      %v4399 = vadd.f32 %v4377, %v4387
      %v4400 = vadd.f32 %v4378, %v4387
      %v4401 = vadd.f32 %v4379, %v4387
      %v4402 = vadd.f32 %v4380, %v4387
      %v4403 = vadd.f32 %v4381, %v4387
      %v4404 = vadd.f32 %v4382, %v4387
      %4405 = vadd.xlane.f32.xlu0 %v4389
      %v4406 = vpop.xlane.xlu0 %4405
      %4407 = vadd.xlane.f32.xlu0 %v4390
      %v4408 = vpop.xlane.xlu0 %4407
      %4409 = vadd.xlane.f32.xlu0 %v4391
      %v4410 = vpop.xlane.xlu0 %4409
      %4411 = vadd.xlane.f32.xlu0 %v4392
      %v4412 = vpop.xlane.xlu0 %4411
      %4413 = vadd.xlane.f32.xlu0 %v4393
      %v4414 = vpop.xlane.xlu0 %4413
      %4415 = vadd.xlane.f32.xlu0 %v4394
      %v4416 = vpop.xlane.xlu0 %4415
      %4417 = vadd.xlane.f32.xlu0 %v4395
      %v4418 = vpop.xlane.xlu0 %4417
      %4419 = vadd.xlane.f32.xlu0 %v4396
      %v4420 = vpop.xlane.xlu0 %4419
      %4421 = vadd.xlane.f32.xlu0 %v4397
      %v4422 = vpop.xlane.xlu0 %4421
      %4423 = vadd.xlane.f32.xlu0 %v4398
      %v4424 = vpop.xlane.xlu0 %4423
      %4425 = vadd.xlane.f32.xlu0 %v4399
      %v4426 = vpop.xlane.xlu0 %4425
      %4427 = vadd.xlane.f32.xlu0 %v4400
      %v4428 = vpop.xlane.xlu0 %4427
      %4429 = vadd.xlane.f32.xlu0 %v4401
      %v4430 = vpop.xlane.xlu0 %4429
      %4431 = vadd.xlane.f32.xlu0 %v4402
      %v4432 = vpop.xlane.xlu0 %4431
      %4433 = vadd.xlane.f32.xlu0 %v4403
      %v4434 = vpop.xlane.xlu0 %4433
      %4435 = vadd.xlane.f32.xlu0 %v4404
      %v4436 = vpop.xlane.xlu0 %4435
      %v4437 = vmul.f32 %v4406, %v1012
      %v4438 = vmul.f32 %v4408, %v1012
      %v4439 = vmul.f32 %v4410, %v1012
      %v4440 = vmul.f32 %v4412, %v1012
      %v4441 = vmul.f32 %v4414, %v1012
      %v4442 = vmul.f32 %v4416, %v1012
      %v4443 = vmul.f32 %v4418, %v1012
      %v4444 = vmul.f32 %v4420, %v1012
      %v4445 = vmul.f32 %v4422, %v1012
      %v4446 = vmul.f32 %v4424, %v1012
      %v4447 = vmul.f32 %v4426, %v1012
      %v4448 = vmul.f32 %v4428, %v1012
      %v4449 = vmul.f32 %v4430, %v1012
      %v4450 = vmul.f32 %v4432, %v1012
      %v4451 = vmul.f32 %v4434, %v1012
      %v4452 = vmul.f32 %v4436, %v1012
      %v4453 = vsub.f32 %v4389, %v4437
      %v4454 = vsub.f32 %v4390, %v4438
      %v4455 = vsub.f32 %v4391, %v4439
      %v4456 = vsub.f32 %v4392, %v4440
      %v4457 = vsub.f32 %v4393, %v4441
      %v4458 = vsub.f32 %v4394, %v4442
      %v4459 = vsub.f32 %v4395, %v4443
      %v4460 = vsub.f32 %v4396, %v4444
      %v4461 = vsub.f32 %v4397, %v4445
      %v4462 = vsub.f32 %v4398, %v4446
      %v4463 = vsub.f32 %v4399, %v4447
      %v4464 = vsub.f32 %v4400, %v4448
      %v4465 = vsub.f32 %v4401, %v4449
      %v4466 = vsub.f32 %v4402, %v4450
      %v4467 = vsub.f32 %v4403, %v4451
      %v4468 = vsub.f32 %v4404, %v4452
      %v4469 = vmul.f32 %v4453, %v4453
      %v4470 = vmul.f32 %v4454, %v4454
      %v4471 = vmul.f32 %v4455, %v4455
      %v4472 = vmul.f32 %v4456, %v4456
      %v4473 = vmul.f32 %v4457, %v4457
      %v4474 = vmul.f32 %v4458, %v4458
      %v4475 = vmul.f32 %v4459, %v4459
      %v4476 = vmul.f32 %v4460, %v4460
      %v4477 = vmul.f32 %v4461, %v4461
      %v4478 = vmul.f32 %v4462, %v4462
      %v4479 = vmul.f32 %v4463, %v4463
      %v4480 = vmul.f32 %v4464, %v4464
      %v4481 = vmul.f32 %v4465, %v4465
      %v4482 = vmul.f32 %v4466, %v4466
      %v4483 = vmul.f32 %v4467, %v4467
      %v4484 = vmul.f32 %v4468, %v4468
      %4485 = vadd.xlane.f32.xlu0 %v4469
      %v4486 = vpop.xlane.xlu0 %4485
      %4487 = vadd.xlane.f32.xlu0 %v4470
      %v4488 = vpop.xlane.xlu0 %4487
      %4489 = vadd.xlane.f32.xlu0 %v4471
      %v4490 = vpop.xlane.xlu0 %4489
      %4491 = vadd.xlane.f32.xlu0 %v4472
      %v4492 = vpop.xlane.xlu0 %4491
      %4493 = vadd.xlane.f32.xlu0 %v4473
      %v4494 = vpop.xlane.xlu0 %4493
      %4495 = vadd.xlane.f32.xlu0 %v4474
      %v4496 = vpop.xlane.xlu0 %4495
      %4497 = vadd.xlane.f32.xlu0 %v4475
      %v4498 = vpop.xlane.xlu0 %4497
      %4499 = vadd.xlane.f32.xlu0 %v4476
      %v4500 = vpop.xlane.xlu0 %4499
      %4501 = vadd.xlane.f32.xlu0 %v4477
      %v4502 = vpop.xlane.xlu0 %4501
      %4503 = vadd.xlane.f32.xlu0 %v4478
      %v4504 = vpop.xlane.xlu0 %4503
      %4505 = vadd.xlane.f32.xlu0 %v4479
      %v4506 = vpop.xlane.xlu0 %4505
      %4507 = vadd.xlane.f32.xlu0 %v4480
      %v4508 = vpop.xlane.xlu0 %4507
      %4509 = vadd.xlane.f32.xlu0 %v4481
      %v4510 = vpop.xlane.xlu0 %4509
      %4511 = vadd.xlane.f32.xlu0 %v4482
      %v4512 = vpop.xlane.xlu0 %4511
      %4513 = vadd.xlane.f32.xlu0 %v4483
      %v4514 = vpop.xlane.xlu0 %4513
      %4515 = vadd.xlane.f32.xlu0 %v4484
      %v4516 = vpop.xlane.xlu0 %4515
      %v4517 = vmul.f32 %v4486, %v1012
      %v4518 = vmul.f32 %v4488, %v1012
      %v4519 = vmul.f32 %v4490, %v1012
      %v4520 = vmul.f32 %v4492, %v1012
      %v4521 = vmul.f32 %v4494, %v1012
      %v4522 = vmul.f32 %v4496, %v1012
      %v4523 = vmul.f32 %v4498, %v1012
      %v4524 = vmul.f32 %v4500, %v1012
      %v4525 = vmul.f32 %v4502, %v1012
      %v4526 = vmul.f32 %v4504, %v1012
      %v4527 = vmul.f32 %v4506, %v1012
      %v4528 = vmul.f32 %v4508, %v1012
      %v4529 = vmul.f32 %v4510, %v1012
      %v4530 = vmul.f32 %v4512, %v1012
      %v4531 = vmul.f32 %v4514, %v1012
      %v4532 = vmul.f32 %v4516, %v1012
      %v4533 = vadd.f32 %v4517, 1e-05
      %v4534 = vadd.f32 %v4518, 1e-05
      %v4535 = vadd.f32 %v4519, 1e-05
      %v4536 = vadd.f32 %v4520, 1e-05
      %v4537 = vadd.f32 %v4521, 1e-05
      %v4538 = vadd.f32 %v4522, 1e-05
      %v4539 = vadd.f32 %v4523, 1e-05
      %v4540 = vadd.f32 %v4524, 1e-05
      %v4541 = vadd.f32 %v4525, 1e-05
      %v4542 = vadd.f32 %v4526, 1e-05
      %v4543 = vadd.f32 %v4527, 1e-05
      %v4544 = vadd.f32 %v4528, 1e-05
      %v4545 = vadd.f32 %v4529, 1e-05
      %v4546 = vadd.f32 %v4530, 1e-05
      %v4547 = vadd.f32 %v4531, 1e-05
      %v4548 = vadd.f32 %v4532, 1e-05
      %v4549 = vrsqrt.pop %v4533
      %v4550 = vrsqrt.pop %v4534
      %v4551 = vrsqrt.pop %v4535
      %v4552 = vrsqrt.pop %v4536
      %v4553 = vrsqrt.pop %v4537
      %v4554 = vrsqrt.pop %v4538
      %v4555 = vrsqrt.pop %v4539
      %v4556 = vrsqrt.pop %v4540
      %v4557 = vrsqrt.pop %v4541
      %v4558 = vrsqrt.pop %v4542
      %v4559 = vrsqrt.pop %v4543
      %v4560 = vrsqrt.pop %v4544
      %v4561 = vrsqrt.pop %v4545
      %v4562 = vrsqrt.pop %v4546
      %v4563 = vrsqrt.pop %v4547
      %v4564 = vrsqrt.pop %v4548
      %v4565 = vmul.f32 %v4453, %v4549
      %v4566 = vmul.f32 %v4454, %v4550
      %v4567 = vmul.f32 %v4455, %v4551
      %v4568 = vmul.f32 %v4456, %v4552
      %v4569 = vmul.f32 %v4457, %v4553
      %v4570 = vmul.f32 %v4458, %v4554
      %v4571 = vmul.f32 %v4459, %v4555
      %v4572 = vmul.f32 %v4460, %v4556
      %v4573 = vmul.f32 %v4461, %v4557
      %v4574 = vmul.f32 %v4462, %v4558
      %v4575 = vmul.f32 %v4463, %v4559
      %v4576 = vmul.f32 %v4464, %v4560
      %v4577 = vmul.f32 %v4465, %v4561
      %v4578 = vmul.f32 %v4466, %v4562
      %v4579 = vmul.f32 %v4467, %v4563
      %v4580 = vmul.f32 %v4468, %v4564
      %v4582 = vlaneseq
      %v4583 = vshrl.u32 %v4582, 7
      %v4584 = vsub.s32 0, %v4583
      %v4585 = vrot.slane %v880, %v4584
      %v4587 = vmul.f32 %v4565, %v4585
      %v4588 = vmul.f32 %v4566, %v4585
      %v4589 = vmul.f32 %v4567, %v4585
      %v4590 = vmul.f32 %v4568, %v4585
      %v4591 = vmul.f32 %v4569, %v4585
      %v4592 = vmul.f32 %v4570, %v4585
      %v4593 = vmul.f32 %v4571, %v4585
      %v4594 = vmul.f32 %v4572, %v4585
      %v4595 = vmul.f32 %v4573, %v4585
      %v4596 = vmul.f32 %v4574, %v4585
      %v4597 = vmul.f32 %v4575, %v4585
      %v4598 = vmul.f32 %v4576, %v4585
      %v4599 = vmul.f32 %v4577, %v4585
      %v4600 = vmul.f32 %v4578, %v4585
      %v4601 = vmul.f32 %v4579, %v4585
      %v4602 = vmul.f32 %v4580, %v4585
      %v4604 = vlaneseq
      %v4605 = vshrl.u32 %v4604, 7
      %v4606 = vsub.s32 0, %v4605
      %v4607 = vrot.slane %v881, %v4606
      %v4609 = vadd.f32 %v4587, %v4607
      %v4610 = vadd.f32 %v4588, %v4607
      %v4611 = vadd.f32 %v4589, %v4607
      %v4612 = vadd.f32 %v4590, %v4607
      %v4613 = vadd.f32 %v4591, %v4607
      %v4614 = vadd.f32 %v4592, %v4607
      %v4615 = vadd.f32 %v4593, %v4607
      %v4616 = vadd.f32 %v4594, %v4607
      %v4617 = vadd.f32 %v4595, %v4607
      %v4618 = vadd.f32 %v4596, %v4607
      %v4619 = vadd.f32 %v4597, %v4607
      %v4620 = vadd.f32 %v4598, %v4607
      %v4621 = vadd.f32 %v4599, %v4607
      %v4622 = vadd.f32 %v4600, %v4607
      %v4623 = vadd.f32 %v4601, %v4607
      %v4624 = vadd.f32 %v4602, %v4607
      %v4625 = vpack.c.bf16 %v4610, %v4609
      %v4626 = vpack.c.bf16 %v4612, %v4611
      %v4627 = vpack.c.bf16 %v4614, %v4613
      %v4628 = vpack.c.bf16 %v4616, %v4615
      %v4629 = vpack.c.bf16 %v4618, %v4617
      %v4630 = vpack.c.bf16 %v4620, %v4619
      %v4631 = vpack.c.bf16 %v4622, %v4621
      %v4632 = vpack.c.bf16 %v4624, %v4623
      %v4634 = vlaneseq
      %v4635 = vshrl.u32 %v4634, 7
      %v4636 = vsub.s32 0, %v4635
      %v4637 = vrot.slane %v914, %v4636
      %v4638 = vlaneseq
      %v4639 = vshrl.u32 %v4638, 7
      %v4640 = vsub.s32 1, %v4639
      %v4641 = vrot.slane %v914, %v4640
      %v4642 = vlaneseq
      %v4643 = vshrl.u32 %v4642, 7
      %v4644 = vsub.s32 2, %v4643
      %v4645 = vrot.slane %v914, %v4644
      %v4646 = vlaneseq
      %v4647 = vshrl.u32 %v4646, 7
      %v4648 = vsub.s32 3, %v4647
      %v4649 = vrot.slane %v914, %v4648
      %v4686 = vunpack.c.l.b16 %v882
      %v4687 = vunpack.c.h.b16 %v882
      %v4688 = vunpack.c.l.b16 %v883
      %v4689 = vunpack.c.h.b16 %v883
      %v4690 = vunpack.c.l.b16 %v884
      %v4691 = vunpack.c.h.b16 %v884
      %v4692 = vunpack.c.l.b16 %v885
      %v4693 = vunpack.c.h.b16 %v885
      %v4694 = vunpack.c.l.b16 %v886
      %v4695 = vunpack.c.h.b16 %v886
      %v4696 = vunpack.c.l.b16 %v887
      %v4697 = vunpack.c.h.b16 %v887
      %v4698 = vunpack.c.l.b16 %v888
      %v4699 = vunpack.c.h.b16 %v888
      %v4700 = vunpack.c.l.b16 %v889
      %v4701 = vunpack.c.h.b16 %v889
      %v4702 = vunpack.c.l.b16 %v890
      %v4703 = vunpack.c.h.b16 %v890
      %v4704 = vunpack.c.l.b16 %v891
      %v4705 = vunpack.c.h.b16 %v891
      %v4706 = vunpack.c.l.b16 %v892
      %v4707 = vunpack.c.h.b16 %v892
      %v4708 = vunpack.c.l.b16 %v893
      %v4709 = vunpack.c.h.b16 %v893
      %v4710 = vunpack.c.l.b16 %v894
      %v4711 = vunpack.c.h.b16 %v894
      %v4712 = vunpack.c.l.b16 %v895
      %v4713 = vunpack.c.h.b16 %v895
      %v4714 = vunpack.c.l.b16 %v896
      %v4715 = vunpack.c.h.b16 %v896
      %v4716 = vunpack.c.l.b16 %v897
      %v4717 = vunpack.c.h.b16 %v897
      %v4718 = vunpack.c.l.b16 %v898
      %v4719 = vunpack.c.h.b16 %v898
      %v4720 = vunpack.c.l.b16 %v899
      %v4721 = vunpack.c.h.b16 %v899
      %v4722 = vunpack.c.l.b16 %v900
      %v4723 = vunpack.c.h.b16 %v900
      %v4724 = vunpack.c.l.b16 %v901
      %v4725 = vunpack.c.h.b16 %v901
      %v4726 = vunpack.c.l.b16 %v902
      %v4727 = vunpack.c.h.b16 %v902
      %v4728 = vunpack.c.l.b16 %v903
      %v4729 = vunpack.c.h.b16 %v903
      %v4730 = vunpack.c.l.b16 %v904
      %v4731 = vunpack.c.h.b16 %v904
      %v4732 = vunpack.c.l.b16 %v905
      %v4733 = vunpack.c.h.b16 %v905
      %v4734 = vunpack.c.l.b16 %v906
      %v4735 = vunpack.c.h.b16 %v906
      %v4736 = vunpack.c.l.b16 %v907
      %v4737 = vunpack.c.h.b16 %v907
      %v4738 = vunpack.c.l.b16 %v908
      %v4739 = vunpack.c.h.b16 %v908
      %v4740 = vunpack.c.l.b16 %v909
      %v4741 = vunpack.c.h.b16 %v909
      %v4742 = vunpack.c.l.b16 %v910
      %v4743 = vunpack.c.h.b16 %v910
      %v4744 = vunpack.c.l.b16 %v911
      %v4745 = vunpack.c.h.b16 %v911
      %v4746 = vunpack.c.l.b16 %v912
      %v4747 = vunpack.c.h.b16 %v912
      %v4748 = vunpack.c.l.b16 %v913
      %v4749 = vunpack.c.h.b16 %v913
      %v4750 = vpack.c.b16 %v4690, %v4686
      %v4751 = vpack.c.b16 %v4691, %v4687
      %v4752 = vpack.c.b16 %v4692, %v4688
      %v4753 = vpack.c.b16 %v4693, %v4689
      %v4754 = vpack.c.b16 %v4698, %v4694
      %v4755 = vpack.c.b16 %v4699, %v4695
      %v4756 = vpack.c.b16 %v4700, %v4696
      %v4757 = vpack.c.b16 %v4701, %v4697
      %v4758 = vpack.c.b16 %v4706, %v4702
      %v4759 = vpack.c.b16 %v4707, %v4703
      %v4760 = vpack.c.b16 %v4708, %v4704
      %v4761 = vpack.c.b16 %v4709, %v4705
      %v4762 = vpack.c.b16 %v4714, %v4710
      %v4763 = vpack.c.b16 %v4715, %v4711
      %v4764 = vpack.c.b16 %v4716, %v4712
      %v4765 = vpack.c.b16 %v4717, %v4713
      %v4766 = vpack.c.b16 %v4722, %v4718
      %v4767 = vpack.c.b16 %v4723, %v4719
      %v4768 = vpack.c.b16 %v4724, %v4720
      %v4769 = vpack.c.b16 %v4725, %v4721
      %v4770 = vpack.c.b16 %v4730, %v4726
      %v4771 = vpack.c.b16 %v4731, %v4727
      %v4772 = vpack.c.b16 %v4732, %v4728
      %v4773 = vpack.c.b16 %v4733, %v4729
      %v4774 = vpack.c.b16 %v4738, %v4734
      %v4775 = vpack.c.b16 %v4739, %v4735
      %v4776 = vpack.c.b16 %v4740, %v4736
      %v4777 = vpack.c.b16 %v4741, %v4737
      %v4778 = vpack.c.b16 %v4746, %v4742
      %v4779 = vpack.c.b16 %v4747, %v4743
      %v4780 = vpack.c.b16 %v4748, %v4744
      %v4781 = vpack.c.b16 %v4749, %v4745
      %4814 = vmatprep.subr.bf16.mxu0 %v4751
      %4815 = vmatpush1.bf16.msra.mxu0 %v4750
      %4816 = vmatprep.subr.bf16.mxu0 %v4755
      %4817 = vmatpush1.bf16.msra.mxu0 %v4754
      %4818 = vmatprep.subr.bf16.mxu0 %v4759
      %4819 = vmatpush1.bf16.msra.mxu0 %v4758
      %4820 = vmatprep.subr.bf16.mxu0 %v4763
      %4821 = vmatpush1.bf16.msra.mxu0 %v4762
      %4822 = vmatprep.subr.bf16.mxu0 %v4767
      %4823 = vmatpush1.bf16.msra.mxu0 %v4766
      %4824 = vmatprep.subr.bf16.mxu0 %v4771
      %4825 = vmatpush1.bf16.msra.mxu0 %v4770
      %4826 = vmatprep.subr.bf16.mxu0 %v4775
      %4827 = vmatpush1.bf16.msra.mxu0 %v4774
      %4828 = vmatprep.subr.bf16.mxu0 %v4779
      %4829 = vmatpush1.bf16.msra.mxu0 %v4778
      %4830 = vmatprep.subr.bf16.mxu0 0
      %4831 = vmatpush1.bf16.msra.mxu0 0
      %4832 = vmatprep.subr.bf16.mxu0 0
      %4833 = vmatpush1.bf16.msra.mxu0 0
      %4834 = vmatprep.subr.bf16.mxu0 0
      %4835 = vmatpush1.bf16.msra.mxu0 0
      %4836 = vmatprep.subr.bf16.mxu0 0
      %4837 = vmatpush1.bf16.msra.mxu0 0
      %4838 = vmatprep.subr.bf16.mxu0 0
      %4839 = vmatpush1.bf16.msra.mxu0 0
      %4840 = vmatprep.subr.bf16.mxu0 0
      %4841 = vmatpush1.bf16.msra.mxu0 0
      %4842 = vmatprep.subr.bf16.mxu0 0
      %4843 = vmatpush1.bf16.msra.mxu0 0
      %4844 = vmatprep.subr.bf16.mxu0 0
      %4845 = vmatpush1.bf16.msra.mxu0 0
      %4846 = vmatprep.mubr.bf16.mxu0 0
      %4847 = vmatmul.mubr.bf16.gmra.mrb[0].mxu0 %v4625
      %v4848 = vpop.f32.mrb[0].mxu0
      %v4849 = vadd.f32 %v4637, %v4848
      %v4850 = vpop.f32.mrb[0].mxu0
      %v4851 = vadd.f32 %v4641, %v4850
      %v4852 = vpop.f32.mrb[0].mxu0
      %v4853 = vadd.f32 %v4637, %v4852
      %v4854 = vpop.f32.mrb[0].mxu0
      %v4855 = vadd.f32 %v4641, %v4854
      %4856 = vmatprep.mubr.bf16.mxu0 0
      %4857 = vmatmul.mubr.bf16.gmra.mrb[0].mxu0 %v4626
      %v4858 = vpop.f32.mrb[0].mxu0
      %v4859 = vadd.f32 %v4637, %v4858
      %v4860 = vpop.f32.mrb[0].mxu0
      %v4861 = vadd.f32 %v4641, %v4860
      %v4862 = vpop.f32.mrb[0].mxu0
      %v4863 = vadd.f32 %v4637, %v4862
      %v4864 = vpop.f32.mrb[0].mxu0
      %v4865 = vadd.f32 %v4641, %v4864
      %4866 = vmatprep.mubr.bf16.mxu0 0
      %4867 = vmatmul.mubr.bf16.gmra.mrb[0].mxu0 %v4627
      %v4868 = vpop.f32.mrb[0].mxu0
      %v4869 = vadd.f32 %v4637, %v4868
      %v4870 = vpop.f32.mrb[0].mxu0
      %v4871 = vadd.f32 %v4641, %v4870
      %v4872 = vpop.f32.mrb[0].mxu0
      %v4873 = vadd.f32 %v4637, %v4872
      %v4874 = vpop.f32.mrb[0].mxu0
      %v4875 = vadd.f32 %v4641, %v4874
      %4876 = vmatprep.mubr.bf16.mxu0 0
      %4877 = vmatmul.mubr.bf16.gmra.mrb[0].mxu0 %v4628
      %v4878 = vpop.f32.mrb[0].mxu0
      %v4879 = vadd.f32 %v4637, %v4878
      %v4880 = vpop.f32.mrb[0].mxu0
      %v4881 = vadd.f32 %v4641, %v4880
      %v4882 = vpop.f32.mrb[0].mxu0
      %v4883 = vadd.f32 %v4637, %v4882
      %v4884 = vpop.f32.mrb[0].mxu0
      %v4885 = vadd.f32 %v4641, %v4884
      %4886 = vmatprep.mubr.bf16.mxu0 0
      %4887 = vmatmul.mubr.bf16.gmra.mrb[0].mxu0 %v4629
      %v4888 = vpop.f32.mrb[0].mxu0
      %v4889 = vadd.f32 %v4637, %v4888
      %v4890 = vpop.f32.mrb[0].mxu0
      %v4891 = vadd.f32 %v4641, %v4890
      %v4892 = vpop.f32.mrb[0].mxu0
      %v4893 = vadd.f32 %v4637, %v4892
      %v4894 = vpop.f32.mrb[0].mxu0
      %v4895 = vadd.f32 %v4641, %v4894
      %4896 = vmatprep.mubr.bf16.mxu0 0
      %4897 = vmatmul.mubr.bf16.gmra.mrb[0].mxu0 %v4630
      %v4898 = vpop.f32.mrb[0].mxu0
      %v4899 = vadd.f32 %v4637, %v4898
      %v4900 = vpop.f32.mrb[0].mxu0
      %v4901 = vadd.f32 %v4641, %v4900
      %v4902 = vpop.f32.mrb[0].mxu0
      %v4903 = vadd.f32 %v4637, %v4902
      %v4904 = vpop.f32.mrb[0].mxu0
      %v4905 = vadd.f32 %v4641, %v4904
      %4906 = vmatprep.mubr.bf16.mxu0 0
      %4907 = vmatmul.mubr.bf16.gmra.mrb[0].mxu0 %v4631
      %v4908 = vpop.f32.mrb[0].mxu0
      %v4909 = vadd.f32 %v4637, %v4908
      %v4910 = vpop.f32.mrb[0].mxu0
      %v4911 = vadd.f32 %v4641, %v4910
      %v4912 = vpop.f32.mrb[0].mxu0
      %v4913 = vadd.f32 %v4637, %v4912
      %v4914 = vpop.f32.mrb[0].mxu0
      %v4915 = vadd.f32 %v4641, %v4914
      %4916 = vmatprep.mubr.bf16.mxu0 0
      %4917 = vmatmul.mubr.bf16.gmra.mrb[0].mxu0 %v4632
      %v4918 = vpop.f32.mrb[0].mxu0
      %v4919 = vadd.f32 %v4637, %v4918
      %v4920 = vpop.f32.mrb[0].mxu0
      %v4921 = vadd.f32 %v4641, %v4920
      %v4922 = vpop.f32.mrb[0].mxu0
      %v4923 = vadd.f32 %v4637, %v4922
      %v4924 = vpop.f32.mrb[0].mxu0
      %v4925 = vadd.f32 %v4641, %v4924
      %4926 = vdwg.mxu0
      %4927 = vmatprep.subr.bf16.mxu0 %v4753
      %4928 = vmatpush1.bf16.msra.mxu0 %v4752
      %4929 = vmatprep.subr.bf16.mxu0 %v4757
      %4930 = vmatpush1.bf16.msra.mxu0 %v4756
      %4931 = vmatprep.subr.bf16.mxu0 %v4761
      %4932 = vmatpush1.bf16.msra.mxu0 %v4760
      %4933 = vmatprep.subr.bf16.mxu0 %v4765
      %4934 = vmatpush1.bf16.msra.mxu0 %v4764
      %4935 = vmatprep.subr.bf16.mxu0 %v4769
      %4936 = vmatpush1.bf16.msra.mxu0 %v4768
      %4937 = vmatprep.subr.bf16.mxu0 %v4773
      %4938 = vmatpush1.bf16.msra.mxu0 %v4772
      %4939 = vmatprep.subr.bf16.mxu0 %v4777
      %4940 = vmatpush1.bf16.msra.mxu0 %v4776
      %4941 = vmatprep.subr.bf16.mxu0 %v4781
      %4942 = vmatpush1.bf16.msra.mxu0 %v4780
      %4943 = vmatprep.subr.bf16.mxu0 0
      %4944 = vmatpush1.bf16.msra.mxu0 0
      %4945 = vmatprep.subr.bf16.mxu0 0
      %4946 = vmatpush1.bf16.msra.mxu0 0
      %4947 = vmatprep.subr.bf16.mxu0 0
      %4948 = vmatpush1.bf16.msra.mxu0 0
      %4949 = vmatprep.subr.bf16.mxu0 0
      %4950 = vmatpush1.bf16.msra.mxu0 0
      %4951 = vmatprep.subr.bf16.mxu0 0
      %4952 = vmatpush1.bf16.msra.mxu0 0
      %4953 = vmatprep.subr.bf16.mxu0 0
      %4954 = vmatpush1.bf16.msra.mxu0 0
      %4955 = vmatprep.subr.bf16.mxu0 0
      %4956 = vmatpush1.bf16.msra.mxu0 0
      %4957 = vmatprep.subr.bf16.mxu0 0
      %4958 = vmatpush1.bf16.msra.mxu0 0
      %4959 = vmatprep.mubr.bf16.mxu0 0
      %4960 = vmatmul.mubr.bf16.gmra.mrb[0].mxu0 %v4625
      %v4961 = vpop.f32.mrb[0].mxu0
      %v4962 = vadd.f32 %v4645, %v4961
      %v4963 = vpop.f32.mrb[0].mxu0
      %v4964 = vadd.f32 %v4649, %v4963
      %v4965 = vpop.f32.mrb[0].mxu0
      %v4966 = vadd.f32 %v4645, %v4965
      %v4967 = vpop.f32.mrb[0].mxu0
      %v4968 = vadd.f32 %v4649, %v4967
      %4969 = vmatprep.mubr.bf16.mxu0 0
      %4970 = vmatmul.mubr.bf16.gmra.mrb[0].mxu0 %v4626
      %v4971 = vpop.f32.mrb[0].mxu0
      %v4972 = vadd.f32 %v4645, %v4971
      %v4973 = vpop.f32.mrb[0].mxu0
      %v4974 = vadd.f32 %v4649, %v4973
      %v4975 = vpop.f32.mrb[0].mxu0
      %v4976 = vadd.f32 %v4645, %v4975
      %v4977 = vpop.f32.mrb[0].mxu0
      %v4978 = vadd.f32 %v4649, %v4977
      %4979 = vmatprep.mubr.bf16.mxu0 0
      %4980 = vmatmul.mubr.bf16.gmra.mrb[0].mxu0 %v4627
      %v4981 = vpop.f32.mrb[0].mxu0
      %v4982 = vadd.f32 %v4645, %v4981
      %v4983 = vpop.f32.mrb[0].mxu0
      %v4984 = vadd.f32 %v4649, %v4983
      %v4985 = vpop.f32.mrb[0].mxu0
      %v4986 = vadd.f32 %v4645, %v4985
      %v4987 = vpop.f32.mrb[0].mxu0
      %v4988 = vadd.f32 %v4649, %v4987
      %4989 = vmatprep.mubr.bf16.mxu0 0
      %4990 = vmatmul.mubr.bf16.gmra.mrb[0].mxu0 %v4628
      %v4991 = vpop.f32.mrb[0].mxu0
      %v4992 = vadd.f32 %v4645, %v4991
      %v4993 = vpop.f32.mrb[0].mxu0
      %v4994 = vadd.f32 %v4649, %v4993
      %v4995 = vpop.f32.mrb[0].mxu0
      %v4996 = vadd.f32 %v4645, %v4995
      %v4997 = vpop.f32.mrb[0].mxu0
      %v4998 = vadd.f32 %v4649, %v4997
      %4999 = vmatprep.mubr.bf16.mxu0 0
      %5000 = vmatmul.mubr.bf16.gmra.mrb[0].mxu0 %v4629
      %v5001 = vpop.f32.mrb[0].mxu0
      %v5002 = vadd.f32 %v4645, %v5001
      %v5003 = vpop.f32.mrb[0].mxu0
      %v5004 = vadd.f32 %v4649, %v5003
      %v5005 = vpop.f32.mrb[0].mxu0
      %v5006 = vadd.f32 %v4645, %v5005
      %v5007 = vpop.f32.mrb[0].mxu0
      %v5008 = vadd.f32 %v4649, %v5007
      %5009 = vmatprep.mubr.bf16.mxu0 0
      %5010 = vmatmul.mubr.bf16.gmra.mrb[0].mxu0 %v4630
      %v5011 = vpop.f32.mrb[0].mxu0
      %v5012 = vadd.f32 %v4645, %v5011
      %v5013 = vpop.f32.mrb[0].mxu0
      %v5014 = vadd.f32 %v4649, %v5013
      %v5015 = vpop.f32.mrb[0].mxu0
      %v5016 = vadd.f32 %v4645, %v5015
      %v5017 = vpop.f32.mrb[0].mxu0
      %v5018 = vadd.f32 %v4649, %v5017
      %5019 = vmatprep.mubr.bf16.mxu0 0
      %5020 = vmatmul.mubr.bf16.gmra.mrb[0].mxu0 %v4631
      %v5021 = vpop.f32.mrb[0].mxu0
      %v5022 = vadd.f32 %v4645, %v5021
      %v5023 = vpop.f32.mrb[0].mxu0
      %v5024 = vadd.f32 %v4649, %v5023
      %v5025 = vpop.f32.mrb[0].mxu0
      %v5026 = vadd.f32 %v4645, %v5025
      %v5027 = vpop.f32.mrb[0].mxu0
      %v5028 = vadd.f32 %v4649, %v5027
      %5029 = vmatprep.mubr.bf16.mxu0 0
      %5030 = vmatmul.mubr.bf16.gmra.mrb[0].mxu0 %v4632
      %v5031 = vpop.f32.mrb[0].mxu0
      %v5032 = vadd.f32 %v4645, %v5031
      %v5033 = vpop.f32.mrb[0].mxu0
      %v5034 = vadd.f32 %v4649, %v5033
      %v5035 = vpop.f32.mrb[0].mxu0
      %v5036 = vadd.f32 %v4645, %v5035
      %v5037 = vpop.f32.mrb[0].mxu0
      %v5038 = vadd.f32 %v4649, %v5037
      %5039 = vdwg.mxu0
      %v5040 = vmul.f32 %v4849, 0.5
      %v5041 = vmul.f32 %v4851, 0.5
      %v5042 = vmul.f32 %v4962, 0.5
      %v5043 = vmul.f32 %v4964, 0.5
      %v5044 = vmul.f32 %v4853, 0.5
      %v5045 = vmul.f32 %v4855, 0.5
      %v5046 = vmul.f32 %v4966, 0.5
      %v5047 = vmul.f32 %v4968, 0.5
      %v5048 = vmul.f32 %v4859, 0.5
      %v5049 = vmul.f32 %v4861, 0.5
      %v5050 = vmul.f32 %v4972, 0.5
      %v5051 = vmul.f32 %v4974, 0.5
      %v5052 = vmul.f32 %v4863, 0.5
      %v5053 = vmul.f32 %v4865, 0.5
      %v5054 = vmul.f32 %v4976, 0.5
      %v5055 = vmul.f32 %v4978, 0.5
      %v5056 = vmul.f32 %v4869, 0.5
      %v5057 = vmul.f32 %v4871, 0.5
      %v5058 = vmul.f32 %v4982, 0.5
      %v5059 = vmul.f32 %v4984, 0.5
      %v5060 = vmul.f32 %v4873, 0.5
      %v5061 = vmul.f32 %v4875, 0.5
      %v5062 = vmul.f32 %v4986, 0.5
      %v5063 = vmul.f32 %v4988, 0.5
      %v5064 = vmul.f32 %v4879, 0.5
      %v5065 = vmul.f32 %v4881, 0.5
      %v5066 = vmul.f32 %v4992, 0.5
      %v5067 = vmul.f32 %v4994, 0.5
      %v5068 = vmul.f32 %v4883, 0.5
      %v5069 = vmul.f32 %v4885, 0.5
      %v5070 = vmul.f32 %v4996, 0.5
      %v5071 = vmul.f32 %v4998, 0.5
      %v5072 = vmul.f32 %v4889, 0.5
      %v5073 = vmul.f32 %v4891, 0.5
      %v5074 = vmul.f32 %v5002, 0.5
      %v5075 = vmul.f32 %v5004, 0.5
      %v5076 = vmul.f32 %v4893, 0.5
      %v5077 = vmul.f32 %v4895, 0.5
      %v5078 = vmul.f32 %v5006, 0.5
      %v5079 = vmul.f32 %v5008, 0.5
      %v5080 = vmul.f32 %v4899, 0.5
      %v5081 = vmul.f32 %v4901, 0.5
      %v5082 = vmul.f32 %v5012, 0.5
      %v5083 = vmul.f32 %v5014, 0.5
      %v5084 = vmul.f32 %v4903, 0.5
      %v5085 = vmul.f32 %v4905, 0.5
      %v5086 = vmul.f32 %v5016, 0.5
      %v5087 = vmul.f32 %v5018, 0.5
      %v5088 = vmul.f32 %v4909, 0.5
      %v5089 = vmul.f32 %v4911, 0.5
      %v5090 = vmul.f32 %v5022, 0.5
      %v5091 = vmul.f32 %v5024, 0.5
      %v5092 = vmul.f32 %v4913, 0.5
      %v5093 = vmul.f32 %v4915, 0.5
      %v5094 = vmul.f32 %v5026, 0.5
      %v5095 = vmul.f32 %v5028, 0.5
      %v5096 = vmul.f32 %v4919, 0.5
      %v5097 = vmul.f32 %v4921, 0.5
      %v5098 = vmul.f32 %v5032, 0.5
      %v5099 = vmul.f32 %v5034, 0.5
      %v5100 = vmul.f32 %v4923, 0.5
      %v5101 = vmul.f32 %v4925, 0.5
      %v5102 = vmul.f32 %v5036, 0.5
      %v5103 = vmul.f32 %v5038, 0.5
      %v5104 = vmul.f32 %v4849, 0.044715
      %v5105 = vmul.f32 %v4851, 0.044715
      %v5106 = vmul.f32 %v4962, 0.044715
      %v5107 = vmul.f32 %v4964, 0.044715
      %v5108 = vmul.f32 %v4853, 0.044715
      %v5109 = vmul.f32 %v4855, 0.044715
      %v5110 = vmul.f32 %v4966, 0.044715
      %v5111 = vmul.f32 %v4968, 0.044715
      %v5112 = vmul.f32 %v4859, 0.044715
      %v5113 = vmul.f32 %v4861, 0.044715
      %v5114 = vmul.f32 %v4972, 0.044715
      %v5115 = vmul.f32 %v4974, 0.044715
      %v5116 = vmul.f32 %v4863, 0.044715
      %v5117 = vmul.f32 %v4865, 0.044715
      %v5118 = vmul.f32 %v4976, 0.044715
      %v5119 = vmul.f32 %v4978, 0.044715
      %v5120 = vmul.f32 %v4869, 0.044715
      %v5121 = vmul.f32 %v4871, 0.044715
      %v5122 = vmul.f32 %v4982, 0.044715
      %v5123 = vmul.f32 %v4984, 0.044715
      %v5124 = vmul.f32 %v4873, 0.044715
      %v5125 = vmul.f32 %v4875, 0.044715
      %v5126 = vmul.f32 %v4986, 0.044715
      %v5127 = vmul.f32 %v4988, 0.044715
      %v5128 = vmul.f32 %v4879, 0.044715
      %v5129 = vmul.f32 %v4881, 0.044715
      %v5130 = vmul.f32 %v4992, 0.044715
      %v5131 = vmul.f32 %v4994, 0.044715
      %v5132 = vmul.f32 %v4883, 0.044715
      %v5133 = vmul.f32 %v4885, 0.044715
      %v5134 = vmul.f32 %v4996, 0.044715
      %v5135 = vmul.f32 %v4998, 0.044715
      %v5136 = vmul.f32 %v4889, 0.044715
      %v5137 = vmul.f32 %v4891, 0.044715
      %v5138 = vmul.f32 %v5002, 0.044715
      %v5139 = vmul.f32 %v5004, 0.044715
      %v5140 = vmul.f32 %v4893, 0.044715
      %v5141 = vmul.f32 %v4895, 0.044715
      %v5142 = vmul.f32 %v5006, 0.044715
      %v5143 = vmul.f32 %v5008, 0.044715
      %v5144 = vmul.f32 %v4899, 0.044715
      %v5145 = vmul.f32 %v4901, 0.044715
      %v5146 = vmul.f32 %v5012, 0.044715
      %v5147 = vmul.f32 %v5014, 0.044715
      %v5148 = vmul.f32 %v4903, 0.044715
      %v5149 = vmul.f32 %v4905, 0.044715
      %v5150 = vmul.f32 %v5016, 0.044715
      %v5151 = vmul.f32 %v5018, 0.044715
      %v5152 = vmul.f32 %v4909, 0.044715
      %v5153 = vmul.f32 %v4911, 0.044715
      %v5154 = vmul.f32 %v5022, 0.044715
      %v5155 = vmul.f32 %v5024, 0.044715
      %v5156 = vmul.f32 %v4913, 0.044715
      %v5157 = vmul.f32 %v4915, 0.044715
      %v5158 = vmul.f32 %v5026, 0.044715
      %v5159 = vmul.f32 %v5028, 0.044715
      %v5160 = vmul.f32 %v4919, 0.044715
      %v5161 = vmul.f32 %v4921, 0.044715
      %v5162 = vmul.f32 %v5032, 0.044715
      %v5163 = vmul.f32 %v5034, 0.044715
      %v5164 = vmul.f32 %v4923, 0.044715
      %v5165 = vmul.f32 %v4925, 0.044715
      %v5166 = vmul.f32 %v5036, 0.044715
      %v5167 = vmul.f32 %v5038, 0.044715
      %v5168 = vmul.f32 %v5104, %v4849
      %v5169 = vmul.f32 %v5105, %v4851
      %v5170 = vmul.f32 %v5106, %v4962
      %v5171 = vmul.f32 %v5107, %v4964
      %v5172 = vmul.f32 %v5108, %v4853
      %v5173 = vmul.f32 %v5109, %v4855
      %v5174 = vmul.f32 %v5110, %v4966
      %v5175 = vmul.f32 %v5111, %v4968
      %v5176 = vmul.f32 %v5112, %v4859
      %v5177 = vmul.f32 %v5113, %v4861
      %v5178 = vmul.f32 %v5114, %v4972
      %v5179 = vmul.f32 %v5115, %v4974
      %v5180 = vmul.f32 %v5116, %v4863
      %v5181 = vmul.f32 %v5117, %v4865
      %v5182 = vmul.f32 %v5118, %v4976
      %v5183 = vmul.f32 %v5119, %v4978
      %v5184 = vmul.f32 %v5120, %v4869
      %v5185 = vmul.f32 %v5121, %v4871
      %v5186 = vmul.f32 %v5122, %v4982
      %v5187 = vmul.f32 %v5123, %v4984
      %v5188 = vmul.f32 %v5124, %v4873
      %v5189 = vmul.f32 %v5125, %v4875
      %v5190 = vmul.f32 %v5126, %v4986
      %v5191 = vmul.f32 %v5127, %v4988
      %v5192 = vmul.f32 %v5128, %v4879
      %v5193 = vmul.f32 %v5129, %v4881
      %v5194 = vmul.f32 %v5130, %v4992
      %v5195 = vmul.f32 %v5131, %v4994
      %v5196 = vmul.f32 %v5132, %v4883
      %v5197 = vmul.f32 %v5133, %v4885
      %v5198 = vmul.f32 %v5134, %v4996
      %v5199 = vmul.f32 %v5135, %v4998
      %v5200 = vmul.f32 %v5136, %v4889
      %v5201 = vmul.f32 %v5137, %v4891
      %v5202 = vmul.f32 %v5138, %v5002
      %v5203 = vmul.f32 %v5139, %v5004
      %v5204 = vmul.f32 %v5140, %v4893
      %v5205 = vmul.f32 %v5141, %v4895
      %v5206 = vmul.f32 %v5142, %v5006
      %v5207 = vmul.f32 %v5143, %v5008
      %v5208 = vmul.f32 %v5144, %v4899
      %v5209 = vmul.f32 %v5145, %v4901
      %v5210 = vmul.f32 %v5146, %v5012
      %v5211 = vmul.f32 %v5147, %v5014
      %v5212 = vmul.f32 %v5148, %v4903
      %v5213 = vmul.f32 %v5149, %v4905
      %v5214 = vmul.f32 %v5150, %v5016
      %v5215 = vmul.f32 %v5151, %v5018
      %v5216 = vmul.f32 %v5152, %v4909
      %v5217 = vmul.f32 %v5153, %v4911
      %v5218 = vmul.f32 %v5154, %v5022
      %v5219 = vmul.f32 %v5155, %v5024
      %v5220 = vmul.f32 %v5156, %v4913
      %v5221 = vmul.f32 %v5157, %v4915
      %v5222 = vmul.f32 %v5158, %v5026
      %v5223 = vmul.f32 %v5159, %v5028
      %v5224 = vmul.f32 %v5160, %v4919
      %v5225 = vmul.f32 %v5161, %v4921
      %v5226 = vmul.f32 %v5162, %v5032
      %v5227 = vmul.f32 %v5163, %v5034
      %v5228 = vmul.f32 %v5164, %v4923
      %v5229 = vmul.f32 %v5165, %v4925
      %v5230 = vmul.f32 %v5166, %v5036
      %v5231 = vmul.f32 %v5167, %v5038
      %v5232 = vmul.f32 %v5168, %v4849
      %v5233 = vmul.f32 %v5169, %v4851
      %v5234 = vmul.f32 %v5170, %v4962
      %v5235 = vmul.f32 %v5171, %v4964
      %v5236 = vmul.f32 %v5172, %v4853
      %v5237 = vmul.f32 %v5173, %v4855
      %v5238 = vmul.f32 %v5174, %v4966
      %v5239 = vmul.f32 %v5175, %v4968
      %v5240 = vmul.f32 %v5176, %v4859
      %v5241 = vmul.f32 %v5177, %v4861
      %v5242 = vmul.f32 %v5178, %v4972
      %v5243 = vmul.f32 %v5179, %v4974
      %v5244 = vmul.f32 %v5180, %v4863
      %v5245 = vmul.f32 %v5181, %v4865
      %v5246 = vmul.f32 %v5182, %v4976
      %v5247 = vmul.f32 %v5183, %v4978
      %v5248 = vmul.f32 %v5184, %v4869
      %v5249 = vmul.f32 %v5185, %v4871
      %v5250 = vmul.f32 %v5186, %v4982
      %v5251 = vmul.f32 %v5187, %v4984
      %v5252 = vmul.f32 %v5188, %v4873
      %v5253 = vmul.f32 %v5189, %v4875
      %v5254 = vmul.f32 %v5190, %v4986
      %v5255 = vmul.f32 %v5191, %v4988
      %v5256 = vmul.f32 %v5192, %v4879
      %v5257 = vmul.f32 %v5193, %v4881
      %v5258 = vmul.f32 %v5194, %v4992
      %v5259 = vmul.f32 %v5195, %v4994
      %v5260 = vmul.f32 %v5196, %v4883
      %v5261 = vmul.f32 %v5197, %v4885
      %v5262 = vmul.f32 %v5198, %v4996
      %v5263 = vmul.f32 %v5199, %v4998
      %v5264 = vmul.f32 %v5200, %v4889
      %v5265 = vmul.f32 %v5201, %v4891
      %v5266 = vmul.f32 %v5202, %v5002
      %v5267 = vmul.f32 %v5203, %v5004
      %v5268 = vmul.f32 %v5204, %v4893
      %v5269 = vmul.f32 %v5205, %v4895
      %v5270 = vmul.f32 %v5206, %v5006
      %v5271 = vmul.f32 %v5207, %v5008
      %v5272 = vmul.f32 %v5208, %v4899
      %v5273 = vmul.f32 %v5209, %v4901
      %v5274 = vmul.f32 %v5210, %v5012
      %v5275 = vmul.f32 %v5211, %v5014
      %v5276 = vmul.f32 %v5212, %v4903
      %v5277 = vmul.f32 %v5213, %v4905
      %v5278 = vmul.f32 %v5214, %v5016
      %v5279 = vmul.f32 %v5215, %v5018
      %v5280 = vmul.f32 %v5216, %v4909
      %v5281 = vmul.f32 %v5217, %v4911
      %v5282 = vmul.f32 %v5218, %v5022
      %v5283 = vmul.f32 %v5219, %v5024
      %v5284 = vmul.f32 %v5220, %v4913
      %v5285 = vmul.f32 %v5221, %v4915
      %v5286 = vmul.f32 %v5222, %v5026
      %v5287 = vmul.f32 %v5223, %v5028
      %v5288 = vmul.f32 %v5224, %v4919
      %v5289 = vmul.f32 %v5225, %v4921
      %v5290 = vmul.f32 %v5226, %v5032
      %v5291 = vmul.f32 %v5227, %v5034
      %v5292 = vmul.f32 %v5228, %v4923
      %v5293 = vmul.f32 %v5229, %v4925
      %v5294 = vmul.f32 %v5230, %v5036
      %v5295 = vmul.f32 %v5231, %v5038
      %v5296 = vadd.f32 %v4849, %v5232
      %v5297 = vadd.f32 %v4851, %v5233
      %v5298 = vadd.f32 %v4962, %v5234
      %v5299 = vadd.f32 %v4964, %v5235
      %v5300 = vadd.f32 %v4853, %v5236
      %v5301 = vadd.f32 %v4855, %v5237
      %v5302 = vadd.f32 %v4966, %v5238
      %v5303 = vadd.f32 %v4968, %v5239
      %v5304 = vadd.f32 %v4859, %v5240
      %v5305 = vadd.f32 %v4861, %v5241
      %v5306 = vadd.f32 %v4972, %v5242
      %v5307 = vadd.f32 %v4974, %v5243
      %v5308 = vadd.f32 %v4863, %v5244
      %v5309 = vadd.f32 %v4865, %v5245
      %v5310 = vadd.f32 %v4976, %v5246
      %v5311 = vadd.f32 %v4978, %v5247
      %v5312 = vadd.f32 %v4869, %v5248
      %v5313 = vadd.f32 %v4871, %v5249
      %v5314 = vadd.f32 %v4982, %v5250
      %v5315 = vadd.f32 %v4984, %v5251
      %v5316 = vadd.f32 %v4873, %v5252
      %v5317 = vadd.f32 %v4875, %v5253
      %v5318 = vadd.f32 %v4986, %v5254
      %v5319 = vadd.f32 %v4988, %v5255
      %v5320 = vadd.f32 %v4879, %v5256
      %v5321 = vadd.f32 %v4881, %v5257
      %v5322 = vadd.f32 %v4992, %v5258
      %v5323 = vadd.f32 %v4994, %v5259
      %v5324 = vadd.f32 %v4883, %v5260
      %v5325 = vadd.f32 %v4885, %v5261
      %v5326 = vadd.f32 %v4996, %v5262
      %v5327 = vadd.f32 %v4998, %v5263
      %v5328 = vadd.f32 %v4889, %v5264
      %v5329 = vadd.f32 %v4891, %v5265
      %v5330 = vadd.f32 %v5002, %v5266
      %v5331 = vadd.f32 %v5004, %v5267
      %v5332 = vadd.f32 %v4893, %v5268
      %v5333 = vadd.f32 %v4895, %v5269
      %v5334 = vadd.f32 %v5006, %v5270
      %v5335 = vadd.f32 %v5008, %v5271
      %v5336 = vadd.f32 %v4899, %v5272
      %v5337 = vadd.f32 %v4901, %v5273
      %v5338 = vadd.f32 %v5012, %v5274
      %v5339 = vadd.f32 %v5014, %v5275
      %v5340 = vadd.f32 %v4903, %v5276
      %v5341 = vadd.f32 %v4905, %v5277
      %v5342 = vadd.f32 %v5016, %v5278
      %v5343 = vadd.f32 %v5018, %v5279
      %v5344 = vadd.f32 %v4909, %v5280
      %v5345 = vadd.f32 %v4911, %v5281
      %v5346 = vadd.f32 %v5022, %v5282
      %v5347 = vadd.f32 %v5024, %v5283
      %v5348 = vadd.f32 %v4913, %v5284
      %v5349 = vadd.f32 %v4915, %v5285
      %v5350 = vadd.f32 %v5026, %v5286
      %v5351 = vadd.f32 %v5028, %v5287
      %v5352 = vadd.f32 %v4919, %v5288
      %v5353 = vadd.f32 %v4921, %v5289
      %v5354 = vadd.f32 %v5032, %v5290
      %v5355 = vadd.f32 %v5034, %v5291
      %v5356 = vadd.f32 %v4923, %v5292
      %v5357 = vadd.f32 %v4925, %v5293
      %v5358 = vadd.f32 %v5036, %v5294
      %v5359 = vadd.f32 %v5038, %v5295
      %v5360 = vmul.f32 %v5296, 0.7978846
      %v5361 = vmul.f32 %v5297, 0.7978846
      %v5362 = vmul.f32 %v5298, 0.7978846
      %v5363 = vmul.f32 %v5299, 0.7978846
      %v5364 = vmul.f32 %v5300, 0.7978846
      %v5365 = vmul.f32 %v5301, 0.7978846
      %v5366 = vmul.f32 %v5302, 0.7978846
      %v5367 = vmul.f32 %v5303, 0.7978846
      %v5368 = vmul.f32 %v5304, 0.7978846
      %v5369 = vmul.f32 %v5305, 0.7978846
      %v5370 = vmul.f32 %v5306, 0.7978846
      %v5371 = vmul.f32 %v5307, 0.7978846
      %v5372 = vmul.f32 %v5308, 0.7978846
      %v5373 = vmul.f32 %v5309, 0.7978846
      %v5374 = vmul.f32 %v5310, 0.7978846
      %v5375 = vmul.f32 %v5311, 0.7978846
      %v5376 = vmul.f32 %v5312, 0.7978846
      %v5377 = vmul.f32 %v5313, 0.7978846
      %v5378 = vmul.f32 %v5314, 0.7978846
      %v5379 = vmul.f32 %v5315, 0.7978846
      %v5380 = vmul.f32 %v5316, 0.7978846
      %v5381 = vmul.f32 %v5317, 0.7978846
      %v5382 = vmul.f32 %v5318, 0.7978846
      %v5383 = vmul.f32 %v5319, 0.7978846
      %v5384 = vmul.f32 %v5320, 0.7978846
      %v5385 = vmul.f32 %v5321, 0.7978846
      %v5386 = vmul.f32 %v5322, 0.7978846
      %v5387 = vmul.f32 %v5323, 0.7978846
      %v5388 = vmul.f32 %v5324, 0.7978846
      %v5389 = vmul.f32 %v5325, 0.7978846
      %v5390 = vmul.f32 %v5326, 0.7978846
      %v5391 = vmul.f32 %v5327, 0.7978846
      %v5392 = vmul.f32 %v5328, 0.7978846
      %v5393 = vmul.f32 %v5329, 0.7978846
      %v5394 = vmul.f32 %v5330, 0.7978846
      %v5395 = vmul.f32 %v5331, 0.7978846
      %v5396 = vmul.f32 %v5332, 0.7978846
      %v5397 = vmul.f32 %v5333, 0.7978846
      %v5398 = vmul.f32 %v5334, 0.7978846
      %v5399 = vmul.f32 %v5335, 0.7978846
      %v5400 = vmul.f32 %v5336, 0.7978846
      %v5401 = vmul.f32 %v5337, 0.7978846
      %v5402 = vmul.f32 %v5338, 0.7978846
      %v5403 = vmul.f32 %v5339, 0.7978846
      %v5404 = vmul.f32 %v5340, 0.7978846
      %v5405 = vmul.f32 %v5341, 0.7978846
      %v5406 = vmul.f32 %v5342, 0.7978846
      %v5407 = vmul.f32 %v5343, 0.7978846
      %v5408 = vmul.f32 %v5344, 0.7978846
      %v5409 = vmul.f32 %v5345, 0.7978846
      %v5410 = vmul.f32 %v5346, 0.7978846
      %v5411 = vmul.f32 %v5347, 0.7978846
      %v5412 = vmul.f32 %v5348, 0.7978846
      %v5413 = vmul.f32 %v5349, 0.7978846
      %v5414 = vmul.f32 %v5350, 0.7978846
      %v5415 = vmul.f32 %v5351, 0.7978846
      %v5416 = vmul.f32 %v5352, 0.7978846
      %v5417 = vmul.f32 %v5353, 0.7978846
      %v5418 = vmul.f32 %v5354, 0.7978846
      %v5419 = vmul.f32 %v5355, 0.7978846
      %v5420 = vmul.f32 %v5356, 0.7978846
      %v5421 = vmul.f32 %v5357, 0.7978846
      %v5422 = vmul.f32 %v5358, 0.7978846
      %v5423 = vmul.f32 %v5359, 0.7978846
      %v5424 = vtanh.pop %v5360
      %v5425 = vtanh.pop %v5361
      %v5426 = vtanh.pop %v5362
      %v5427 = vtanh.pop %v5363
      %v5428 = vtanh.pop %v5364
      %v5429 = vtanh.pop %v5365
      %v5430 = vtanh.pop %v5366
      %v5431 = vtanh.pop %v5367
      %v5432 = vtanh.pop %v5368
      %v5433 = vtanh.pop %v5369
      %v5434 = vtanh.pop %v5370
      %v5435 = vtanh.pop %v5371
      %v5436 = vtanh.pop %v5372
      %v5437 = vtanh.pop %v5373
      %v5438 = vtanh.pop %v5374
      %v5439 = vtanh.pop %v5375
      %v5440 = vtanh.pop %v5376
      %v5441 = vtanh.pop %v5377
      %v5442 = vtanh.pop %v5378
      %v5443 = vtanh.pop %v5379
      %v5444 = vtanh.pop %v5380
      %v5445 = vtanh.pop %v5381
      %v5446 = vtanh.pop %v5382
      %v5447 = vtanh.pop %v5383
      %v5448 = vtanh.pop %v5384
      %v5449 = vtanh.pop %v5385
      %v5450 = vtanh.pop %v5386
      %v5451 = vtanh.pop %v5387
      %v5452 = vtanh.pop %v5388
      %v5453 = vtanh.pop %v5389
      %v5454 = vtanh.pop %v5390
      %v5455 = vtanh.pop %v5391
      %v5456 = vtanh.pop %v5392
      %v5457 = vtanh.pop %v5393
      %v5458 = vtanh.pop %v5394
      %v5459 = vtanh.pop %v5395
      %v5460 = vtanh.pop %v5396
      %v5461 = vtanh.pop %v5397
      %v5462 = vtanh.pop %v5398
      %v5463 = vtanh.pop %v5399
      %v5464 = vtanh.pop %v5400
      %v5465 = vtanh.pop %v5401
      %v5466 = vtanh.pop %v5402
      %v5467 = vtanh.pop %v5403
      %v5468 = vtanh.pop %v5404
      %v5469 = vtanh.pop %v5405
      %v5470 = vtanh.pop %v5406
      %v5471 = vtanh.pop %v5407
      %v5472 = vtanh.pop %v5408
      %v5473 = vtanh.pop %v5409
      %v5474 = vtanh.pop %v5410
      %v5475 = vtanh.pop %v5411
      %v5476 = vtanh.pop %v5412
      %v5477 = vtanh.pop %v5413
      %v5478 = vtanh.pop %v5414
      %v5479 = vtanh.pop %v5415
      %v5480 = vtanh.pop %v5416
      %v5481 = vtanh.pop %v5417
      %v5482 = vtanh.pop %v5418
      %v5483 = vtanh.pop %v5419
      %v5484 = vtanh.pop %v5420
      %v5485 = vtanh.pop %v5421
      %v5486 = vtanh.pop %v5422
      %v5487 = vtanh.pop %v5423
      %v5488 = vadd.f32 %v5424, 1.0
      %v5489 = vadd.f32 %v5425, 1.0
      %v5490 = vadd.f32 %v5426, 1.0
      %v5491 = vadd.f32 %v5427, 1.0
      %v5492 = vadd.f32 %v5428, 1.0
      %v5493 = vadd.f32 %v5429, 1.0
      %v5494 = vadd.f32 %v5430, 1.0
      %v5495 = vadd.f32 %v5431, 1.0
      %v5496 = vadd.f32 %v5432, 1.0
      %v5497 = vadd.f32 %v5433, 1.0
      %v5498 = vadd.f32 %v5434, 1.0
      %v5499 = vadd.f32 %v5435, 1.0
      %v5500 = vadd.f32 %v5436, 1.0
      %v5501 = vadd.f32 %v5437, 1.0
      %v5502 = vadd.f32 %v5438, 1.0
      %v5503 = vadd.f32 %v5439, 1.0
      %v5504 = vadd.f32 %v5440, 1.0
      %v5505 = vadd.f32 %v5441, 1.0
      %v5506 = vadd.f32 %v5442, 1.0
      %v5507 = vadd.f32 %v5443, 1.0
      %v5508 = vadd.f32 %v5444, 1.0
      %v5509 = vadd.f32 %v5445, 1.0
      %v5510 = vadd.f32 %v5446, 1.0
      %v5511 = vadd.f32 %v5447, 1.0
      %v5512 = vadd.f32 %v5448, 1.0
      %v5513 = vadd.f32 %v5449, 1.0
      %v5514 = vadd.f32 %v5450, 1.0
      %v5515 = vadd.f32 %v5451, 1.0
      %v5516 = vadd.f32 %v5452, 1.0
      %v5517 = vadd.f32 %v5453, 1.0
      %v5518 = vadd.f32 %v5454, 1.0
      %v5519 = vadd.f32 %v5455, 1.0
      %v5520 = vadd.f32 %v5456, 1.0
      %v5521 = vadd.f32 %v5457, 1.0
      %v5522 = vadd.f32 %v5458, 1.0
      %v5523 = vadd.f32 %v5459, 1.0
      %v5524 = vadd.f32 %v5460, 1.0
      %v5525 = vadd.f32 %v5461, 1.0
      %v5526 = vadd.f32 %v5462, 1.0
      %v5527 = vadd.f32 %v5463, 1.0
      %v5528 = vadd.f32 %v5464, 1.0
      %v5529 = vadd.f32 %v5465, 1.0
      %v5530 = vadd.f32 %v5466, 1.0
      %v5531 = vadd.f32 %v5467, 1.0
      %v5532 = vadd.f32 %v5468, 1.0
      %v5533 = vadd.f32 %v5469, 1.0
      %v5534 = vadd.f32 %v5470, 1.0
      %v5535 = vadd.f32 %v5471, 1.0
      %v5536 = vadd.f32 %v5472, 1.0
      %v5537 = vadd.f32 %v5473, 1.0
      %v5538 = vadd.f32 %v5474, 1.0
      %v5539 = vadd.f32 %v5475, 1.0
      %v5540 = vadd.f32 %v5476, 1.0
      %v5541 = vadd.f32 %v5477, 1.0
      %v5542 = vadd.f32 %v5478, 1.0
      %v5543 = vadd.f32 %v5479, 1.0
      %v5544 = vadd.f32 %v5480, 1.0
      %v5545 = vadd.f32 %v5481, 1.0
      %v5546 = vadd.f32 %v5482, 1.0
      %v5547 = vadd.f32 %v5483, 1.0
      %v5548 = vadd.f32 %v5484, 1.0
      %v5549 = vadd.f32 %v5485, 1.0
      %v5550 = vadd.f32 %v5486, 1.0
      %v5551 = vadd.f32 %v5487, 1.0
      %v5552 = vmul.f32 %v5040, %v5488
      %v5553 = vmul.f32 %v5041, %v5489
      %v5554 = vmul.f32 %v5042, %v5490
      %v5555 = vmul.f32 %v5043, %v5491
      %v5556 = vmul.f32 %v5044, %v5492
      %v5557 = vmul.f32 %v5045, %v5493
      %v5558 = vmul.f32 %v5046, %v5494
      %v5559 = vmul.f32 %v5047, %v5495
      %v5560 = vmul.f32 %v5048, %v5496
      %v5561 = vmul.f32 %v5049, %v5497
      %v5562 = vmul.f32 %v5050, %v5498
      %v5563 = vmul.f32 %v5051, %v5499
      %v5564 = vmul.f32 %v5052, %v5500
      %v5565 = vmul.f32 %v5053, %v5501
      %v5566 = vmul.f32 %v5054, %v5502
      %v5567 = vmul.f32 %v5055, %v5503
      %v5568 = vmul.f32 %v5056, %v5504
      %v5569 = vmul.f32 %v5057, %v5505
      %v5570 = vmul.f32 %v5058, %v5506
      %v5571 = vmul.f32 %v5059, %v5507
      %v5572 = vmul.f32 %v5060, %v5508
      %v5573 = vmul.f32 %v5061, %v5509
      %v5574 = vmul.f32 %v5062, %v5510
      %v5575 = vmul.f32 %v5063, %v5511
      %v5576 = vmul.f32 %v5064, %v5512
      %v5577 = vmul.f32 %v5065, %v5513
      %v5578 = vmul.f32 %v5066, %v5514
      %v5579 = vmul.f32 %v5067, %v5515
      %v5580 = vmul.f32 %v5068, %v5516
      %v5581 = vmul.f32 %v5069, %v5517
      %v5582 = vmul.f32 %v5070, %v5518
      %v5583 = vmul.f32 %v5071, %v5519
      %v5584 = vmul.f32 %v5072, %v5520
      %v5585 = vmul.f32 %v5073, %v5521
      %v5586 = vmul.f32 %v5074, %v5522
      %v5587 = vmul.f32 %v5075, %v5523
      %v5588 = vmul.f32 %v5076, %v5524
      %v5589 = vmul.f32 %v5077, %v5525
      %v5590 = vmul.f32 %v5078, %v5526
      %v5591 = vmul.f32 %v5079, %v5527
      %v5592 = vmul.f32 %v5080, %v5528
      %v5593 = vmul.f32 %v5081, %v5529
      %v5594 = vmul.f32 %v5082, %v5530
      %v5595 = vmul.f32 %v5083, %v5531
      %v5596 = vmul.f32 %v5084, %v5532
      %v5597 = vmul.f32 %v5085, %v5533
      %v5598 = vmul.f32 %v5086, %v5534
      %v5599 = vmul.f32 %v5087, %v5535
      %v5600 = vmul.f32 %v5088, %v5536
      %v5601 = vmul.f32 %v5089, %v5537
      %v5602 = vmul.f32 %v5090, %v5538
      %v5603 = vmul.f32 %v5091, %v5539
      %v5604 = vmul.f32 %v5092, %v5540
      %v5605 = vmul.f32 %v5093, %v5541
      %v5606 = vmul.f32 %v5094, %v5542
      %v5607 = vmul.f32 %v5095, %v5543
      %v5608 = vmul.f32 %v5096, %v5544
      %v5609 = vmul.f32 %v5097, %v5545
      %v5610 = vmul.f32 %v5098, %v5546
      %v5611 = vmul.f32 %v5099, %v5547
      %v5612 = vmul.f32 %v5100, %v5548
      %v5613 = vmul.f32 %v5101, %v5549
      %v5614 = vmul.f32 %v5102, %v5550
      %v5615 = vmul.f32 %v5103, %v5551
      %v5616 = vpack.c.bf16 %v5556, %v5552
      %v5617 = vpack.c.bf16 %v5557, %v5553
      %v5618 = vpack.c.bf16 %v5558, %v5554
      %v5619 = vpack.c.bf16 %v5559, %v5555
      %v5620 = vpack.c.bf16 %v5564, %v5560
      %v5621 = vpack.c.bf16 %v5565, %v5561
      %v5622 = vpack.c.bf16 %v5566, %v5562
      %v5623 = vpack.c.bf16 %v5567, %v5563
      %v5624 = vpack.c.bf16 %v5572, %v5568
      %v5625 = vpack.c.bf16 %v5573, %v5569
      %v5626 = vpack.c.bf16 %v5574, %v5570
      %v5627 = vpack.c.bf16 %v5575, %v5571
      %v5628 = vpack.c.bf16 %v5580, %v5576
      %v5629 = vpack.c.bf16 %v5581, %v5577
      %v5630 = vpack.c.bf16 %v5582, %v5578
      %v5631 = vpack.c.bf16 %v5583, %v5579
      %v5632 = vpack.c.bf16 %v5588, %v5584
      %v5633 = vpack.c.bf16 %v5589, %v5585
      %v5634 = vpack.c.bf16 %v5590, %v5586
      %v5635 = vpack.c.bf16 %v5591, %v5587
      %v5636 = vpack.c.bf16 %v5596, %v5592
      %v5637 = vpack.c.bf16 %v5597, %v5593
      %v5638 = vpack.c.bf16 %v5598, %v5594
      %v5639 = vpack.c.bf16 %v5599, %v5595
      %v5640 = vpack.c.bf16 %v5604, %v5600
      %v5641 = vpack.c.bf16 %v5605, %v5601
      %v5642 = vpack.c.bf16 %v5606, %v5602
      %v5643 = vpack.c.bf16 %v5607, %v5603
      %v5644 = vpack.c.bf16 %v5612, %v5608
      %v5645 = vpack.c.bf16 %v5613, %v5609
      %v5646 = vpack.c.bf16 %v5614, %v5610
      %v5647 = vpack.c.bf16 %v5615, %v5611
      %v5712 = vunpack.c.l.b16 %v915
      %v5713 = vunpack.c.l.b16 %v916
      %v5714 = vunpack.c.l.b16 %v917
      %v5715 = vunpack.c.l.b16 %v918
      %v5716 = vunpack.c.l.b16 %v919
      %v5717 = vunpack.c.l.b16 %v920
      %v5718 = vunpack.c.l.b16 %v921
      %v5719 = vunpack.c.l.b16 %v922
      %v5720 = vunpack.c.l.b16 %v923
      %v5721 = vunpack.c.l.b16 %v924
      %v5722 = vunpack.c.l.b16 %v925
      %v5723 = vunpack.c.l.b16 %v926
      %v5724 = vunpack.c.l.b16 %v927
      %v5725 = vunpack.c.l.b16 %v928
      %v5726 = vunpack.c.l.b16 %v929
      %v5727 = vunpack.c.l.b16 %v930
      %v5728 = vunpack.c.l.b16 %v931
      %v5729 = vunpack.c.l.b16 %v932
      %v5730 = vunpack.c.l.b16 %v933
      %v5731 = vunpack.c.l.b16 %v934
      %v5732 = vunpack.c.l.b16 %v935
      %v5733 = vunpack.c.l.b16 %v936
      %v5734 = vunpack.c.l.b16 %v937
      %v5735 = vunpack.c.l.b16 %v938
      %v5736 = vunpack.c.l.b16 %v939
      %v5737 = vunpack.c.l.b16 %v940
      %v5738 = vunpack.c.l.b16 %v941
      %v5739 = vunpack.c.l.b16 %v942
      %v5740 = vunpack.c.l.b16 %v943
      %v5741 = vunpack.c.l.b16 %v944
      %v5742 = vunpack.c.l.b16 %v945
      %v5743 = vunpack.c.l.b16 %v946
      %v5744 = vunpack.c.l.b16 %v947
      %v5745 = vunpack.c.l.b16 %v948
      %v5746 = vunpack.c.l.b16 %v949
      %v5747 = vunpack.c.l.b16 %v950
      %v5748 = vunpack.c.l.b16 %v951
      %v5749 = vunpack.c.l.b16 %v952
      %v5750 = vunpack.c.l.b16 %v953
      %v5751 = vunpack.c.l.b16 %v954
      %v5752 = vunpack.c.l.b16 %v955
      %v5753 = vunpack.c.l.b16 %v956
      %v5754 = vunpack.c.l.b16 %v957
      %v5755 = vunpack.c.l.b16 %v958
      %v5756 = vunpack.c.l.b16 %v959
      %v5757 = vunpack.c.l.b16 %v960
      %v5758 = vunpack.c.l.b16 %v961
      %v5759 = vunpack.c.l.b16 %v962
      %v5760 = vunpack.c.l.b16 %v963
      %v5761 = vunpack.c.l.b16 %v964
      %v5762 = vunpack.c.l.b16 %v965
      %v5763 = vunpack.c.l.b16 %v966
      %v5764 = vunpack.c.l.b16 %v967
      %v5765 = vunpack.c.l.b16 %v968
      %v5766 = vunpack.c.l.b16 %v969
      %v5767 = vunpack.c.l.b16 %v970
      %v5768 = vunpack.c.l.b16 %v971
      %v5769 = vunpack.c.l.b16 %v972
      %v5770 = vunpack.c.l.b16 %v973
      %v5771 = vunpack.c.l.b16 %v974
      %v5772 = vunpack.c.l.b16 %v975
      %v5773 = vunpack.c.l.b16 %v976
      %v5774 = vunpack.c.l.b16 %v977
      %v5775 = vunpack.c.l.b16 %v978
      %v5776 = vpack.c.b16 %v5713, %v5712
      %v5777 = vpack.c.b16 %v5715, %v5714
      %v5778 = vpack.c.b16 %v5717, %v5716
      %v5779 = vpack.c.b16 %v5719, %v5718
      %v5780 = vpack.c.b16 %v5721, %v5720
      %v5781 = vpack.c.b16 %v5723, %v5722
      %v5782 = vpack.c.b16 %v5725, %v5724
      %v5783 = vpack.c.b16 %v5727, %v5726
      %v5784 = vpack.c.b16 %v5729, %v5728
      %v5785 = vpack.c.b16 %v5731, %v5730
      %v5786 = vpack.c.b16 %v5733, %v5732
      %v5787 = vpack.c.b16 %v5735, %v5734
      %v5788 = vpack.c.b16 %v5737, %v5736
      %v5789 = vpack.c.b16 %v5739, %v5738
      %v5790 = vpack.c.b16 %v5741, %v5740
      %v5791 = vpack.c.b16 %v5743, %v5742
      %v5792 = vpack.c.b16 %v5745, %v5744
      %v5793 = vpack.c.b16 %v5747, %v5746
      %v5794 = vpack.c.b16 %v5749, %v5748
      %v5795 = vpack.c.b16 %v5751, %v5750
      %v5796 = vpack.c.b16 %v5753, %v5752
      %v5797 = vpack.c.b16 %v5755, %v5754
      %v5798 = vpack.c.b16 %v5757, %v5756
      %v5799 = vpack.c.b16 %v5759, %v5758
      %v5800 = vpack.c.b16 %v5761, %v5760
      %v5801 = vpack.c.b16 %v5763, %v5762
      %v5802 = vpack.c.b16 %v5765, %v5764
      %v5803 = vpack.c.b16 %v5767, %v5766
      %v5804 = vpack.c.b16 %v5769, %v5768
      %v5805 = vpack.c.b16 %v5771, %v5770
      %v5806 = vpack.c.b16 %v5773, %v5772
      %v5807 = vpack.c.b16 %v5775, %v5774
      %5840 = vmatprep.subr.bf16.mxu0 0
      %5841 = vmatpush1.bf16.msra.mxu0 %v5776
      %5842 = vmatprep.subr.bf16.mxu0 0
      %5843 = vmatpush1.bf16.msra.mxu0 %v5777
      %5844 = vmatprep.subr.bf16.mxu0 0
      %5845 = vmatpush1.bf16.msra.mxu0 %v5778
      %5846 = vmatprep.subr.bf16.mxu0 0
      %5847 = vmatpush1.bf16.msra.mxu0 %v5779
      %5848 = vmatprep.subr.bf16.mxu0 0
      %5849 = vmatpush1.bf16.msra.mxu0 %v5780
      %5850 = vmatprep.subr.bf16.mxu0 0
      %5851 = vmatpush1.bf16.msra.mxu0 %v5781
      %5852 = vmatprep.subr.bf16.mxu0 0
      %5853 = vmatpush1.bf16.msra.mxu0 %v5782
      %5854 = vmatprep.subr.bf16.mxu0 0
      %5855 = vmatpush1.bf16.msra.mxu0 %v5783
      %5856 = vmatprep.subr.bf16.mxu0 0
      %5857 = vmatpush1.bf16.msra.mxu0 %v5784
      %5858 = vmatprep.subr.bf16.mxu0 0
      %5859 = vmatpush1.bf16.msra.mxu0 %v5785
      %5860 = vmatprep.subr.bf16.mxu0 0
      %5861 = vmatpush1.bf16.msra.mxu0 %v5786
      %5862 = vmatprep.subr.bf16.mxu0 0
      %5863 = vmatpush1.bf16.msra.mxu0 %v5787
      %5864 = vmatprep.subr.bf16.mxu0 0
      %5865 = vmatpush1.bf16.msra.mxu0 %v5788
      %5866 = vmatprep.subr.bf16.mxu0 0
      %5867 = vmatpush1.bf16.msra.mxu0 %v5789
      %5868 = vmatprep.subr.bf16.mxu0 0
      %5869 = vmatpush1.bf16.msra.mxu0 %v5790
      %5870 = vmatprep.subr.bf16.mxu0 0
      %5871 = vmatpush1.bf16.msra.mxu0 %v5791
      %5872 = vmatprep.mubr.bf16.mxu0 %v5617
      %5873 = vmatmul.mubr.bf16.gmra.mrb[0].mxu0 %v5616
      %v5874 = vpop.f32.mrb[0].mxu0
      %v5875 = vadd.f32 0.0, %v5874
      %v5876 = vpop.f32.mrb[0].mxu0
      %v5877 = vpop.f32.mrb[0].mxu0
      %v5878 = vadd.f32 0.0, %v5877
      %v5879 = vpop.f32.mrb[0].mxu0
      %5880 = vmatprep.mubr.bf16.mxu0 %v5621
      %5881 = vmatmul.mubr.bf16.gmra.mrb[0].mxu0 %v5620
      %v5882 = vpop.f32.mrb[0].mxu0
      %v5883 = vadd.f32 0.0, %v5882
      %v5884 = vpop.f32.mrb[0].mxu0
      %v5885 = vpop.f32.mrb[0].mxu0
      %v5886 = vadd.f32 0.0, %v5885
      %v5887 = vpop.f32.mrb[0].mxu0
      %5888 = vmatprep.mubr.bf16.mxu0 %v5625
      %5889 = vmatmul.mubr.bf16.gmra.mrb[0].mxu0 %v5624
      %v5890 = vpop.f32.mrb[0].mxu0
      %v5891 = vadd.f32 0.0, %v5890
      %v5892 = vpop.f32.mrb[0].mxu0
      %v5893 = vpop.f32.mrb[0].mxu0
      %v5894 = vadd.f32 0.0, %v5893
      %v5895 = vpop.f32.mrb[0].mxu0
      %5896 = vmatprep.mubr.bf16.mxu0 %v5629
      %5897 = vmatmul.mubr.bf16.gmra.mrb[0].mxu0 %v5628
      %v5898 = vpop.f32.mrb[0].mxu0
      %v5899 = vadd.f32 0.0, %v5898
      %v5900 = vpop.f32.mrb[0].mxu0
      %v5901 = vpop.f32.mrb[0].mxu0
      %v5902 = vadd.f32 0.0, %v5901
      %v5903 = vpop.f32.mrb[0].mxu0
      %5904 = vmatprep.mubr.bf16.mxu0 %v5633
      %5905 = vmatmul.mubr.bf16.gmra.mrb[0].mxu0 %v5632
      %v5906 = vpop.f32.mrb[0].mxu0
      %v5907 = vadd.f32 0.0, %v5906
      %v5908 = vpop.f32.mrb[0].mxu0
      %v5909 = vpop.f32.mrb[0].mxu0
      %v5910 = vadd.f32 0.0, %v5909
      %v5911 = vpop.f32.mrb[0].mxu0
      %5912 = vmatprep.mubr.bf16.mxu0 %v5637
      %5913 = vmatmul.mubr.bf16.gmra.mrb[0].mxu0 %v5636
      %v5914 = vpop.f32.mrb[0].mxu0
      %v5915 = vadd.f32 0.0, %v5914
      %v5916 = vpop.f32.mrb[0].mxu0
      %v5917 = vpop.f32.mrb[0].mxu0
      %v5918 = vadd.f32 0.0, %v5917
      %v5919 = vpop.f32.mrb[0].mxu0
      %5920 = vmatprep.mubr.bf16.mxu0 %v5641
      %5921 = vmatmul.mubr.bf16.gmra.mrb[0].mxu0 %v5640
      %v5922 = vpop.f32.mrb[0].mxu0
      %v5923 = vadd.f32 0.0, %v5922
      %v5924 = vpop.f32.mrb[0].mxu0
      %v5925 = vpop.f32.mrb[0].mxu0
      %v5926 = vadd.f32 0.0, %v5925
      %v5927 = vpop.f32.mrb[0].mxu0
      %5928 = vmatprep.mubr.bf16.mxu0 %v5645
      %5929 = vmatmul.mubr.bf16.gmra.mrb[0].mxu0 %v5644
      %v5930 = vpop.f32.mrb[0].mxu0
      %v5931 = vadd.f32 0.0, %v5930
      %v5932 = vpop.f32.mrb[0].mxu0
      %v5933 = vpop.f32.mrb[0].mxu0
      %v5934 = vadd.f32 0.0, %v5933
      %v5935 = vpop.f32.mrb[0].mxu0
      %5936 = vdwg.mxu0
      %5937 = vmatprep.subr.bf16.mxu0 0
      %5938 = vmatpush1.bf16.msra.mxu0 %v5792
      %5939 = vmatprep.subr.bf16.mxu0 0
      %5940 = vmatpush1.bf16.msra.mxu0 %v5793
      %5941 = vmatprep.subr.bf16.mxu0 0
      %5942 = vmatpush1.bf16.msra.mxu0 %v5794
      %5943 = vmatprep.subr.bf16.mxu0 0
      %5944 = vmatpush1.bf16.msra.mxu0 %v5795
      %5945 = vmatprep.subr.bf16.mxu0 0
      %5946 = vmatpush1.bf16.msra.mxu0 %v5796
      %5947 = vmatprep.subr.bf16.mxu0 0
      %5948 = vmatpush1.bf16.msra.mxu0 %v5797
      %5949 = vmatprep.subr.bf16.mxu0 0
      %5950 = vmatpush1.bf16.msra.mxu0 %v5798
      %5951 = vmatprep.subr.bf16.mxu0 0
      %5952 = vmatpush1.bf16.msra.mxu0 %v5799
      %5953 = vmatprep.subr.bf16.mxu0 0
      %5954 = vmatpush1.bf16.msra.mxu0 %v5800
      %5955 = vmatprep.subr.bf16.mxu0 0
      %5956 = vmatpush1.bf16.msra.mxu0 %v5801
      %5957 = vmatprep.subr.bf16.mxu0 0
      %5958 = vmatpush1.bf16.msra.mxu0 %v5802
      %5959 = vmatprep.subr.bf16.mxu0 0
      %5960 = vmatpush1.bf16.msra.mxu0 %v5803
      %5961 = vmatprep.subr.bf16.mxu0 0
      %5962 = vmatpush1.bf16.msra.mxu0 %v5804
      %5963 = vmatprep.subr.bf16.mxu0 0
      %5964 = vmatpush1.bf16.msra.mxu0 %v5805
      %5965 = vmatprep.subr.bf16.mxu0 0
      %5966 = vmatpush1.bf16.msra.mxu0 %v5806
      %5967 = vmatprep.subr.bf16.mxu0 0
      %5968 = vmatpush1.bf16.msra.mxu0 %v5807
      %5969 = vmatprep.mubr.bf16.mxu0 %v5619
      %5970 = vmatmul.mubr.bf16.gmra.mrb[0].mxu0 %v5618
      %v5971 = vpop.f32.mrb[0].mxu0
      %v5972 = vadd.f32 %v5875, %v5971
      %v5973 = vpop.f32.mrb[0].mxu0
      %v5974 = vpop.f32.mrb[0].mxu0
      %v5975 = vadd.f32 %v5878, %v5974
      %v5976 = vpop.f32.mrb[0].mxu0
      %5977 = vmatprep.mubr.bf16.mxu0 %v5623
      %5978 = vmatmul.mubr.bf16.gmra.mrb[0].mxu0 %v5622
      %v5979 = vpop.f32.mrb[0].mxu0
      %v5980 = vadd.f32 %v5883, %v5979
      %v5981 = vpop.f32.mrb[0].mxu0
      %v5982 = vpop.f32.mrb[0].mxu0
      %v5983 = vadd.f32 %v5886, %v5982
      %v5984 = vpop.f32.mrb[0].mxu0
      %5985 = vmatprep.mubr.bf16.mxu0 %v5627
      %5986 = vmatmul.mubr.bf16.gmra.mrb[0].mxu0 %v5626
      %v5987 = vpop.f32.mrb[0].mxu0
      %v5988 = vadd.f32 %v5891, %v5987
      %v5989 = vpop.f32.mrb[0].mxu0
      %v5990 = vpop.f32.mrb[0].mxu0
      %v5991 = vadd.f32 %v5894, %v5990
      %v5992 = vpop.f32.mrb[0].mxu0
      %5993 = vmatprep.mubr.bf16.mxu0 %v5631
      %5994 = vmatmul.mubr.bf16.gmra.mrb[0].mxu0 %v5630
      %v5995 = vpop.f32.mrb[0].mxu0
      %v5996 = vadd.f32 %v5899, %v5995
      %v5997 = vpop.f32.mrb[0].mxu0
      %v5998 = vpop.f32.mrb[0].mxu0
      %v5999 = vadd.f32 %v5902, %v5998
      %v6000 = vpop.f32.mrb[0].mxu0
      %6001 = vmatprep.mubr.bf16.mxu0 %v5635
      %6002 = vmatmul.mubr.bf16.gmra.mrb[0].mxu0 %v5634
      %v6003 = vpop.f32.mrb[0].mxu0
      %v6004 = vadd.f32 %v5907, %v6003
      %v6005 = vpop.f32.mrb[0].mxu0
      %v6006 = vpop.f32.mrb[0].mxu0
      %v6007 = vadd.f32 %v5910, %v6006
      %v6008 = vpop.f32.mrb[0].mxu0
      %6009 = vmatprep.mubr.bf16.mxu0 %v5639
      %6010 = vmatmul.mubr.bf16.gmra.mrb[0].mxu0 %v5638
      %v6011 = vpop.f32.mrb[0].mxu0
      %v6012 = vadd.f32 %v5915, %v6011
      %v6013 = vpop.f32.mrb[0].mxu0
      %v6014 = vpop.f32.mrb[0].mxu0
      %v6015 = vadd.f32 %v5918, %v6014
      %v6016 = vpop.f32.mrb[0].mxu0
      %6017 = vmatprep.mubr.bf16.mxu0 %v5643
      %6018 = vmatmul.mubr.bf16.gmra.mrb[0].mxu0 %v5642
      %v6019 = vpop.f32.mrb[0].mxu0
      %v6020 = vadd.f32 %v5923, %v6019
      %v6021 = vpop.f32.mrb[0].mxu0
      %v6022 = vpop.f32.mrb[0].mxu0
      %v6023 = vadd.f32 %v5926, %v6022
      %v6024 = vpop.f32.mrb[0].mxu0
      %6025 = vmatprep.mubr.bf16.mxu0 %v5647
      %6026 = vmatmul.mubr.bf16.gmra.mrb[0].mxu0 %v5646
      %v6027 = vpop.f32.mrb[0].mxu0
      %v6028 = vadd.f32 %v5931, %v6027
      %v6029 = vpop.f32.mrb[0].mxu0
      %v6030 = vpop.f32.mrb[0].mxu0
      %v6031 = vadd.f32 %v5934, %v6030
      %v6032 = vpop.f32.mrb[0].mxu0
      %6033 = vdwg.mxu0
      %v6034 = vadd.f32 %v4389, %v5972
      %v6035 = vadd.f32 %v4390, %v5975
      %v6036 = vadd.f32 %v4391, %v5980
      %v6037 = vadd.f32 %v4392, %v5983
      %v6038 = vadd.f32 %v4393, %v5988
      %v6039 = vadd.f32 %v4394, %v5991
      %v6040 = vadd.f32 %v4395, %v5996
      %v6041 = vadd.f32 %v4396, %v5999
      %v6042 = vadd.f32 %v4397, %v6004
      %v6043 = vadd.f32 %v4398, %v6007
      %v6044 = vadd.f32 %v4399, %v6012
      %v6045 = vadd.f32 %v4400, %v6015
      %v6046 = vadd.f32 %v4401, %v6020
      %v6047 = vadd.f32 %v4402, %v6023
      %v6048 = vadd.f32 %v4403, %v6028
      %v6049 = vadd.f32 %v4404, %v6031
      %v6051 = vlaneseq
      %v6052 = vshrl.u32 %v6051, 7
      %v6053 = vsub.s32 0, %v6052
      %v6054 = vrot.slane %v979, %v6053
      %v6056 = vadd.f32 %v6034, %v6054
      %v6057 = vadd.f32 %v6035, %v6054
      %v6058 = vadd.f32 %v6036, %v6054
      %v6059 = vadd.f32 %v6037, %v6054
      %v6060 = vadd.f32 %v6038, %v6054
      %v6061 = vadd.f32 %v6039, %v6054
      %v6062 = vadd.f32 %v6040, %v6054
      %v6063 = vadd.f32 %v6041, %v6054
      %v6064 = vadd.f32 %v6042, %v6054
      %v6065 = vadd.f32 %v6043, %v6054
      %v6066 = vadd.f32 %v6044, %v6054
      %v6067 = vadd.f32 %v6045, %v6054
      %v6068 = vadd.f32 %v6046, %v6054
      %v6069 = vadd.f32 %v6047, %v6054
      %v6070 = vadd.f32 %v6048, %v6054
      %v6071 = vadd.f32 %v6049, %v6054
      %6072 = vst [vmem:[#allocation2] sm:$0xff] %v6056
      %6073 = vst [vmem:[#allocation2 + $0x8] sm:$0xff] %v6057
      %6074 = vst [vmem:[#allocation2 + $0x10] sm:$0xff] %v6058
      %6075 = vst [vmem:[#allocation2 + $0x18] sm:$0xff] %v6059
      %6076 = vst [vmem:[#allocation2 + $0x20] sm:$0xff] %v6060
      %6077 = vst [vmem:[#allocation2 + $0x28] sm:$0xff] %v6061
      %6078 = vst [vmem:[#allocation2 + $0x30] sm:$0xff] %v6062
      %6079 = vst [vmem:[#allocation2 + $0x38] sm:$0xff] %v6063
      %6080 = vst [vmem:[#allocation2 + $0x40] sm:$0xff] %v6064
      %6081 = vst [vmem:[#allocation2 + $0x48] sm:$0xff] %v6065
      %6082 = vst [vmem:[#allocation2 + $0x50] sm:$0xff] %v6066
      %6083 = vst [vmem:[#allocation2 + $0x58] sm:$0xff] %v6067
      %6084 = vst [vmem:[#allocation2 + $0x60] sm:$0xff] %v6068
      %6085 = vst [vmem:[#allocation2 + $0x68] sm:$0xff] %v6069
      %6086 = vst [vmem:[#allocation2 + $0x70] sm:$0xff] %v6070
      %6087 = vst [vmem:[#allocation2 + $0x78] sm:$0xff] %v6071
      %p6088 = scmp.eq.s32.totalorder %s33, 1
      // Predicated region
      $region93: #{_lambda_.1} parent=87 // pred_check
        %p6089 = pneg %p6088
      $region94: #{_lambda_.1} parent=87 // pred_check_branch
        %6091 = sbr.rel (%p6089) target = $region96
      $region95: #{_lambda_.1} parent=87 // pred_region
        %v6092 = vld [vmem:[%s14] sm:$0x1]
        %v6093 = vld [vmem:[%s15] sm:$0x1]
        %v6094 = vld [vmem:[%s16] sm:$0xf]
        %v6095 = vld [vmem:[%s16 + $0x4] sm:$0xf]
        %v6096 = vld [vmem:[%s16 + $0x8] sm:$0xf]
        %v6097 = vld [vmem:[%s16 + $0xc] sm:$0xf]
        %v6098 = vld [vmem:[%s16 + $0x10] sm:$0xf]
        %v6099 = vld [vmem:[%s16 + $0x14] sm:$0xf]
        %v6100 = vld [vmem:[%s16 + $0x18] sm:$0xf]
        %v6101 = vld [vmem:[%s16 + $0x1c] sm:$0xf]
        %v6102 = vld [vmem:[%s16 + $0x20] sm:$0xf]
        %v6103 = vld [vmem:[%s16 + $0x24] sm:$0xf]
        %v6104 = vld [vmem:[%s16 + $0x28] sm:$0xf]
        %v6105 = vld [vmem:[%s16 + $0x2c] sm:$0xf]
        %v6106 = vld [vmem:[%s16 + $0x30] sm:$0xf]
        %v6107 = vld [vmem:[%s16 + $0x34] sm:$0xf]
        %v6108 = vld [vmem:[%s16 + $0x38] sm:$0xf]
        %v6109 = vld [vmem:[%s16 + $0x3c] sm:$0xf]
        %6110 = vadd.xlane.f32.xlu0 %v6056
        %v6111 = vpop.xlane.xlu0 %6110
        %6112 = vadd.xlane.f32.xlu0 %v6057
        %v6113 = vpop.xlane.xlu0 %6112
        %6114 = vadd.xlane.f32.xlu0 %v6058
        %v6115 = vpop.xlane.xlu0 %6114
        %6116 = vadd.xlane.f32.xlu0 %v6059
        %v6117 = vpop.xlane.xlu0 %6116
        %6118 = vadd.xlane.f32.xlu0 %v6060
        %v6119 = vpop.xlane.xlu0 %6118
        %6120 = vadd.xlane.f32.xlu0 %v6061
        %v6121 = vpop.xlane.xlu0 %6120
        %6122 = vadd.xlane.f32.xlu0 %v6062
        %v6123 = vpop.xlane.xlu0 %6122
        %6124 = vadd.xlane.f32.xlu0 %v6063
        %v6125 = vpop.xlane.xlu0 %6124
        %6126 = vadd.xlane.f32.xlu0 %v6064
        %v6127 = vpop.xlane.xlu0 %6126
        %6128 = vadd.xlane.f32.xlu0 %v6065
        %v6129 = vpop.xlane.xlu0 %6128
        %6130 = vadd.xlane.f32.xlu0 %v6066
        %v6131 = vpop.xlane.xlu0 %6130
        %6132 = vadd.xlane.f32.xlu0 %v6067
        %v6133 = vpop.xlane.xlu0 %6132
        %6134 = vadd.xlane.f32.xlu0 %v6068
        %v6135 = vpop.xlane.xlu0 %6134
        %6136 = vadd.xlane.f32.xlu0 %v6069
        %v6137 = vpop.xlane.xlu0 %6136
        %6138 = vadd.xlane.f32.xlu0 %v6070
        %v6139 = vpop.xlane.xlu0 %6138
        %6140 = vadd.xlane.f32.xlu0 %v6071
        %v6141 = vpop.xlane.xlu0 %6140
        %v6142 = vmul.f32 %v6111, %v1012
        %v6143 = vmul.f32 %v6113, %v1012
        %v6144 = vmul.f32 %v6115, %v1012
        %v6145 = vmul.f32 %v6117, %v1012
        %v6146 = vmul.f32 %v6119, %v1012
        %v6147 = vmul.f32 %v6121, %v1012
        %v6148 = vmul.f32 %v6123, %v1012
        %v6149 = vmul.f32 %v6125, %v1012
        %v6150 = vmul.f32 %v6127, %v1012
        %v6151 = vmul.f32 %v6129, %v1012
        %v6152 = vmul.f32 %v6131, %v1012
        %v6153 = vmul.f32 %v6133, %v1012
        %v6154 = vmul.f32 %v6135, %v1012
        %v6155 = vmul.f32 %v6137, %v1012
        %v6156 = vmul.f32 %v6139, %v1012
        %v6157 = vmul.f32 %v6141, %v1012
        %v6158 = vsub.f32 %v6056, %v6142
        %v6159 = vsub.f32 %v6057, %v6143
        %v6160 = vsub.f32 %v6058, %v6144
        %v6161 = vsub.f32 %v6059, %v6145
        %v6162 = vsub.f32 %v6060, %v6146
        %v6163 = vsub.f32 %v6061, %v6147
        %v6164 = vsub.f32 %v6062, %v6148
        %v6165 = vsub.f32 %v6063, %v6149
        %v6166 = vsub.f32 %v6064, %v6150
        %v6167 = vsub.f32 %v6065, %v6151
        %v6168 = vsub.f32 %v6066, %v6152
        %v6169 = vsub.f32 %v6067, %v6153
        %v6170 = vsub.f32 %v6068, %v6154
        %v6171 = vsub.f32 %v6069, %v6155
        %v6172 = vsub.f32 %v6070, %v6156
        %v6173 = vsub.f32 %v6071, %v6157
        %v6174 = vmul.f32 %v6158, %v6158
        %v6175 = vmul.f32 %v6159, %v6159
        %v6176 = vmul.f32 %v6160, %v6160
        %v6177 = vmul.f32 %v6161, %v6161
        %v6178 = vmul.f32 %v6162, %v6162
        %v6179 = vmul.f32 %v6163, %v6163
        %v6180 = vmul.f32 %v6164, %v6164
        %v6181 = vmul.f32 %v6165, %v6165
        %v6182 = vmul.f32 %v6166, %v6166
        %v6183 = vmul.f32 %v6167, %v6167
        %v6184 = vmul.f32 %v6168, %v6168
        %v6185 = vmul.f32 %v6169, %v6169
        %v6186 = vmul.f32 %v6170, %v6170
        %v6187 = vmul.f32 %v6171, %v6171
        %v6188 = vmul.f32 %v6172, %v6172
        %v6189 = vmul.f32 %v6173, %v6173
        %6190 = vadd.xlane.f32.xlu0 %v6174
        %v6191 = vpop.xlane.xlu0 %6190
        %6192 = vadd.xlane.f32.xlu0 %v6175
        %v6193 = vpop.xlane.xlu0 %6192
        %6194 = vadd.xlane.f32.xlu0 %v6176
        %v6195 = vpop.xlane.xlu0 %6194
        %6196 = vadd.xlane.f32.xlu0 %v6177
        %v6197 = vpop.xlane.xlu0 %6196
        %6198 = vadd.xlane.f32.xlu0 %v6178
        %v6199 = vpop.xlane.xlu0 %6198
        %6200 = vadd.xlane.f32.xlu0 %v6179
        %v6201 = vpop.xlane.xlu0 %6200
        %6202 = vadd.xlane.f32.xlu0 %v6180
        %v6203 = vpop.xlane.xlu0 %6202
        %6204 = vadd.xlane.f32.xlu0 %v6181
        %v6205 = vpop.xlane.xlu0 %6204
        %6206 = vadd.xlane.f32.xlu0 %v6182
        %v6207 = vpop.xlane.xlu0 %6206
        %6208 = vadd.xlane.f32.xlu0 %v6183
        %v6209 = vpop.xlane.xlu0 %6208
        %6210 = vadd.xlane.f32.xlu0 %v6184
        %v6211 = vpop.xlane.xlu0 %6210
        %6212 = vadd.xlane.f32.xlu0 %v6185
        %v6213 = vpop.xlane.xlu0 %6212
        %6214 = vadd.xlane.f32.xlu0 %v6186
        %v6215 = vpop.xlane.xlu0 %6214
        %6216 = vadd.xlane.f32.xlu0 %v6187
        %v6217 = vpop.xlane.xlu0 %6216
        %6218 = vadd.xlane.f32.xlu0 %v6188
        %v6219 = vpop.xlane.xlu0 %6218
        %6220 = vadd.xlane.f32.xlu0 %v6189
        %v6221 = vpop.xlane.xlu0 %6220
        %v6222 = vmul.f32 %v6191, %v1012
        %v6223 = vmul.f32 %v6193, %v1012
        %v6224 = vmul.f32 %v6195, %v1012
        %v6225 = vmul.f32 %v6197, %v1012
        %v6226 = vmul.f32 %v6199, %v1012
        %v6227 = vmul.f32 %v6201, %v1012
        %v6228 = vmul.f32 %v6203, %v1012
        %v6229 = vmul.f32 %v6205, %v1012
        %v6230 = vmul.f32 %v6207, %v1012
        %v6231 = vmul.f32 %v6209, %v1012
        %v6232 = vmul.f32 %v6211, %v1012
        %v6233 = vmul.f32 %v6213, %v1012
        %v6234 = vmul.f32 %v6215, %v1012
        %v6235 = vmul.f32 %v6217, %v1012
        %v6236 = vmul.f32 %v6219, %v1012
        %v6237 = vmul.f32 %v6221, %v1012
        %v6238 = vadd.f32 %v6222, 1e-05
        %v6239 = vadd.f32 %v6223, 1e-05
        %v6240 = vadd.f32 %v6224, 1e-05
        %v6241 = vadd.f32 %v6225, 1e-05
        %v6242 = vadd.f32 %v6226, 1e-05
        %v6243 = vadd.f32 %v6227, 1e-05
        %v6244 = vadd.f32 %v6228, 1e-05
        %v6245 = vadd.f32 %v6229, 1e-05
        %v6246 = vadd.f32 %v6230, 1e-05
        %v6247 = vadd.f32 %v6231, 1e-05
        %v6248 = vadd.f32 %v6232, 1e-05
        %v6249 = vadd.f32 %v6233, 1e-05
        %v6250 = vadd.f32 %v6234, 1e-05
        %v6251 = vadd.f32 %v6235, 1e-05
        %v6252 = vadd.f32 %v6236, 1e-05
        %v6253 = vadd.f32 %v6237, 1e-05
        %v6254 = vrsqrt.pop %v6238
        %v6255 = vrsqrt.pop %v6239
        %v6256 = vrsqrt.pop %v6240
        %v6257 = vrsqrt.pop %v6241
        %v6258 = vrsqrt.pop %v6242
        %v6259 = vrsqrt.pop %v6243
        %v6260 = vrsqrt.pop %v6244
        %v6261 = vrsqrt.pop %v6245
        %v6262 = vrsqrt.pop %v6246
        %v6263 = vrsqrt.pop %v6247
        %v6264 = vrsqrt.pop %v6248
        %v6265 = vrsqrt.pop %v6249
        %v6266 = vrsqrt.pop %v6250
        %v6267 = vrsqrt.pop %v6251
        %v6268 = vrsqrt.pop %v6252
        %v6269 = vrsqrt.pop %v6253
        %v6270 = vmul.f32 %v6158, %v6254
        %v6271 = vmul.f32 %v6159, %v6255
        %v6272 = vmul.f32 %v6160, %v6256
        %v6273 = vmul.f32 %v6161, %v6257
        %v6274 = vmul.f32 %v6162, %v6258
        %v6275 = vmul.f32 %v6163, %v6259
        %v6276 = vmul.f32 %v6164, %v6260
        %v6277 = vmul.f32 %v6165, %v6261
        %v6278 = vmul.f32 %v6166, %v6262
        %v6279 = vmul.f32 %v6167, %v6263
        %v6280 = vmul.f32 %v6168, %v6264
        %v6281 = vmul.f32 %v6169, %v6265
        %v6282 = vmul.f32 %v6170, %v6266
        %v6283 = vmul.f32 %v6171, %v6267
        %v6284 = vmul.f32 %v6172, %v6268
        %v6285 = vmul.f32 %v6173, %v6269
        %v6287 = vlaneseq
        %v6288 = vshrl.u32 %v6287, 7
        %v6289 = vsub.s32 0, %v6288
        %v6290 = vrot.slane %v6092, %v6289
        %v6292 = vmul.f32 %v6270, %v6290
        %v6293 = vmul.f32 %v6271, %v6290
        %v6294 = vmul.f32 %v6272, %v6290
        %v6295 = vmul.f32 %v6273, %v6290
        %v6296 = vmul.f32 %v6274, %v6290
        %v6297 = vmul.f32 %v6275, %v6290
        %v6298 = vmul.f32 %v6276, %v6290
        %v6299 = vmul.f32 %v6277, %v6290
        %v6300 = vmul.f32 %v6278, %v6290
        %v6301 = vmul.f32 %v6279, %v6290
        %v6302 = vmul.f32 %v6280, %v6290
        %v6303 = vmul.f32 %v6281, %v6290
        %v6304 = vmul.f32 %v6282, %v6290
        %v6305 = vmul.f32 %v6283, %v6290
        %v6306 = vmul.f32 %v6284, %v6290
        %v6307 = vmul.f32 %v6285, %v6290
        %v6309 = vlaneseq
        %v6310 = vshrl.u32 %v6309, 7
        %v6311 = vsub.s32 0, %v6310
        %v6312 = vrot.slane %v6093, %v6311
        %v6314 = vadd.f32 %v6292, %v6312
        %v6315 = vadd.f32 %v6293, %v6312
        %v6316 = vadd.f32 %v6294, %v6312
        %v6317 = vadd.f32 %v6295, %v6312
        %v6318 = vadd.f32 %v6296, %v6312
        %v6319 = vadd.f32 %v6297, %v6312
        %v6320 = vadd.f32 %v6298, %v6312
        %v6321 = vadd.f32 %v6299, %v6312
        %v6322 = vadd.f32 %v6300, %v6312
        %v6323 = vadd.f32 %v6301, %v6312
        %v6324 = vadd.f32 %v6302, %v6312
        %v6325 = vadd.f32 %v6303, %v6312
        %v6326 = vadd.f32 %v6304, %v6312
        %v6327 = vadd.f32 %v6305, %v6312
        %v6328 = vadd.f32 %v6306, %v6312
        %v6329 = vadd.f32 %v6307, %v6312
        %v6330 = vpack.c.bf16 %v6315, %v6314
        %v6331 = vpack.c.bf16 %v6317, %v6316
        %v6332 = vpack.c.bf16 %v6319, %v6318
        %v6333 = vpack.c.bf16 %v6321, %v6320
        %v6334 = vpack.c.bf16 %v6323, %v6322
        %v6335 = vpack.c.bf16 %v6325, %v6324
        %v6336 = vpack.c.bf16 %v6327, %v6326
        %v6337 = vpack.c.bf16 %v6329, %v6328
        %v6354 = vunpack.c.l.b16 %v6094
        %v6355 = vunpack.c.l.b16 %v6095
        %v6356 = vunpack.c.l.b16 %v6096
        %v6357 = vunpack.c.l.b16 %v6097
        %v6358 = vunpack.c.l.b16 %v6098
        %v6359 = vunpack.c.l.b16 %v6099
        %v6360 = vunpack.c.l.b16 %v6100
        %v6361 = vunpack.c.l.b16 %v6101
        %v6362 = vunpack.c.l.b16 %v6102
        %v6363 = vunpack.c.l.b16 %v6103
        %v6364 = vunpack.c.l.b16 %v6104
        %v6365 = vunpack.c.l.b16 %v6105
        %v6366 = vunpack.c.l.b16 %v6106
        %v6367 = vunpack.c.l.b16 %v6107
        %v6368 = vunpack.c.l.b16 %v6108
        %v6369 = vunpack.c.l.b16 %v6109
        %v6370 = vpack.c.b16 %v6355, %v6354
        %v6371 = vpack.c.b16 %v6357, %v6356
        %v6372 = vpack.c.b16 %v6359, %v6358
        %v6373 = vpack.c.b16 %v6361, %v6360
        %v6374 = vpack.c.b16 %v6363, %v6362
        %v6375 = vpack.c.b16 %v6365, %v6364
        %v6376 = vpack.c.b16 %v6367, %v6366
        %v6377 = vpack.c.b16 %v6369, %v6368
        %6386 = vmatprep.subr.bf16.mxu0 0
        %6387 = vmatpush1.bf16.msra.mxu0 %v6370
        %6388 = vmatprep.subr.bf16.mxu0 0
        %6389 = vmatpush1.bf16.msra.mxu0 %v6371
        %6390 = vmatprep.subr.bf16.mxu0 0
        %6391 = vmatpush1.bf16.msra.mxu0 %v6372
        %6392 = vmatprep.subr.bf16.mxu0 0
        %6393 = vmatpush1.bf16.msra.mxu0 %v6373
        %6394 = vmatprep.subr.bf16.mxu0 0
        %6395 = vmatpush1.bf16.msra.mxu0 %v6374
        %6396 = vmatprep.subr.bf16.mxu0 0
        %6397 = vmatpush1.bf16.msra.mxu0 %v6375
        %6398 = vmatprep.subr.bf16.mxu0 0
        %6399 = vmatpush1.bf16.msra.mxu0 %v6376
        %6400 = vmatprep.subr.bf16.mxu0 0
        %6401 = vmatpush1.bf16.msra.mxu0 %v6377
        %6402 = vmatprep.subr.bf16.mxu0 0
        %6403 = vmatpush1.bf16.msra.mxu0 0
        %6404 = vmatprep.subr.bf16.mxu0 0
        %6405 = vmatpush1.bf16.msra.mxu0 0
        %6406 = vmatprep.subr.bf16.mxu0 0
        %6407 = vmatpush1.bf16.msra.mxu0 0
        %6408 = vmatprep.subr.bf16.mxu0 0
        %6409 = vmatpush1.bf16.msra.mxu0 0
        %6410 = vmatprep.subr.bf16.mxu0 0
        %6411 = vmatpush1.bf16.msra.mxu0 0
        %6412 = vmatprep.subr.bf16.mxu0 0
        %6413 = vmatpush1.bf16.msra.mxu0 0
        %6414 = vmatprep.subr.bf16.mxu0 0
        %6415 = vmatpush1.bf16.msra.mxu0 0
        %6416 = vmatprep.subr.bf16.mxu0 0
        %6417 = vmatpush1.bf16.msra.mxu0 0
        %6418 = vmatprep.mubr.bf16.mxu0 0
        %6419 = vmatmul.mubr.bf16.gmra.mrb[0].mxu0 %v6330
        %v6420 = vpop.f32.mrb[0].mxu0
        %v6421 = vadd.f32 0.0, %v6420
        %v6422 = vpop.f32.mrb[0].mxu0
        %v6423 = vpop.f32.mrb[0].mxu0
        %v6424 = vadd.f32 0.0, %v6423
        %v6425 = vpop.f32.mrb[0].mxu0
        %6426 = vmatprep.mubr.bf16.mxu0 0
        %6427 = vmatmul.mubr.bf16.gmra.mrb[0].mxu0 %v6331
        %v6428 = vpop.f32.mrb[0].mxu0
        %v6429 = vadd.f32 0.0, %v6428
        %v6430 = vpop.f32.mrb[0].mxu0
        %v6431 = vpop.f32.mrb[0].mxu0
        %v6432 = vadd.f32 0.0, %v6431
        %v6433 = vpop.f32.mrb[0].mxu0
        %6434 = vmatprep.mubr.bf16.mxu0 0
        %6435 = vmatmul.mubr.bf16.gmra.mrb[0].mxu0 %v6332
        %v6436 = vpop.f32.mrb[0].mxu0
        %v6437 = vadd.f32 0.0, %v6436
        %v6438 = vpop.f32.mrb[0].mxu0
        %v6439 = vpop.f32.mrb[0].mxu0
        %v6440 = vadd.f32 0.0, %v6439
        %v6441 = vpop.f32.mrb[0].mxu0
        %6442 = vmatprep.mubr.bf16.mxu0 0
        %6443 = vmatmul.mubr.bf16.gmra.mrb[0].mxu0 %v6333
        %v6444 = vpop.f32.mrb[0].mxu0
        %v6445 = vadd.f32 0.0, %v6444
        %v6446 = vpop.f32.mrb[0].mxu0
        %v6447 = vpop.f32.mrb[0].mxu0
        %v6448 = vadd.f32 0.0, %v6447
        %v6449 = vpop.f32.mrb[0].mxu0
        %6450 = vmatprep.mubr.bf16.mxu0 0
        %6451 = vmatmul.mubr.bf16.gmra.mrb[0].mxu0 %v6334
        %v6452 = vpop.f32.mrb[0].mxu0
        %v6453 = vadd.f32 0.0, %v6452
        %v6454 = vpop.f32.mrb[0].mxu0
        %v6455 = vpop.f32.mrb[0].mxu0
        %v6456 = vadd.f32 0.0, %v6455
        %v6457 = vpop.f32.mrb[0].mxu0
        %6458 = vmatprep.mubr.bf16.mxu0 0
        %6459 = vmatmul.mubr.bf16.gmra.mrb[0].mxu0 %v6335
        %v6460 = vpop.f32.mrb[0].mxu0
        %v6461 = vadd.f32 0.0, %v6460
        %v6462 = vpop.f32.mrb[0].mxu0
        %v6463 = vpop.f32.mrb[0].mxu0
        %v6464 = vadd.f32 0.0, %v6463
        %v6465 = vpop.f32.mrb[0].mxu0
        %6466 = vmatprep.mubr.bf16.mxu0 0
        %6467 = vmatmul.mubr.bf16.gmra.mrb[0].mxu0 %v6336
        %v6468 = vpop.f32.mrb[0].mxu0
        %v6469 = vadd.f32 0.0, %v6468
        %v6470 = vpop.f32.mrb[0].mxu0
        %v6471 = vpop.f32.mrb[0].mxu0
        %v6472 = vadd.f32 0.0, %v6471
        %v6473 = vpop.f32.mrb[0].mxu0
        %6474 = vmatprep.mubr.bf16.mxu0 0
        %6475 = vmatmul.mubr.bf16.gmra.mrb[0].mxu0 %v6337
        %v6476 = vpop.f32.mrb[0].mxu0
        %v6477 = vadd.f32 0.0, %v6476
        %v6478 = vpop.f32.mrb[0].mxu0
        %v6479 = vpop.f32.mrb[0].mxu0
        %v6480 = vadd.f32 0.0, %v6479
        %v6481 = vpop.f32.mrb[0].mxu0
        %6482 = vdwg.mxu0
        %6483 = vst [vmem:[%s765] sm:$0xff] %v6421
        %6484 = vst [vmem:[%s765 + $0x8] sm:$0xff] %v6424
        %6485 = vst [vmem:[%s765 + $0x10] sm:$0xff] %v6429
        %6486 = vst [vmem:[%s765 + $0x18] sm:$0xff] %v6432
        %6487 = vst [vmem:[%s765 + $0x20] sm:$0xff] %v6437
        %6488 = vst [vmem:[%s765 + $0x28] sm:$0xff] %v6440
        %6489 = vst [vmem:[%s765 + $0x30] sm:$0xff] %v6445
        %6490 = vst [vmem:[%s765 + $0x38] sm:$0xff] %v6448
        %6491 = vst [vmem:[%s765 + $0x40] sm:$0xff] %v6453
        %6492 = vst [vmem:[%s765 + $0x48] sm:$0xff] %v6456
        %6493 = vst [vmem:[%s765 + $0x50] sm:$0xff] %v6461
        %6494 = vst [vmem:[%s765 + $0x58] sm:$0xff] %v6464
        %6495 = vst [vmem:[%s765 + $0x60] sm:$0xff] %v6469
        %6496 = vst [vmem:[%s765 + $0x68] sm:$0xff] %v6472
        %6497 = vst [vmem:[%s765 + $0x70] sm:$0xff] %v6477
        %6498 = vst [vmem:[%s765 + $0x78] sm:$0xff] %v6480
      $region96: #{_lambda_.1} parent=87 // pred_fallthru
        _
      %s6499 = smul.u32 2, %s32
      %p6500 = scmp.lt.s32.totalorder %s6499, 3
      %s6501 = scalar_select %p6500, %s6499, 3
      %s6502 = smul.addr %s6501, 8
      %s6503 = smul.addr %s6502, 8
      %s6504 = scalar_lea.vmem %s17, %s6503
      // Predicated region
      $region97: #{_lambda_.1} parent=87 // pred_check
        %p6505 = pneg %p480
      $region98: #{_lambda_.1} parent=87 // pred_check_branch
        %6507 = sbr.rel (%p6505) target = $region100
      $region99: #{_lambda_.1} parent=87 // pred_region
        %s6508 = smul.u32 2, %s32
      $region100: #{_lambda_.1} parent=87 // pred_fallthru
        _
    $region88: #{_lambda_.1} parent=5 // pred_fallthru
      _
    %p6509 = scmp.le.s32.totalorder 2, %s23
    // Predicated region
    $region101: #{_lambda_.1} parent=5 // pred_check
      %p6510 = pneg %p6509
    $region102: #{_lambda_.1} parent=5 // pred_check_branch
      %6512 = sbr.rel (%p6510) target = $region104
    $region103: #{_lambda_.1} parent=5 // pred_region
      %s6513 = ssub.s32 %s23, 2
      // Predicated region
      $region105: #{_lambda_.1} parent=103 // pred_check
        %p6514 = pneg %p486
      $region106: #{_lambda_.1} parent=103 // pred_check_branch
        %6516 = sbr.rel (%p6514) target = $region108
      $region107: #{_lambda_.1} parent=103 // pred_region
        %s6517 = smul.u32 2, %s34
        %p6518 = scmp.lt.s32.totalorder %s6517, 3
        %s6519 = scalar_select %p6518, %s6517, 3
        %s6520 = smul.addr %s6519, 8
        %s6521 = smul.addr %s6520, 8
        %s6522 = scalar_lea.vmem %s17, %s6521
      $region108: #{_lambda_.1} parent=103 // pred_fallthru
        _
    $region104: #{_lambda_.1} parent=5 // pred_fallthru
      _
  $region6: #{_lambda_.1} parent=0 // loop_footer
    %s27 = sadd.s32 1, %s23
  $region7: #{_lambda_.1} parent=0 // loop_footer_branch
    %22 = sbr.rel target = $region3
  $region8: #{_lambda_.1} parent=0 // loop_exit
    _

</llo_original>
